<compile_context>
chip_gen: v7x
topology: tpu7x:2x2x1
jax: 0.10.0
libtpu: 0.0.40
codegen_flags: <defaults>
</compile_context>

<pallas_src>
import functools
import math

import jax
import jax.numpy as jnp
from jax.experimental import pallas as pl
from jax.experimental.pallas import tpu as pltpu


# ----------------------------------------------------------------------------
# Pallas kernel: fused bidirectional LSTM recurrence over pre-projected gates.
# grid = (T // Tb,); both direction chains advance inside each grid step.
# ----------------------------------------------------------------------------
def _bilstm_kernel(gxf_ref, gxb_ref, whf_ref, whb_ref, len_ref,
                   outf_ref, outb_ref, hf_sc, cf_sc, hb_sc, cb_sc, *, Tb, H):
    i = pl.program_id(0)
    nb = pl.num_programs(0)

    @pl.when(i == 0)                       # new sequence -> reset both chains
    def _():
        hf_sc[...] = jnp.zeros_like(hf_sc)
        cf_sc[...] = jnp.zeros_like(cf_sc)
        hb_sc[...] = jnp.zeros_like(hb_sc)
        cb_sc[...] = jnp.zeros_like(cb_sc)

    whf = whf_ref[...]                     # (Hp, 4Hp) bf16, VMEM-resident
    whb = whb_ref[...]
    lens = len_ref[...]                    # (B, 1) int32
    t0f = i * Tb                           # forward block holds times  [t0f, t0f+Tb)
    t0b = (nb - 1 - i) * Tb                # backward block holds times [t0b, t0b+Tb)

    h_f = hf_sc[...]
    c_f = cf_sc[...]
    h_b = hb_sc[...]
    c_b = cb_sc[...]

    def cell(gates, h_prev, c_prev, t_abs):
        # gate order (i | f | o | g): one sigmoid slab + one tanh slab.
        sig = jax.nn.sigmoid(gates[:, :3 * H])
        i_g = sig[:, 0 * H:1 * H]
        f_g = sig[:, 1 * H:2 * H]
        o_g = sig[:, 2 * H:3 * H]
        g_g = jnp.tanh(gates[:, 3 * H:4 * H])
        c_new = f_g * c_prev + i_g * g_g
        h_new = o_g * jnp.tanh(c_new)
        valid = lens > t_abs               # packed-sequence mask (B, 1)
        return (jnp.where(valid, h_new, h_prev),
                jnp.where(valid, c_new, c_prev),
                jnp.where(valid, h_new, 0.0))

    # Static unroll (Tb is capped small); the two chains are independent, so
    # the scheduler interleaves their matmul/EUP latencies.
    for s in range(Tb):
        sb = Tb - 1 - s
        gf = gxf_ref[s].astype(jnp.float32) + jnp.dot(
            h_f.astype(whf.dtype), whf, preferred_element_type=jnp.float32)
        gb = gxb_ref[sb].astype(jnp.float32) + jnp.dot(
            h_b.astype(whb.dtype), whb, preferred_element_type=jnp.float32)
        h_f, c_f, o_f = cell(gf, h_f, c_f, t0f + s)
        h_b, c_b, o_b = cell(gb, h_b, c_b, t0b + sb)
        outf_ref[s] = o_f
        outb_ref[sb] = o_b

    hf_sc[...] = h_f
    cf_sc[...] = c_f
    hb_sc[...] = h_b
    cb_sc[...] = c_b


def _bilstm_pallas(gx, w_hh, len_col, Tb):
    """Fused bidirectional LSTM recurrence (both directions per grid step).

    gx:      (2, Tp, B, 4Hp) bf16  pre-projected x @ W_ih + b, per direction
    w_hh:    (2, Hp, 4Hp)    bf16  recurrent weights (gate order i|f|o|g)
    len_col: (B, 1)          int32 sequence lengths
    returns  (2, Tp, B, Hp)  f32   per-direction hidden states (0 at padding)
    """
    _, Tp, B, G = gx.shape
    Hp = w_hh.shape[1]
    nb = Tp // Tb

    kernel = functools.partial(_bilstm_kernel, Tb=Tb, H=Hp)
    out_f, out_b = pl.pallas_call(
        kernel,
        out_shape=(jax.ShapeDtypeStruct((Tp, B, Hp), jnp.float32),
                   jax.ShapeDtypeStruct((Tp, B, Hp), jnp.float32)),
        grid_spec=pltpu.PrefetchScalarGridSpec(
            num_scalar_prefetch=0,
            grid=(nb,),
            in_specs=[
                # gx: forward chain consumes block i, backward chain block nb-1-i
                pl.BlockSpec((None, Tb, B, G), lambda i: (0, i, 0, 0)),
                pl.BlockSpec((None, Tb, B, G), lambda i: (1, nb - 1 - i, 0, 0)),
                # recurrent weights, one per direction, VMEM resident
                pl.BlockSpec((None, Hp, G), lambda i: (0, 0, 0)),
                pl.BlockSpec((None, Hp, G), lambda i: (1, 0, 0)),
                # lengths kept as a tiny resident VMEM operand (B, 1) int32
                pl.BlockSpec((B, 1), lambda i: (0, 0)),
            ],
            out_specs=[
                pl.BlockSpec((Tb, B, Hp), lambda i: (i, 0, 0)),
                pl.BlockSpec((Tb, B, Hp), lambda i: (nb - 1 - i, 0, 0)),
            ],
            scratch_shapes=[
                pltpu.VMEM((B, Hp), jnp.float32),   # h forward
                pltpu.VMEM((B, Hp), jnp.float32),   # c forward
                pltpu.VMEM((B, Hp), jnp.float32),   # h backward
                pltpu.VMEM((B, Hp), jnp.float32),   # c backward
            ],
        ),
        compiler_params=pltpu.CompilerParams(
            dimension_semantics=("arbitrary",)),    # carried h/c -> sequential
    )(gx, gx, w_hh, w_hh, len_col)
    return jnp.stack([out_f, out_b], axis=0)


# ----------------------------------------------------------------------------
# Pure-JAX reference for the same recurrence (lax.scan) — numerical check only.
# ----------------------------------------------------------------------------
def _bilstm_ref(gx, w_hh, len_col, Tb):
    del Tb
    _, Tp, B, _ = gx.shape
    H = w_hh.shape[1]
    lens = len_col

    def run_dir(gx_d, whh_d, reverse):
        def step(carry, inp):
            h_prev, c_prev = carry
            gx_t, t = inp
            gates = gx_t.astype(jnp.float32) + jnp.dot(
                h_prev.astype(whh_d.dtype), whh_d,
                preferred_element_type=jnp.float32)
            sig = jax.nn.sigmoid(gates[:, :3 * H])
            i_g, f_g, o_g = sig[:, :H], sig[:, H:2 * H], sig[:, 2 * H:3 * H]
            g_g = jnp.tanh(gates[:, 3 * H:])
            c_new = f_g * c_prev + i_g * g_g
            h_new = o_g * jnp.tanh(c_new)
            valid = lens > t
            return ((jnp.where(valid, h_new, h_prev),
                     jnp.where(valid, c_new, c_prev)),
                    jnp.where(valid, h_new, 0.0))

        init = (jnp.zeros((B, H), jnp.float32), jnp.zeros((B, H), jnp.float32))
        _, outs = jax.lax.scan(step, init, (gx_d, jnp.arange(Tp)),
                               reverse=reverse)
        return outs

    return jnp.stack([run_dir(gx[0], w_hh[0], False),
                      run_dir(gx[1], w_hh[1], True)], axis=0)


# ----------------------------------------------------------------------------
# Glue (plain JAX): padding helpers, pre-projection, layers, pyramid stages.
# ----------------------------------------------------------------------------
def _round_up(x, m):
    return -(-x // m) * m


def _pad_gate_cols(w, H, Hp):
    """Pad the trailing 4H gate axis to 4Hp, preserving the [i|f|o|g] blocks."""
    if Hp == H:
        return w
    shp = w.shape
    w = w.reshape(shp[:-1] + (4, H))
    w = jnp.pad(w, [(0, 0)] * (w.ndim - 1) + [(0, Hp - H)])
    return w.reshape(shp[:-1] + (4 * Hp,))


def _choose_tb(T, B, G, Hp, max_tb=16, budget_bytes=8 << 20):
    """Largest time block fitting a conservative VMEM budget on any TPU gen."""
    per_step = 2 * 2 * (B * G * 2 + B * Hp * 4)   # dirs x dbl-buf x (gx bf16 + out f32)
    return int(max(1, min(max_tb, T, budget_bytes // max(per_step, 1))))


def bilstm_stack(x_tbd, lengths, layer_params, core):
    """Multi-layer bidirectional LSTM on a length-masked, time-major batch.

    x_tbd: (T, B, D) f32 time-major.  Returns (T, B, 2H) time-major.
    """
    T, B, _ = x_tbd.shape
    H = layer_params[0]["w_hh"].shape[1]
    Hp = _round_up(H, 32)                 # 4*Hp is a multiple of 128 lanes
    G = 4 * Hp
    Tb = _choose_tb(T, B, G, Hp)
    Tp = _round_up(T, Tb)
    if Tp != T:
        x_tbd = jnp.pad(x_tbd, ((0, Tp - T), (0, 0), (0, 0)))
    len_col = lengths.reshape(B, 1).astype(jnp.int32)
    bf16 = jnp.bfloat16

    pair = None                           # (2, Tp, B, Hp) from previous layer
    for lp in layer_params:
        w_ih, w_hh, b = lp["w_ih"], lp["w_hh"], lp["b"]
        b_p = _pad_gate_cols(b, H, Hp)                           # (2, 4Hp)
        w_hh_p = _pad_gate_cols(w_hh, H, Hp)                     # (2, H, 4Hp)
        w_hh_p = jnp.pad(w_hh_p, ((0, 0), (0, Hp - H), (0, 0)))  # (2, Hp, 4Hp)
        if pair is None:                  # first layer: plain (Tp, B, D) input
            w_ih_p = _pad_gate_cols(w_ih, H, Hp)                 # (2, D, 4Hp)
            gx = jnp.einsum("tbd,zdg->ztbg",
                            x_tbd.astype(bf16), w_ih_p.astype(bf16),
                            preferred_element_type=jnp.float32)
        else:                             # consume direction-stacked output
            w4 = w_ih.reshape(2, 2, H, 4 * H)        # (dir, prev-dir, H, 4H)
            w4 = _pad_gate_cols(w4, H, Hp)                             # (2,2,H,4Hp)
            w4 = jnp.pad(w4, ((0, 0), (0, 0), (0, Hp - H), (0, 0)))    # (2,2,Hp,4Hp)
            gx = jnp.einsum("ptbh,zphg->ztbg",
                            pair.astype(bf16), w4.astype(bf16),
                            preferred_element_type=jnp.float32)
        gx = (gx + b_p[:, None, None, :]).astype(bf16)   # bf16 HBM stream
        pair = core(gx, w_hh_p.astype(bf16), len_col, Tb)
        # TODO(synk): inter-layer dropout(0.2) skipped (inference semantics).

    out = pair[..., :H].transpose(1, 2, 0, 3).reshape(Tp, B, 2 * H)
    return out[:T]


def pblstm_stage(h_tbd, lengths, max_len, layer_params, core):
    """One pBLSTM: fold frame pairs into features, clamp lengths, 2-layer biLSTM.

    h_tbd: (T, B, D) time-major.  max_len: traced scalar = current max(lengths);
    it emulates pad_packed_sequence's dynamic trimming without a host sync.
    """
    T, B, D = h_tbd.shape
    if T % 2 == 1:
        h_tbd = jnp.pad(h_tbd, ((0, 1), (0, 0), (0, 0)))
        T += 1
    h_tbd = (h_tbd.reshape(T // 2, 2, B, D)
                  .transpose(0, 2, 1, 3)
                  .reshape(T // 2, B, 2 * D))
    max_len = (max_len + 1) // 2          # ceil(dynamic_T / 2)
    # NOTE: reference clamps (does NOT halve) lengths — reproduced faithfully.
    lengths = jnp.minimum(lengths, max_len)
    out = bilstm_stack(h_tbd, lengths, layer_params, core)
    return out, lengths, max_len


def listener_forward(x, lx, params, core=_bilstm_pallas):
    """x: (B, T, 27) f32, lx: (B,) int lengths -> (output, output_length).

    output has the static pyramid-reduced time length; frames past the dynamic
    max(output_length) are exactly zero (pad_packed's pad value), so the valid
    region matches the PyTorch reference.
    """
    B = x.shape[0]
    lengths = lx.astype(jnp.int32)
    Bp = _round_up(B, 8)                  # sublane-dense batch for the kernel
    if Bp != B:
        x = jnp.pad(x, ((0, Bp - B), (0, 0), (0, 0)))
        lengths = jnp.pad(lengths, (0, Bp - B))   # zero-length rows stay zero
    h = jnp.transpose(x, (1, 0, 2))                        # time-major (once)
    h = bilstm_stack(h, lengths, params["lstm"], core)     # (T, B, 2H)
    max_len = jnp.max(lengths)
    for pb in params["pblstm"]:
        h, lengths, max_len = pblstm_stage(h, lengths, max_len, pb, core)
    return jnp.transpose(h, (1, 0, 2))[:B], lengths[:B]    # batch-first (once)


# ----------------------------------------------------------------------------
# Deterministic parameter construction (PyTorch-style uniform(-1/sqrt(H), ...)).
# Weights stored transposed vs PyTorch, stacked over [fwd, bwd] direction, with
# gate column order (i | f | o | g):
#   w_ih: (2, D_in, 4H), w_hh: (2, H, 4H), b: (2, 4H) (= b_ih + b_hh).
# ----------------------------------------------------------------------------
def make_bilstm_params(key, input_size, hidden_size, num_layers):
    scale = 1.0 / math.sqrt(hidden_size)
    params = []
    for layer in range(num_layers):
        d_in = input_size if layer == 0 else 2 * hidden_size
        key, k0, k1, k2 = jax.random.split(key, 4)

        def u(k, shape):
            return jax.random.uniform(k, shape, jnp.float32, -scale, scale)

        params.append({
            "w_ih": u(k0, (2, d_in, 4 * hidden_size)),
            "w_hh": u(k1, (2, hidden_size, 4 * hidden_size)),
            "b":    u(k2, (2, 4 * hidden_size)),
        })
    return params, key


if __name__ == "__main__":
    hidden_dim = 16
    B, T, F_IN = 2, 16, 27

    key = jax.random.PRNGKey(0)
    key, kx = jax.random.split(key)
    x = jax.random.normal(kx, (B, T, F_IN), jnp.float32)
    lx = jnp.array([16, 11], dtype=jnp.int32)

    lstm_params, key = make_bilstm_params(key, F_IN, hidden_dim, num_layers=3)
    pblstm_params = []
    for _ in range(3):
        p, key = make_bilstm_params(key, hidden_dim * 4, hidden_dim, num_layers=2)
        pblstm_params.append(p)
    params = {"lstm": lstm_params, "pblstm": pblstm_params}

    # Fully jittable (no host syncs).
    fwd = jax.jit(lambda xx, ll, pp: listener_forward(xx, ll, pp, core=_bilstm_pallas))
    out, out_len = fwd(x, lx, params)
    out = jax.block_until_ready(out)
    out_len = jax.block_until_ready(out_len)

    # Pure-JAX (lax.scan) reference for the recurrence, same glue.
    out_ref, len_ref = listener_forward(x, lx, params, core=_bilstm_ref)
    out_ref = jax.block_until_ready(out_ref)

    # T is halved 3 times (16 -> 8 -> 4 -> 2); features = 2 * hidden_dim.
    assert out.shape == (B, 2, 2 * hidden_dim), out.shape
    assert out.dtype == jnp.float32
    assert out_len.shape == (B,)
    assert bool(jnp.array_equal(out_len, len_ref))
    assert bool(jnp.allclose(out, out_ref, atol=1e-2, rtol=1e-2))
    print("KERNEL_OK")
</pallas_src>

<mosaic_0001>
module attributes {stable_mosaic.version = 11 : i64} {
  func.func @_bilstm_kernel(%arg0: i32, %arg1: memref<1x16x8x128xbf16, #tpu.memory_space<vmem>>, %arg2: memref<1x16x8x128xbf16, #tpu.memory_space<vmem>>, %arg3: memref<1x32x128xbf16, #tpu.memory_space<vmem>>, %arg4: memref<1x32x128xbf16, #tpu.memory_space<vmem>>, %arg5: memref<8x1xi32, #tpu.memory_space<vmem>>, %arg6: memref<16x8x32xf32, #tpu.memory_space<vmem>>, %arg7: memref<16x8x32xf32, #tpu.memory_space<vmem>>, %arg8: memref<8x32xf32, #tpu.memory_space<vmem>>, %arg9: memref<8x32xf32, #tpu.memory_space<vmem>>, %arg10: memref<8x32xf32, #tpu.memory_space<vmem>>, %arg11: memref<8x32xf32, #tpu.memory_space<vmem>>) attributes {dimension_semantics = [#tpu.dimension_semantics<arbitrary>], iteration_bounds = array<i64: 1>, scalar_prefetch = 0 : i64, scratch_operands = 4 : i64, tpu.core_type = #tpu.core_type<tc>, window_params = [{transform_indices = @transform_0, window_bounds = array<i64: 1, 16, 8, 128>}, {transform_indices = @transform_1, window_bounds = array<i64: 1, 16, 8, 128>}, {transform_indices = @transform_2, window_bounds = array<i64: 1, 32, 128>}, {transform_indices = @transform_3, window_bounds = array<i64: 1, 32, 128>}, {pipeline_mode = #tpu.pipeline_mode<synchronous>, transform_indices = @transform_4, window_bounds = array<i64: 8, 1>}, {transform_indices = @transform_5, window_bounds = array<i64: 16, 8, 32>}, {transform_indices = @transform_6, window_bounds = array<i64: 16, 8, 32>}]} {
    %c0_i32 = arith.constant 0 : i32
    %0 = arith.cmpi eq, %arg0, %c0_i32 : i32
    %1 = arith.extui %0 : i1 to i32
    %c0_i32_0 = arith.constant 0 : i32
    %2 = arith.cmpi ne, %1, %c0_i32_0 : i32
    scf.if %2 {
      %cst_347 = arith.constant 0.000000e+00 : f32
      %1235 = vector.broadcast %cst_347 : f32 to vector<8x32xf32>
      %c0_348 = arith.constant 0 : index
      %c0_349 = arith.constant 0 : index
      %1236 = vector.load %arg8[%c0_348, %c0_349] : memref<8x32xf32, #tpu.memory_space<vmem>>, vector<8x32xf32>
      tpu.vector_store %arg8[%c0_348, %c0_349], %1235 {strides = array<i32>} : memref<8x32xf32, #tpu.memory_space<vmem>>, vector<8x32xf32>,
      %cst_350 = arith.constant 0.000000e+00 : f32
      %1237 = vector.broadcast %cst_350 : f32 to vector<8x32xf32>
      %c0_351 = arith.constant 0 : index
      %c0_352 = arith.constant 0 : index
      %1238 = vector.load %arg9[%c0_351, %c0_352] : memref<8x32xf32, #tpu.memory_space<vmem>>, vector<8x32xf32>
      tpu.vector_store %arg9[%c0_351, %c0_352], %1237 {strides = array<i32>} : memref<8x32xf32, #tpu.memory_space<vmem>>, vector<8x32xf32>,
      %cst_353 = arith.constant 0.000000e+00 : f32
      %1239 = vector.broadcast %cst_353 : f32 to vector<8x32xf32>
      %c0_354 = arith.constant 0 : index
      %c0_355 = arith.constant 0 : index
      %1240 = vector.load %arg10[%c0_354, %c0_355] : memref<8x32xf32, #tpu.memory_space<vmem>>, vector<8x32xf32>
      tpu.vector_store %arg10[%c0_354, %c0_355], %1239 {strides = array<i32>} : memref<8x32xf32, #tpu.memory_space<vmem>>, vector<8x32xf32>,
      %cst_356 = arith.constant 0.000000e+00 : f32
      %1241 = vector.broadcast %cst_356 : f32 to vector<8x32xf32>
      %c0_357 = arith.constant 0 : index
      %c0_358 = arith.constant 0 : index
      %1242 = vector.load %arg11[%c0_357, %c0_358] : memref<8x32xf32, #tpu.memory_space<vmem>>, vector<8x32xf32>
      tpu.vector_store %arg11[%c0_357, %c0_358], %1241 {strides = array<i32>} : memref<8x32xf32, #tpu.memory_space<vmem>>, vector<8x32xf32>,
    } else {
    }
    %c0 = arith.constant 0 : index
    %c0_1 = arith.constant 0 : index
    %c0_2 = arith.constant 0 : index
    %3 = vector.load %arg3[%c0, %c0_1, %c0_2] : memref<1x32x128xbf16, #tpu.memory_space<vmem>>, vector<1x32x128xbf16>
    %4 = vector.shape_cast %3 : vector<1x32x128xbf16> to vector<32x128xbf16>
    %c0_3 = arith.constant 0 : index
    %c0_4 = arith.constant 0 : index
    %c0_5 = arith.constant 0 : index
    %5 = vector.load %arg4[%c0_3, %c0_4, %c0_5] : memref<1x32x128xbf16, #tpu.memory_space<vmem>>, vector<1x32x128xbf16>
    %6 = vector.shape_cast %5 : vector<1x32x128xbf16> to vector<32x128xbf16>
    %c0_6 = arith.constant 0 : index
    %c0_7 = arith.constant 0 : index
    %7 = vector.load %arg5[%c0_6, %c0_7] : memref<8x1xi32, #tpu.memory_space<vmem>>, vector<8x1xi32>
    %c16_i32 = arith.constant 16 : i32
    %8 = arith.muli %arg0, %c16_i32 : i32
    %c0_i32_8 = arith.constant 0 : i32
    %9 = arith.subi %c0_i32_8, %arg0 : i32
    %c16_i32_9 = arith.constant 16 : i32
    %10 = arith.muli %9, %c16_i32_9 : i32
    %c0_10 = arith.constant 0 : index
    %c0_11 = arith.constant 0 : index
    %11 = vector.load %arg8[%c0_10, %c0_11] : memref<8x32xf32, #tpu.memory_space<vmem>>, vector<8x32xf32>
    %c0_12 = arith.constant 0 : index
    %c0_13 = arith.constant 0 : index
    %12 = vector.load %arg9[%c0_12, %c0_13] : memref<8x32xf32, #tpu.memory_space<vmem>>, vector<8x32xf32>
    %c0_14 = arith.constant 0 : index
    %c0_15 = arith.constant 0 : index
    %13 = vector.load %arg10[%c0_14, %c0_15] : memref<8x32xf32, #tpu.memory_space<vmem>>, vector<8x32xf32>
    %c0_16 = arith.constant 0 : index
    %c0_17 = arith.constant 0 : index
    %14 = vector.load %arg11[%c0_16, %c0_17] : memref<8x32xf32, #tpu.memory_space<vmem>>, vector<8x32xf32>
    %c0_18 = arith.constant 0 : index
    %c0_19 = arith.constant 0 : index
    %c0_20 = arith.constant 0 : index
    %c0_21 = arith.constant 0 : index
    %15 = vector.load %arg1[%c0_18, %c0_19, %c0_20, %c0_21] : memref<1x16x8x128xbf16, #tpu.memory_space<vmem>>, vector<1x1x8x128xbf16>
    %16 = vector.shape_cast %15 : vector<1x1x8x128xbf16> to vector<8x128xbf16>
    %17 = arith.extf %16 : vector<8x128xbf16> to vector<8x128xf32>
    %18 = arith.truncf %11 : vector<8x32xf32> to vector<8x32xbf16>
    %cst = arith.constant dense<0.000000e+00> : vector<8x128xf32>
    %19 = tpu.matmul %18, %4, %cst {dimension_numbers = #tpu.dot_dimension_numbers<[1], [0], [0], [1], [0, 0, 1, 1], [], []>} : vector<8x32xbf16>, vector<32x128xbf16>, vector<8x128xf32> -> vector<8x128xf32>
    %20 = arith.addf %17, %19 : vector<8x128xf32>
    %c0_22 = arith.constant 0 : index
    %c15 = arith.constant 15 : index
    %c0_23 = arith.constant 0 : index
    %c0_24 = arith.constant 0 : index
    %21 = vector.load %arg2[%c0_22, %c15, %c0_23, %c0_24] : memref<1x16x8x128xbf16, #tpu.memory_space<vmem>>, vector<1x1x8x128xbf16>
    %22 = vector.shape_cast %21 : vector<1x1x8x128xbf16> to vector<8x128xbf16>
    %23 = arith.extf %22 : vector<8x128xbf16> to vector<8x128xf32>
    %24 = arith.truncf %13 : vector<8x32xf32> to vector<8x32xbf16>
    %cst_25 = arith.constant dense<0.000000e+00> : vector<8x128xf32>
    %25 = tpu.matmul %24, %6, %cst_25 {dimension_numbers = #tpu.dot_dimension_numbers<[1], [0], [0], [1], [0, 0, 1, 1], [], []>} : vector<8x32xbf16>, vector<32x128xbf16>, vector<8x128xf32> -> vector<8x128xf32>
    %26 = arith.addf %23, %25 : vector<8x128xf32>
    %c0_i32_26 = arith.constant 0 : i32
    %27 = arith.addi %8, %c0_i32_26 : i32
    %28 = vector.extract_strided_slice %20 {offsets = [0, 0], sizes = [8, 96], strides = [1, 1]} : vector<8x128xf32> to vector<8x96xf32>
    %29 = arith.negf %28 : vector<8x96xf32>
    %30 = math.exp %29 : vector<8x96xf32>
    %cst_27 = arith.constant 1.000000e+00 : f32
    %31 = vector.broadcast %cst_27 : f32 to vector<8x96xf32>
    %32 = arith.addf %31, %30 : vector<8x96xf32>
    %33 = arith.divf %31, %32 : vector<8x96xf32>
    %34 = vector.extract_strided_slice %33 {offsets = [0, 0], sizes = [8, 32], strides = [1, 1]} : vector<8x96xf32> to vector<8x32xf32>
    %35 = vector.extract_strided_slice %33 {offsets = [0, 32], sizes = [8, 32], strides = [1, 1]} : vector<8x96xf32> to vector<8x32xf32>
    %36 = vector.extract_strided_slice %33 {offsets = [0, 64], sizes = [8, 32], strides = [1, 1]} : vector<8x96xf32> to vector<8x32xf32>
    %37 = vector.extract_strided_slice %20 {offsets = [0, 96], sizes = [8, 32], strides = [1, 1]} : vector<8x128xf32> to vector<8x32xf32>
    %38 = math.tanh %37 : vector<8x32xf32>
    %39 = arith.mulf %35, %12 : vector<8x32xf32>
    %40 = arith.mulf %34, %38 : vector<8x32xf32>
    %41 = arith.addf %39, %40 : vector<8x32xf32>
    %42 = math.tanh %41 : vector<8x32xf32>
    %43 = arith.mulf %36, %42 : vector<8x32xf32>
    %44 = vector.broadcast %27 : i32 to vector<8x1xi32>
    %45 = arith.cmpi sgt, %7, %44 : vector<8x1xi32>
    %46 = vector.shape_cast %45 : vector<8x1xi1> to vector<8x1xi1>
    %47 = vector.broadcast %46 : vector<8x1xi1> to vector<8x32xi1>
    %48 = arith.select %47, %43, %11 : vector<8x32xi1>, vector<8x32xf32>
    %49 = vector.shape_cast %45 : vector<8x1xi1> to vector<8x1xi1>
    %50 = vector.broadcast %49 : vector<8x1xi1> to vector<8x32xi1>
    %51 = arith.select %50, %41, %12 : vector<8x32xi1>, vector<8x32xf32>
    %cst_28 = arith.constant 0.000000e+00 : f32
    %52 = vector.shape_cast %45 : vector<8x1xi1> to vector<8x1xi1>
    %53 = vector.broadcast %52 : vector<8x1xi1> to vector<8x32xi1>
    %54 = vector.broadcast %cst_28 : f32 to vector<8x32xf32>
    %55 = arith.select %53, %43, %54 : vector<8x32xi1>, vector<8x32xf32>
    %c15_i32 = arith.constant 15 : i32
    %56 = arith.addi %10, %c15_i32 : i32
    %57 = vector.extract_strided_slice %26 {offsets = [0, 0], sizes = [8, 96], strides = [1, 1]} : vector<8x128xf32> to vector<8x96xf32>
    %58 = arith.negf %57 : vector<8x96xf32>
    %59 = math.exp %58 : vector<8x96xf32>
    %cst_29 = arith.constant 1.000000e+00 : f32
    %60 = vector.broadcast %cst_29 : f32 to vector<8x96xf32>
    %61 = arith.addf %60, %59 : vector<8x96xf32>
    %62 = arith.divf %60, %61 : vector<8x96xf32>
    %63 = vector.extract_strided_slice %62 {offsets = [0, 0], sizes = [8, 32], strides = [1, 1]} : vector<8x96xf32> to vector<8x32xf32>
    %64 = vector.extract_strided_slice %62 {offsets = [0, 32], sizes = [8, 32], strides = [1, 1]} : vector<8x96xf32> to vector<8x32xf32>
    %65 = vector.extract_strided_slice %62 {offsets = [0, 64], sizes = [8, 32], strides = [1, 1]} : vector<8x96xf32> to vector<8x32xf32>
    %66 = vector.extract_strided_slice %26 {offsets = [0, 96], sizes = [8, 32], strides = [1, 1]} : vector<8x128xf32> to vector<8x32xf32>
    %67 = math.tanh %66 : vector<8x32xf32>
    %68 = arith.mulf %64, %14 : vector<8x32xf32>
    %69 = arith.mulf %63, %67 : vector<8x32xf32>
    %70 = arith.addf %68, %69 : vector<8x32xf32>
    %71 = math.tanh %70 : vector<8x32xf32>
    %72 = arith.mulf %65, %71 : vector<8x32xf32>
    %73 = vector.broadcast %56 : i32 to vector<8x1xi32>
    %74 = arith.cmpi sgt, %7, %73 : vector<8x1xi32>
    %75 = vector.shape_cast %74 : vector<8x1xi1> to vector<8x1xi1>
    %76 = vector.broadcast %75 : vector<8x1xi1> to vector<8x32xi1>
    %77 = arith.select %76, %72, %13 : vector<8x32xi1>, vector<8x32xf32>
    %78 = vector.shape_cast %74 : vector<8x1xi1> to vector<8x1xi1>
    %79 = vector.broadcast %78 : vector<8x1xi1> to vector<8x32xi1>
    %80 = arith.select %79, %70, %14 : vector<8x32xi1>, vector<8x32xf32>
    %cst_30 = arith.constant 0.000000e+00 : f32
    %81 = vector.shape_cast %74 : vector<8x1xi1> to vector<8x1xi1>
    %82 = vector.broadcast %81 : vector<8x1xi1> to vector<8x32xi1>
    %83 = vector.broadcast %cst_30 : f32 to vector<8x32xf32>
    %84 = arith.select %82, %72, %83 : vector<8x32xi1>, vector<8x32xf32>
    %c0_31 = arith.constant 0 : index
    %c0_32 = arith.constant 0 : index
    %c0_33 = arith.constant 0 : index
    %85 = vector.load %arg6[%c0_31, %c0_32, %c0_33] : memref<16x8x32xf32, #tpu.memory_space<vmem>>, vector<1x8x32xf32>
    %86 = vector.shape_cast %85 : vector<1x8x32xf32> to vector<8x32xf32>
    %87 = vector.shape_cast %55 : vector<8x32xf32> to vector<1x8x32xf32>
    tpu.vector_store %arg6[%c0_31, %c0_32, %c0_33], %87 {strides = array<i32>} : memref<16x8x32xf32, #tpu.memory_space<vmem>>, vector<1x8x32xf32>,
    %c15_34 = arith.constant 15 : index
    %c0_35 = arith.constant 0 : index
    %c0_36 = arith.constant 0 : index
    %88 = vector.load %arg7[%c15_34, %c0_35, %c0_36] : memref<16x8x32xf32, #tpu.memory_space<vmem>>, vector<1x8x32xf32>
    %89 = vector.shape_cast %88 : vector<1x8x32xf32> to vector<8x32xf32>
    %90 = vector.shape_cast %84 : vector<8x32xf32> to vector<1x8x32xf32>
    tpu.vector_store %arg7[%c15_34, %c0_35, %c0_36], %90 {strides = array<i32>} : memref<16x8x32xf32, #tpu.memory_space<vmem>>, vector<1x8x32xf32>,
    %c0_37 = arith.constant 0 : index
    %c1 = arith.constant 1 : index
    %c0_38 = arith.constant 0 : index
    %c0_39 = arith.constant 0 : index
    %91 = vector.load %arg1[%c0_37, %c1, %c0_38, %c0_39] : memref<1x16x8x128xbf16, #tpu.memory_space<vmem>>, vector<1x1x8x128xbf16>
    %92 = vector.shape_cast %91 : vector<1x1x8x128xbf16> to vector<8x128xbf16>
    %93 = arith.extf %92 : vector<8x128xbf16> to vector<8x128xf32>
    %94 = arith.truncf %48 : vector<8x32xf32> to vector<8x32xbf16>
    %cst_40 = arith.constant dense<0.000000e+00> : vector<8x128xf32>
    %95 = tpu.matmul %94, %4, %cst_40 {dimension_numbers = #tpu.dot_dimension_numbers<[1], [0], [0], [1], [0, 0, 1, 1], [], []>} : vector<8x32xbf16>, vector<32x128xbf16>, vector<8x128xf32> -> vector<8x128xf32>
    %96 = arith.addf %93, %95 : vector<8x128xf32>
    %c0_41 = arith.constant 0 : index
    %c14 = arith.constant 14 : index
    %c0_42 = arith.constant 0 : index
    %c0_43 = arith.constant 0 : index
    %97 = vector.load %arg2[%c0_41, %c14, %c0_42, %c0_43] : memref<1x16x8x128xbf16, #tpu.memory_space<vmem>>, vector<1x1x8x128xbf16>
    %98 = vector.shape_cast %97 : vector<1x1x8x128xbf16> to vector<8x128xbf16>
    %99 = arith.extf %98 : vector<8x128xbf16> to vector<8x128xf32>
    %100 = arith.truncf %77 : vector<8x32xf32> to vector<8x32xbf16>
    %cst_44 = arith.constant dense<0.000000e+00> : vector<8x128xf32>
    %101 = tpu.matmul %100, %6, %cst_44 {dimension_numbers = #tpu.dot_dimension_numbers<[1], [0], [0], [1], [0, 0, 1, 1], [], []>} : vector<8x32xbf16>, vector<32x128xbf16>, vector<8x128xf32> -> vector<8x128xf32>
    %102 = arith.addf %99, %101 : vector<8x128xf32>
    %c1_i32 = arith.constant 1 : i32
    %103 = arith.addi %8, %c1_i32 : i32
    %104 = vector.extract_strided_slice %96 {offsets = [0, 0], sizes = [8, 96], strides = [1, 1]} : vector<8x128xf32> to vector<8x96xf32>
    %105 = arith.negf %104 : vector<8x96xf32>
    %106 = math.exp %105 : vector<8x96xf32>
    %cst_45 = arith.constant 1.000000e+00 : f32
    %107 = vector.broadcast %cst_45 : f32 to vector<8x96xf32>
    %108 = arith.addf %107, %106 : vector<8x96xf32>
    %109 = arith.divf %107, %108 : vector<8x96xf32>
    %110 = vector.extract_strided_slice %109 {offsets = [0, 0], sizes = [8, 32], strides = [1, 1]} : vector<8x96xf32> to vector<8x32xf32>
    %111 = vector.extract_strided_slice %109 {offsets = [0, 32], sizes = [8, 32], strides = [1, 1]} : vector<8x96xf32> to vector<8x32xf32>
    %112 = vector.extract_strided_slice %109 {offsets = [0, 64], sizes = [8, 32], strides = [1, 1]} : vector<8x96xf32> to vector<8x32xf32>
    %113 = vector.extract_strided_slice %96 {offsets = [0, 96], sizes = [8, 32], strides = [1, 1]} : vector<8x128xf32> to vector<8x32xf32>
    %114 = math.tanh %113 : vector<8x32xf32>
    %115 = arith.mulf %111, %51 : vector<8x32xf32>
    %116 = arith.mulf %110, %114 : vector<8x32xf32>
    %117 = arith.addf %115, %116 : vector<8x32xf32>
    %118 = math.tanh %117 : vector<8x32xf32>
    %119 = arith.mulf %112, %118 : vector<8x32xf32>
    %120 = vector.broadcast %103 : i32 to vector<8x1xi32>
    %121 = arith.cmpi sgt, %7, %120 : vector<8x1xi32>
    %122 = vector.shape_cast %121 : vector<8x1xi1> to vector<8x1xi1>
    %123 = vector.broadcast %122 : vector<8x1xi1> to vector<8x32xi1>
    %124 = arith.select %123, %119, %48 : vector<8x32xi1>, vector<8x32xf32>
    %125 = vector.shape_cast %121 : vector<8x1xi1> to vector<8x1xi1>
    %126 = vector.broadcast %125 : vector<8x1xi1> to vector<8x32xi1>
    %127 = arith.select %126, %117, %51 : vector<8x32xi1>, vector<8x32xf32>
    %cst_46 = arith.constant 0.000000e+00 : f32
    %128 = vector.shape_cast %121 : vector<8x1xi1> to vector<8x1xi1>
    %129 = vector.broadcast %128 : vector<8x1xi1> to vector<8x32xi1>
    %130 = vector.broadcast %cst_46 : f32 to vector<8x32xf32>
    %131 = arith.select %129, %119, %130 : vector<8x32xi1>, vector<8x32xf32>
    %c14_i32 = arith.constant 14 : i32
    %132 = arith.addi %10, %c14_i32 : i32
    %133 = vector.extract_strided_slice %102 {offsets = [0, 0], sizes = [8, 96], strides = [1, 1]} : vector<8x128xf32> to vector<8x96xf32>
    %134 = arith.negf %133 : vector<8x96xf32>
    %135 = math.exp %134 : vector<8x96xf32>
    %cst_47 = arith.constant 1.000000e+00 : f32
    %136 = vector.broadcast %cst_47 : f32 to vector<8x96xf32>
    %137 = arith.addf %136, %135 : vector<8x96xf32>
    %138 = arith.divf %136, %137 : vector<8x96xf32>
    %139 = vector.extract_strided_slice %138 {offsets = [0, 0], sizes = [8, 32], strides = [1, 1]} : vector<8x96xf32> to vector<8x32xf32>
    %140 = vector.extract_strided_slice %138 {offsets = [0, 32], sizes = [8, 32], strides = [1, 1]} : vector<8x96xf32> to vector<8x32xf32>
    %141 = vector.extract_strided_slice %138 {offsets = [0, 64], sizes = [8, 32], strides = [1, 1]} : vector<8x96xf32> to vector<8x32xf32>
    %142 = vector.extract_strided_slice %102 {offsets = [0, 96], sizes = [8, 32], strides = [1, 1]} : vector<8x128xf32> to vector<8x32xf32>
    %143 = math.tanh %142 : vector<8x32xf32>
    %144 = arith.mulf %140, %80 : vector<8x32xf32>
    %145 = arith.mulf %139, %143 : vector<8x32xf32>
    %146 = arith.addf %144, %145 : vector<8x32xf32>
    %147 = math.tanh %146 : vector<8x32xf32>
    %148 = arith.mulf %141, %147 : vector<8x32xf32>
    %149 = vector.broadcast %132 : i32 to vector<8x1xi32>
    %150 = arith.cmpi sgt, %7, %149 : vector<8x1xi32>
    %151 = vector.shape_cast %150 : vector<8x1xi1> to vector<8x1xi1>
    %152 = vector.broadcast %151 : vector<8x1xi1> to vector<8x32xi1>
    %153 = arith.select %152, %148, %77 : vector<8x32xi1>, vector<8x32xf32>
    %154 = vector.shape_cast %150 : vector<8x1xi1> to vector<8x1xi1>
    %155 = vector.broadcast %154 : vector<8x1xi1> to vector<8x32xi1>
    %156 = arith.select %155, %146, %80 : vector<8x32xi1>, vector<8x32xf32>
    %cst_48 = arith.constant 0.000000e+00 : f32
    %157 = vector.shape_cast %150 : vector<8x1xi1> to vector<8x1xi1>
    %158 = vector.broadcast %157 : vector<8x1xi1> to vector<8x32xi1>
    %159 = vector.broadcast %cst_48 : f32 to vector<8x32xf32>
    %160 = arith.select %158, %148, %159 : vector<8x32xi1>, vector<8x32xf32>
    %c1_49 = arith.constant 1 : index
    %c0_50 = arith.constant 0 : index
    %c0_51 = arith.constant 0 : index
    %161 = vector.load %arg6[%c1_49, %c0_50, %c0_51] : memref<16x8x32xf32, #tpu.memory_space<vmem>>, vector<1x8x32xf32>
    %162 = vector.shape_cast %161 : vector<1x8x32xf32> to vector<8x32xf32>
    %163 = vector.shape_cast %131 : vector<8x32xf32> to vector<1x8x32xf32>
    tpu.vector_store %arg6[%c1_49, %c0_50, %c0_51], %163 {strides = array<i32>} : memref<16x8x32xf32, #tpu.memory_space<vmem>>, vector<1x8x32xf32>,
    %c14_52 = arith.constant 14 : index
    %c0_53 = arith.constant 0 : index
    %c0_54 = arith.constant 0 : index
    %164 = vector.load %arg7[%c14_52, %c0_53, %c0_54] : memref<16x8x32xf32, #tpu.memory_space<vmem>>, vector<1x8x32xf32>
    %165 = vector.shape_cast %164 : vector<1x8x32xf32> to vector<8x32xf32>
    %166 = vector.shape_cast %160 : vector<8x32xf32> to vector<1x8x32xf32>
    tpu.vector_store %arg7[%c14_52, %c0_53, %c0_54], %166 {strides = array<i32>} : memref<16x8x32xf32, #tpu.memory_space<vmem>>, vector<1x8x32xf32>,
    %c0_55 = arith.constant 0 : index
    %c2 = arith.constant 2 : index
    %c0_56 = arith.constant 0 : index
    %c0_57 = arith.constant 0 : index
    %167 = vector.load %arg1[%c0_55, %c2, %c0_56, %c0_57] : memref<1x16x8x128xbf16, #tpu.memory_space<vmem>>, vector<1x1x8x128xbf16>
    %168 = vector.shape_cast %167 : vector<1x1x8x128xbf16> to vector<8x128xbf16>
    %169 = arith.extf %168 : vector<8x128xbf16> to vector<8x128xf32>
    %170 = arith.truncf %124 : vector<8x32xf32> to vector<8x32xbf16>
    %cst_58 = arith.constant dense<0.000000e+00> : vector<8x128xf32>
    %171 = tpu.matmul %170, %4, %cst_58 {dimension_numbers = #tpu.dot_dimension_numbers<[1], [0], [0], [1], [0, 0, 1, 1], [], []>} : vector<8x32xbf16>, vector<32x128xbf16>, vector<8x128xf32> -> vector<8x128xf32>
    %172 = arith.addf %169, %171 : vector<8x128xf32>
    %c0_59 = arith.constant 0 : index
    %c13 = arith.constant 13 : index
    %c0_60 = arith.constant 0 : index
    %c0_61 = arith.constant 0 : index
    %173 = vector.load %arg2[%c0_59, %c13, %c0_60, %c0_61] : memref<1x16x8x128xbf16, #tpu.memory_space<vmem>>, vector<1x1x8x128xbf16>
    %174 = vector.shape_cast %173 : vector<1x1x8x128xbf16> to vector<8x128xbf16>
    %175 = arith.extf %174 : vector<8x128xbf16> to vector<8x128xf32>
    %176 = arith.truncf %153 : vector<8x32xf32> to vector<8x32xbf16>
    %cst_62 = arith.constant dense<0.000000e+00> : vector<8x128xf32>
    %177 = tpu.matmul %176, %6, %cst_62 {dimension_numbers = #tpu.dot_dimension_numbers<[1], [0], [0], [1], [0, 0, 1, 1], [], []>} : vector<8x32xbf16>, vector<32x128xbf16>, vector<8x128xf32> -> vector<8x128xf32>
    %178 = arith.addf %175, %177 : vector<8x128xf32>
    %c2_i32 = arith.constant 2 : i32
    %179 = arith.addi %8, %c2_i32 : i32
    %180 = vector.extract_strided_slice %172 {offsets = [0, 0], sizes = [8, 96], strides = [1, 1]} : vector<8x128xf32> to vector<8x96xf32>
    %181 = arith.negf %180 : vector<8x96xf32>
    %182 = math.exp %181 : vector<8x96xf32>
    %cst_63 = arith.constant 1.000000e+00 : f32
    %183 = vector.broadcast %cst_63 : f32 to vector<8x96xf32>
    %184 = arith.addf %183, %182 : vector<8x96xf32>
    %185 = arith.divf %183, %184 : vector<8x96xf32>
    %186 = vector.extract_strided_slice %185 {offsets = [0, 0], sizes = [8, 32], strides = [1, 1]} : vector<8x96xf32> to vector<8x32xf32>
    %187 = vector.extract_strided_slice %185 {offsets = [0, 32], sizes = [8, 32], strides = [1, 1]} : vector<8x96xf32> to vector<8x32xf32>
    %188 = vector.extract_strided_slice %185 {offsets = [0, 64], sizes = [8, 32], strides = [1, 1]} : vector<8x96xf32> to vector<8x32xf32>
    %189 = vector.extract_strided_slice %172 {offsets = [0, 96], sizes = [8, 32], strides = [1, 1]} : vector<8x128xf32> to vector<8x32xf32>
    %190 = math.tanh %189 : vector<8x32xf32>
    %191 = arith.mulf %187, %127 : vector<8x32xf32>
    %192 = arith.mulf %186, %190 : vector<8x32xf32>
    %193 = arith.addf %191, %192 : vector<8x32xf32>
    %194 = math.tanh %193 : vector<8x32xf32>
    %195 = arith.mulf %188, %194 : vector<8x32xf32>
    %196 = vector.broadcast %179 : i32 to vector<8x1xi32>
    %197 = arith.cmpi sgt, %7, %196 : vector<8x1xi32>
    %198 = vector.shape_cast %197 : vector<8x1xi1> to vector<8x1xi1>
    %199 = vector.broadcast %198 : vector<8x1xi1> to vector<8x32xi1>
    %200 = arith.select %199, %195, %124 : vector<8x32xi1>, vector<8x32xf32>
    %201 = vector.shape_cast %197 : vector<8x1xi1> to vector<8x1xi1>
    %202 = vector.broadcast %201 : vector<8x1xi1> to vector<8x32xi1>
    %203 = arith.select %202, %193, %127 : vector<8x32xi1>, vector<8x32xf32>
    %cst_64 = arith.constant 0.000000e+00 : f32
    %204 = vector.shape_cast %197 : vector<8x1xi1> to vector<8x1xi1>
    %205 = vector.broadcast %204 : vector<8x1xi1> to vector<8x32xi1>
    %206 = vector.broadcast %cst_64 : f32 to vector<8x32xf32>
    %207 = arith.select %205, %195, %206 : vector<8x32xi1>, vector<8x32xf32>
    %c13_i32 = arith.constant 13 : i32
    %208 = arith.addi %10, %c13_i32 : i32
    %209 = vector.extract_strided_slice %178 {offsets = [0, 0], sizes = [8, 96], strides = [1, 1]} : vector<8x128xf32> to vector<8x96xf32>
    %210 = arith.negf %209 : vector<8x96xf32>
    %211 = math.exp %210 : vector<8x96xf32>
    %cst_65 = arith.constant 1.000000e+00 : f32
    %212 = vector.broadcast %cst_65 : f32 to vector<8x96xf32>
    %213 = arith.addf %212, %211 : vector<8x96xf32>
    %214 = arith.divf %212, %213 : vector<8x96xf32>
    %215 = vector.extract_strided_slice %214 {offsets = [0, 0], sizes = [8, 32], strides = [1, 1]} : vector<8x96xf32> to vector<8x32xf32>
    %216 = vector.extract_strided_slice %214 {offsets = [0, 32], sizes = [8, 32], strides = [1, 1]} : vector<8x96xf32> to vector<8x32xf32>
    %217 = vector.extract_strided_slice %214 {offsets = [0, 64], sizes = [8, 32], strides = [1, 1]} : vector<8x96xf32> to vector<8x32xf32>
    %218 = vector.extract_strided_slice %178 {offsets = [0, 96], sizes = [8, 32], strides = [1, 1]} : vector<8x128xf32> to vector<8x32xf32>
    %219 = math.tanh %218 : vector<8x32xf32>
    %220 = arith.mulf %216, %156 : vector<8x32xf32>
    %221 = arith.mulf %215, %219 : vector<8x32xf32>
    %222 = arith.addf %220, %221 : vector<8x32xf32>
    %223 = math.tanh %222 : vector<8x32xf32>
    %224 = arith.mulf %217, %223 : vector<8x32xf32>
    %225 = vector.broadcast %208 : i32 to vector<8x1xi32>
    %226 = arith.cmpi sgt, %7, %225 : vector<8x1xi32>
    %227 = vector.shape_cast %226 : vector<8x1xi1> to vector<8x1xi1>
    %228 = vector.broadcast %227 : vector<8x1xi1> to vector<8x32xi1>
    %229 = arith.select %228, %224, %153 : vector<8x32xi1>, vector<8x32xf32>
    %230 = vector.shape_cast %226 : vector<8x1xi1> to vector<8x1xi1>
    %231 = vector.broadcast %230 : vector<8x1xi1> to vector<8x32xi1>
    %232 = arith.select %231, %222, %156 : vector<8x32xi1>, vector<8x32xf32>
    %cst_66 = arith.constant 0.000000e+00 : f32
    %233 = vector.shape_cast %226 : vector<8x1xi1> to vector<8x1xi1>
    %234 = vector.broadcast %233 : vector<8x1xi1> to vector<8x32xi1>
    %235 = vector.broadcast %cst_66 : f32 to vector<8x32xf32>
    %236 = arith.select %234, %224, %235 : vector<8x32xi1>, vector<8x32xf32>
    %c2_67 = arith.constant 2 : index
    %c0_68 = arith.constant 0 : index
    %c0_69 = arith.constant 0 : index
    %237 = vector.load %arg6[%c2_67, %c0_68, %c0_69] : memref<16x8x32xf32, #tpu.memory_space<vmem>>, vector<1x8x32xf32>
    %238 = vector.shape_cast %237 : vector<1x8x32xf32> to vector<8x32xf32>
    %239 = vector.shape_cast %207 : vector<8x32xf32> to vector<1x8x32xf32>
    tpu.vector_store %arg6[%c2_67, %c0_68, %c0_69], %239 {strides = array<i32>} : memref<16x8x32xf32, #tpu.memory_space<vmem>>, vector<1x8x32xf32>,
    %c13_70 = arith.constant 13 : index
    %c0_71 = arith.constant 0 : index
    %c0_72 = arith.constant 0 : index
    %240 = vector.load %arg7[%c13_70, %c0_71, %c0_72] : memref<16x8x32xf32, #tpu.memory_space<vmem>>, vector<1x8x32xf32>
    %241 = vector.shape_cast %240 : vector<1x8x32xf32> to vector<8x32xf32>
    %242 = vector.shape_cast %236 : vector<8x32xf32> to vector<1x8x32xf32>
    tpu.vector_store %arg7[%c13_70, %c0_71, %c0_72], %242 {strides = array<i32>} : memref<16x8x32xf32, #tpu.memory_space<vmem>>, vector<1x8x32xf32>,
    %c0_73 = arith.constant 0 : index
    %c3 = arith.constant 3 : index
    %c0_74 = arith.constant 0 : index
    %c0_75 = arith.constant 0 : index
    %243 = vector.load %arg1[%c0_73, %c3, %c0_74, %c0_75] : memref<1x16x8x128xbf16, #tpu.memory_space<vmem>>, vector<1x1x8x128xbf16>
    %244 = vector.shape_cast %243 : vector<1x1x8x128xbf16> to vector<8x128xbf16>
    %245 = arith.extf %244 : vector<8x128xbf16> to vector<8x128xf32>
    %246 = arith.truncf %200 : vector<8x32xf32> to vector<8x32xbf16>
    %cst_76 = arith.constant dense<0.000000e+00> : vector<8x128xf32>
    %247 = tpu.matmul %246, %4, %cst_76 {dimension_numbers = #tpu.dot_dimension_numbers<[1], [0], [0], [1], [0, 0, 1, 1], [], []>} : vector<8x32xbf16>, vector<32x128xbf16>, vector<8x128xf32> -> vector<8x128xf32>
    %248 = arith.addf %245, %247 : vector<8x128xf32>
    %c0_77 = arith.constant 0 : index
    %c12 = arith.constant 12 : index
    %c0_78 = arith.constant 0 : index
    %c0_79 = arith.constant 0 : index
    %249 = vector.load %arg2[%c0_77, %c12, %c0_78, %c0_79] : memref<1x16x8x128xbf16, #tpu.memory_space<vmem>>, vector<1x1x8x128xbf16>
    %250 = vector.shape_cast %249 : vector<1x1x8x128xbf16> to vector<8x128xbf16>
    %251 = arith.extf %250 : vector<8x128xbf16> to vector<8x128xf32>
    %252 = arith.truncf %229 : vector<8x32xf32> to vector<8x32xbf16>
    %cst_80 = arith.constant dense<0.000000e+00> : vector<8x128xf32>
    %253 = tpu.matmul %252, %6, %cst_80 {dimension_numbers = #tpu.dot_dimension_numbers<[1], [0], [0], [1], [0, 0, 1, 1], [], []>} : vector<8x32xbf16>, vector<32x128xbf16>, vector<8x128xf32> -> vector<8x128xf32>
    %254 = arith.addf %251, %253 : vector<8x128xf32>
    %c3_i32 = arith.constant 3 : i32
    %255 = arith.addi %8, %c3_i32 : i32
    %256 = vector.extract_strided_slice %248 {offsets = [0, 0], sizes = [8, 96], strides = [1, 1]} : vector<8x128xf32> to vector<8x96xf32>
    %257 = arith.negf %256 : vector<8x96xf32>
    %258 = math.exp %257 : vector<8x96xf32>
    %cst_81 = arith.constant 1.000000e+00 : f32
    %259 = vector.broadcast %cst_81 : f32 to vector<8x96xf32>
    %260 = arith.addf %259, %258 : vector<8x96xf32>
    %261 = arith.divf %259, %260 : vector<8x96xf32>
    %262 = vector.extract_strided_slice %261 {offsets = [0, 0], sizes = [8, 32], strides = [1, 1]} : vector<8x96xf32> to vector<8x32xf32>
    %263 = vector.extract_strided_slice %261 {offsets = [0, 32], sizes = [8, 32], strides = [1, 1]} : vector<8x96xf32> to vector<8x32xf32>
    %264 = vector.extract_strided_slice %261 {offsets = [0, 64], sizes = [8, 32], strides = [1, 1]} : vector<8x96xf32> to vector<8x32xf32>
    %265 = vector.extract_strided_slice %248 {offsets = [0, 96], sizes = [8, 32], strides = [1, 1]} : vector<8x128xf32> to vector<8x32xf32>
    %266 = math.tanh %265 : vector<8x32xf32>
    %267 = arith.mulf %263, %203 : vector<8x32xf32>
    %268 = arith.mulf %262, %266 : vector<8x32xf32>
    %269 = arith.addf %267, %268 : vector<8x32xf32>
    %270 = math.tanh %269 : vector<8x32xf32>
    %271 = arith.mulf %264, %270 : vector<8x32xf32>
    %272 = vector.broadcast %255 : i32 to vector<8x1xi32>
    %273 = arith.cmpi sgt, %7, %272 : vector<8x1xi32>
    %274 = vector.shape_cast %273 : vector<8x1xi1> to vector<8x1xi1>
    %275 = vector.broadcast %274 : vector<8x1xi1> to vector<8x32xi1>
    %276 = arith.select %275, %271, %200 : vector<8x32xi1>, vector<8x32xf32>
    %277 = vector.shape_cast %273 : vector<8x1xi1> to vector<8x1xi1>
    %278 = vector.broadcast %277 : vector<8x1xi1> to vector<8x32xi1>
    %279 = arith.select %278, %269, %203 : vector<8x32xi1>, vector<8x32xf32>
    %cst_82 = arith.constant 0.000000e+00 : f32
    %280 = vector.shape_cast %273 : vector<8x1xi1> to vector<8x1xi1>
    %281 = vector.broadcast %280 : vector<8x1xi1> to vector<8x32xi1>
    %282 = vector.broadcast %cst_82 : f32 to vector<8x32xf32>
    %283 = arith.select %281, %271, %282 : vector<8x32xi1>, vector<8x32xf32>
    %c12_i32 = arith.constant 12 : i32
    %284 = arith.addi %10, %c12_i32 : i32
    %285 = vector.extract_strided_slice %254 {offsets = [0, 0], sizes = [8, 96], strides = [1, 1]} : vector<8x128xf32> to vector<8x96xf32>
    %286 = arith.negf %285 : vector<8x96xf32>
    %287 = math.exp %286 : vector<8x96xf32>
    %cst_83 = arith.constant 1.000000e+00 : f32
    %288 = vector.broadcast %cst_83 : f32 to vector<8x96xf32>
    %289 = arith.addf %288, %287 : vector<8x96xf32>
    %290 = arith.divf %288, %289 : vector<8x96xf32>
    %291 = vector.extract_strided_slice %290 {offsets = [0, 0], sizes = [8, 32], strides = [1, 1]} : vector<8x96xf32> to vector<8x32xf32>
    %292 = vector.extract_strided_slice %290 {offsets = [0, 32], sizes = [8, 32], strides = [1, 1]} : vector<8x96xf32> to vector<8x32xf32>
    %293 = vector.extract_strided_slice %290 {offsets = [0, 64], sizes = [8, 32], strides = [1, 1]} : vector<8x96xf32> to vector<8x32xf32>
    %294 = vector.extract_strided_slice %254 {offsets = [0, 96], sizes = [8, 32], strides = [1, 1]} : vector<8x128xf32> to vector<8x32xf32>
    %295 = math.tanh %294 : vector<8x32xf32>
    %296 = arith.mulf %292, %232 : vector<8x32xf32>
    %297 = arith.mulf %291, %295 : vector<8x32xf32>
    %298 = arith.addf %296, %297 : vector<8x32xf32>
    %299 = math.tanh %298 : vector<8x32xf32>
    %300 = arith.mulf %293, %299 : vector<8x32xf32>
    %301 = vector.broadcast %284 : i32 to vector<8x1xi32>
    %302 = arith.cmpi sgt, %7, %301 : vector<8x1xi32>
    %303 = vector.shape_cast %302 : vector<8x1xi1> to vector<8x1xi1>
    %304 = vector.broadcast %303 : vector<8x1xi1> to vector<8x32xi1>
    %305 = arith.select %304, %300, %229 : vector<8x32xi1>, vector<8x32xf32>
    %306 = vector.shape_cast %302 : vector<8x1xi1> to vector<8x1xi1>
    %307 = vector.broadcast %306 : vector<8x1xi1> to vector<8x32xi1>
    %308 = arith.select %307, %298, %232 : vector<8x32xi1>, vector<8x32xf32>
    %cst_84 = arith.constant 0.000000e+00 : f32
    %309 = vector.shape_cast %302 : vector<8x1xi1> to vector<8x1xi1>
    %310 = vector.broadcast %309 : vector<8x1xi1> to vector<8x32xi1>
    %311 = vector.broadcast %cst_84 : f32 to vector<8x32xf32>
    %312 = arith.select %310, %300, %311 : vector<8x32xi1>, vector<8x32xf32>
    %c3_85 = arith.constant 3 : index
    %c0_86 = arith.constant 0 : index
    %c0_87 = arith.constant 0 : index
    %313 = vector.load %arg6[%c3_85, %c0_86, %c0_87] : memref<16x8x32xf32, #tpu.memory_space<vmem>>, vector<1x8x32xf32>
    %314 = vector.shape_cast %313 : vector<1x8x32xf32> to vector<8x32xf32>
    %315 = vector.shape_cast %283 : vector<8x32xf32> to vector<1x8x32xf32>
    tpu.vector_store %arg6[%c3_85, %c0_86, %c0_87], %315 {strides = array<i32>} : memref<16x8x32xf32, #tpu.memory_space<vmem>>, vector<1x8x32xf32>,
    %c12_88 = arith.constant 12 : index
    %c0_89 = arith.constant 0 : index
    %c0_90 = arith.constant 0 : index
    %316 = vector.load %arg7[%c12_88, %c0_89, %c0_90] : memref<16x8x32xf32, #tpu.memory_space<vmem>>, vector<1x8x32xf32>
    %317 = vector.shape_cast %316 : vector<1x8x32xf32> to vector<8x32xf32>
    %318 = vector.shape_cast %312 : vector<8x32xf32> to vector<1x8x32xf32>
    tpu.vector_store %arg7[%c12_88, %c0_89, %c0_90], %318 {strides = array<i32>} : memref<16x8x32xf32, #tpu.memory_space<vmem>>, vector<1x8x32xf32>,
    %c0_91 = arith.constant 0 : index
    %c4 = arith.constant 4 : index
    %c0_92 = arith.constant 0 : index
    %c0_93 = arith.constant 0 : index
    %319 = vector.load %arg1[%c0_91, %c4, %c0_92, %c0_93] : memref<1x16x8x128xbf16, #tpu.memory_space<vmem>>, vector<1x1x8x128xbf16>
    %320 = vector.shape_cast %319 : vector<1x1x8x128xbf16> to vector<8x128xbf16>
    %321 = arith.extf %320 : vector<8x128xbf16> to vector<8x128xf32>
    %322 = arith.truncf %276 : vector<8x32xf32> to vector<8x32xbf16>
    %cst_94 = arith.constant dense<0.000000e+00> : vector<8x128xf32>
    %323 = tpu.matmul %322, %4, %cst_94 {dimension_numbers = #tpu.dot_dimension_numbers<[1], [0], [0], [1], [0, 0, 1, 1], [], []>} : vector<8x32xbf16>, vector<32x128xbf16>, vector<8x128xf32> -> vector<8x128xf32>
    %324 = arith.addf %321, %323 : vector<8x128xf32>
    %c0_95 = arith.constant 0 : index
    %c11 = arith.constant 11 : index
    %c0_96 = arith.constant 0 : index
    %c0_97 = arith.constant 0 : index
    %325 = vector.load %arg2[%c0_95, %c11, %c0_96, %c0_97] : memref<1x16x8x128xbf16, #tpu.memory_space<vmem>>, vector<1x1x8x128xbf16>
    %326 = vector.shape_cast %325 : vector<1x1x8x128xbf16> to vector<8x128xbf16>
    %327 = arith.extf %326 : vector<8x128xbf16> to vector<8x128xf32>
    %328 = arith.truncf %305 : vector<8x32xf32> to vector<8x32xbf16>
    %cst_98 = arith.constant dense<0.000000e+00> : vector<8x128xf32>
    %329 = tpu.matmul %328, %6, %cst_98 {dimension_numbers = #tpu.dot_dimension_numbers<[1], [0], [0], [1], [0, 0, 1, 1], [], []>} : vector<8x32xbf16>, vector<32x128xbf16>, vector<8x128xf32> -> vector<8x128xf32>
    %330 = arith.addf %327, %329 : vector<8x128xf32>
    %c4_i32 = arith.constant 4 : i32
    %331 = arith.addi %8, %c4_i32 : i32
    %332 = vector.extract_strided_slice %324 {offsets = [0, 0], sizes = [8, 96], strides = [1, 1]} : vector<8x128xf32> to vector<8x96xf32>
    %333 = arith.negf %332 : vector<8x96xf32>
    %334 = math.exp %333 : vector<8x96xf32>
    %cst_99 = arith.constant 1.000000e+00 : f32
    %335 = vector.broadcast %cst_99 : f32 to vector<8x96xf32>
    %336 = arith.addf %335, %334 : vector<8x96xf32>
    %337 = arith.divf %335, %336 : vector<8x96xf32>
    %338 = vector.extract_strided_slice %337 {offsets = [0, 0], sizes = [8, 32], strides = [1, 1]} : vector<8x96xf32> to vector<8x32xf32>
    %339 = vector.extract_strided_slice %337 {offsets = [0, 32], sizes = [8, 32], strides = [1, 1]} : vector<8x96xf32> to vector<8x32xf32>
    %340 = vector.extract_strided_slice %337 {offsets = [0, 64], sizes = [8, 32], strides = [1, 1]} : vector<8x96xf32> to vector<8x32xf32>
    %341 = vector.extract_strided_slice %324 {offsets = [0, 96], sizes = [8, 32], strides = [1, 1]} : vector<8x128xf32> to vector<8x32xf32>
    %342 = math.tanh %341 : vector<8x32xf32>
    %343 = arith.mulf %339, %279 : vector<8x32xf32>
    %344 = arith.mulf %338, %342 : vector<8x32xf32>
    %345 = arith.addf %343, %344 : vector<8x32xf32>
    %346 = math.tanh %345 : vector<8x32xf32>
    %347 = arith.mulf %340, %346 : vector<8x32xf32>
    %348 = vector.broadcast %331 : i32 to vector<8x1xi32>
    %349 = arith.cmpi sgt, %7, %348 : vector<8x1xi32>
    %350 = vector.shape_cast %349 : vector<8x1xi1> to vector<8x1xi1>
    %351 = vector.broadcast %350 : vector<8x1xi1> to vector<8x32xi1>
    %352 = arith.select %351, %347, %276 : vector<8x32xi1>, vector<8x32xf32>
    %353 = vector.shape_cast %349 : vector<8x1xi1> to vector<8x1xi1>
    %354 = vector.broadcast %353 : vector<8x1xi1> to vector<8x32xi1>
    %355 = arith.select %354, %345, %279 : vector<8x32xi1>, vector<8x32xf32>
    %cst_100 = arith.constant 0.000000e+00 : f32
    %356 = vector.shape_cast %349 : vector<8x1xi1> to vector<8x1xi1>
    %357 = vector.broadcast %356 : vector<8x1xi1> to vector<8x32xi1>
    %358 = vector.broadcast %cst_100 : f32 to vector<8x32xf32>
    %359 = arith.select %357, %347, %358 : vector<8x32xi1>, vector<8x32xf32>
    %c11_i32 = arith.constant 11 : i32
    %360 = arith.addi %10, %c11_i32 : i32
    %361 = vector.extract_strided_slice %330 {offsets = [0, 0], sizes = [8, 96], strides = [1, 1]} : vector<8x128xf32> to vector<8x96xf32>
    %362 = arith.negf %361 : vector<8x96xf32>
    %363 = math.exp %362 : vector<8x96xf32>
    %cst_101 = arith.constant 1.000000e+00 : f32
    %364 = vector.broadcast %cst_101 : f32 to vector<8x96xf32>
    %365 = arith.addf %364, %363 : vector<8x96xf32>
    %366 = arith.divf %364, %365 : vector<8x96xf32>
    %367 = vector.extract_strided_slice %366 {offsets = [0, 0], sizes = [8, 32], strides = [1, 1]} : vector<8x96xf32> to vector<8x32xf32>
    %368 = vector.extract_strided_slice %366 {offsets = [0, 32], sizes = [8, 32], strides = [1, 1]} : vector<8x96xf32> to vector<8x32xf32>
    %369 = vector.extract_strided_slice %366 {offsets = [0, 64], sizes = [8, 32], strides = [1, 1]} : vector<8x96xf32> to vector<8x32xf32>
    %370 = vector.extract_strided_slice %330 {offsets = [0, 96], sizes = [8, 32], strides = [1, 1]} : vector<8x128xf32> to vector<8x32xf32>
    %371 = math.tanh %370 : vector<8x32xf32>
    %372 = arith.mulf %368, %308 : vector<8x32xf32>
    %373 = arith.mulf %367, %371 : vector<8x32xf32>
    %374 = arith.addf %372, %373 : vector<8x32xf32>
    %375 = math.tanh %374 : vector<8x32xf32>
    %376 = arith.mulf %369, %375 : vector<8x32xf32>
    %377 = vector.broadcast %360 : i32 to vector<8x1xi32>
    %378 = arith.cmpi sgt, %7, %377 : vector<8x1xi32>
    %379 = vector.shape_cast %378 : vector<8x1xi1> to vector<8x1xi1>
    %380 = vector.broadcast %379 : vector<8x1xi1> to vector<8x32xi1>
    %381 = arith.select %380, %376, %305 : vector<8x32xi1>, vector<8x32xf32>
    %382 = vector.shape_cast %378 : vector<8x1xi1> to vector<8x1xi1>
    %383 = vector.broadcast %382 : vector<8x1xi1> to vector<8x32xi1>
    %384 = arith.select %383, %374, %308 : vector<8x32xi1>, vector<8x32xf32>
    %cst_102 = arith.constant 0.000000e+00 : f32
    %385 = vector.shape_cast %378 : vector<8x1xi1> to vector<8x1xi1>
    %386 = vector.broadcast %385 : vector<8x1xi1> to vector<8x32xi1>
    %387 = vector.broadcast %cst_102 : f32 to vector<8x32xf32>
    %388 = arith.select %386, %376, %387 : vector<8x32xi1>, vector<8x32xf32>
    %c4_103 = arith.constant 4 : index
    %c0_104 = arith.constant 0 : index
    %c0_105 = arith.constant 0 : index
    %389 = vector.load %arg6[%c4_103, %c0_104, %c0_105] : memref<16x8x32xf32, #tpu.memory_space<vmem>>, vector<1x8x32xf32>
    %390 = vector.shape_cast %389 : vector<1x8x32xf32> to vector<8x32xf32>
    %391 = vector.shape_cast %359 : vector<8x32xf32> to vector<1x8x32xf32>
    tpu.vector_store %arg6[%c4_103, %c0_104, %c0_105], %391 {strides = array<i32>} : memref<16x8x32xf32, #tpu.memory_space<vmem>>, vector<1x8x32xf32>,
    %c11_106 = arith.constant 11 : index
    %c0_107 = arith.constant 0 : index
    %c0_108 = arith.constant 0 : index
    %392 = vector.load %arg7[%c11_106, %c0_107, %c0_108] : memref<16x8x32xf32, #tpu.memory_space<vmem>>, vector<1x8x32xf32>
    %393 = vector.shape_cast %392 : vector<1x8x32xf32> to vector<8x32xf32>
    %394 = vector.shape_cast %388 : vector<8x32xf32> to vector<1x8x32xf32>
    tpu.vector_store %arg7[%c11_106, %c0_107, %c0_108], %394 {strides = array<i32>} : memref<16x8x32xf32, #tpu.memory_space<vmem>>, vector<1x8x32xf32>,
    %c0_109 = arith.constant 0 : index
    %c5 = arith.constant 5 : index
    %c0_110 = arith.constant 0 : index
    %c0_111 = arith.constant 0 : index
    %395 = vector.load %arg1[%c0_109, %c5, %c0_110, %c0_111] : memref<1x16x8x128xbf16, #tpu.memory_space<vmem>>, vector<1x1x8x128xbf16>
    %396 = vector.shape_cast %395 : vector<1x1x8x128xbf16> to vector<8x128xbf16>
    %397 = arith.extf %396 : vector<8x128xbf16> to vector<8x128xf32>
    %398 = arith.truncf %352 : vector<8x32xf32> to vector<8x32xbf16>
    %cst_112 = arith.constant dense<0.000000e+00> : vector<8x128xf32>
    %399 = tpu.matmul %398, %4, %cst_112 {dimension_numbers = #tpu.dot_dimension_numbers<[1], [0], [0], [1], [0, 0, 1, 1], [], []>} : vector<8x32xbf16>, vector<32x128xbf16>, vector<8x128xf32> -> vector<8x128xf32>
    %400 = arith.addf %397, %399 : vector<8x128xf32>
    %c0_113 = arith.constant 0 : index
    %c10 = arith.constant 10 : index
    %c0_114 = arith.constant 0 : index
    %c0_115 = arith.constant 0 : index
    %401 = vector.load %arg2[%c0_113, %c10, %c0_114, %c0_115] : memref<1x16x8x128xbf16, #tpu.memory_space<vmem>>, vector<1x1x8x128xbf16>
    %402 = vector.shape_cast %401 : vector<1x1x8x128xbf16> to vector<8x128xbf16>
    %403 = arith.extf %402 : vector<8x128xbf16> to vector<8x128xf32>
    %404 = arith.truncf %381 : vector<8x32xf32> to vector<8x32xbf16>
    %cst_116 = arith.constant dense<0.000000e+00> : vector<8x128xf32>
    %405 = tpu.matmul %404, %6, %cst_116 {dimension_numbers = #tpu.dot_dimension_numbers<[1], [0], [0], [1], [0, 0, 1, 1], [], []>} : vector<8x32xbf16>, vector<32x128xbf16>, vector<8x128xf32> -> vector<8x128xf32>
    %406 = arith.addf %403, %405 : vector<8x128xf32>
    %c5_i32 = arith.constant 5 : i32
    %407 = arith.addi %8, %c5_i32 : i32
    %408 = vector.extract_strided_slice %400 {offsets = [0, 0], sizes = [8, 96], strides = [1, 1]} : vector<8x128xf32> to vector<8x96xf32>
    %409 = arith.negf %408 : vector<8x96xf32>
    %410 = math.exp %409 : vector<8x96xf32>
    %cst_117 = arith.constant 1.000000e+00 : f32
    %411 = vector.broadcast %cst_117 : f32 to vector<8x96xf32>
    %412 = arith.addf %411, %410 : vector<8x96xf32>
    %413 = arith.divf %411, %412 : vector<8x96xf32>
    %414 = vector.extract_strided_slice %413 {offsets = [0, 0], sizes = [8, 32], strides = [1, 1]} : vector<8x96xf32> to vector<8x32xf32>
    %415 = vector.extract_strided_slice %413 {offsets = [0, 32], sizes = [8, 32], strides = [1, 1]} : vector<8x96xf32> to vector<8x32xf32>
    %416 = vector.extract_strided_slice %413 {offsets = [0, 64], sizes = [8, 32], strides = [1, 1]} : vector<8x96xf32> to vector<8x32xf32>
    %417 = vector.extract_strided_slice %400 {offsets = [0, 96], sizes = [8, 32], strides = [1, 1]} : vector<8x128xf32> to vector<8x32xf32>
    %418 = math.tanh %417 : vector<8x32xf32>
    %419 = arith.mulf %415, %355 : vector<8x32xf32>
    %420 = arith.mulf %414, %418 : vector<8x32xf32>
    %421 = arith.addf %419, %420 : vector<8x32xf32>
    %422 = math.tanh %421 : vector<8x32xf32>
    %423 = arith.mulf %416, %422 : vector<8x32xf32>
    %424 = vector.broadcast %407 : i32 to vector<8x1xi32>
    %425 = arith.cmpi sgt, %7, %424 : vector<8x1xi32>
    %426 = vector.shape_cast %425 : vector<8x1xi1> to vector<8x1xi1>
    %427 = vector.broadcast %426 : vector<8x1xi1> to vector<8x32xi1>
    %428 = arith.select %427, %423, %352 : vector<8x32xi1>, vector<8x32xf32>
    %429 = vector.shape_cast %425 : vector<8x1xi1> to vector<8x1xi1>
    %430 = vector.broadcast %429 : vector<8x1xi1> to vector<8x32xi1>
    %431 = arith.select %430, %421, %355 : vector<8x32xi1>, vector<8x32xf32>
    %cst_118 = arith.constant 0.000000e+00 : f32
    %432 = vector.shape_cast %425 : vector<8x1xi1> to vector<8x1xi1>
    %433 = vector.broadcast %432 : vector<8x1xi1> to vector<8x32xi1>
    %434 = vector.broadcast %cst_118 : f32 to vector<8x32xf32>
    %435 = arith.select %433, %423, %434 : vector<8x32xi1>, vector<8x32xf32>
    %c10_i32 = arith.constant 10 : i32
    %436 = arith.addi %10, %c10_i32 : i32
    %437 = vector.extract_strided_slice %406 {offsets = [0, 0], sizes = [8, 96], strides = [1, 1]} : vector<8x128xf32> to vector<8x96xf32>
    %438 = arith.negf %437 : vector<8x96xf32>
    %439 = math.exp %438 : vector<8x96xf32>
    %cst_119 = arith.constant 1.000000e+00 : f32
    %440 = vector.broadcast %cst_119 : f32 to vector<8x96xf32>
    %441 = arith.addf %440, %439 : vector<8x96xf32>
    %442 = arith.divf %440, %441 : vector<8x96xf32>
    %443 = vector.extract_strided_slice %442 {offsets = [0, 0], sizes = [8, 32], strides = [1, 1]} : vector<8x96xf32> to vector<8x32xf32>
    %444 = vector.extract_strided_slice %442 {offsets = [0, 32], sizes = [8, 32], strides = [1, 1]} : vector<8x96xf32> to vector<8x32xf32>
    %445 = vector.extract_strided_slice %442 {offsets = [0, 64], sizes = [8, 32], strides = [1, 1]} : vector<8x96xf32> to vector<8x32xf32>
    %446 = vector.extract_strided_slice %406 {offsets = [0, 96], sizes = [8, 32], strides = [1, 1]} : vector<8x128xf32> to vector<8x32xf32>
    %447 = math.tanh %446 : vector<8x32xf32>
    %448 = arith.mulf %444, %384 : vector<8x32xf32>
    %449 = arith.mulf %443, %447 : vector<8x32xf32>
    %450 = arith.addf %448, %449 : vector<8x32xf32>
    %451 = math.tanh %450 : vector<8x32xf32>
    %452 = arith.mulf %445, %451 : vector<8x32xf32>
    %453 = vector.broadcast %436 : i32 to vector<8x1xi32>
    %454 = arith.cmpi sgt, %7, %453 : vector<8x1xi32>
    %455 = vector.shape_cast %454 : vector<8x1xi1> to vector<8x1xi1>
    %456 = vector.broadcast %455 : vector<8x1xi1> to vector<8x32xi1>
    %457 = arith.select %456, %452, %381 : vector<8x32xi1>, vector<8x32xf32>
    %458 = vector.shape_cast %454 : vector<8x1xi1> to vector<8x1xi1>
    %459 = vector.broadcast %458 : vector<8x1xi1> to vector<8x32xi1>
    %460 = arith.select %459, %450, %384 : vector<8x32xi1>, vector<8x32xf32>
    %cst_120 = arith.constant 0.000000e+00 : f32
    %461 = vector.shape_cast %454 : vector<8x1xi1> to vector<8x1xi1>
    %462 = vector.broadcast %461 : vector<8x1xi1> to vector<8x32xi1>
    %463 = vector.broadcast %cst_120 : f32 to vector<8x32xf32>
    %464 = arith.select %462, %452, %463 : vector<8x32xi1>, vector<8x32xf32>
    %c5_121 = arith.constant 5 : index
    %c0_122 = arith.constant 0 : index
    %c0_123 = arith.constant 0 : index
    %465 = vector.load %arg6[%c5_121, %c0_122, %c0_123] : memref<16x8x32xf32, #tpu.memory_space<vmem>>, vector<1x8x32xf32>
    %466 = vector.shape_cast %465 : vector<1x8x32xf32> to vector<8x32xf32>
    %467 = vector.shape_cast %435 : vector<8x32xf32> to vector<1x8x32xf32>
    tpu.vector_store %arg6[%c5_121, %c0_122, %c0_123], %467 {strides = array<i32>} : memref<16x8x32xf32, #tpu.memory_space<vmem>>, vector<1x8x32xf32>,
    %c10_124 = arith.constant 10 : index
    %c0_125 = arith.constant 0 : index
    %c0_126 = arith.constant 0 : index
    %468 = vector.load %arg7[%c10_124, %c0_125, %c0_126] : memref<16x8x32xf32, #tpu.memory_space<vmem>>, vector<1x8x32xf32>
    %469 = vector.shape_cast %468 : vector<1x8x32xf32> to vector<8x32xf32>
    %470 = vector.shape_cast %464 : vector<8x32xf32> to vector<1x8x32xf32>
    tpu.vector_store %arg7[%c10_124, %c0_125, %c0_126], %470 {strides = array<i32>} : memref<16x8x32xf32, #tpu.memory_space<vmem>>, vector<1x8x32xf32>,
    %c0_127 = arith.constant 0 : index
    %c6 = arith.constant 6 : index
    %c0_128 = arith.constant 0 : index
    %c0_129 = arith.constant 0 : index
    %471 = vector.load %arg1[%c0_127, %c6, %c0_128, %c0_129] : memref<1x16x8x128xbf16, #tpu.memory_space<vmem>>, vector<1x1x8x128xbf16>
    %472 = vector.shape_cast %471 : vector<1x1x8x128xbf16> to vector<8x128xbf16>
    %473 = arith.extf %472 : vector<8x128xbf16> to vector<8x128xf32>
    %474 = arith.truncf %428 : vector<8x32xf32> to vector<8x32xbf16>
    %cst_130 = arith.constant dense<0.000000e+00> : vector<8x128xf32>
    %475 = tpu.matmul %474, %4, %cst_130 {dimension_numbers = #tpu.dot_dimension_numbers<[1], [0], [0], [1], [0, 0, 1, 1], [], []>} : vector<8x32xbf16>, vector<32x128xbf16>, vector<8x128xf32> -> vector<8x128xf32>
    %476 = arith.addf %473, %475 : vector<8x128xf32>
    %c0_131 = arith.constant 0 : index
    %c9 = arith.constant 9 : index
    %c0_132 = arith.constant 0 : index
    %c0_133 = arith.constant 0 : index
    %477 = vector.load %arg2[%c0_131, %c9, %c0_132, %c0_133] : memref<1x16x8x128xbf16, #tpu.memory_space<vmem>>, vector<1x1x8x128xbf16>
    %478 = vector.shape_cast %477 : vector<1x1x8x128xbf16> to vector<8x128xbf16>
    %479 = arith.extf %478 : vector<8x128xbf16> to vector<8x128xf32>
    %480 = arith.truncf %457 : vector<8x32xf32> to vector<8x32xbf16>
    %cst_134 = arith.constant dense<0.000000e+00> : vector<8x128xf32>
    %481 = tpu.matmul %480, %6, %cst_134 {dimension_numbers = #tpu.dot_dimension_numbers<[1], [0], [0], [1], [0, 0, 1, 1], [], []>} : vector<8x32xbf16>, vector<32x128xbf16>, vector<8x128xf32> -> vector<8x128xf32>
    %482 = arith.addf %479, %481 : vector<8x128xf32>
    %c6_i32 = arith.constant 6 : i32
    %483 = arith.addi %8, %c6_i32 : i32
    %484 = vector.extract_strided_slice %476 {offsets = [0, 0], sizes = [8, 96], strides = [1, 1]} : vector<8x128xf32> to vector<8x96xf32>
    %485 = arith.negf %484 : vector<8x96xf32>
    %486 = math.exp %485 : vector<8x96xf32>
    %cst_135 = arith.constant 1.000000e+00 : f32
    %487 = vector.broadcast %cst_135 : f32 to vector<8x96xf32>
    %488 = arith.addf %487, %486 : vector<8x96xf32>
    %489 = arith.divf %487, %488 : vector<8x96xf32>
    %490 = vector.extract_strided_slice %489 {offsets = [0, 0], sizes = [8, 32], strides = [1, 1]} : vector<8x96xf32> to vector<8x32xf32>
    %491 = vector.extract_strided_slice %489 {offsets = [0, 32], sizes = [8, 32], strides = [1, 1]} : vector<8x96xf32> to vector<8x32xf32>
    %492 = vector.extract_strided_slice %489 {offsets = [0, 64], sizes = [8, 32], strides = [1, 1]} : vector<8x96xf32> to vector<8x32xf32>
    %493 = vector.extract_strided_slice %476 {offsets = [0, 96], sizes = [8, 32], strides = [1, 1]} : vector<8x128xf32> to vector<8x32xf32>
    %494 = math.tanh %493 : vector<8x32xf32>
    %495 = arith.mulf %491, %431 : vector<8x32xf32>
    %496 = arith.mulf %490, %494 : vector<8x32xf32>
    %497 = arith.addf %495, %496 : vector<8x32xf32>
    %498 = math.tanh %497 : vector<8x32xf32>
    %499 = arith.mulf %492, %498 : vector<8x32xf32>
    %500 = vector.broadcast %483 : i32 to vector<8x1xi32>
    %501 = arith.cmpi sgt, %7, %500 : vector<8x1xi32>
    %502 = vector.shape_cast %501 : vector<8x1xi1> to vector<8x1xi1>
    %503 = vector.broadcast %502 : vector<8x1xi1> to vector<8x32xi1>
    %504 = arith.select %503, %499, %428 : vector<8x32xi1>, vector<8x32xf32>
    %505 = vector.shape_cast %501 : vector<8x1xi1> to vector<8x1xi1>
    %506 = vector.broadcast %505 : vector<8x1xi1> to vector<8x32xi1>
    %507 = arith.select %506, %497, %431 : vector<8x32xi1>, vector<8x32xf32>
    %cst_136 = arith.constant 0.000000e+00 : f32
    %508 = vector.shape_cast %501 : vector<8x1xi1> to vector<8x1xi1>
    %509 = vector.broadcast %508 : vector<8x1xi1> to vector<8x32xi1>
    %510 = vector.broadcast %cst_136 : f32 to vector<8x32xf32>
    %511 = arith.select %509, %499, %510 : vector<8x32xi1>, vector<8x32xf32>
    %c9_i32 = arith.constant 9 : i32
    %512 = arith.addi %10, %c9_i32 : i32
    %513 = vector.extract_strided_slice %482 {offsets = [0, 0], sizes = [8, 96], strides = [1, 1]} : vector<8x128xf32> to vector<8x96xf32>
    %514 = arith.negf %513 : vector<8x96xf32>
    %515 = math.exp %514 : vector<8x96xf32>
    %cst_137 = arith.constant 1.000000e+00 : f32
    %516 = vector.broadcast %cst_137 : f32 to vector<8x96xf32>
    %517 = arith.addf %516, %515 : vector<8x96xf32>
    %518 = arith.divf %516, %517 : vector<8x96xf32>
    %519 = vector.extract_strided_slice %518 {offsets = [0, 0], sizes = [8, 32], strides = [1, 1]} : vector<8x96xf32> to vector<8x32xf32>
    %520 = vector.extract_strided_slice %518 {offsets = [0, 32], sizes = [8, 32], strides = [1, 1]} : vector<8x96xf32> to vector<8x32xf32>
    %521 = vector.extract_strided_slice %518 {offsets = [0, 64], sizes = [8, 32], strides = [1, 1]} : vector<8x96xf32> to vector<8x32xf32>
    %522 = vector.extract_strided_slice %482 {offsets = [0, 96], sizes = [8, 32], strides = [1, 1]} : vector<8x128xf32> to vector<8x32xf32>
    %523 = math.tanh %522 : vector<8x32xf32>
    %524 = arith.mulf %520, %460 : vector<8x32xf32>
    %525 = arith.mulf %519, %523 : vector<8x32xf32>
    %526 = arith.addf %524, %525 : vector<8x32xf32>
    %527 = math.tanh %526 : vector<8x32xf32>
    %528 = arith.mulf %521, %527 : vector<8x32xf32>
    %529 = vector.broadcast %512 : i32 to vector<8x1xi32>
    %530 = arith.cmpi sgt, %7, %529 : vector<8x1xi32>
    %531 = vector.shape_cast %530 : vector<8x1xi1> to vector<8x1xi1>
    %532 = vector.broadcast %531 : vector<8x1xi1> to vector<8x32xi1>
    %533 = arith.select %532, %528, %457 : vector<8x32xi1>, vector<8x32xf32>
    %534 = vector.shape_cast %530 : vector<8x1xi1> to vector<8x1xi1>
    %535 = vector.broadcast %534 : vector<8x1xi1> to vector<8x32xi1>
    %536 = arith.select %535, %526, %460 : vector<8x32xi1>, vector<8x32xf32>
    %cst_138 = arith.constant 0.000000e+00 : f32
    %537 = vector.shape_cast %530 : vector<8x1xi1> to vector<8x1xi1>
    %538 = vector.broadcast %537 : vector<8x1xi1> to vector<8x32xi1>
    %539 = vector.broadcast %cst_138 : f32 to vector<8x32xf32>
    %540 = arith.select %538, %528, %539 : vector<8x32xi1>, vector<8x32xf32>
    %c6_139 = arith.constant 6 : index
    %c0_140 = arith.constant 0 : index
    %c0_141 = arith.constant 0 : index
    %541 = vector.load %arg6[%c6_139, %c0_140, %c0_141] : memref<16x8x32xf32, #tpu.memory_space<vmem>>, vector<1x8x32xf32>
    %542 = vector.shape_cast %541 : vector<1x8x32xf32> to vector<8x32xf32>
    %543 = vector.shape_cast %511 : vector<8x32xf32> to vector<1x8x32xf32>
    tpu.vector_store %arg6[%c6_139, %c0_140, %c0_141], %543 {strides = array<i32>} : memref<16x8x32xf32, #tpu.memory_space<vmem>>, vector<1x8x32xf32>,
    %c9_142 = arith.constant 9 : index
    %c0_143 = arith.constant 0 : index
    %c0_144 = arith.constant 0 : index
    %544 = vector.load %arg7[%c9_142, %c0_143, %c0_144] : memref<16x8x32xf32, #tpu.memory_space<vmem>>, vector<1x8x32xf32>
    %545 = vector.shape_cast %544 : vector<1x8x32xf32> to vector<8x32xf32>
    %546 = vector.shape_cast %540 : vector<8x32xf32> to vector<1x8x32xf32>
    tpu.vector_store %arg7[%c9_142, %c0_143, %c0_144], %546 {strides = array<i32>} : memref<16x8x32xf32, #tpu.memory_space<vmem>>, vector<1x8x32xf32>,
    %c0_145 = arith.constant 0 : index
    %c7 = arith.constant 7 : index
    %c0_146 = arith.constant 0 : index
    %c0_147 = arith.constant 0 : index
    %547 = vector.load %arg1[%c0_145, %c7, %c0_146, %c0_147] : memref<1x16x8x128xbf16, #tpu.memory_space<vmem>>, vector<1x1x8x128xbf16>
    %548 = vector.shape_cast %547 : vector<1x1x8x128xbf16> to vector<8x128xbf16>
    %549 = arith.extf %548 : vector<8x128xbf16> to vector<8x128xf32>
    %550 = arith.truncf %504 : vector<8x32xf32> to vector<8x32xbf16>
    %cst_148 = arith.constant dense<0.000000e+00> : vector<8x128xf32>
    %551 = tpu.matmul %550, %4, %cst_148 {dimension_numbers = #tpu.dot_dimension_numbers<[1], [0], [0], [1], [0, 0, 1, 1], [], []>} : vector<8x32xbf16>, vector<32x128xbf16>, vector<8x128xf32> -> vector<8x128xf32>
    %552 = arith.addf %549, %551 : vector<8x128xf32>
    %c0_149 = arith.constant 0 : index
    %c8 = arith.constant 8 : index
    %c0_150 = arith.constant 0 : index
    %c0_151 = arith.constant 0 : index
    %553 = vector.load %arg2[%c0_149, %c8, %c0_150, %c0_151] : memref<1x16x8x128xbf16, #tpu.memory_space<vmem>>, vector<1x1x8x128xbf16>
    %554 = vector.shape_cast %553 : vector<1x1x8x128xbf16> to vector<8x128xbf16>
    %555 = arith.extf %554 : vector<8x128xbf16> to vector<8x128xf32>
    %556 = arith.truncf %533 : vector<8x32xf32> to vector<8x32xbf16>
    %cst_152 = arith.constant dense<0.000000e+00> : vector<8x128xf32>
    %557 = tpu.matmul %556, %6, %cst_152 {dimension_numbers = #tpu.dot_dimension_numbers<[1], [0], [0], [1], [0, 0, 1, 1], [], []>} : vector<8x32xbf16>, vector<32x128xbf16>, vector<8x128xf32> -> vector<8x128xf32>
    %558 = arith.addf %555, %557 : vector<8x128xf32>
    %c7_i32 = arith.constant 7 : i32
    %559 = arith.addi %8, %c7_i32 : i32
    %560 = vector.extract_strided_slice %552 {offsets = [0, 0], sizes = [8, 96], strides = [1, 1]} : vector<8x128xf32> to vector<8x96xf32>
    %561 = arith.negf %560 : vector<8x96xf32>
    %562 = math.exp %561 : vector<8x96xf32>
    %cst_153 = arith.constant 1.000000e+00 : f32
    %563 = vector.broadcast %cst_153 : f32 to vector<8x96xf32>
    %564 = arith.addf %563, %562 : vector<8x96xf32>
    %565 = arith.divf %563, %564 : vector<8x96xf32>
    %566 = vector.extract_strided_slice %565 {offsets = [0, 0], sizes = [8, 32], strides = [1, 1]} : vector<8x96xf32> to vector<8x32xf32>
    %567 = vector.extract_strided_slice %565 {offsets = [0, 32], sizes = [8, 32], strides = [1, 1]} : vector<8x96xf32> to vector<8x32xf32>
    %568 = vector.extract_strided_slice %565 {offsets = [0, 64], sizes = [8, 32], strides = [1, 1]} : vector<8x96xf32> to vector<8x32xf32>
    %569 = vector.extract_strided_slice %552 {offsets = [0, 96], sizes = [8, 32], strides = [1, 1]} : vector<8x128xf32> to vector<8x32xf32>
    %570 = math.tanh %569 : vector<8x32xf32>
    %571 = arith.mulf %567, %507 : vector<8x32xf32>
    %572 = arith.mulf %566, %570 : vector<8x32xf32>
    %573 = arith.addf %571, %572 : vector<8x32xf32>
    %574 = math.tanh %573 : vector<8x32xf32>
    %575 = arith.mulf %568, %574 : vector<8x32xf32>
    %576 = vector.broadcast %559 : i32 to vector<8x1xi32>
    %577 = arith.cmpi sgt, %7, %576 : vector<8x1xi32>
    %578 = vector.shape_cast %577 : vector<8x1xi1> to vector<8x1xi1>
    %579 = vector.broadcast %578 : vector<8x1xi1> to vector<8x32xi1>
    %580 = arith.select %579, %575, %504 : vector<8x32xi1>, vector<8x32xf32>
    %581 = vector.shape_cast %577 : vector<8x1xi1> to vector<8x1xi1>
    %582 = vector.broadcast %581 : vector<8x1xi1> to vector<8x32xi1>
    %583 = arith.select %582, %573, %507 : vector<8x32xi1>, vector<8x32xf32>
    %cst_154 = arith.constant 0.000000e+00 : f32
    %584 = vector.shape_cast %577 : vector<8x1xi1> to vector<8x1xi1>
    %585 = vector.broadcast %584 : vector<8x1xi1> to vector<8x32xi1>
    %586 = vector.broadcast %cst_154 : f32 to vector<8x32xf32>
    %587 = arith.select %585, %575, %586 : vector<8x32xi1>, vector<8x32xf32>
    %c8_i32 = arith.constant 8 : i32
    %588 = arith.addi %10, %c8_i32 : i32
    %589 = vector.extract_strided_slice %558 {offsets = [0, 0], sizes = [8, 96], strides = [1, 1]} : vector<8x128xf32> to vector<8x96xf32>
    %590 = arith.negf %589 : vector<8x96xf32>
    %591 = math.exp %590 : vector<8x96xf32>
    %cst_155 = arith.constant 1.000000e+00 : f32
    %592 = vector.broadcast %cst_155 : f32 to vector<8x96xf32>
    %593 = arith.addf %592, %591 : vector<8x96xf32>
    %594 = arith.divf %592, %593 : vector<8x96xf32>
    %595 = vector.extract_strided_slice %594 {offsets = [0, 0], sizes = [8, 32], strides = [1, 1]} : vector<8x96xf32> to vector<8x32xf32>
    %596 = vector.extract_strided_slice %594 {offsets = [0, 32], sizes = [8, 32], strides = [1, 1]} : vector<8x96xf32> to vector<8x32xf32>
    %597 = vector.extract_strided_slice %594 {offsets = [0, 64], sizes = [8, 32], strides = [1, 1]} : vector<8x96xf32> to vector<8x32xf32>
    %598 = vector.extract_strided_slice %558 {offsets = [0, 96], sizes = [8, 32], strides = [1, 1]} : vector<8x128xf32> to vector<8x32xf32>
    %599 = math.tanh %598 : vector<8x32xf32>
    %600 = arith.mulf %596, %536 : vector<8x32xf32>
    %601 = arith.mulf %595, %599 : vector<8x32xf32>
    %602 = arith.addf %600, %601 : vector<8x32xf32>
    %603 = math.tanh %602 : vector<8x32xf32>
    %604 = arith.mulf %597, %603 : vector<8x32xf32>
    %605 = vector.broadcast %588 : i32 to vector<8x1xi32>
    %606 = arith.cmpi sgt, %7, %605 : vector<8x1xi32>
    %607 = vector.shape_cast %606 : vector<8x1xi1> to vector<8x1xi1>
    %608 = vector.broadcast %607 : vector<8x1xi1> to vector<8x32xi1>
    %609 = arith.select %608, %604, %533 : vector<8x32xi1>, vector<8x32xf32>
    %610 = vector.shape_cast %606 : vector<8x1xi1> to vector<8x1xi1>
    %611 = vector.broadcast %610 : vector<8x1xi1> to vector<8x32xi1>
    %612 = arith.select %611, %602, %536 : vector<8x32xi1>, vector<8x32xf32>
    %cst_156 = arith.constant 0.000000e+00 : f32
    %613 = vector.shape_cast %606 : vector<8x1xi1> to vector<8x1xi1>
    %614 = vector.broadcast %613 : vector<8x1xi1> to vector<8x32xi1>
    %615 = vector.broadcast %cst_156 : f32 to vector<8x32xf32>
    %616 = arith.select %614, %604, %615 : vector<8x32xi1>, vector<8x32xf32>
    %c7_157 = arith.constant 7 : index
    %c0_158 = arith.constant 0 : index
    %c0_159 = arith.constant 0 : index
    %617 = vector.load %arg6[%c7_157, %c0_158, %c0_159] : memref<16x8x32xf32, #tpu.memory_space<vmem>>, vector<1x8x32xf32>
    %618 = vector.shape_cast %617 : vector<1x8x32xf32> to vector<8x32xf32>
    %619 = vector.shape_cast %587 : vector<8x32xf32> to vector<1x8x32xf32>
    tpu.vector_store %arg6[%c7_157, %c0_158, %c0_159], %619 {strides = array<i32>} : memref<16x8x32xf32, #tpu.memory_space<vmem>>, vector<1x8x32xf32>,
    %c8_160 = arith.constant 8 : index
    %c0_161 = arith.constant 0 : index
    %c0_162 = arith.constant 0 : index
    %620 = vector.load %arg7[%c8_160, %c0_161, %c0_162] : memref<16x8x32xf32, #tpu.memory_space<vmem>>, vector<1x8x32xf32>
    %621 = vector.shape_cast %620 : vector<1x8x32xf32> to vector<8x32xf32>
    %622 = vector.shape_cast %616 : vector<8x32xf32> to vector<1x8x32xf32>
    tpu.vector_store %arg7[%c8_160, %c0_161, %c0_162], %622 {strides = array<i32>} : memref<16x8x32xf32, #tpu.memory_space<vmem>>, vector<1x8x32xf32>,
    %c0_163 = arith.constant 0 : index
    %c8_164 = arith.constant 8 : index
    %c0_165 = arith.constant 0 : index
    %c0_166 = arith.constant 0 : index
    %623 = vector.load %arg1[%c0_163, %c8_164, %c0_165, %c0_166] : memref<1x16x8x128xbf16, #tpu.memory_space<vmem>>, vector<1x1x8x128xbf16>
    %624 = vector.shape_cast %623 : vector<1x1x8x128xbf16> to vector<8x128xbf16>
    %625 = arith.extf %624 : vector<8x128xbf16> to vector<8x128xf32>
    %626 = arith.truncf %580 : vector<8x32xf32> to vector<8x32xbf16>
    %cst_167 = arith.constant dense<0.000000e+00> : vector<8x128xf32>
    %627 = tpu.matmul %626, %4, %cst_167 {dimension_numbers = #tpu.dot_dimension_numbers<[1], [0], [0], [1], [0, 0, 1, 1], [], []>} : vector<8x32xbf16>, vector<32x128xbf16>, vector<8x128xf32> -> vector<8x128xf32>
    %628 = arith.addf %625, %627 : vector<8x128xf32>
    %c0_168 = arith.constant 0 : index
    %c7_169 = arith.constant 7 : index
    %c0_170 = arith.constant 0 : index
    %c0_171 = arith.constant 0 : index
    %629 = vector.load %arg2[%c0_168, %c7_169, %c0_170, %c0_171] : memref<1x16x8x128xbf16, #tpu.memory_space<vmem>>, vector<1x1x8x128xbf16>
    %630 = vector.shape_cast %629 : vector<1x1x8x128xbf16> to vector<8x128xbf16>
    %631 = arith.extf %630 : vector<8x128xbf16> to vector<8x128xf32>
    %632 = arith.truncf %609 : vector<8x32xf32> to vector<8x32xbf16>
    %cst_172 = arith.constant dense<0.000000e+00> : vector<8x128xf32>
    %633 = tpu.matmul %632, %6, %cst_172 {dimension_numbers = #tpu.dot_dimension_numbers<[1], [0], [0], [1], [0, 0, 1, 1], [], []>} : vector<8x32xbf16>, vector<32x128xbf16>, vector<8x128xf32> -> vector<8x128xf32>
    %634 = arith.addf %631, %633 : vector<8x128xf32>
    %c8_i32_173 = arith.constant 8 : i32
    %635 = arith.addi %8, %c8_i32_173 : i32
    %636 = vector.extract_strided_slice %628 {offsets = [0, 0], sizes = [8, 96], strides = [1, 1]} : vector<8x128xf32> to vector<8x96xf32>
    %637 = arith.negf %636 : vector<8x96xf32>
    %638 = math.exp %637 : vector<8x96xf32>
    %cst_174 = arith.constant 1.000000e+00 : f32
    %639 = vector.broadcast %cst_174 : f32 to vector<8x96xf32>
    %640 = arith.addf %639, %638 : vector<8x96xf32>
    %641 = arith.divf %639, %640 : vector<8x96xf32>
    %642 = vector.extract_strided_slice %641 {offsets = [0, 0], sizes = [8, 32], strides = [1, 1]} : vector<8x96xf32> to vector<8x32xf32>
    %643 = vector.extract_strided_slice %641 {offsets = [0, 32], sizes = [8, 32], strides = [1, 1]} : vector<8x96xf32> to vector<8x32xf32>
    %644 = vector.extract_strided_slice %641 {offsets = [0, 64], sizes = [8, 32], strides = [1, 1]} : vector<8x96xf32> to vector<8x32xf32>
    %645 = vector.extract_strided_slice %628 {offsets = [0, 96], sizes = [8, 32], strides = [1, 1]} : vector<8x128xf32> to vector<8x32xf32>
    %646 = math.tanh %645 : vector<8x32xf32>
    %647 = arith.mulf %643, %583 : vector<8x32xf32>
    %648 = arith.mulf %642, %646 : vector<8x32xf32>
    %649 = arith.addf %647, %648 : vector<8x32xf32>
    %650 = math.tanh %649 : vector<8x32xf32>
    %651 = arith.mulf %644, %650 : vector<8x32xf32>
    %652 = vector.broadcast %635 : i32 to vector<8x1xi32>
    %653 = arith.cmpi sgt, %7, %652 : vector<8x1xi32>
    %654 = vector.shape_cast %653 : vector<8x1xi1> to vector<8x1xi1>
    %655 = vector.broadcast %654 : vector<8x1xi1> to vector<8x32xi1>
    %656 = arith.select %655, %651, %580 : vector<8x32xi1>, vector<8x32xf32>
    %657 = vector.shape_cast %653 : vector<8x1xi1> to vector<8x1xi1>
    %658 = vector.broadcast %657 : vector<8x1xi1> to vector<8x32xi1>
    %659 = arith.select %658, %649, %583 : vector<8x32xi1>, vector<8x32xf32>
    %cst_175 = arith.constant 0.000000e+00 : f32
    %660 = vector.shape_cast %653 : vector<8x1xi1> to vector<8x1xi1>
    %661 = vector.broadcast %660 : vector<8x1xi1> to vector<8x32xi1>
    %662 = vector.broadcast %cst_175 : f32 to vector<8x32xf32>
    %663 = arith.select %661, %651, %662 : vector<8x32xi1>, vector<8x32xf32>
    %c7_i32_176 = arith.constant 7 : i32
    %664 = arith.addi %10, %c7_i32_176 : i32
    %665 = vector.extract_strided_slice %634 {offsets = [0, 0], sizes = [8, 96], strides = [1, 1]} : vector<8x128xf32> to vector<8x96xf32>
    %666 = arith.negf %665 : vector<8x96xf32>
    %667 = math.exp %666 : vector<8x96xf32>
    %cst_177 = arith.constant 1.000000e+00 : f32
    %668 = vector.broadcast %cst_177 : f32 to vector<8x96xf32>
    %669 = arith.addf %668, %667 : vector<8x96xf32>
    %670 = arith.divf %668, %669 : vector<8x96xf32>
    %671 = vector.extract_strided_slice %670 {offsets = [0, 0], sizes = [8, 32], strides = [1, 1]} : vector<8x96xf32> to vector<8x32xf32>
    %672 = vector.extract_strided_slice %670 {offsets = [0, 32], sizes = [8, 32], strides = [1, 1]} : vector<8x96xf32> to vector<8x32xf32>
    %673 = vector.extract_strided_slice %670 {offsets = [0, 64], sizes = [8, 32], strides = [1, 1]} : vector<8x96xf32> to vector<8x32xf32>
    %674 = vector.extract_strided_slice %634 {offsets = [0, 96], sizes = [8, 32], strides = [1, 1]} : vector<8x128xf32> to vector<8x32xf32>
    %675 = math.tanh %674 : vector<8x32xf32>
    %676 = arith.mulf %672, %612 : vector<8x32xf32>
    %677 = arith.mulf %671, %675 : vector<8x32xf32>
    %678 = arith.addf %676, %677 : vector<8x32xf32>
    %679 = math.tanh %678 : vector<8x32xf32>
    %680 = arith.mulf %673, %679 : vector<8x32xf32>
    %681 = vector.broadcast %664 : i32 to vector<8x1xi32>
    %682 = arith.cmpi sgt, %7, %681 : vector<8x1xi32>
    %683 = vector.shape_cast %682 : vector<8x1xi1> to vector<8x1xi1>
    %684 = vector.broadcast %683 : vector<8x1xi1> to vector<8x32xi1>
    %685 = arith.select %684, %680, %609 : vector<8x32xi1>, vector<8x32xf32>
    %686 = vector.shape_cast %682 : vector<8x1xi1> to vector<8x1xi1>
    %687 = vector.broadcast %686 : vector<8x1xi1> to vector<8x32xi1>
    %688 = arith.select %687, %678, %612 : vector<8x32xi1>, vector<8x32xf32>
    %cst_178 = arith.constant 0.000000e+00 : f32
    %689 = vector.shape_cast %682 : vector<8x1xi1> to vector<8x1xi1>
    %690 = vector.broadcast %689 : vector<8x1xi1> to vector<8x32xi1>
    %691 = vector.broadcast %cst_178 : f32 to vector<8x32xf32>
    %692 = arith.select %690, %680, %691 : vector<8x32xi1>, vector<8x32xf32>
    %c8_179 = arith.constant 8 : index
    %c0_180 = arith.constant 0 : index
    %c0_181 = arith.constant 0 : index
    %693 = vector.load %arg6[%c8_179, %c0_180, %c0_181] : memref<16x8x32xf32, #tpu.memory_space<vmem>>, vector<1x8x32xf32>
    %694 = vector.shape_cast %693 : vector<1x8x32xf32> to vector<8x32xf32>
    %695 = vector.shape_cast %663 : vector<8x32xf32> to vector<1x8x32xf32>
    tpu.vector_store %arg6[%c8_179, %c0_180, %c0_181], %695 {strides = array<i32>} : memref<16x8x32xf32, #tpu.memory_space<vmem>>, vector<1x8x32xf32>,
    %c7_182 = arith.constant 7 : index
    %c0_183 = arith.constant 0 : index
    %c0_184 = arith.constant 0 : index
    %696 = vector.load %arg7[%c7_182, %c0_183, %c0_184] : memref<16x8x32xf32, #tpu.memory_space<vmem>>, vector<1x8x32xf32>
    %697 = vector.shape_cast %696 : vector<1x8x32xf32> to vector<8x32xf32>
    %698 = vector.shape_cast %692 : vector<8x32xf32> to vector<1x8x32xf32>
    tpu.vector_store %arg7[%c7_182, %c0_183, %c0_184], %698 {strides = array<i32>} : memref<16x8x32xf32, #tpu.memory_space<vmem>>, vector<1x8x32xf32>,
    %c0_185 = arith.constant 0 : index
    %c9_186 = arith.constant 9 : index
    %c0_187 = arith.constant 0 : index
    %c0_188 = arith.constant 0 : index
    %699 = vector.load %arg1[%c0_185, %c9_186, %c0_187, %c0_188] : memref<1x16x8x128xbf16, #tpu.memory_space<vmem>>, vector<1x1x8x128xbf16>
    %700 = vector.shape_cast %699 : vector<1x1x8x128xbf16> to vector<8x128xbf16>
    %701 = arith.extf %700 : vector<8x128xbf16> to vector<8x128xf32>
    %702 = arith.truncf %656 : vector<8x32xf32> to vector<8x32xbf16>
    %cst_189 = arith.constant dense<0.000000e+00> : vector<8x128xf32>
    %703 = tpu.matmul %702, %4, %cst_189 {dimension_numbers = #tpu.dot_dimension_numbers<[1], [0], [0], [1], [0, 0, 1, 1], [], []>} : vector<8x32xbf16>, vector<32x128xbf16>, vector<8x128xf32> -> vector<8x128xf32>
    %704 = arith.addf %701, %703 : vector<8x128xf32>
    %c0_190 = arith.constant 0 : index
    %c6_191 = arith.constant 6 : index
    %c0_192 = arith.constant 0 : index
    %c0_193 = arith.constant 0 : index
    %705 = vector.load %arg2[%c0_190, %c6_191, %c0_192, %c0_193] : memref<1x16x8x128xbf16, #tpu.memory_space<vmem>>, vector<1x1x8x128xbf16>
    %706 = vector.shape_cast %705 : vector<1x1x8x128xbf16> to vector<8x128xbf16>
    %707 = arith.extf %706 : vector<8x128xbf16> to vector<8x128xf32>
    %708 = arith.truncf %685 : vector<8x32xf32> to vector<8x32xbf16>
    %cst_194 = arith.constant dense<0.000000e+00> : vector<8x128xf32>
    %709 = tpu.matmul %708, %6, %cst_194 {dimension_numbers = #tpu.dot_dimension_numbers<[1], [0], [0], [1], [0, 0, 1, 1], [], []>} : vector<8x32xbf16>, vector<32x128xbf16>, vector<8x128xf32> -> vector<8x128xf32>
    %710 = arith.addf %707, %709 : vector<8x128xf32>
    %c9_i32_195 = arith.constant 9 : i32
    %711 = arith.addi %8, %c9_i32_195 : i32
    %712 = vector.extract_strided_slice %704 {offsets = [0, 0], sizes = [8, 96], strides = [1, 1]} : vector<8x128xf32> to vector<8x96xf32>
    %713 = arith.negf %712 : vector<8x96xf32>
    %714 = math.exp %713 : vector<8x96xf32>
    %cst_196 = arith.constant 1.000000e+00 : f32
    %715 = vector.broadcast %cst_196 : f32 to vector<8x96xf32>
    %716 = arith.addf %715, %714 : vector<8x96xf32>
    %717 = arith.divf %715, %716 : vector<8x96xf32>
    %718 = vector.extract_strided_slice %717 {offsets = [0, 0], sizes = [8, 32], strides = [1, 1]} : vector<8x96xf32> to vector<8x32xf32>
    %719 = vector.extract_strided_slice %717 {offsets = [0, 32], sizes = [8, 32], strides = [1, 1]} : vector<8x96xf32> to vector<8x32xf32>
    %720 = vector.extract_strided_slice %717 {offsets = [0, 64], sizes = [8, 32], strides = [1, 1]} : vector<8x96xf32> to vector<8x32xf32>
    %721 = vector.extract_strided_slice %704 {offsets = [0, 96], sizes = [8, 32], strides = [1, 1]} : vector<8x128xf32> to vector<8x32xf32>
    %722 = math.tanh %721 : vector<8x32xf32>
    %723 = arith.mulf %719, %659 : vector<8x32xf32>
    %724 = arith.mulf %718, %722 : vector<8x32xf32>
    %725 = arith.addf %723, %724 : vector<8x32xf32>
    %726 = math.tanh %725 : vector<8x32xf32>
    %727 = arith.mulf %720, %726 : vector<8x32xf32>
    %728 = vector.broadcast %711 : i32 to vector<8x1xi32>
    %729 = arith.cmpi sgt, %7, %728 : vector<8x1xi32>
    %730 = vector.shape_cast %729 : vector<8x1xi1> to vector<8x1xi1>
    %731 = vector.broadcast %730 : vector<8x1xi1> to vector<8x32xi1>
    %732 = arith.select %731, %727, %656 : vector<8x32xi1>, vector<8x32xf32>
    %733 = vector.shape_cast %729 : vector<8x1xi1> to vector<8x1xi1>
    %734 = vector.broadcast %733 : vector<8x1xi1> to vector<8x32xi1>
    %735 = arith.select %734, %725, %659 : vector<8x32xi1>, vector<8x32xf32>
    %cst_197 = arith.constant 0.000000e+00 : f32
    %736 = vector.shape_cast %729 : vector<8x1xi1> to vector<8x1xi1>
    %737 = vector.broadcast %736 : vector<8x1xi1> to vector<8x32xi1>
    %738 = vector.broadcast %cst_197 : f32 to vector<8x32xf32>
    %739 = arith.select %737, %727, %738 : vector<8x32xi1>, vector<8x32xf32>
    %c6_i32_198 = arith.constant 6 : i32
    %740 = arith.addi %10, %c6_i32_198 : i32
    %741 = vector.extract_strided_slice %710 {offsets = [0, 0], sizes = [8, 96], strides = [1, 1]} : vector<8x128xf32> to vector<8x96xf32>
    %742 = arith.negf %741 : vector<8x96xf32>
    %743 = math.exp %742 : vector<8x96xf32>
    %cst_199 = arith.constant 1.000000e+00 : f32
    %744 = vector.broadcast %cst_199 : f32 to vector<8x96xf32>
    %745 = arith.addf %744, %743 : vector<8x96xf32>
    %746 = arith.divf %744, %745 : vector<8x96xf32>
    %747 = vector.extract_strided_slice %746 {offsets = [0, 0], sizes = [8, 32], strides = [1, 1]} : vector<8x96xf32> to vector<8x32xf32>
    %748 = vector.extract_strided_slice %746 {offsets = [0, 32], sizes = [8, 32], strides = [1, 1]} : vector<8x96xf32> to vector<8x32xf32>
    %749 = vector.extract_strided_slice %746 {offsets = [0, 64], sizes = [8, 32], strides = [1, 1]} : vector<8x96xf32> to vector<8x32xf32>
    %750 = vector.extract_strided_slice %710 {offsets = [0, 96], sizes = [8, 32], strides = [1, 1]} : vector<8x128xf32> to vector<8x32xf32>
    %751 = math.tanh %750 : vector<8x32xf32>
    %752 = arith.mulf %748, %688 : vector<8x32xf32>
    %753 = arith.mulf %747, %751 : vector<8x32xf32>
    %754 = arith.addf %752, %753 : vector<8x32xf32>
    %755 = math.tanh %754 : vector<8x32xf32>
    %756 = arith.mulf %749, %755 : vector<8x32xf32>
    %757 = vector.broadcast %740 : i32 to vector<8x1xi32>
    %758 = arith.cmpi sgt, %7, %757 : vector<8x1xi32>
    %759 = vector.shape_cast %758 : vector<8x1xi1> to vector<8x1xi1>
    %760 = vector.broadcast %759 : vector<8x1xi1> to vector<8x32xi1>
    %761 = arith.select %760, %756, %685 : vector<8x32xi1>, vector<8x32xf32>
    %762 = vector.shape_cast %758 : vector<8x1xi1> to vector<8x1xi1>
    %763 = vector.broadcast %762 : vector<8x1xi1> to vector<8x32xi1>
    %764 = arith.select %763, %754, %688 : vector<8x32xi1>, vector<8x32xf32>
    %cst_200 = arith.constant 0.000000e+00 : f32
    %765 = vector.shape_cast %758 : vector<8x1xi1> to vector<8x1xi1>
    %766 = vector.broadcast %765 : vector<8x1xi1> to vector<8x32xi1>
    %767 = vector.broadcast %cst_200 : f32 to vector<8x32xf32>
    %768 = arith.select %766, %756, %767 : vector<8x32xi1>, vector<8x32xf32>
    %c9_201 = arith.constant 9 : index
    %c0_202 = arith.constant 0 : index
    %c0_203 = arith.constant 0 : index
    %769 = vector.load %arg6[%c9_201, %c0_202, %c0_203] : memref<16x8x32xf32, #tpu.memory_space<vmem>>, vector<1x8x32xf32>
    %770 = vector.shape_cast %769 : vector<1x8x32xf32> to vector<8x32xf32>
    %771 = vector.shape_cast %739 : vector<8x32xf32> to vector<1x8x32xf32>
    tpu.vector_store %arg6[%c9_201, %c0_202, %c0_203], %771 {strides = array<i32>} : memref<16x8x32xf32, #tpu.memory_space<vmem>>, vector<1x8x32xf32>,
    %c6_204 = arith.constant 6 : index
    %c0_205 = arith.constant 0 : index
    %c0_206 = arith.constant 0 : index
    %772 = vector.load %arg7[%c6_204, %c0_205, %c0_206] : memref<16x8x32xf32, #tpu.memory_space<vmem>>, vector<1x8x32xf32>
    %773 = vector.shape_cast %772 : vector<1x8x32xf32> to vector<8x32xf32>
    %774 = vector.shape_cast %768 : vector<8x32xf32> to vector<1x8x32xf32>
    tpu.vector_store %arg7[%c6_204, %c0_205, %c0_206], %774 {strides = array<i32>} : memref<16x8x32xf32, #tpu.memory_space<vmem>>, vector<1x8x32xf32>,
    %c0_207 = arith.constant 0 : index
    %c10_208 = arith.constant 10 : index
    %c0_209 = arith.constant 0 : index
    %c0_210 = arith.constant 0 : index
    %775 = vector.load %arg1[%c0_207, %c10_208, %c0_209, %c0_210] : memref<1x16x8x128xbf16, #tpu.memory_space<vmem>>, vector<1x1x8x128xbf16>
    %776 = vector.shape_cast %775 : vector<1x1x8x128xbf16> to vector<8x128xbf16>
    %777 = arith.extf %776 : vector<8x128xbf16> to vector<8x128xf32>
    %778 = arith.truncf %732 : vector<8x32xf32> to vector<8x32xbf16>
    %cst_211 = arith.constant dense<0.000000e+00> : vector<8x128xf32>
    %779 = tpu.matmul %778, %4, %cst_211 {dimension_numbers = #tpu.dot_dimension_numbers<[1], [0], [0], [1], [0, 0, 1, 1], [], []>} : vector<8x32xbf16>, vector<32x128xbf16>, vector<8x128xf32> -> vector<8x128xf32>
    %780 = arith.addf %777, %779 : vector<8x128xf32>
    %c0_212 = arith.constant 0 : index
    %c5_213 = arith.constant 5 : index
    %c0_214 = arith.constant 0 : index
    %c0_215 = arith.constant 0 : index
    %781 = vector.load %arg2[%c0_212, %c5_213, %c0_214, %c0_215] : memref<1x16x8x128xbf16, #tpu.memory_space<vmem>>, vector<1x1x8x128xbf16>
    %782 = vector.shape_cast %781 : vector<1x1x8x128xbf16> to vector<8x128xbf16>
    %783 = arith.extf %782 : vector<8x128xbf16> to vector<8x128xf32>
    %784 = arith.truncf %761 : vector<8x32xf32> to vector<8x32xbf16>
    %cst_216 = arith.constant dense<0.000000e+00> : vector<8x128xf32>
    %785 = tpu.matmul %784, %6, %cst_216 {dimension_numbers = #tpu.dot_dimension_numbers<[1], [0], [0], [1], [0, 0, 1, 1], [], []>} : vector<8x32xbf16>, vector<32x128xbf16>, vector<8x128xf32> -> vector<8x128xf32>
    %786 = arith.addf %783, %785 : vector<8x128xf32>
    %c10_i32_217 = arith.constant 10 : i32
    %787 = arith.addi %8, %c10_i32_217 : i32
    %788 = vector.extract_strided_slice %780 {offsets = [0, 0], sizes = [8, 96], strides = [1, 1]} : vector<8x128xf32> to vector<8x96xf32>
    %789 = arith.negf %788 : vector<8x96xf32>
    %790 = math.exp %789 : vector<8x96xf32>
    %cst_218 = arith.constant 1.000000e+00 : f32
    %791 = vector.broadcast %cst_218 : f32 to vector<8x96xf32>
    %792 = arith.addf %791, %790 : vector<8x96xf32>
    %793 = arith.divf %791, %792 : vector<8x96xf32>
    %794 = vector.extract_strided_slice %793 {offsets = [0, 0], sizes = [8, 32], strides = [1, 1]} : vector<8x96xf32> to vector<8x32xf32>
    %795 = vector.extract_strided_slice %793 {offsets = [0, 32], sizes = [8, 32], strides = [1, 1]} : vector<8x96xf32> to vector<8x32xf32>
    %796 = vector.extract_strided_slice %793 {offsets = [0, 64], sizes = [8, 32], strides = [1, 1]} : vector<8x96xf32> to vector<8x32xf32>
    %797 = vector.extract_strided_slice %780 {offsets = [0, 96], sizes = [8, 32], strides = [1, 1]} : vector<8x128xf32> to vector<8x32xf32>
    %798 = math.tanh %797 : vector<8x32xf32>
    %799 = arith.mulf %795, %735 : vector<8x32xf32>
    %800 = arith.mulf %794, %798 : vector<8x32xf32>
    %801 = arith.addf %799, %800 : vector<8x32xf32>
    %802 = math.tanh %801 : vector<8x32xf32>
    %803 = arith.mulf %796, %802 : vector<8x32xf32>
    %804 = vector.broadcast %787 : i32 to vector<8x1xi32>
    %805 = arith.cmpi sgt, %7, %804 : vector<8x1xi32>
    %806 = vector.shape_cast %805 : vector<8x1xi1> to vector<8x1xi1>
    %807 = vector.broadcast %806 : vector<8x1xi1> to vector<8x32xi1>
    %808 = arith.select %807, %803, %732 : vector<8x32xi1>, vector<8x32xf32>
    %809 = vector.shape_cast %805 : vector<8x1xi1> to vector<8x1xi1>
    %810 = vector.broadcast %809 : vector<8x1xi1> to vector<8x32xi1>
    %811 = arith.select %810, %801, %735 : vector<8x32xi1>, vector<8x32xf32>
    %cst_219 = arith.constant 0.000000e+00 : f32
    %812 = vector.shape_cast %805 : vector<8x1xi1> to vector<8x1xi1>
    %813 = vector.broadcast %812 : vector<8x1xi1> to vector<8x32xi1>
    %814 = vector.broadcast %cst_219 : f32 to vector<8x32xf32>
    %815 = arith.select %813, %803, %814 : vector<8x32xi1>, vector<8x32xf32>
    %c5_i32_220 = arith.constant 5 : i32
    %816 = arith.addi %10, %c5_i32_220 : i32
    %817 = vector.extract_strided_slice %786 {offsets = [0, 0], sizes = [8, 96], strides = [1, 1]} : vector<8x128xf32> to vector<8x96xf32>
    %818 = arith.negf %817 : vector<8x96xf32>
    %819 = math.exp %818 : vector<8x96xf32>
    %cst_221 = arith.constant 1.000000e+00 : f32
    %820 = vector.broadcast %cst_221 : f32 to vector<8x96xf32>
    %821 = arith.addf %820, %819 : vector<8x96xf32>
    %822 = arith.divf %820, %821 : vector<8x96xf32>
    %823 = vector.extract_strided_slice %822 {offsets = [0, 0], sizes = [8, 32], strides = [1, 1]} : vector<8x96xf32> to vector<8x32xf32>
    %824 = vector.extract_strided_slice %822 {offsets = [0, 32], sizes = [8, 32], strides = [1, 1]} : vector<8x96xf32> to vector<8x32xf32>
    %825 = vector.extract_strided_slice %822 {offsets = [0, 64], sizes = [8, 32], strides = [1, 1]} : vector<8x96xf32> to vector<8x32xf32>
    %826 = vector.extract_strided_slice %786 {offsets = [0, 96], sizes = [8, 32], strides = [1, 1]} : vector<8x128xf32> to vector<8x32xf32>
    %827 = math.tanh %826 : vector<8x32xf32>
    %828 = arith.mulf %824, %764 : vector<8x32xf32>
    %829 = arith.mulf %823, %827 : vector<8x32xf32>
    %830 = arith.addf %828, %829 : vector<8x32xf32>
    %831 = math.tanh %830 : vector<8x32xf32>
    %832 = arith.mulf %825, %831 : vector<8x32xf32>
    %833 = vector.broadcast %816 : i32 to vector<8x1xi32>
    %834 = arith.cmpi sgt, %7, %833 : vector<8x1xi32>
    %835 = vector.shape_cast %834 : vector<8x1xi1> to vector<8x1xi1>
    %836 = vector.broadcast %835 : vector<8x1xi1> to vector<8x32xi1>
    %837 = arith.select %836, %832, %761 : vector<8x32xi1>, vector<8x32xf32>
    %838 = vector.shape_cast %834 : vector<8x1xi1> to vector<8x1xi1>
    %839 = vector.broadcast %838 : vector<8x1xi1> to vector<8x32xi1>
    %840 = arith.select %839, %830, %764 : vector<8x32xi1>, vector<8x32xf32>
    %cst_222 = arith.constant 0.000000e+00 : f32
    %841 = vector.shape_cast %834 : vector<8x1xi1> to vector<8x1xi1>
    %842 = vector.broadcast %841 : vector<8x1xi1> to vector<8x32xi1>
    %843 = vector.broadcast %cst_222 : f32 to vector<8x32xf32>
    %844 = arith.select %842, %832, %843 : vector<8x32xi1>, vector<8x32xf32>
    %c10_223 = arith.constant 10 : index
    %c0_224 = arith.constant 0 : index
    %c0_225 = arith.constant 0 : index
    %845 = vector.load %arg6[%c10_223, %c0_224, %c0_225] : memref<16x8x32xf32, #tpu.memory_space<vmem>>, vector<1x8x32xf32>
    %846 = vector.shape_cast %845 : vector<1x8x32xf32> to vector<8x32xf32>
    %847 = vector.shape_cast %815 : vector<8x32xf32> to vector<1x8x32xf32>
    tpu.vector_store %arg6[%c10_223, %c0_224, %c0_225], %847 {strides = array<i32>} : memref<16x8x32xf32, #tpu.memory_space<vmem>>, vector<1x8x32xf32>,
    %c5_226 = arith.constant 5 : index
    %c0_227 = arith.constant 0 : index
    %c0_228 = arith.constant 0 : index
    %848 = vector.load %arg7[%c5_226, %c0_227, %c0_228] : memref<16x8x32xf32, #tpu.memory_space<vmem>>, vector<1x8x32xf32>
    %849 = vector.shape_cast %848 : vector<1x8x32xf32> to vector<8x32xf32>
    %850 = vector.shape_cast %844 : vector<8x32xf32> to vector<1x8x32xf32>
    tpu.vector_store %arg7[%c5_226, %c0_227, %c0_228], %850 {strides = array<i32>} : memref<16x8x32xf32, #tpu.memory_space<vmem>>, vector<1x8x32xf32>,
    %c0_229 = arith.constant 0 : index
    %c11_230 = arith.constant 11 : index
    %c0_231 = arith.constant 0 : index
    %c0_232 = arith.constant 0 : index
    %851 = vector.load %arg1[%c0_229, %c11_230, %c0_231, %c0_232] : memref<1x16x8x128xbf16, #tpu.memory_space<vmem>>, vector<1x1x8x128xbf16>
    %852 = vector.shape_cast %851 : vector<1x1x8x128xbf16> to vector<8x128xbf16>
    %853 = arith.extf %852 : vector<8x128xbf16> to vector<8x128xf32>
    %854 = arith.truncf %808 : vector<8x32xf32> to vector<8x32xbf16>
    %cst_233 = arith.constant dense<0.000000e+00> : vector<8x128xf32>
    %855 = tpu.matmul %854, %4, %cst_233 {dimension_numbers = #tpu.dot_dimension_numbers<[1], [0], [0], [1], [0, 0, 1, 1], [], []>} : vector<8x32xbf16>, vector<32x128xbf16>, vector<8x128xf32> -> vector<8x128xf32>
    %856 = arith.addf %853, %855 : vector<8x128xf32>
    %c0_234 = arith.constant 0 : index
    %c4_235 = arith.constant 4 : index
    %c0_236 = arith.constant 0 : index
    %c0_237 = arith.constant 0 : index
    %857 = vector.load %arg2[%c0_234, %c4_235, %c0_236, %c0_237] : memref<1x16x8x128xbf16, #tpu.memory_space<vmem>>, vector<1x1x8x128xbf16>
    %858 = vector.shape_cast %857 : vector<1x1x8x128xbf16> to vector<8x128xbf16>
    %859 = arith.extf %858 : vector<8x128xbf16> to vector<8x128xf32>
    %860 = arith.truncf %837 : vector<8x32xf32> to vector<8x32xbf16>
    %cst_238 = arith.constant dense<0.000000e+00> : vector<8x128xf32>
    %861 = tpu.matmul %860, %6, %cst_238 {dimension_numbers = #tpu.dot_dimension_numbers<[1], [0], [0], [1], [0, 0, 1, 1], [], []>} : vector<8x32xbf16>, vector<32x128xbf16>, vector<8x128xf32> -> vector<8x128xf32>
    %862 = arith.addf %859, %861 : vector<8x128xf32>
    %c11_i32_239 = arith.constant 11 : i32
    %863 = arith.addi %8, %c11_i32_239 : i32
    %864 = vector.extract_strided_slice %856 {offsets = [0, 0], sizes = [8, 96], strides = [1, 1]} : vector<8x128xf32> to vector<8x96xf32>
    %865 = arith.negf %864 : vector<8x96xf32>
    %866 = math.exp %865 : vector<8x96xf32>
    %cst_240 = arith.constant 1.000000e+00 : f32
    %867 = vector.broadcast %cst_240 : f32 to vector<8x96xf32>
    %868 = arith.addf %867, %866 : vector<8x96xf32>
    %869 = arith.divf %867, %868 : vector<8x96xf32>
    %870 = vector.extract_strided_slice %869 {offsets = [0, 0], sizes = [8, 32], strides = [1, 1]} : vector<8x96xf32> to vector<8x32xf32>
    %871 = vector.extract_strided_slice %869 {offsets = [0, 32], sizes = [8, 32], strides = [1, 1]} : vector<8x96xf32> to vector<8x32xf32>
    %872 = vector.extract_strided_slice %869 {offsets = [0, 64], sizes = [8, 32], strides = [1, 1]} : vector<8x96xf32> to vector<8x32xf32>
    %873 = vector.extract_strided_slice %856 {offsets = [0, 96], sizes = [8, 32], strides = [1, 1]} : vector<8x128xf32> to vector<8x32xf32>
    %874 = math.tanh %873 : vector<8x32xf32>
    %875 = arith.mulf %871, %811 : vector<8x32xf32>
    %876 = arith.mulf %870, %874 : vector<8x32xf32>
    %877 = arith.addf %875, %876 : vector<8x32xf32>
    %878 = math.tanh %877 : vector<8x32xf32>
    %879 = arith.mulf %872, %878 : vector<8x32xf32>
    %880 = vector.broadcast %863 : i32 to vector<8x1xi32>
    %881 = arith.cmpi sgt, %7, %880 : vector<8x1xi32>
    %882 = vector.shape_cast %881 : vector<8x1xi1> to vector<8x1xi1>
    %883 = vector.broadcast %882 : vector<8x1xi1> to vector<8x32xi1>
    %884 = arith.select %883, %879, %808 : vector<8x32xi1>, vector<8x32xf32>
    %885 = vector.shape_cast %881 : vector<8x1xi1> to vector<8x1xi1>
    %886 = vector.broadcast %885 : vector<8x1xi1> to vector<8x32xi1>
    %887 = arith.select %886, %877, %811 : vector<8x32xi1>, vector<8x32xf32>
    %cst_241 = arith.constant 0.000000e+00 : f32
    %888 = vector.shape_cast %881 : vector<8x1xi1> to vector<8x1xi1>
    %889 = vector.broadcast %888 : vector<8x1xi1> to vector<8x32xi1>
    %890 = vector.broadcast %cst_241 : f32 to vector<8x32xf32>
    %891 = arith.select %889, %879, %890 : vector<8x32xi1>, vector<8x32xf32>
    %c4_i32_242 = arith.constant 4 : i32
    %892 = arith.addi %10, %c4_i32_242 : i32
    %893 = vector.extract_strided_slice %862 {offsets = [0, 0], sizes = [8, 96], strides = [1, 1]} : vector<8x128xf32> to vector<8x96xf32>
    %894 = arith.negf %893 : vector<8x96xf32>
    %895 = math.exp %894 : vector<8x96xf32>
    %cst_243 = arith.constant 1.000000e+00 : f32
    %896 = vector.broadcast %cst_243 : f32 to vector<8x96xf32>
    %897 = arith.addf %896, %895 : vector<8x96xf32>
    %898 = arith.divf %896, %897 : vector<8x96xf32>
    %899 = vector.extract_strided_slice %898 {offsets = [0, 0], sizes = [8, 32], strides = [1, 1]} : vector<8x96xf32> to vector<8x32xf32>
    %900 = vector.extract_strided_slice %898 {offsets = [0, 32], sizes = [8, 32], strides = [1, 1]} : vector<8x96xf32> to vector<8x32xf32>
    %901 = vector.extract_strided_slice %898 {offsets = [0, 64], sizes = [8, 32], strides = [1, 1]} : vector<8x96xf32> to vector<8x32xf32>
    %902 = vector.extract_strided_slice %862 {offsets = [0, 96], sizes = [8, 32], strides = [1, 1]} : vector<8x128xf32> to vector<8x32xf32>
    %903 = math.tanh %902 : vector<8x32xf32>
    %904 = arith.mulf %900, %840 : vector<8x32xf32>
    %905 = arith.mulf %899, %903 : vector<8x32xf32>
    %906 = arith.addf %904, %905 : vector<8x32xf32>
    %907 = math.tanh %906 : vector<8x32xf32>
    %908 = arith.mulf %901, %907 : vector<8x32xf32>
    %909 = vector.broadcast %892 : i32 to vector<8x1xi32>
    %910 = arith.cmpi sgt, %7, %909 : vector<8x1xi32>
    %911 = vector.shape_cast %910 : vector<8x1xi1> to vector<8x1xi1>
    %912 = vector.broadcast %911 : vector<8x1xi1> to vector<8x32xi1>
    %913 = arith.select %912, %908, %837 : vector<8x32xi1>, vector<8x32xf32>
    %914 = vector.shape_cast %910 : vector<8x1xi1> to vector<8x1xi1>
    %915 = vector.broadcast %914 : vector<8x1xi1> to vector<8x32xi1>
    %916 = arith.select %915, %906, %840 : vector<8x32xi1>, vector<8x32xf32>
    %cst_244 = arith.constant 0.000000e+00 : f32
    %917 = vector.shape_cast %910 : vector<8x1xi1> to vector<8x1xi1>
    %918 = vector.broadcast %917 : vector<8x1xi1> to vector<8x32xi1>
    %919 = vector.broadcast %cst_244 : f32 to vector<8x32xf32>
    %920 = arith.select %918, %908, %919 : vector<8x32xi1>, vector<8x32xf32>
    %c11_245 = arith.constant 11 : index
    %c0_246 = arith.constant 0 : index
    %c0_247 = arith.constant 0 : index
    %921 = vector.load %arg6[%c11_245, %c0_246, %c0_247] : memref<16x8x32xf32, #tpu.memory_space<vmem>>, vector<1x8x32xf32>
    %922 = vector.shape_cast %921 : vector<1x8x32xf32> to vector<8x32xf32>
    %923 = vector.shape_cast %891 : vector<8x32xf32> to vector<1x8x32xf32>
    tpu.vector_store %arg6[%c11_245, %c0_246, %c0_247], %923 {strides = array<i32>} : memref<16x8x32xf32, #tpu.memory_space<vmem>>, vector<1x8x32xf32>,
    %c4_248 = arith.constant 4 : index
    %c0_249 = arith.constant 0 : index
    %c0_250 = arith.constant 0 : index
    %924 = vector.load %arg7[%c4_248, %c0_249, %c0_250] : memref<16x8x32xf32, #tpu.memory_space<vmem>>, vector<1x8x32xf32>
    %925 = vector.shape_cast %924 : vector<1x8x32xf32> to vector<8x32xf32>
    %926 = vector.shape_cast %920 : vector<8x32xf32> to vector<1x8x32xf32>
    tpu.vector_store %arg7[%c4_248, %c0_249, %c0_250], %926 {strides = array<i32>} : memref<16x8x32xf32, #tpu.memory_space<vmem>>, vector<1x8x32xf32>,
    %c0_251 = arith.constant 0 : index
    %c12_252 = arith.constant 12 : index
    %c0_253 = arith.constant 0 : index
    %c0_254 = arith.constant 0 : index
    %927 = vector.load %arg1[%c0_251, %c12_252, %c0_253, %c0_254] : memref<1x16x8x128xbf16, #tpu.memory_space<vmem>>, vector<1x1x8x128xbf16>
    %928 = vector.shape_cast %927 : vector<1x1x8x128xbf16> to vector<8x128xbf16>
    %929 = arith.extf %928 : vector<8x128xbf16> to vector<8x128xf32>
    %930 = arith.truncf %884 : vector<8x32xf32> to vector<8x32xbf16>
    %cst_255 = arith.constant dense<0.000000e+00> : vector<8x128xf32>
    %931 = tpu.matmul %930, %4, %cst_255 {dimension_numbers = #tpu.dot_dimension_numbers<[1], [0], [0], [1], [0, 0, 1, 1], [], []>} : vector<8x32xbf16>, vector<32x128xbf16>, vector<8x128xf32> -> vector<8x128xf32>
    %932 = arith.addf %929, %931 : vector<8x128xf32>
    %c0_256 = arith.constant 0 : index
    %c3_257 = arith.constant 3 : index
    %c0_258 = arith.constant 0 : index
    %c0_259 = arith.constant 0 : index
    %933 = vector.load %arg2[%c0_256, %c3_257, %c0_258, %c0_259] : memref<1x16x8x128xbf16, #tpu.memory_space<vmem>>, vector<1x1x8x128xbf16>
    %934 = vector.shape_cast %933 : vector<1x1x8x128xbf16> to vector<8x128xbf16>
    %935 = arith.extf %934 : vector<8x128xbf16> to vector<8x128xf32>
    %936 = arith.truncf %913 : vector<8x32xf32> to vector<8x32xbf16>
    %cst_260 = arith.constant dense<0.000000e+00> : vector<8x128xf32>
    %937 = tpu.matmul %936, %6, %cst_260 {dimension_numbers = #tpu.dot_dimension_numbers<[1], [0], [0], [1], [0, 0, 1, 1], [], []>} : vector<8x32xbf16>, vector<32x128xbf16>, vector<8x128xf32> -> vector<8x128xf32>
    %938 = arith.addf %935, %937 : vector<8x128xf32>
    %c12_i32_261 = arith.constant 12 : i32
    %939 = arith.addi %8, %c12_i32_261 : i32
    %940 = vector.extract_strided_slice %932 {offsets = [0, 0], sizes = [8, 96], strides = [1, 1]} : vector<8x128xf32> to vector<8x96xf32>
    %941 = arith.negf %940 : vector<8x96xf32>
    %942 = math.exp %941 : vector<8x96xf32>
    %cst_262 = arith.constant 1.000000e+00 : f32
    %943 = vector.broadcast %cst_262 : f32 to vector<8x96xf32>
    %944 = arith.addf %943, %942 : vector<8x96xf32>
    %945 = arith.divf %943, %944 : vector<8x96xf32>
    %946 = vector.extract_strided_slice %945 {offsets = [0, 0], sizes = [8, 32], strides = [1, 1]} : vector<8x96xf32> to vector<8x32xf32>
    %947 = vector.extract_strided_slice %945 {offsets = [0, 32], sizes = [8, 32], strides = [1, 1]} : vector<8x96xf32> to vector<8x32xf32>
    %948 = vector.extract_strided_slice %945 {offsets = [0, 64], sizes = [8, 32], strides = [1, 1]} : vector<8x96xf32> to vector<8x32xf32>
    %949 = vector.extract_strided_slice %932 {offsets = [0, 96], sizes = [8, 32], strides = [1, 1]} : vector<8x128xf32> to vector<8x32xf32>
    %950 = math.tanh %949 : vector<8x32xf32>
    %951 = arith.mulf %947, %887 : vector<8x32xf32>
    %952 = arith.mulf %946, %950 : vector<8x32xf32>
    %953 = arith.addf %951, %952 : vector<8x32xf32>
    %954 = math.tanh %953 : vector<8x32xf32>
    %955 = arith.mulf %948, %954 : vector<8x32xf32>
    %956 = vector.broadcast %939 : i32 to vector<8x1xi32>
    %957 = arith.cmpi sgt, %7, %956 : vector<8x1xi32>
    %958 = vector.shape_cast %957 : vector<8x1xi1> to vector<8x1xi1>
    %959 = vector.broadcast %958 : vector<8x1xi1> to vector<8x32xi1>
    %960 = arith.select %959, %955, %884 : vector<8x32xi1>, vector<8x32xf32>
    %961 = vector.shape_cast %957 : vector<8x1xi1> to vector<8x1xi1>
    %962 = vector.broadcast %961 : vector<8x1xi1> to vector<8x32xi1>
    %963 = arith.select %962, %953, %887 : vector<8x32xi1>, vector<8x32xf32>
    %cst_263 = arith.constant 0.000000e+00 : f32
    %964 = vector.shape_cast %957 : vector<8x1xi1> to vector<8x1xi1>
    %965 = vector.broadcast %964 : vector<8x1xi1> to vector<8x32xi1>
    %966 = vector.broadcast %cst_263 : f32 to vector<8x32xf32>
    %967 = arith.select %965, %955, %966 : vector<8x32xi1>, vector<8x32xf32>
    %c3_i32_264 = arith.constant 3 : i32
    %968 = arith.addi %10, %c3_i32_264 : i32
    %969 = vector.extract_strided_slice %938 {offsets = [0, 0], sizes = [8, 96], strides = [1, 1]} : vector<8x128xf32> to vector<8x96xf32>
    %970 = arith.negf %969 : vector<8x96xf32>
    %971 = math.exp %970 : vector<8x96xf32>
    %cst_265 = arith.constant 1.000000e+00 : f32
    %972 = vector.broadcast %cst_265 : f32 to vector<8x96xf32>
    %973 = arith.addf %972, %971 : vector<8x96xf32>
    %974 = arith.divf %972, %973 : vector<8x96xf32>
    %975 = vector.extract_strided_slice %974 {offsets = [0, 0], sizes = [8, 32], strides = [1, 1]} : vector<8x96xf32> to vector<8x32xf32>
    %976 = vector.extract_strided_slice %974 {offsets = [0, 32], sizes = [8, 32], strides = [1, 1]} : vector<8x96xf32> to vector<8x32xf32>
    %977 = vector.extract_strided_slice %974 {offsets = [0, 64], sizes = [8, 32], strides = [1, 1]} : vector<8x96xf32> to vector<8x32xf32>
    %978 = vector.extract_strided_slice %938 {offsets = [0, 96], sizes = [8, 32], strides = [1, 1]} : vector<8x128xf32> to vector<8x32xf32>
    %979 = math.tanh %978 : vector<8x32xf32>
    %980 = arith.mulf %976, %916 : vector<8x32xf32>
    %981 = arith.mulf %975, %979 : vector<8x32xf32>
    %982 = arith.addf %980, %981 : vector<8x32xf32>
    %983 = math.tanh %982 : vector<8x32xf32>
    %984 = arith.mulf %977, %983 : vector<8x32xf32>
    %985 = vector.broadcast %968 : i32 to vector<8x1xi32>
    %986 = arith.cmpi sgt, %7, %985 : vector<8x1xi32>
    %987 = vector.shape_cast %986 : vector<8x1xi1> to vector<8x1xi1>
    %988 = vector.broadcast %987 : vector<8x1xi1> to vector<8x32xi1>
    %989 = arith.select %988, %984, %913 : vector<8x32xi1>, vector<8x32xf32>
    %990 = vector.shape_cast %986 : vector<8x1xi1> to vector<8x1xi1>
    %991 = vector.broadcast %990 : vector<8x1xi1> to vector<8x32xi1>
    %992 = arith.select %991, %982, %916 : vector<8x32xi1>, vector<8x32xf32>
    %cst_266 = arith.constant 0.000000e+00 : f32
    %993 = vector.shape_cast %986 : vector<8x1xi1> to vector<8x1xi1>
    %994 = vector.broadcast %993 : vector<8x1xi1> to vector<8x32xi1>
    %995 = vector.broadcast %cst_266 : f32 to vector<8x32xf32>
    %996 = arith.select %994, %984, %995 : vector<8x32xi1>, vector<8x32xf32>
    %c12_267 = arith.constant 12 : index
    %c0_268 = arith.constant 0 : index
    %c0_269 = arith.constant 0 : index
    %997 = vector.load %arg6[%c12_267, %c0_268, %c0_269] : memref<16x8x32xf32, #tpu.memory_space<vmem>>, vector<1x8x32xf32>
    %998 = vector.shape_cast %997 : vector<1x8x32xf32> to vector<8x32xf32>
    %999 = vector.shape_cast %967 : vector<8x32xf32> to vector<1x8x32xf32>
    tpu.vector_store %arg6[%c12_267, %c0_268, %c0_269], %999 {strides = array<i32>} : memref<16x8x32xf32, #tpu.memory_space<vmem>>, vector<1x8x32xf32>,
    %c3_270 = arith.constant 3 : index
    %c0_271 = arith.constant 0 : index
    %c0_272 = arith.constant 0 : index
    %1000 = vector.load %arg7[%c3_270, %c0_271, %c0_272] : memref<16x8x32xf32, #tpu.memory_space<vmem>>, vector<1x8x32xf32>
    %1001 = vector.shape_cast %1000 : vector<1x8x32xf32> to vector<8x32xf32>
    %1002 = vector.shape_cast %996 : vector<8x32xf32> to vector<1x8x32xf32>
    tpu.vector_store %arg7[%c3_270, %c0_271, %c0_272], %1002 {strides = array<i32>} : memref<16x8x32xf32, #tpu.memory_space<vmem>>, vector<1x8x32xf32>,
    %c0_273 = arith.constant 0 : index
    %c13_274 = arith.constant 13 : index
    %c0_275 = arith.constant 0 : index
    %c0_276 = arith.constant 0 : index
    %1003 = vector.load %arg1[%c0_273, %c13_274, %c0_275, %c0_276] : memref<1x16x8x128xbf16, #tpu.memory_space<vmem>>, vector<1x1x8x128xbf16>
    %1004 = vector.shape_cast %1003 : vector<1x1x8x128xbf16> to vector<8x128xbf16>
    %1005 = arith.extf %1004 : vector<8x128xbf16> to vector<8x128xf32>
    %1006 = arith.truncf %960 : vector<8x32xf32> to vector<8x32xbf16>
    %cst_277 = arith.constant dense<0.000000e+00> : vector<8x128xf32>
    %1007 = tpu.matmul %1006, %4, %cst_277 {dimension_numbers = #tpu.dot_dimension_numbers<[1], [0], [0], [1], [0, 0, 1, 1], [], []>} : vector<8x32xbf16>, vector<32x128xbf16>, vector<8x128xf32> -> vector<8x128xf32>
    %1008 = arith.addf %1005, %1007 : vector<8x128xf32>
    %c0_278 = arith.constant 0 : index
    %c2_279 = arith.constant 2 : index
    %c0_280 = arith.constant 0 : index
    %c0_281 = arith.constant 0 : index
    %1009 = vector.load %arg2[%c0_278, %c2_279, %c0_280, %c0_281] : memref<1x16x8x128xbf16, #tpu.memory_space<vmem>>, vector<1x1x8x128xbf16>
    %1010 = vector.shape_cast %1009 : vector<1x1x8x128xbf16> to vector<8x128xbf16>
    %1011 = arith.extf %1010 : vector<8x128xbf16> to vector<8x128xf32>
    %1012 = arith.truncf %989 : vector<8x32xf32> to vector<8x32xbf16>
    %cst_282 = arith.constant dense<0.000000e+00> : vector<8x128xf32>
    %1013 = tpu.matmul %1012, %6, %cst_282 {dimension_numbers = #tpu.dot_dimension_numbers<[1], [0], [0], [1], [0, 0, 1, 1], [], []>} : vector<8x32xbf16>, vector<32x128xbf16>, vector<8x128xf32> -> vector<8x128xf32>
    %1014 = arith.addf %1011, %1013 : vector<8x128xf32>
    %c13_i32_283 = arith.constant 13 : i32
    %1015 = arith.addi %8, %c13_i32_283 : i32
    %1016 = vector.extract_strided_slice %1008 {offsets = [0, 0], sizes = [8, 96], strides = [1, 1]} : vector<8x128xf32> to vector<8x96xf32>
    %1017 = arith.negf %1016 : vector<8x96xf32>
    %1018 = math.exp %1017 : vector<8x96xf32>
    %cst_284 = arith.constant 1.000000e+00 : f32
    %1019 = vector.broadcast %cst_284 : f32 to vector<8x96xf32>
    %1020 = arith.addf %1019, %1018 : vector<8x96xf32>
    %1021 = arith.divf %1019, %1020 : vector<8x96xf32>
    %1022 = vector.extract_strided_slice %1021 {offsets = [0, 0], sizes = [8, 32], strides = [1, 1]} : vector<8x96xf32> to vector<8x32xf32>
    %1023 = vector.extract_strided_slice %1021 {offsets = [0, 32], sizes = [8, 32], strides = [1, 1]} : vector<8x96xf32> to vector<8x32xf32>
    %1024 = vector.extract_strided_slice %1021 {offsets = [0, 64], sizes = [8, 32], strides = [1, 1]} : vector<8x96xf32> to vector<8x32xf32>
    %1025 = vector.extract_strided_slice %1008 {offsets = [0, 96], sizes = [8, 32], strides = [1, 1]} : vector<8x128xf32> to vector<8x32xf32>
    %1026 = math.tanh %1025 : vector<8x32xf32>
    %1027 = arith.mulf %1023, %963 : vector<8x32xf32>
    %1028 = arith.mulf %1022, %1026 : vector<8x32xf32>
    %1029 = arith.addf %1027, %1028 : vector<8x32xf32>
    %1030 = math.tanh %1029 : vector<8x32xf32>
    %1031 = arith.mulf %1024, %1030 : vector<8x32xf32>
    %1032 = vector.broadcast %1015 : i32 to vector<8x1xi32>
    %1033 = arith.cmpi sgt, %7, %1032 : vector<8x1xi32>
    %1034 = vector.shape_cast %1033 : vector<8x1xi1> to vector<8x1xi1>
    %1035 = vector.broadcast %1034 : vector<8x1xi1> to vector<8x32xi1>
    %1036 = arith.select %1035, %1031, %960 : vector<8x32xi1>, vector<8x32xf32>
    %1037 = vector.shape_cast %1033 : vector<8x1xi1> to vector<8x1xi1>
    %1038 = vector.broadcast %1037 : vector<8x1xi1> to vector<8x32xi1>
    %1039 = arith.select %1038, %1029, %963 : vector<8x32xi1>, vector<8x32xf32>
    %cst_285 = arith.constant 0.000000e+00 : f32
    %1040 = vector.shape_cast %1033 : vector<8x1xi1> to vector<8x1xi1>
    %1041 = vector.broadcast %1040 : vector<8x1xi1> to vector<8x32xi1>
    %1042 = vector.broadcast %cst_285 : f32 to vector<8x32xf32>
    %1043 = arith.select %1041, %1031, %1042 : vector<8x32xi1>, vector<8x32xf32>
    %c2_i32_286 = arith.constant 2 : i32
    %1044 = arith.addi %10, %c2_i32_286 : i32
    %1045 = vector.extract_strided_slice %1014 {offsets = [0, 0], sizes = [8, 96], strides = [1, 1]} : vector<8x128xf32> to vector<8x96xf32>
    %1046 = arith.negf %1045 : vector<8x96xf32>
    %1047 = math.exp %1046 : vector<8x96xf32>
    %cst_287 = arith.constant 1.000000e+00 : f32
    %1048 = vector.broadcast %cst_287 : f32 to vector<8x96xf32>
    %1049 = arith.addf %1048, %1047 : vector<8x96xf32>
    %1050 = arith.divf %1048, %1049 : vector<8x96xf32>
    %1051 = vector.extract_strided_slice %1050 {offsets = [0, 0], sizes = [8, 32], strides = [1, 1]} : vector<8x96xf32> to vector<8x32xf32>
    %1052 = vector.extract_strided_slice %1050 {offsets = [0, 32], sizes = [8, 32], strides = [1, 1]} : vector<8x96xf32> to vector<8x32xf32>
    %1053 = vector.extract_strided_slice %1050 {offsets = [0, 64], sizes = [8, 32], strides = [1, 1]} : vector<8x96xf32> to vector<8x32xf32>
    %1054 = vector.extract_strided_slice %1014 {offsets = [0, 96], sizes = [8, 32], strides = [1, 1]} : vector<8x128xf32> to vector<8x32xf32>
    %1055 = math.tanh %1054 : vector<8x32xf32>
    %1056 = arith.mulf %1052, %992 : vector<8x32xf32>
    %1057 = arith.mulf %1051, %1055 : vector<8x32xf32>
    %1058 = arith.addf %1056, %1057 : vector<8x32xf32>
    %1059 = math.tanh %1058 : vector<8x32xf32>
    %1060 = arith.mulf %1053, %1059 : vector<8x32xf32>
    %1061 = vector.broadcast %1044 : i32 to vector<8x1xi32>
    %1062 = arith.cmpi sgt, %7, %1061 : vector<8x1xi32>
    %1063 = vector.shape_cast %1062 : vector<8x1xi1> to vector<8x1xi1>
    %1064 = vector.broadcast %1063 : vector<8x1xi1> to vector<8x32xi1>
    %1065 = arith.select %1064, %1060, %989 : vector<8x32xi1>, vector<8x32xf32>
    %1066 = vector.shape_cast %1062 : vector<8x1xi1> to vector<8x1xi1>
    %1067 = vector.broadcast %1066 : vector<8x1xi1> to vector<8x32xi1>
    %1068 = arith.select %1067, %1058, %992 : vector<8x32xi1>, vector<8x32xf32>
    %cst_288 = arith.constant 0.000000e+00 : f32
    %1069 = vector.shape_cast %1062 : vector<8x1xi1> to vector<8x1xi1>
    %1070 = vector.broadcast %1069 : vector<8x1xi1> to vector<8x32xi1>
    %1071 = vector.broadcast %cst_288 : f32 to vector<8x32xf32>
    %1072 = arith.select %1070, %1060, %1071 : vector<8x32xi1>, vector<8x32xf32>
    %c13_289 = arith.constant 13 : index
    %c0_290 = arith.constant 0 : index
    %c0_291 = arith.constant 0 : index
    %1073 = vector.load %arg6[%c13_289, %c0_290, %c0_291] : memref<16x8x32xf32, #tpu.memory_space<vmem>>, vector<1x8x32xf32>
    %1074 = vector.shape_cast %1073 : vector<1x8x32xf32> to vector<8x32xf32>
    %1075 = vector.shape_cast %1043 : vector<8x32xf32> to vector<1x8x32xf32>
    tpu.vector_store %arg6[%c13_289, %c0_290, %c0_291], %1075 {strides = array<i32>} : memref<16x8x32xf32, #tpu.memory_space<vmem>>, vector<1x8x32xf32>,
    %c2_292 = arith.constant 2 : index
    %c0_293 = arith.constant 0 : index
    %c0_294 = arith.constant 0 : index
    %1076 = vector.load %arg7[%c2_292, %c0_293, %c0_294] : memref<16x8x32xf32, #tpu.memory_space<vmem>>, vector<1x8x32xf32>
    %1077 = vector.shape_cast %1076 : vector<1x8x32xf32> to vector<8x32xf32>
    %1078 = vector.shape_cast %1072 : vector<8x32xf32> to vector<1x8x32xf32>
    tpu.vector_store %arg7[%c2_292, %c0_293, %c0_294], %1078 {strides = array<i32>} : memref<16x8x32xf32, #tpu.memory_space<vmem>>, vector<1x8x32xf32>,
    %c0_295 = arith.constant 0 : index
    %c14_296 = arith.constant 14 : index
    %c0_297 = arith.constant 0 : index
    %c0_298 = arith.constant 0 : index
    %1079 = vector.load %arg1[%c0_295, %c14_296, %c0_297, %c0_298] : memref<1x16x8x128xbf16, #tpu.memory_space<vmem>>, vector<1x1x8x128xbf16>
    %1080 = vector.shape_cast %1079 : vector<1x1x8x128xbf16> to vector<8x128xbf16>
    %1081 = arith.extf %1080 : vector<8x128xbf16> to vector<8x128xf32>
    %1082 = arith.truncf %1036 : vector<8x32xf32> to vector<8x32xbf16>
    %cst_299 = arith.constant dense<0.000000e+00> : vector<8x128xf32>
    %1083 = tpu.matmul %1082, %4, %cst_299 {dimension_numbers = #tpu.dot_dimension_numbers<[1], [0], [0], [1], [0, 0, 1, 1], [], []>} : vector<8x32xbf16>, vector<32x128xbf16>, vector<8x128xf32> -> vector<8x128xf32>
    %1084 = arith.addf %1081, %1083 : vector<8x128xf32>
    %c0_300 = arith.constant 0 : index
    %c1_301 = arith.constant 1 : index
    %c0_302 = arith.constant 0 : index
    %c0_303 = arith.constant 0 : index
    %1085 = vector.load %arg2[%c0_300, %c1_301, %c0_302, %c0_303] : memref<1x16x8x128xbf16, #tpu.memory_space<vmem>>, vector<1x1x8x128xbf16>
    %1086 = vector.shape_cast %1085 : vector<1x1x8x128xbf16> to vector<8x128xbf16>
    %1087 = arith.extf %1086 : vector<8x128xbf16> to vector<8x128xf32>
    %1088 = arith.truncf %1065 : vector<8x32xf32> to vector<8x32xbf16>
    %cst_304 = arith.constant dense<0.000000e+00> : vector<8x128xf32>
    %1089 = tpu.matmul %1088, %6, %cst_304 {dimension_numbers = #tpu.dot_dimension_numbers<[1], [0], [0], [1], [0, 0, 1, 1], [], []>} : vector<8x32xbf16>, vector<32x128xbf16>, vector<8x128xf32> -> vector<8x128xf32>
    %1090 = arith.addf %1087, %1089 : vector<8x128xf32>
    %c14_i32_305 = arith.constant 14 : i32
    %1091 = arith.addi %8, %c14_i32_305 : i32
    %1092 = vector.extract_strided_slice %1084 {offsets = [0, 0], sizes = [8, 96], strides = [1, 1]} : vector<8x128xf32> to vector<8x96xf32>
    %1093 = arith.negf %1092 : vector<8x96xf32>
    %1094 = math.exp %1093 : vector<8x96xf32>
    %cst_306 = arith.constant 1.000000e+00 : f32
    %1095 = vector.broadcast %cst_306 : f32 to vector<8x96xf32>
    %1096 = arith.addf %1095, %1094 : vector<8x96xf32>
    %1097 = arith.divf %1095, %1096 : vector<8x96xf32>
    %1098 = vector.extract_strided_slice %1097 {offsets = [0, 0], sizes = [8, 32], strides = [1, 1]} : vector<8x96xf32> to vector<8x32xf32>
    %1099 = vector.extract_strided_slice %1097 {offsets = [0, 32], sizes = [8, 32], strides = [1, 1]} : vector<8x96xf32> to vector<8x32xf32>
    %1100 = vector.extract_strided_slice %1097 {offsets = [0, 64], sizes = [8, 32], strides = [1, 1]} : vector<8x96xf32> to vector<8x32xf32>
    %1101 = vector.extract_strided_slice %1084 {offsets = [0, 96], sizes = [8, 32], strides = [1, 1]} : vector<8x128xf32> to vector<8x32xf32>
    %1102 = math.tanh %1101 : vector<8x32xf32>
    %1103 = arith.mulf %1099, %1039 : vector<8x32xf32>
    %1104 = arith.mulf %1098, %1102 : vector<8x32xf32>
    %1105 = arith.addf %1103, %1104 : vector<8x32xf32>
    %1106 = math.tanh %1105 : vector<8x32xf32>
    %1107 = arith.mulf %1100, %1106 : vector<8x32xf32>
    %1108 = vector.broadcast %1091 : i32 to vector<8x1xi32>
    %1109 = arith.cmpi sgt, %7, %1108 : vector<8x1xi32>
    %1110 = vector.shape_cast %1109 : vector<8x1xi1> to vector<8x1xi1>
    %1111 = vector.broadcast %1110 : vector<8x1xi1> to vector<8x32xi1>
    %1112 = arith.select %1111, %1107, %1036 : vector<8x32xi1>, vector<8x32xf32>
    %1113 = vector.shape_cast %1109 : vector<8x1xi1> to vector<8x1xi1>
    %1114 = vector.broadcast %1113 : vector<8x1xi1> to vector<8x32xi1>
    %1115 = arith.select %1114, %1105, %1039 : vector<8x32xi1>, vector<8x32xf32>
    %cst_307 = arith.constant 0.000000e+00 : f32
    %1116 = vector.shape_cast %1109 : vector<8x1xi1> to vector<8x1xi1>
    %1117 = vector.broadcast %1116 : vector<8x1xi1> to vector<8x32xi1>
    %1118 = vector.broadcast %cst_307 : f32 to vector<8x32xf32>
    %1119 = arith.select %1117, %1107, %1118 : vector<8x32xi1>, vector<8x32xf32>
    %c1_i32_308 = arith.constant 1 : i32
    %1120 = arith.addi %10, %c1_i32_308 : i32
    %1121 = vector.extract_strided_slice %1090 {offsets = [0, 0], sizes = [8, 96], strides = [1, 1]} : vector<8x128xf32> to vector<8x96xf32>
    %1122 = arith.negf %1121 : vector<8x96xf32>
    %1123 = math.exp %1122 : vector<8x96xf32>
    %cst_309 = arith.constant 1.000000e+00 : f32
    %1124 = vector.broadcast %cst_309 : f32 to vector<8x96xf32>
    %1125 = arith.addf %1124, %1123 : vector<8x96xf32>
    %1126 = arith.divf %1124, %1125 : vector<8x96xf32>
    %1127 = vector.extract_strided_slice %1126 {offsets = [0, 0], sizes = [8, 32], strides = [1, 1]} : vector<8x96xf32> to vector<8x32xf32>
    %1128 = vector.extract_strided_slice %1126 {offsets = [0, 32], sizes = [8, 32], strides = [1, 1]} : vector<8x96xf32> to vector<8x32xf32>
    %1129 = vector.extract_strided_slice %1126 {offsets = [0, 64], sizes = [8, 32], strides = [1, 1]} : vector<8x96xf32> to vector<8x32xf32>
    %1130 = vector.extract_strided_slice %1090 {offsets = [0, 96], sizes = [8, 32], strides = [1, 1]} : vector<8x128xf32> to vector<8x32xf32>
    %1131 = math.tanh %1130 : vector<8x32xf32>
    %1132 = arith.mulf %1128, %1068 : vector<8x32xf32>
    %1133 = arith.mulf %1127, %1131 : vector<8x32xf32>
    %1134 = arith.addf %1132, %1133 : vector<8x32xf32>
    %1135 = math.tanh %1134 : vector<8x32xf32>
    %1136 = arith.mulf %1129, %1135 : vector<8x32xf32>
    %1137 = vector.broadcast %1120 : i32 to vector<8x1xi32>
    %1138 = arith.cmpi sgt, %7, %1137 : vector<8x1xi32>
    %1139 = vector.shape_cast %1138 : vector<8x1xi1> to vector<8x1xi1>
    %1140 = vector.broadcast %1139 : vector<8x1xi1> to vector<8x32xi1>
    %1141 = arith.select %1140, %1136, %1065 : vector<8x32xi1>, vector<8x32xf32>
    %1142 = vector.shape_cast %1138 : vector<8x1xi1> to vector<8x1xi1>
    %1143 = vector.broadcast %1142 : vector<8x1xi1> to vector<8x32xi1>
    %1144 = arith.select %1143, %1134, %1068 : vector<8x32xi1>, vector<8x32xf32>
    %cst_310 = arith.constant 0.000000e+00 : f32
    %1145 = vector.shape_cast %1138 : vector<8x1xi1> to vector<8x1xi1>
    %1146 = vector.broadcast %1145 : vector<8x1xi1> to vector<8x32xi1>
    %1147 = vector.broadcast %cst_310 : f32 to vector<8x32xf32>
    %1148 = arith.select %1146, %1136, %1147 : vector<8x32xi1>, vector<8x32xf32>
    %c14_311 = arith.constant 14 : index
    %c0_312 = arith.constant 0 : index
    %c0_313 = arith.constant 0 : index
    %1149 = vector.load %arg6[%c14_311, %c0_312, %c0_313] : memref<16x8x32xf32, #tpu.memory_space<vmem>>, vector<1x8x32xf32>
    %1150 = vector.shape_cast %1149 : vector<1x8x32xf32> to vector<8x32xf32>
    %1151 = vector.shape_cast %1119 : vector<8x32xf32> to vector<1x8x32xf32>
    tpu.vector_store %arg6[%c14_311, %c0_312, %c0_313], %1151 {strides = array<i32>} : memref<16x8x32xf32, #tpu.memory_space<vmem>>, vector<1x8x32xf32>,
    %c1_314 = arith.constant 1 : index
    %c0_315 = arith.constant 0 : index
    %c0_316 = arith.constant 0 : index
    %1152 = vector.load %arg7[%c1_314, %c0_315, %c0_316] : memref<16x8x32xf32, #tpu.memory_space<vmem>>, vector<1x8x32xf32>
    %1153 = vector.shape_cast %1152 : vector<1x8x32xf32> to vector<8x32xf32>
    %1154 = vector.shape_cast %1148 : vector<8x32xf32> to vector<1x8x32xf32>
    tpu.vector_store %arg7[%c1_314, %c0_315, %c0_316], %1154 {strides = array<i32>} : memref<16x8x32xf32, #tpu.memory_space<vmem>>, vector<1x8x32xf32>,
    %c0_317 = arith.constant 0 : index
    %c15_318 = arith.constant 15 : index
    %c0_319 = arith.constant 0 : index
    %c0_320 = arith.constant 0 : index
    %1155 = vector.load %arg1[%c0_317, %c15_318, %c0_319, %c0_320] : memref<1x16x8x128xbf16, #tpu.memory_space<vmem>>, vector<1x1x8x128xbf16>
    %1156 = vector.shape_cast %1155 : vector<1x1x8x128xbf16> to vector<8x128xbf16>
    %1157 = arith.extf %1156 : vector<8x128xbf16> to vector<8x128xf32>
    %1158 = arith.truncf %1112 : vector<8x32xf32> to vector<8x32xbf16>
    %cst_321 = arith.constant dense<0.000000e+00> : vector<8x128xf32>
    %1159 = tpu.matmul %1158, %4, %cst_321 {dimension_numbers = #tpu.dot_dimension_numbers<[1], [0], [0], [1], [0, 0, 1, 1], [], []>} : vector<8x32xbf16>, vector<32x128xbf16>, vector<8x128xf32> -> vector<8x128xf32>
    %1160 = arith.addf %1157, %1159 : vector<8x128xf32>
    %c0_322 = arith.constant 0 : index
    %c0_323 = arith.constant 0 : index
    %c0_324 = arith.constant 0 : index
    %c0_325 = arith.constant 0 : index
    %1161 = vector.load %arg2[%c0_322, %c0_323, %c0_324, %c0_325] : memref<1x16x8x128xbf16, #tpu.memory_space<vmem>>, vector<1x1x8x128xbf16>
    %1162 = vector.shape_cast %1161 : vector<1x1x8x128xbf16> to vector<8x128xbf16>
    %1163 = arith.extf %1162 : vector<8x128xbf16> to vector<8x128xf32>
    %1164 = arith.truncf %1141 : vector<8x32xf32> to vector<8x32xbf16>
    %cst_326 = arith.constant dense<0.000000e+00> : vector<8x128xf32>
    %1165 = tpu.matmul %1164, %6, %cst_326 {dimension_numbers = #tpu.dot_dimension_numbers<[1], [0], [0], [1], [0, 0, 1, 1], [], []>} : vector<8x32xbf16>, vector<32x128xbf16>, vector<8x128xf32> -> vector<8x128xf32>
    %1166 = arith.addf %1163, %1165 : vector<8x128xf32>
    %c15_i32_327 = arith.constant 15 : i32
    %1167 = arith.addi %8, %c15_i32_327 : i32
    %1168 = vector.extract_strided_slice %1160 {offsets = [0, 0], sizes = [8, 96], strides = [1, 1]} : vector<8x128xf32> to vector<8x96xf32>
    %1169 = arith.negf %1168 : vector<8x96xf32>
    %1170 = math.exp %1169 : vector<8x96xf32>
    %cst_328 = arith.constant 1.000000e+00 : f32
    %1171 = vector.broadcast %cst_328 : f32 to vector<8x96xf32>
    %1172 = arith.addf %1171, %1170 : vector<8x96xf32>
    %1173 = arith.divf %1171, %1172 : vector<8x96xf32>
    %1174 = vector.extract_strided_slice %1173 {offsets = [0, 0], sizes = [8, 32], strides = [1, 1]} : vector<8x96xf32> to vector<8x32xf32>
    %1175 = vector.extract_strided_slice %1173 {offsets = [0, 32], sizes = [8, 32], strides = [1, 1]} : vector<8x96xf32> to vector<8x32xf32>
    %1176 = vector.extract_strided_slice %1173 {offsets = [0, 64], sizes = [8, 32], strides = [1, 1]} : vector<8x96xf32> to vector<8x32xf32>
    %1177 = vector.extract_strided_slice %1160 {offsets = [0, 96], sizes = [8, 32], strides = [1, 1]} : vector<8x128xf32> to vector<8x32xf32>
    %1178 = math.tanh %1177 : vector<8x32xf32>
    %1179 = arith.mulf %1175, %1115 : vector<8x32xf32>
    %1180 = arith.mulf %1174, %1178 : vector<8x32xf32>
    %1181 = arith.addf %1179, %1180 : vector<8x32xf32>
    %1182 = math.tanh %1181 : vector<8x32xf32>
    %1183 = arith.mulf %1176, %1182 : vector<8x32xf32>
    %1184 = vector.broadcast %1167 : i32 to vector<8x1xi32>
    %1185 = arith.cmpi sgt, %7, %1184 : vector<8x1xi32>
    %1186 = vector.shape_cast %1185 : vector<8x1xi1> to vector<8x1xi1>
    %1187 = vector.broadcast %1186 : vector<8x1xi1> to vector<8x32xi1>
    %1188 = arith.select %1187, %1183, %1112 : vector<8x32xi1>, vector<8x32xf32>
    %1189 = vector.shape_cast %1185 : vector<8x1xi1> to vector<8x1xi1>
    %1190 = vector.broadcast %1189 : vector<8x1xi1> to vector<8x32xi1>
    %1191 = arith.select %1190, %1181, %1115 : vector<8x32xi1>, vector<8x32xf32>
    %cst_329 = arith.constant 0.000000e+00 : f32
    %1192 = vector.shape_cast %1185 : vector<8x1xi1> to vector<8x1xi1>
    %1193 = vector.broadcast %1192 : vector<8x1xi1> to vector<8x32xi1>
    %1194 = vector.broadcast %cst_329 : f32 to vector<8x32xf32>
    %1195 = arith.select %1193, %1183, %1194 : vector<8x32xi1>, vector<8x32xf32>
    %c0_i32_330 = arith.constant 0 : i32
    %1196 = arith.addi %10, %c0_i32_330 : i32
    %1197 = vector.extract_strided_slice %1166 {offsets = [0, 0], sizes = [8, 96], strides = [1, 1]} : vector<8x128xf32> to vector<8x96xf32>
    %1198 = arith.negf %1197 : vector<8x96xf32>
    %1199 = math.exp %1198 : vector<8x96xf32>
    %cst_331 = arith.constant 1.000000e+00 : f32
    %1200 = vector.broadcast %cst_331 : f32 to vector<8x96xf32>
    %1201 = arith.addf %1200, %1199 : vector<8x96xf32>
    %1202 = arith.divf %1200, %1201 : vector<8x96xf32>
    %1203 = vector.extract_strided_slice %1202 {offsets = [0, 0], sizes = [8, 32], strides = [1, 1]} : vector<8x96xf32> to vector<8x32xf32>
    %1204 = vector.extract_strided_slice %1202 {offsets = [0, 32], sizes = [8, 32], strides = [1, 1]} : vector<8x96xf32> to vector<8x32xf32>
    %1205 = vector.extract_strided_slice %1202 {offsets = [0, 64], sizes = [8, 32], strides = [1, 1]} : vector<8x96xf32> to vector<8x32xf32>
    %1206 = vector.extract_strided_slice %1166 {offsets = [0, 96], sizes = [8, 32], strides = [1, 1]} : vector<8x128xf32> to vector<8x32xf32>
    %1207 = math.tanh %1206 : vector<8x32xf32>
    %1208 = arith.mulf %1204, %1144 : vector<8x32xf32>
    %1209 = arith.mulf %1203, %1207 : vector<8x32xf32>
    %1210 = arith.addf %1208, %1209 : vector<8x32xf32>
    %1211 = math.tanh %1210 : vector<8x32xf32>
    %1212 = arith.mulf %1205, %1211 : vector<8x32xf32>
    %1213 = vector.broadcast %1196 : i32 to vector<8x1xi32>
    %1214 = arith.cmpi sgt, %7, %1213 : vector<8x1xi32>
    %1215 = vector.shape_cast %1214 : vector<8x1xi1> to vector<8x1xi1>
    %1216 = vector.broadcast %1215 : vector<8x1xi1> to vector<8x32xi1>
    %1217 = arith.select %1216, %1212, %1141 : vector<8x32xi1>, vector<8x32xf32>
    %1218 = vector.shape_cast %1214 : vector<8x1xi1> to vector<8x1xi1>
    %1219 = vector.broadcast %1218 : vector<8x1xi1> to vector<8x32xi1>
    %1220 = arith.select %1219, %1210, %1144 : vector<8x32xi1>, vector<8x32xf32>
    %cst_332 = arith.constant 0.000000e+00 : f32
    %1221 = vector.shape_cast %1214 : vector<8x1xi1> to vector<8x1xi1>
    %1222 = vector.broadcast %1221 : vector<8x1xi1> to vector<8x32xi1>
    %1223 = vector.broadcast %cst_332 : f32 to vector<8x32xf32>
    %1224 = arith.select %1222, %1212, %1223 : vector<8x32xi1>, vector<8x32xf32>
    %c15_333 = arith.constant 15 : index
    %c0_334 = arith.constant 0 : index
    %c0_335 = arith.constant 0 : index
    %1225 = vector.load %arg6[%c15_333, %c0_334, %c0_335] : memref<16x8x32xf32, #tpu.memory_space<vmem>>, vector<1x8x32xf32>
    %1226 = vector.shape_cast %1225 : vector<1x8x32xf32> to vector<8x32xf32>
    %1227 = vector.shape_cast %1195 : vector<8x32xf32> to vector<1x8x32xf32>
    tpu.vector_store %arg6[%c15_333, %c0_334, %c0_335], %1227 {strides = array<i32>} : memref<16x8x32xf32, #tpu.memory_space<vmem>>, vector<1x8x32xf32>,
    %c0_336 = arith.constant 0 : index
    %c0_337 = arith.constant 0 : index
    %c0_338 = arith.constant 0 : index
    %1228 = vector.load %arg7[%c0_336, %c0_337, %c0_338] : memref<16x8x32xf32, #tpu.memory_space<vmem>>, vector<1x8x32xf32>
    %1229 = vector.shape_cast %1228 : vector<1x8x32xf32> to vector<8x32xf32>
    %1230 = vector.shape_cast %1224 : vector<8x32xf32> to vector<1x8x32xf32>
    tpu.vector_store %arg7[%c0_336, %c0_337, %c0_338], %1230 {strides = array<i32>} : memref<16x8x32xf32, #tpu.memory_space<vmem>>, vector<1x8x32xf32>,
    %c0_339 = arith.constant 0 : index
    %c0_340 = arith.constant 0 : index
    %1231 = vector.load %arg8[%c0_339, %c0_340] : memref<8x32xf32, #tpu.memory_space<vmem>>, vector<8x32xf32>
    tpu.vector_store %arg8[%c0_339, %c0_340], %1188 {strides = array<i32>} : memref<8x32xf32, #tpu.memory_space<vmem>>, vector<8x32xf32>,
    %c0_341 = arith.constant 0 : index
    %c0_342 = arith.constant 0 : index
    %1232 = vector.load %arg9[%c0_341, %c0_342] : memref<8x32xf32, #tpu.memory_space<vmem>>, vector<8x32xf32>
    tpu.vector_store %arg9[%c0_341, %c0_342], %1191 {strides = array<i32>} : memref<8x32xf32, #tpu.memory_space<vmem>>, vector<8x32xf32>,
    %c0_343 = arith.constant 0 : index
    %c0_344 = arith.constant 0 : index
    %1233 = vector.load %arg10[%c0_343, %c0_344] : memref<8x32xf32, #tpu.memory_space<vmem>>, vector<8x32xf32>
    tpu.vector_store %arg10[%c0_343, %c0_344], %1217 {strides = array<i32>} : memref<8x32xf32, #tpu.memory_space<vmem>>, vector<8x32xf32>,
    %c0_345 = arith.constant 0 : index
    %c0_346 = arith.constant 0 : index
    %1234 = vector.load %arg11[%c0_345, %c0_346] : memref<8x32xf32, #tpu.memory_space<vmem>>, vector<8x32xf32>
    tpu.vector_store %arg11[%c0_345, %c0_346], %1220 {strides = array<i32>} : memref<8x32xf32, #tpu.memory_space<vmem>>, vector<8x32xf32>,
    return
  }
  func.func @transform_0(%arg0: i32) -> (i32, i32, i32, i32) {
    %c0_i32 = arith.constant 0 : i32
    %c0_i32_0 = arith.constant 0 : i32
    %c0_i32_1 = arith.constant 0 : i32
    %c0_i32_2 = arith.constant 0 : i32
    return %c0_i32, %arg0, %c0_i32_0, %c0_i32_1 : i32, i32, i32, i32
  }
  func.func @transform_1(%arg0: i32) -> (i32, i32, i32, i32) {
    %c0_i32 = arith.constant 0 : i32
    %0 = arith.subi %c0_i32, %arg0 : i32
    %c1_i32 = arith.constant 1 : i32
    %c0_i32_0 = arith.constant 0 : i32
    %c0_i32_1 = arith.constant 0 : i32
    %c0_i32_2 = arith.constant 0 : i32
    return %c1_i32, %0, %c0_i32_0, %c0_i32_1 : i32, i32, i32, i32
  }
  func.func @transform_2(%arg0: i32) -> (i32, i32, i32) {
    %c0_i32 = arith.constant 0 : i32
    %c0_i32_0 = arith.constant 0 : i32
    %c0_i32_1 = arith.constant 0 : i32
    %c0_i32_2 = arith.constant 0 : i32
    return %c0_i32, %c0_i32_0, %c0_i32_1 : i32, i32, i32
  }
  func.func @transform_3(%arg0: i32) -> (i32, i32, i32) {
    %c1_i32 = arith.constant 1 : i32
    %c0_i32 = arith.constant 0 : i32
    %c0_i32_0 = arith.constant 0 : i32
    %c0_i32_1 = arith.constant 0 : i32
    return %c1_i32, %c0_i32, %c0_i32_0 : i32, i32, i32
  }
  func.func @transform_4(%arg0: i32) -> (i32, i32) {
    %c0_i32 = arith.constant 0 : i32
    %c0_i32_0 = arith.constant 0 : i32
    %c0_i32_1 = arith.constant 0 : i32
    return %c0_i32, %c0_i32_0 : i32, i32
  }
  func.func @transform_5(%arg0: i32) -> (i32, i32, i32) {
    %c0_i32 = arith.constant 0 : i32
    %c0_i32_0 = arith.constant 0 : i32
    %c0_i32_1 = arith.constant 0 : i32
    return %arg0, %c0_i32, %c0_i32_0 : i32, i32, i32
  }
  func.func @transform_6(%arg0: i32) -> (i32, i32, i32) {
    %c0_i32 = arith.constant 0 : i32
    %0 = arith.subi %c0_i32, %arg0 : i32
    %c0_i32_0 = arith.constant 0 : i32
    %c0_i32_1 = arith.constant 0 : i32
    %c0_i32_2 = arith.constant 0 : i32
    return %0, %c0_i32_0, %c0_i32_1 : i32, i32, i32
  }
}

module attributes {stable_mosaic.version = 11 : i64} {
  func.func @_bilstm_kernel(%arg0: i32, %arg1: memref<1x8x8x128xbf16, #tpu.memory_space<vmem>>, %arg2: memref<1x8x8x128xbf16, #tpu.memory_space<vmem>>, %arg3: memref<1x32x128xbf16, #tpu.memory_space<vmem>>, %arg4: memref<1x32x128xbf16, #tpu.memory_space<vmem>>, %arg5: memref<8x1xi32, #tpu.memory_space<vmem>>, %arg6: memref<8x8x32xf32, #tpu.memory_space<vmem>>, %arg7: memref<8x8x32xf32, #tpu.memory_space<vmem>>, %arg8: memref<8x32xf32, #tpu.memory_space<vmem>>, %arg9: memref<8x32xf32, #tpu.memory_space<vmem>>, %arg10: memref<8x32xf32, #tpu.memory_space<vmem>>, %arg11: memref<8x32xf32, #tpu.memory_space<vmem>>) attributes {dimension_semantics = [#tpu.dimension_semantics<arbitrary>], iteration_bounds = array<i64: 1>, scalar_prefetch = 0 : i64, scratch_operands = 4 : i64, tpu.core_type = #tpu.core_type<tc>, window_params = [{transform_indices = @transform_0, window_bounds = array<i64: 1, 8, 8, 128>}, {transform_indices = @transform_1, window_bounds = array<i64: 1, 8, 8, 128>}, {transform_indices = @transform_2, window_bounds = array<i64: 1, 32, 128>}, {transform_indices = @transform_3, window_bounds = array<i64: 1, 32, 128>}, {pipeline_mode = #tpu.pipeline_mode<synchronous>, transform_indices = @transform_4, window_bounds = array<i64: 8, 1>}, {transform_indices = @transform_5, window_bounds = array<i64: 8, 8, 32>}, {transform_indices = @transform_6, window_bounds = array<i64: 8, 8, 32>}]} {
    %c0_i32 = arith.constant 0 : i32
    %0 = arith.cmpi eq, %arg0, %c0_i32 : i32
    %1 = arith.extui %0 : i1 to i32
    %c0_i32_0 = arith.constant 0 : i32
    %2 = arith.cmpi ne, %1, %c0_i32_0 : i32
    scf.if %2 {
      %cst_187 = arith.constant 0.000000e+00 : f32
      %627 = vector.broadcast %cst_187 : f32 to vector<8x32xf32>
      %c0_188 = arith.constant 0 : index
      %c0_189 = arith.constant 0 : index
      %628 = vector.load %arg8[%c0_188, %c0_189] : memref<8x32xf32, #tpu.memory_space<vmem>>, vector<8x32xf32>
      tpu.vector_store %arg8[%c0_188, %c0_189], %627 {strides = array<i32>} : memref<8x32xf32, #tpu.memory_space<vmem>>, vector<8x32xf32>,
      %cst_190 = arith.constant 0.000000e+00 : f32
      %629 = vector.broadcast %cst_190 : f32 to vector<8x32xf32>
      %c0_191 = arith.constant 0 : index
      %c0_192 = arith.constant 0 : index
      %630 = vector.load %arg9[%c0_191, %c0_192] : memref<8x32xf32, #tpu.memory_space<vmem>>, vector<8x32xf32>
      tpu.vector_store %arg9[%c0_191, %c0_192], %629 {strides = array<i32>} : memref<8x32xf32, #tpu.memory_space<vmem>>, vector<8x32xf32>,
      %cst_193 = arith.constant 0.000000e+00 : f32
      %631 = vector.broadcast %cst_193 : f32 to vector<8x32xf32>
      %c0_194 = arith.constant 0 : index
      %c0_195 = arith.constant 0 : index
      %632 = vector.load %arg10[%c0_194, %c0_195] : memref<8x32xf32, #tpu.memory_space<vmem>>, vector<8x32xf32>
      tpu.vector_store %arg10[%c0_194, %c0_195], %631 {strides = array<i32>} : memref<8x32xf32, #tpu.memory_space<vmem>>, vector<8x32xf32>,
      %cst_196 = arith.constant 0.000000e+00 : f32
      %633 = vector.broadcast %cst_196 : f32 to vector<8x32xf32>
      %c0_197 = arith.constant 0 : index
      %c0_198 = arith.constant 0 : index
      %634 = vector.load %arg11[%c0_197, %c0_198] : memref<8x32xf32, #tpu.memory_space<vmem>>, vector<8x32xf32>
      tpu.vector_store %arg11[%c0_197, %c0_198], %633 {strides = array<i32>} : memref<8x32xf32, #tpu.memory_space<vmem>>, vector<8x32xf32>,
    } else {
    }
    %c0 = arith.constant 0 : index
    %c0_1 = arith.constant 0 : index
    %c0_2 = arith.constant 0 : index
    %3 = vector.load %arg3[%c0, %c0_1, %c0_2] : memref<1x32x128xbf16, #tpu.memory_space<vmem>>, vector<1x32x128xbf16>
    %4 = vector.shape_cast %3 : vector<1x32x128xbf16> to vector<32x128xbf16>
    %c0_3 = arith.constant 0 : index
    %c0_4 = arith.constant 0 : index
    %c0_5 = arith.constant 0 : index
    %5 = vector.load %arg4[%c0_3, %c0_4, %c0_5] : memref<1x32x128xbf16, #tpu.memory_space<vmem>>, vector<1x32x128xbf16>
    %6 = vector.shape_cast %5 : vector<1x32x128xbf16> to vector<32x128xbf16>
    %c0_6 = arith.constant 0 : index
    %c0_7 = arith.constant 0 : index
    %7 = vector.load %arg5[%c0_6, %c0_7] : memref<8x1xi32, #tpu.memory_space<vmem>>, vector<8x1xi32>
    %c8_i32 = arith.constant 8 : i32
    %8 = arith.muli %arg0, %c8_i32 : i32
    %c0_i32_8 = arith.constant 0 : i32
    %9 = arith.subi %c0_i32_8, %arg0 : i32
    %c8_i32_9 = arith.constant 8 : i32
    %10 = arith.muli %9, %c8_i32_9 : i32
    %c0_10 = arith.constant 0 : index
    %c0_11 = arith.constant 0 : index
    %11 = vector.load %arg8[%c0_10, %c0_11] : memref<8x32xf32, #tpu.memory_space<vmem>>, vector<8x32xf32>
    %c0_12 = arith.constant 0 : index
    %c0_13 = arith.constant 0 : index
    %12 = vector.load %arg9[%c0_12, %c0_13] : memref<8x32xf32, #tpu.memory_space<vmem>>, vector<8x32xf32>
    %c0_14 = arith.constant 0 : index
    %c0_15 = arith.constant 0 : index
    %13 = vector.load %arg10[%c0_14, %c0_15] : memref<8x32xf32, #tpu.memory_space<vmem>>, vector<8x32xf32>
    %c0_16 = arith.constant 0 : index
    %c0_17 = arith.constant 0 : index
    %14 = vector.load %arg11[%c0_16, %c0_17] : memref<8x32xf32, #tpu.memory_space<vmem>>, vector<8x32xf32>
    %c0_18 = arith.constant 0 : index
    %c0_19 = arith.constant 0 : index
    %c0_20 = arith.constant 0 : index
    %c0_21 = arith.constant 0 : index
    %15 = vector.load %arg1[%c0_18, %c0_19, %c0_20, %c0_21] : memref<1x8x8x128xbf16, #tpu.memory_space<vmem>>, vector<1x1x8x128xbf16>
    %16 = vector.shape_cast %15 : vector<1x1x8x128xbf16> to vector<8x128xbf16>
    %17 = arith.extf %16 : vector<8x128xbf16> to vector<8x128xf32>
    %18 = arith.truncf %11 : vector<8x32xf32> to vector<8x32xbf16>
    %cst = arith.constant dense<0.000000e+00> : vector<8x128xf32>
    %19 = tpu.matmul %18, %4, %cst {dimension_numbers = #tpu.dot_dimension_numbers<[1], [0], [0], [1], [0, 0, 1, 1], [], []>} : vector<8x32xbf16>, vector<32x128xbf16>, vector<8x128xf32> -> vector<8x128xf32>
    %20 = arith.addf %17, %19 : vector<8x128xf32>
    %c0_22 = arith.constant 0 : index
    %c7 = arith.constant 7 : index
    %c0_23 = arith.constant 0 : index
    %c0_24 = arith.constant 0 : index
    %21 = vector.load %arg2[%c0_22, %c7, %c0_23, %c0_24] : memref<1x8x8x128xbf16, #tpu.memory_space<vmem>>, vector<1x1x8x128xbf16>
    %22 = vector.shape_cast %21 : vector<1x1x8x128xbf16> to vector<8x128xbf16>
    %23 = arith.extf %22 : vector<8x128xbf16> to vector<8x128xf32>
    %24 = arith.truncf %13 : vector<8x32xf32> to vector<8x32xbf16>
    %cst_25 = arith.constant dense<0.000000e+00> : vector<8x128xf32>
    %25 = tpu.matmul %24, %6, %cst_25 {dimension_numbers = #tpu.dot_dimension_numbers<[1], [0], [0], [1], [0, 0, 1, 1], [], []>} : vector<8x32xbf16>, vector<32x128xbf16>, vector<8x128xf32> -> vector<8x128xf32>
    %26 = arith.addf %23, %25 : vector<8x128xf32>
    %c0_i32_26 = arith.constant 0 : i32
    %27 = arith.addi %8, %c0_i32_26 : i32
    %28 = vector.extract_strided_slice %20 {offsets = [0, 0], sizes = [8, 96], strides = [1, 1]} : vector<8x128xf32> to vector<8x96xf32>
    %29 = arith.negf %28 : vector<8x96xf32>
    %30 = math.exp %29 : vector<8x96xf32>
    %cst_27 = arith.constant 1.000000e+00 : f32
    %31 = vector.broadcast %cst_27 : f32 to vector<8x96xf32>
    %32 = arith.addf %31, %30 : vector<8x96xf32>
    %33 = arith.divf %31, %32 : vector<8x96xf32>
    %34 = vector.extract_strided_slice %33 {offsets = [0, 0], sizes = [8, 32], strides = [1, 1]} : vector<8x96xf32> to vector<8x32xf32>
    %35 = vector.extract_strided_slice %33 {offsets = [0, 32], sizes = [8, 32], strides = [1, 1]} : vector<8x96xf32> to vector<8x32xf32>
    %36 = vector.extract_strided_slice %33 {offsets = [0, 64], sizes = [8, 32], strides = [1, 1]} : vector<8x96xf32> to vector<8x32xf32>
    %37 = vector.extract_strided_slice %20 {offsets = [0, 96], sizes = [8, 32], strides = [1, 1]} : vector<8x128xf32> to vector<8x32xf32>
    %38 = math.tanh %37 : vector<8x32xf32>
    %39 = arith.mulf %35, %12 : vector<8x32xf32>
    %40 = arith.mulf %34, %38 : vector<8x32xf32>
    %41 = arith.addf %39, %40 : vector<8x32xf32>
    %42 = math.tanh %41 : vector<8x32xf32>
    %43 = arith.mulf %36, %42 : vector<8x32xf32>
    %44 = vector.broadcast %27 : i32 to vector<8x1xi32>
    %45 = arith.cmpi sgt, %7, %44 : vector<8x1xi32>
    %46 = vector.shape_cast %45 : vector<8x1xi1> to vector<8x1xi1>
    %47 = vector.broadcast %46 : vector<8x1xi1> to vector<8x32xi1>
    %48 = arith.select %47, %43, %11 : vector<8x32xi1>, vector<8x32xf32>
    %49 = vector.shape_cast %45 : vector<8x1xi1> to vector<8x1xi1>
    %50 = vector.broadcast %49 : vector<8x1xi1> to vector<8x32xi1>
    %51 = arith.select %50, %41, %12 : vector<8x32xi1>, vector<8x32xf32>
    %cst_28 = arith.constant 0.000000e+00 : f32
    %52 = vector.shape_cast %45 : vector<8x1xi1> to vector<8x1xi1>
    %53 = vector.broadcast %52 : vector<8x1xi1> to vector<8x32xi1>
    %54 = vector.broadcast %cst_28 : f32 to vector<8x32xf32>
    %55 = arith.select %53, %43, %54 : vector<8x32xi1>, vector<8x32xf32>
    %c7_i32 = arith.constant 7 : i32
    %56 = arith.addi %10, %c7_i32 : i32
    %57 = vector.extract_strided_slice %26 {offsets = [0, 0], sizes = [8, 96], strides = [1, 1]} : vector<8x128xf32> to vector<8x96xf32>
    %58 = arith.negf %57 : vector<8x96xf32>
    %59 = math.exp %58 : vector<8x96xf32>
    %cst_29 = arith.constant 1.000000e+00 : f32
    %60 = vector.broadcast %cst_29 : f32 to vector<8x96xf32>
    %61 = arith.addf %60, %59 : vector<8x96xf32>
    %62 = arith.divf %60, %61 : vector<8x96xf32>
    %63 = vector.extract_strided_slice %62 {offsets = [0, 0], sizes = [8, 32], strides = [1, 1]} : vector<8x96xf32> to vector<8x32xf32>
    %64 = vector.extract_strided_slice %62 {offsets = [0, 32], sizes = [8, 32], strides = [1, 1]} : vector<8x96xf32> to vector<8x32xf32>
    %65 = vector.extract_strided_slice %62 {offsets = [0, 64], sizes = [8, 32], strides = [1, 1]} : vector<8x96xf32> to vector<8x32xf32>
    %66 = vector.extract_strided_slice %26 {offsets = [0, 96], sizes = [8, 32], strides = [1, 1]} : vector<8x128xf32> to vector<8x32xf32>
    %67 = math.tanh %66 : vector<8x32xf32>
    %68 = arith.mulf %64, %14 : vector<8x32xf32>
    %69 = arith.mulf %63, %67 : vector<8x32xf32>
    %70 = arith.addf %68, %69 : vector<8x32xf32>
    %71 = math.tanh %70 : vector<8x32xf32>
    %72 = arith.mulf %65, %71 : vector<8x32xf32>
    %73 = vector.broadcast %56 : i32 to vector<8x1xi32>
    %74 = arith.cmpi sgt, %7, %73 : vector<8x1xi32>
    %75 = vector.shape_cast %74 : vector<8x1xi1> to vector<8x1xi1>
    %76 = vector.broadcast %75 : vector<8x1xi1> to vector<8x32xi1>
    %77 = arith.select %76, %72, %13 : vector<8x32xi1>, vector<8x32xf32>
    %78 = vector.shape_cast %74 : vector<8x1xi1> to vector<8x1xi1>
    %79 = vector.broadcast %78 : vector<8x1xi1> to vector<8x32xi1>
    %80 = arith.select %79, %70, %14 : vector<8x32xi1>, vector<8x32xf32>
    %cst_30 = arith.constant 0.000000e+00 : f32
    %81 = vector.shape_cast %74 : vector<8x1xi1> to vector<8x1xi1>
    %82 = vector.broadcast %81 : vector<8x1xi1> to vector<8x32xi1>
    %83 = vector.broadcast %cst_30 : f32 to vector<8x32xf32>
    %84 = arith.select %82, %72, %83 : vector<8x32xi1>, vector<8x32xf32>
    %c0_31 = arith.constant 0 : index
    %c0_32 = arith.constant 0 : index
    %c0_33 = arith.constant 0 : index
    %85 = vector.load %arg6[%c0_31, %c0_32, %c0_33] : memref<8x8x32xf32, #tpu.memory_space<vmem>>, vector<1x8x32xf32>
    %86 = vector.shape_cast %85 : vector<1x8x32xf32> to vector<8x32xf32>
    %87 = vector.shape_cast %55 : vector<8x32xf32> to vector<1x8x32xf32>
    tpu.vector_store %arg6[%c0_31, %c0_32, %c0_33], %87 {strides = array<i32>} : memref<8x8x32xf32, #tpu.memory_space<vmem>>, vector<1x8x32xf32>,
    %c7_34 = arith.constant 7 : index
    %c0_35 = arith.constant 0 : index
    %c0_36 = arith.constant 0 : index
    %88 = vector.load %arg7[%c7_34, %c0_35, %c0_36] : memref<8x8x32xf32, #tpu.memory_space<vmem>>, vector<1x8x32xf32>
    %89 = vector.shape_cast %88 : vector<1x8x32xf32> to vector<8x32xf32>
    %90 = vector.shape_cast %84 : vector<8x32xf32> to vector<1x8x32xf32>
    tpu.vector_store %arg7[%c7_34, %c0_35, %c0_36], %90 {strides = array<i32>} : memref<8x8x32xf32, #tpu.memory_space<vmem>>, vector<1x8x32xf32>,
    %c0_37 = arith.constant 0 : index
    %c1 = arith.constant 1 : index
    %c0_38 = arith.constant 0 : index
    %c0_39 = arith.constant 0 : index
    %91 = vector.load %arg1[%c0_37, %c1, %c0_38, %c0_39] : memref<1x8x8x128xbf16, #tpu.memory_space<vmem>>, vector<1x1x8x128xbf16>
    %92 = vector.shape_cast %91 : vector<1x1x8x128xbf16> to vector<8x128xbf16>
    %93 = arith.extf %92 : vector<8x128xbf16> to vector<8x128xf32>
    %94 = arith.truncf %48 : vector<8x32xf32> to vector<8x32xbf16>
    %cst_40 = arith.constant dense<0.000000e+00> : vector<8x128xf32>
    %95 = tpu.matmul %94, %4, %cst_40 {dimension_numbers = #tpu.dot_dimension_numbers<[1], [0], [0], [1], [0, 0, 1, 1], [], []>} : vector<8x32xbf16>, vector<32x128xbf16>, vector<8x128xf32> -> vector<8x128xf32>
    %96 = arith.addf %93, %95 : vector<8x128xf32>
    %c0_41 = arith.constant 0 : index
    %c6 = arith.constant 6 : index
    %c0_42 = arith.constant 0 : index
    %c0_43 = arith.constant 0 : index
    %97 = vector.load %arg2[%c0_41, %c6, %c0_42, %c0_43] : memref<1x8x8x128xbf16, #tpu.memory_space<vmem>>, vector<1x1x8x128xbf16>
    %98 = vector.shape_cast %97 : vector<1x1x8x128xbf16> to vector<8x128xbf16>
    %99 = arith.extf %98 : vector<8x128xbf16> to vector<8x128xf32>
    %100 = arith.truncf %77 : vector<8x32xf32> to vector<8x32xbf16>
    %cst_44 = arith.constant dense<0.000000e+00> : vector<8x128xf32>
    %101 = tpu.matmul %100, %6, %cst_44 {dimension_numbers = #tpu.dot_dimension_numbers<[1], [0], [0], [1], [0, 0, 1, 1], [], []>} : vector<8x32xbf16>, vector<32x128xbf16>, vector<8x128xf32> -> vector<8x128xf32>
    %102 = arith.addf %99, %101 : vector<8x128xf32>
    %c1_i32 = arith.constant 1 : i32
    %103 = arith.addi %8, %c1_i32 : i32
    %104 = vector.extract_strided_slice %96 {offsets = [0, 0], sizes = [8, 96], strides = [1, 1]} : vector<8x128xf32> to vector<8x96xf32>
    %105 = arith.negf %104 : vector<8x96xf32>
    %106 = math.exp %105 : vector<8x96xf32>
    %cst_45 = arith.constant 1.000000e+00 : f32
    %107 = vector.broadcast %cst_45 : f32 to vector<8x96xf32>
    %108 = arith.addf %107, %106 : vector<8x96xf32>
    %109 = arith.divf %107, %108 : vector<8x96xf32>
    %110 = vector.extract_strided_slice %109 {offsets = [0, 0], sizes = [8, 32], strides = [1, 1]} : vector<8x96xf32> to vector<8x32xf32>
    %111 = vector.extract_strided_slice %109 {offsets = [0, 32], sizes = [8, 32], strides = [1, 1]} : vector<8x96xf32> to vector<8x32xf32>
    %112 = vector.extract_strided_slice %109 {offsets = [0, 64], sizes = [8, 32], strides = [1, 1]} : vector<8x96xf32> to vector<8x32xf32>
    %113 = vector.extract_strided_slice %96 {offsets = [0, 96], sizes = [8, 32], strides = [1, 1]} : vector<8x128xf32> to vector<8x32xf32>
    %114 = math.tanh %113 : vector<8x32xf32>
    %115 = arith.mulf %111, %51 : vector<8x32xf32>
    %116 = arith.mulf %110, %114 : vector<8x32xf32>
    %117 = arith.addf %115, %116 : vector<8x32xf32>
    %118 = math.tanh %117 : vector<8x32xf32>
    %119 = arith.mulf %112, %118 : vector<8x32xf32>
    %120 = vector.broadcast %103 : i32 to vector<8x1xi32>
    %121 = arith.cmpi sgt, %7, %120 : vector<8x1xi32>
    %122 = vector.shape_cast %121 : vector<8x1xi1> to vector<8x1xi1>
    %123 = vector.broadcast %122 : vector<8x1xi1> to vector<8x32xi1>
    %124 = arith.select %123, %119, %48 : vector<8x32xi1>, vector<8x32xf32>
    %125 = vector.shape_cast %121 : vector<8x1xi1> to vector<8x1xi1>
    %126 = vector.broadcast %125 : vector<8x1xi1> to vector<8x32xi1>
    %127 = arith.select %126, %117, %51 : vector<8x32xi1>, vector<8x32xf32>
    %cst_46 = arith.constant 0.000000e+00 : f32
    %128 = vector.shape_cast %121 : vector<8x1xi1> to vector<8x1xi1>
    %129 = vector.broadcast %128 : vector<8x1xi1> to vector<8x32xi1>
    %130 = vector.broadcast %cst_46 : f32 to vector<8x32xf32>
    %131 = arith.select %129, %119, %130 : vector<8x32xi1>, vector<8x32xf32>
    %c6_i32 = arith.constant 6 : i32
    %132 = arith.addi %10, %c6_i32 : i32
    %133 = vector.extract_strided_slice %102 {offsets = [0, 0], sizes = [8, 96], strides = [1, 1]} : vector<8x128xf32> to vector<8x96xf32>
    %134 = arith.negf %133 : vector<8x96xf32>
    %135 = math.exp %134 : vector<8x96xf32>
    %cst_47 = arith.constant 1.000000e+00 : f32
    %136 = vector.broadcast %cst_47 : f32 to vector<8x96xf32>
    %137 = arith.addf %136, %135 : vector<8x96xf32>
    %138 = arith.divf %136, %137 : vector<8x96xf32>
    %139 = vector.extract_strided_slice %138 {offsets = [0, 0], sizes = [8, 32], strides = [1, 1]} : vector<8x96xf32> to vector<8x32xf32>
    %140 = vector.extract_strided_slice %138 {offsets = [0, 32], sizes = [8, 32], strides = [1, 1]} : vector<8x96xf32> to vector<8x32xf32>
    %141 = vector.extract_strided_slice %138 {offsets = [0, 64], sizes = [8, 32], strides = [1, 1]} : vector<8x96xf32> to vector<8x32xf32>
    %142 = vector.extract_strided_slice %102 {offsets = [0, 96], sizes = [8, 32], strides = [1, 1]} : vector<8x128xf32> to vector<8x32xf32>
    %143 = math.tanh %142 : vector<8x32xf32>
    %144 = arith.mulf %140, %80 : vector<8x32xf32>
    %145 = arith.mulf %139, %143 : vector<8x32xf32>
    %146 = arith.addf %144, %145 : vector<8x32xf32>
    %147 = math.tanh %146 : vector<8x32xf32>
    %148 = arith.mulf %141, %147 : vector<8x32xf32>
    %149 = vector.broadcast %132 : i32 to vector<8x1xi32>
    %150 = arith.cmpi sgt, %7, %149 : vector<8x1xi32>
    %151 = vector.shape_cast %150 : vector<8x1xi1> to vector<8x1xi1>
    %152 = vector.broadcast %151 : vector<8x1xi1> to vector<8x32xi1>
    %153 = arith.select %152, %148, %77 : vector<8x32xi1>, vector<8x32xf32>
    %154 = vector.shape_cast %150 : vector<8x1xi1> to vector<8x1xi1>
    %155 = vector.broadcast %154 : vector<8x1xi1> to vector<8x32xi1>
    %156 = arith.select %155, %146, %80 : vector<8x32xi1>, vector<8x32xf32>
    %cst_48 = arith.constant 0.000000e+00 : f32
    %157 = vector.shape_cast %150 : vector<8x1xi1> to vector<8x1xi1>
    %158 = vector.broadcast %157 : vector<8x1xi1> to vector<8x32xi1>
    %159 = vector.broadcast %cst_48 : f32 to vector<8x32xf32>
    %160 = arith.select %158, %148, %159 : vector<8x32xi1>, vector<8x32xf32>
    %c1_49 = arith.constant 1 : index
    %c0_50 = arith.constant 0 : index
    %c0_51 = arith.constant 0 : index
    %161 = vector.load %arg6[%c1_49, %c0_50, %c0_51] : memref<8x8x32xf32, #tpu.memory_space<vmem>>, vector<1x8x32xf32>
    %162 = vector.shape_cast %161 : vector<1x8x32xf32> to vector<8x32xf32>
    %163 = vector.shape_cast %131 : vector<8x32xf32> to vector<1x8x32xf32>
    tpu.vector_store %arg6[%c1_49, %c0_50, %c0_51], %163 {strides = array<i32>} : memref<8x8x32xf32, #tpu.memory_space<vmem>>, vector<1x8x32xf32>,
    %c6_52 = arith.constant 6 : index
    %c0_53 = arith.constant 0 : index
    %c0_54 = arith.constant 0 : index
    %164 = vector.load %arg7[%c6_52, %c0_53, %c0_54] : memref<8x8x32xf32, #tpu.memory_space<vmem>>, vector<1x8x32xf32>
    %165 = vector.shape_cast %164 : vector<1x8x32xf32> to vector<8x32xf32>
    %166 = vector.shape_cast %160 : vector<8x32xf32> to vector<1x8x32xf32>
    tpu.vector_store %arg7[%c6_52, %c0_53, %c0_54], %166 {strides = array<i32>} : memref<8x8x32xf32, #tpu.memory_space<vmem>>, vector<1x8x32xf32>,
    %c0_55 = arith.constant 0 : index
    %c2 = arith.constant 2 : index
    %c0_56 = arith.constant 0 : index
    %c0_57 = arith.constant 0 : index
    %167 = vector.load %arg1[%c0_55, %c2, %c0_56, %c0_57] : memref<1x8x8x128xbf16, #tpu.memory_space<vmem>>, vector<1x1x8x128xbf16>
    %168 = vector.shape_cast %167 : vector<1x1x8x128xbf16> to vector<8x128xbf16>
    %169 = arith.extf %168 : vector<8x128xbf16> to vector<8x128xf32>
    %170 = arith.truncf %124 : vector<8x32xf32> to vector<8x32xbf16>
    %cst_58 = arith.constant dense<0.000000e+00> : vector<8x128xf32>
    %171 = tpu.matmul %170, %4, %cst_58 {dimension_numbers = #tpu.dot_dimension_numbers<[1], [0], [0], [1], [0, 0, 1, 1], [], []>} : vector<8x32xbf16>, vector<32x128xbf16>, vector<8x128xf32> -> vector<8x128xf32>
    %172 = arith.addf %169, %171 : vector<8x128xf32>
    %c0_59 = arith.constant 0 : index
    %c5 = arith.constant 5 : index
    %c0_60 = arith.constant 0 : index
    %c0_61 = arith.constant 0 : index
    %173 = vector.load %arg2[%c0_59, %c5, %c0_60, %c0_61] : memref<1x8x8x128xbf16, #tpu.memory_space<vmem>>, vector<1x1x8x128xbf16>
    %174 = vector.shape_cast %173 : vector<1x1x8x128xbf16> to vector<8x128xbf16>
    %175 = arith.extf %174 : vector<8x128xbf16> to vector<8x128xf32>
    %176 = arith.truncf %153 : vector<8x32xf32> to vector<8x32xbf16>
    %cst_62 = arith.constant dense<0.000000e+00> : vector<8x128xf32>
    %177 = tpu.matmul %176, %6, %cst_62 {dimension_numbers = #tpu.dot_dimension_numbers<[1], [0], [0], [1], [0, 0, 1, 1], [], []>} : vector<8x32xbf16>, vector<32x128xbf16>, vector<8x128xf32> -> vector<8x128xf32>
    %178 = arith.addf %175, %177 : vector<8x128xf32>
    %c2_i32 = arith.constant 2 : i32
    %179 = arith.addi %8, %c2_i32 : i32
    %180 = vector.extract_strided_slice %172 {offsets = [0, 0], sizes = [8, 96], strides = [1, 1]} : vector<8x128xf32> to vector<8x96xf32>
    %181 = arith.negf %180 : vector<8x96xf32>
    %182 = math.exp %181 : vector<8x96xf32>
    %cst_63 = arith.constant 1.000000e+00 : f32
    %183 = vector.broadcast %cst_63 : f32 to vector<8x96xf32>
    %184 = arith.addf %183, %182 : vector<8x96xf32>
    %185 = arith.divf %183, %184 : vector<8x96xf32>
    %186 = vector.extract_strided_slice %185 {offsets = [0, 0], sizes = [8, 32], strides = [1, 1]} : vector<8x96xf32> to vector<8x32xf32>
    %187 = vector.extract_strided_slice %185 {offsets = [0, 32], sizes = [8, 32], strides = [1, 1]} : vector<8x96xf32> to vector<8x32xf32>
    %188 = vector.extract_strided_slice %185 {offsets = [0, 64], sizes = [8, 32], strides = [1, 1]} : vector<8x96xf32> to vector<8x32xf32>
    %189 = vector.extract_strided_slice %172 {offsets = [0, 96], sizes = [8, 32], strides = [1, 1]} : vector<8x128xf32> to vector<8x32xf32>
    %190 = math.tanh %189 : vector<8x32xf32>
    %191 = arith.mulf %187, %127 : vector<8x32xf32>
    %192 = arith.mulf %186, %190 : vector<8x32xf32>
    %193 = arith.addf %191, %192 : vector<8x32xf32>
    %194 = math.tanh %193 : vector<8x32xf32>
    %195 = arith.mulf %188, %194 : vector<8x32xf32>
    %196 = vector.broadcast %179 : i32 to vector<8x1xi32>
    %197 = arith.cmpi sgt, %7, %196 : vector<8x1xi32>
    %198 = vector.shape_cast %197 : vector<8x1xi1> to vector<8x1xi1>
    %199 = vector.broadcast %198 : vector<8x1xi1> to vector<8x32xi1>
    %200 = arith.select %199, %195, %124 : vector<8x32xi1>, vector<8x32xf32>
    %201 = vector.shape_cast %197 : vector<8x1xi1> to vector<8x1xi1>
    %202 = vector.broadcast %201 : vector<8x1xi1> to vector<8x32xi1>
    %203 = arith.select %202, %193, %127 : vector<8x32xi1>, vector<8x32xf32>
    %cst_64 = arith.constant 0.000000e+00 : f32
    %204 = vector.shape_cast %197 : vector<8x1xi1> to vector<8x1xi1>
    %205 = vector.broadcast %204 : vector<8x1xi1> to vector<8x32xi1>
    %206 = vector.broadcast %cst_64 : f32 to vector<8x32xf32>
    %207 = arith.select %205, %195, %206 : vector<8x32xi1>, vector<8x32xf32>
    %c5_i32 = arith.constant 5 : i32
    %208 = arith.addi %10, %c5_i32 : i32
    %209 = vector.extract_strided_slice %178 {offsets = [0, 0], sizes = [8, 96], strides = [1, 1]} : vector<8x128xf32> to vector<8x96xf32>
    %210 = arith.negf %209 : vector<8x96xf32>
    %211 = math.exp %210 : vector<8x96xf32>
    %cst_65 = arith.constant 1.000000e+00 : f32
    %212 = vector.broadcast %cst_65 : f32 to vector<8x96xf32>
    %213 = arith.addf %212, %211 : vector<8x96xf32>
    %214 = arith.divf %212, %213 : vector<8x96xf32>
    %215 = vector.extract_strided_slice %214 {offsets = [0, 0], sizes = [8, 32], strides = [1, 1]} : vector<8x96xf32> to vector<8x32xf32>
    %216 = vector.extract_strided_slice %214 {offsets = [0, 32], sizes = [8, 32], strides = [1, 1]} : vector<8x96xf32> to vector<8x32xf32>
    %217 = vector.extract_strided_slice %214 {offsets = [0, 64], sizes = [8, 32], strides = [1, 1]} : vector<8x96xf32> to vector<8x32xf32>
    %218 = vector.extract_strided_slice %178 {offsets = [0, 96], sizes = [8, 32], strides = [1, 1]} : vector<8x128xf32> to vector<8x32xf32>
    %219 = math.tanh %218 : vector<8x32xf32>
    %220 = arith.mulf %216, %156 : vector<8x32xf32>
    %221 = arith.mulf %215, %219 : vector<8x32xf32>
    %222 = arith.addf %220, %221 : vector<8x32xf32>
    %223 = math.tanh %222 : vector<8x32xf32>
    %224 = arith.mulf %217, %223 : vector<8x32xf32>
    %225 = vector.broadcast %208 : i32 to vector<8x1xi32>
    %226 = arith.cmpi sgt, %7, %225 : vector<8x1xi32>
    %227 = vector.shape_cast %226 : vector<8x1xi1> to vector<8x1xi1>
    %228 = vector.broadcast %227 : vector<8x1xi1> to vector<8x32xi1>
    %229 = arith.select %228, %224, %153 : vector<8x32xi1>, vector<8x32xf32>
    %230 = vector.shape_cast %226 : vector<8x1xi1> to vector<8x1xi1>
    %231 = vector.broadcast %230 : vector<8x1xi1> to vector<8x32xi1>
    %232 = arith.select %231, %222, %156 : vector<8x32xi1>, vector<8x32xf32>
    %cst_66 = arith.constant 0.000000e+00 : f32
    %233 = vector.shape_cast %226 : vector<8x1xi1> to vector<8x1xi1>
    %234 = vector.broadcast %233 : vector<8x1xi1> to vector<8x32xi1>
    %235 = vector.broadcast %cst_66 : f32 to vector<8x32xf32>
    %236 = arith.select %234, %224, %235 : vector<8x32xi1>, vector<8x32xf32>
    %c2_67 = arith.constant 2 : index
    %c0_68 = arith.constant 0 : index
    %c0_69 = arith.constant 0 : index
    %237 = vector.load %arg6[%c2_67, %c0_68, %c0_69] : memref<8x8x32xf32, #tpu.memory_space<vmem>>, vector<1x8x32xf32>
    %238 = vector.shape_cast %237 : vector<1x8x32xf32> to vector<8x32xf32>
    %239 = vector.shape_cast %207 : vector<8x32xf32> to vector<1x8x32xf32>
    tpu.vector_store %arg6[%c2_67, %c0_68, %c0_69], %239 {strides = array<i32>} : memref<8x8x32xf32, #tpu.memory_space<vmem>>, vector<1x8x32xf32>,
    %c5_70 = arith.constant 5 : index
    %c0_71 = arith.constant 0 : index
    %c0_72 = arith.constant 0 : index
    %240 = vector.load %arg7[%c5_70, %c0_71, %c0_72] : memref<8x8x32xf32, #tpu.memory_space<vmem>>, vector<1x8x32xf32>
    %241 = vector.shape_cast %240 : vector<1x8x32xf32> to vector<8x32xf32>
    %242 = vector.shape_cast %236 : vector<8x32xf32> to vector<1x8x32xf32>
    tpu.vector_store %arg7[%c5_70, %c0_71, %c0_72], %242 {strides = array<i32>} : memref<8x8x32xf32, #tpu.memory_space<vmem>>, vector<1x8x32xf32>,
    %c0_73 = arith.constant 0 : index
    %c3 = arith.constant 3 : index
    %c0_74 = arith.constant 0 : index
    %c0_75 = arith.constant 0 : index
    %243 = vector.load %arg1[%c0_73, %c3, %c0_74, %c0_75] : memref<1x8x8x128xbf16, #tpu.memory_space<vmem>>, vector<1x1x8x128xbf16>
    %244 = vector.shape_cast %243 : vector<1x1x8x128xbf16> to vector<8x128xbf16>
    %245 = arith.extf %244 : vector<8x128xbf16> to vector<8x128xf32>
    %246 = arith.truncf %200 : vector<8x32xf32> to vector<8x32xbf16>
    %cst_76 = arith.constant dense<0.000000e+00> : vector<8x128xf32>
    %247 = tpu.matmul %246, %4, %cst_76 {dimension_numbers = #tpu.dot_dimension_numbers<[1], [0], [0], [1], [0, 0, 1, 1], [], []>} : vector<8x32xbf16>, vector<32x128xbf16>, vector<8x128xf32> -> vector<8x128xf32>
    %248 = arith.addf %245, %247 : vector<8x128xf32>
    %c0_77 = arith.constant 0 : index
    %c4 = arith.constant 4 : index
    %c0_78 = arith.constant 0 : index
    %c0_79 = arith.constant 0 : index
    %249 = vector.load %arg2[%c0_77, %c4, %c0_78, %c0_79] : memref<1x8x8x128xbf16, #tpu.memory_space<vmem>>, vector<1x1x8x128xbf16>
    %250 = vector.shape_cast %249 : vector<1x1x8x128xbf16> to vector<8x128xbf16>
    %251 = arith.extf %250 : vector<8x128xbf16> to vector<8x128xf32>
    %252 = arith.truncf %229 : vector<8x32xf32> to vector<8x32xbf16>
    %cst_80 = arith.constant dense<0.000000e+00> : vector<8x128xf32>
    %253 = tpu.matmul %252, %6, %cst_80 {dimension_numbers = #tpu.dot_dimension_numbers<[1], [0], [0], [1], [0, 0, 1, 1], [], []>} : vector<8x32xbf16>, vector<32x128xbf16>, vector<8x128xf32> -> vector<8x128xf32>
    %254 = arith.addf %251, %253 : vector<8x128xf32>
    %c3_i32 = arith.constant 3 : i32
    %255 = arith.addi %8, %c3_i32 : i32
    %256 = vector.extract_strided_slice %248 {offsets = [0, 0], sizes = [8, 96], strides = [1, 1]} : vector<8x128xf32> to vector<8x96xf32>
    %257 = arith.negf %256 : vector<8x96xf32>
    %258 = math.exp %257 : vector<8x96xf32>
    %cst_81 = arith.constant 1.000000e+00 : f32
    %259 = vector.broadcast %cst_81 : f32 to vector<8x96xf32>
    %260 = arith.addf %259, %258 : vector<8x96xf32>
    %261 = arith.divf %259, %260 : vector<8x96xf32>
    %262 = vector.extract_strided_slice %261 {offsets = [0, 0], sizes = [8, 32], strides = [1, 1]} : vector<8x96xf32> to vector<8x32xf32>
    %263 = vector.extract_strided_slice %261 {offsets = [0, 32], sizes = [8, 32], strides = [1, 1]} : vector<8x96xf32> to vector<8x32xf32>
    %264 = vector.extract_strided_slice %261 {offsets = [0, 64], sizes = [8, 32], strides = [1, 1]} : vector<8x96xf32> to vector<8x32xf32>
    %265 = vector.extract_strided_slice %248 {offsets = [0, 96], sizes = [8, 32], strides = [1, 1]} : vector<8x128xf32> to vector<8x32xf32>
    %266 = math.tanh %265 : vector<8x32xf32>
    %267 = arith.mulf %263, %203 : vector<8x32xf32>
    %268 = arith.mulf %262, %266 : vector<8x32xf32>
    %269 = arith.addf %267, %268 : vector<8x32xf32>
    %270 = math.tanh %269 : vector<8x32xf32>
    %271 = arith.mulf %264, %270 : vector<8x32xf32>
    %272 = vector.broadcast %255 : i32 to vector<8x1xi32>
    %273 = arith.cmpi sgt, %7, %272 : vector<8x1xi32>
    %274 = vector.shape_cast %273 : vector<8x1xi1> to vector<8x1xi1>
    %275 = vector.broadcast %274 : vector<8x1xi1> to vector<8x32xi1>
    %276 = arith.select %275, %271, %200 : vector<8x32xi1>, vector<8x32xf32>
    %277 = vector.shape_cast %273 : vector<8x1xi1> to vector<8x1xi1>
    %278 = vector.broadcast %277 : vector<8x1xi1> to vector<8x32xi1>
    %279 = arith.select %278, %269, %203 : vector<8x32xi1>, vector<8x32xf32>
    %cst_82 = arith.constant 0.000000e+00 : f32
    %280 = vector.shape_cast %273 : vector<8x1xi1> to vector<8x1xi1>
    %281 = vector.broadcast %280 : vector<8x1xi1> to vector<8x32xi1>
    %282 = vector.broadcast %cst_82 : f32 to vector<8x32xf32>
    %283 = arith.select %281, %271, %282 : vector<8x32xi1>, vector<8x32xf32>
    %c4_i32 = arith.constant 4 : i32
    %284 = arith.addi %10, %c4_i32 : i32
    %285 = vector.extract_strided_slice %254 {offsets = [0, 0], sizes = [8, 96], strides = [1, 1]} : vector<8x128xf32> to vector<8x96xf32>
    %286 = arith.negf %285 : vector<8x96xf32>
    %287 = math.exp %286 : vector<8x96xf32>
    %cst_83 = arith.constant 1.000000e+00 : f32
    %288 = vector.broadcast %cst_83 : f32 to vector<8x96xf32>
    %289 = arith.addf %288, %287 : vector<8x96xf32>
    %290 = arith.divf %288, %289 : vector<8x96xf32>
    %291 = vector.extract_strided_slice %290 {offsets = [0, 0], sizes = [8, 32], strides = [1, 1]} : vector<8x96xf32> to vector<8x32xf32>
    %292 = vector.extract_strided_slice %290 {offsets = [0, 32], sizes = [8, 32], strides = [1, 1]} : vector<8x96xf32> to vector<8x32xf32>
    %293 = vector.extract_strided_slice %290 {offsets = [0, 64], sizes = [8, 32], strides = [1, 1]} : vector<8x96xf32> to vector<8x32xf32>
    %294 = vector.extract_strided_slice %254 {offsets = [0, 96], sizes = [8, 32], strides = [1, 1]} : vector<8x128xf32> to vector<8x32xf32>
    %295 = math.tanh %294 : vector<8x32xf32>
    %296 = arith.mulf %292, %232 : vector<8x32xf32>
    %297 = arith.mulf %291, %295 : vector<8x32xf32>
    %298 = arith.addf %296, %297 : vector<8x32xf32>
    %299 = math.tanh %298 : vector<8x32xf32>
    %300 = arith.mulf %293, %299 : vector<8x32xf32>
    %301 = vector.broadcast %284 : i32 to vector<8x1xi32>
    %302 = arith.cmpi sgt, %7, %301 : vector<8x1xi32>
    %303 = vector.shape_cast %302 : vector<8x1xi1> to vector<8x1xi1>
    %304 = vector.broadcast %303 : vector<8x1xi1> to vector<8x32xi1>
    %305 = arith.select %304, %300, %229 : vector<8x32xi1>, vector<8x32xf32>
    %306 = vector.shape_cast %302 : vector<8x1xi1> to vector<8x1xi1>
    %307 = vector.broadcast %306 : vector<8x1xi1> to vector<8x32xi1>
    %308 = arith.select %307, %298, %232 : vector<8x32xi1>, vector<8x32xf32>
    %cst_84 = arith.constant 0.000000e+00 : f32
    %309 = vector.shape_cast %302 : vector<8x1xi1> to vector<8x1xi1>
    %310 = vector.broadcast %309 : vector<8x1xi1> to vector<8x32xi1>
    %311 = vector.broadcast %cst_84 : f32 to vector<8x32xf32>
    %312 = arith.select %310, %300, %311 : vector<8x32xi1>, vector<8x32xf32>
    %c3_85 = arith.constant 3 : index
    %c0_86 = arith.constant 0 : index
    %c0_87 = arith.constant 0 : index
    %313 = vector.load %arg6[%c3_85, %c0_86, %c0_87] : memref<8x8x32xf32, #tpu.memory_space<vmem>>, vector<1x8x32xf32>
    %314 = vector.shape_cast %313 : vector<1x8x32xf32> to vector<8x32xf32>
    %315 = vector.shape_cast %283 : vector<8x32xf32> to vector<1x8x32xf32>
    tpu.vector_store %arg6[%c3_85, %c0_86, %c0_87], %315 {strides = array<i32>} : memref<8x8x32xf32, #tpu.memory_space<vmem>>, vector<1x8x32xf32>,
    %c4_88 = arith.constant 4 : index
    %c0_89 = arith.constant 0 : index
    %c0_90 = arith.constant 0 : index
    %316 = vector.load %arg7[%c4_88, %c0_89, %c0_90] : memref<8x8x32xf32, #tpu.memory_space<vmem>>, vector<1x8x32xf32>
    %317 = vector.shape_cast %316 : vector<1x8x32xf32> to vector<8x32xf32>
    %318 = vector.shape_cast %312 : vector<8x32xf32> to vector<1x8x32xf32>
    tpu.vector_store %arg7[%c4_88, %c0_89, %c0_90], %318 {strides = array<i32>} : memref<8x8x32xf32, #tpu.memory_space<vmem>>, vector<1x8x32xf32>,
    %c0_91 = arith.constant 0 : index
    %c4_92 = arith.constant 4 : index
    %c0_93 = arith.constant 0 : index
    %c0_94 = arith.constant 0 : index
    %319 = vector.load %arg1[%c0_91, %c4_92, %c0_93, %c0_94] : memref<1x8x8x128xbf16, #tpu.memory_space<vmem>>, vector<1x1x8x128xbf16>
    %320 = vector.shape_cast %319 : vector<1x1x8x128xbf16> to vector<8x128xbf16>
    %321 = arith.extf %320 : vector<8x128xbf16> to vector<8x128xf32>
    %322 = arith.truncf %276 : vector<8x32xf32> to vector<8x32xbf16>
    %cst_95 = arith.constant dense<0.000000e+00> : vector<8x128xf32>
    %323 = tpu.matmul %322, %4, %cst_95 {dimension_numbers = #tpu.dot_dimension_numbers<[1], [0], [0], [1], [0, 0, 1, 1], [], []>} : vector<8x32xbf16>, vector<32x128xbf16>, vector<8x128xf32> -> vector<8x128xf32>
    %324 = arith.addf %321, %323 : vector<8x128xf32>
    %c0_96 = arith.constant 0 : index
    %c3_97 = arith.constant 3 : index
    %c0_98 = arith.constant 0 : index
    %c0_99 = arith.constant 0 : index
    %325 = vector.load %arg2[%c0_96, %c3_97, %c0_98, %c0_99] : memref<1x8x8x128xbf16, #tpu.memory_space<vmem>>, vector<1x1x8x128xbf16>
    %326 = vector.shape_cast %325 : vector<1x1x8x128xbf16> to vector<8x128xbf16>
    %327 = arith.extf %326 : vector<8x128xbf16> to vector<8x128xf32>
    %328 = arith.truncf %305 : vector<8x32xf32> to vector<8x32xbf16>
    %cst_100 = arith.constant dense<0.000000e+00> : vector<8x128xf32>
    %329 = tpu.matmul %328, %6, %cst_100 {dimension_numbers = #tpu.dot_dimension_numbers<[1], [0], [0], [1], [0, 0, 1, 1], [], []>} : vector<8x32xbf16>, vector<32x128xbf16>, vector<8x128xf32> -> vector<8x128xf32>
    %330 = arith.addf %327, %329 : vector<8x128xf32>
    %c4_i32_101 = arith.constant 4 : i32
    %331 = arith.addi %8, %c4_i32_101 : i32
    %332 = vector.extract_strided_slice %324 {offsets = [0, 0], sizes = [8, 96], strides = [1, 1]} : vector<8x128xf32> to vector<8x96xf32>
    %333 = arith.negf %332 : vector<8x96xf32>
    %334 = math.exp %333 : vector<8x96xf32>
    %cst_102 = arith.constant 1.000000e+00 : f32
    %335 = vector.broadcast %cst_102 : f32 to vector<8x96xf32>
    %336 = arith.addf %335, %334 : vector<8x96xf32>
    %337 = arith.divf %335, %336 : vector<8x96xf32>
    %338 = vector.extract_strided_slice %337 {offsets = [0, 0], sizes = [8, 32], strides = [1, 1]} : vector<8x96xf32> to vector<8x32xf32>
    %339 = vector.extract_strided_slice %337 {offsets = [0, 32], sizes = [8, 32], strides = [1, 1]} : vector<8x96xf32> to vector<8x32xf32>
    %340 = vector.extract_strided_slice %337 {offsets = [0, 64], sizes = [8, 32], strides = [1, 1]} : vector<8x96xf32> to vector<8x32xf32>
    %341 = vector.extract_strided_slice %324 {offsets = [0, 96], sizes = [8, 32], strides = [1, 1]} : vector<8x128xf32> to vector<8x32xf32>
    %342 = math.tanh %341 : vector<8x32xf32>
    %343 = arith.mulf %339, %279 : vector<8x32xf32>
    %344 = arith.mulf %338, %342 : vector<8x32xf32>
    %345 = arith.addf %343, %344 : vector<8x32xf32>
    %346 = math.tanh %345 : vector<8x32xf32>
    %347 = arith.mulf %340, %346 : vector<8x32xf32>
    %348 = vector.broadcast %331 : i32 to vector<8x1xi32>
    %349 = arith.cmpi sgt, %7, %348 : vector<8x1xi32>
    %350 = vector.shape_cast %349 : vector<8x1xi1> to vector<8x1xi1>
    %351 = vector.broadcast %350 : vector<8x1xi1> to vector<8x32xi1>
    %352 = arith.select %351, %347, %276 : vector<8x32xi1>, vector<8x32xf32>
    %353 = vector.shape_cast %349 : vector<8x1xi1> to vector<8x1xi1>
    %354 = vector.broadcast %353 : vector<8x1xi1> to vector<8x32xi1>
    %355 = arith.select %354, %345, %279 : vector<8x32xi1>, vector<8x32xf32>
    %cst_103 = arith.constant 0.000000e+00 : f32
    %356 = vector.shape_cast %349 : vector<8x1xi1> to vector<8x1xi1>
    %357 = vector.broadcast %356 : vector<8x1xi1> to vector<8x32xi1>
    %358 = vector.broadcast %cst_103 : f32 to vector<8x32xf32>
    %359 = arith.select %357, %347, %358 : vector<8x32xi1>, vector<8x32xf32>
    %c3_i32_104 = arith.constant 3 : i32
    %360 = arith.addi %10, %c3_i32_104 : i32
    %361 = vector.extract_strided_slice %330 {offsets = [0, 0], sizes = [8, 96], strides = [1, 1]} : vector<8x128xf32> to vector<8x96xf32>
    %362 = arith.negf %361 : vector<8x96xf32>
    %363 = math.exp %362 : vector<8x96xf32>
    %cst_105 = arith.constant 1.000000e+00 : f32
    %364 = vector.broadcast %cst_105 : f32 to vector<8x96xf32>
    %365 = arith.addf %364, %363 : vector<8x96xf32>
    %366 = arith.divf %364, %365 : vector<8x96xf32>
    %367 = vector.extract_strided_slice %366 {offsets = [0, 0], sizes = [8, 32], strides = [1, 1]} : vector<8x96xf32> to vector<8x32xf32>
    %368 = vector.extract_strided_slice %366 {offsets = [0, 32], sizes = [8, 32], strides = [1, 1]} : vector<8x96xf32> to vector<8x32xf32>
    %369 = vector.extract_strided_slice %366 {offsets = [0, 64], sizes = [8, 32], strides = [1, 1]} : vector<8x96xf32> to vector<8x32xf32>
    %370 = vector.extract_strided_slice %330 {offsets = [0, 96], sizes = [8, 32], strides = [1, 1]} : vector<8x128xf32> to vector<8x32xf32>
    %371 = math.tanh %370 : vector<8x32xf32>
    %372 = arith.mulf %368, %308 : vector<8x32xf32>
    %373 = arith.mulf %367, %371 : vector<8x32xf32>
    %374 = arith.addf %372, %373 : vector<8x32xf32>
    %375 = math.tanh %374 : vector<8x32xf32>
    %376 = arith.mulf %369, %375 : vector<8x32xf32>
    %377 = vector.broadcast %360 : i32 to vector<8x1xi32>
    %378 = arith.cmpi sgt, %7, %377 : vector<8x1xi32>
    %379 = vector.shape_cast %378 : vector<8x1xi1> to vector<8x1xi1>
    %380 = vector.broadcast %379 : vector<8x1xi1> to vector<8x32xi1>
    %381 = arith.select %380, %376, %305 : vector<8x32xi1>, vector<8x32xf32>
    %382 = vector.shape_cast %378 : vector<8x1xi1> to vector<8x1xi1>
    %383 = vector.broadcast %382 : vector<8x1xi1> to vector<8x32xi1>
    %384 = arith.select %383, %374, %308 : vector<8x32xi1>, vector<8x32xf32>
    %cst_106 = arith.constant 0.000000e+00 : f32
    %385 = vector.shape_cast %378 : vector<8x1xi1> to vector<8x1xi1>
    %386 = vector.broadcast %385 : vector<8x1xi1> to vector<8x32xi1>
    %387 = vector.broadcast %cst_106 : f32 to vector<8x32xf32>
    %388 = arith.select %386, %376, %387 : vector<8x32xi1>, vector<8x32xf32>
    %c4_107 = arith.constant 4 : index
    %c0_108 = arith.constant 0 : index
    %c0_109 = arith.constant 0 : index
    %389 = vector.load %arg6[%c4_107, %c0_108, %c0_109] : memref<8x8x32xf32, #tpu.memory_space<vmem>>, vector<1x8x32xf32>
    %390 = vector.shape_cast %389 : vector<1x8x32xf32> to vector<8x32xf32>
    %391 = vector.shape_cast %359 : vector<8x32xf32> to vector<1x8x32xf32>
    tpu.vector_store %arg6[%c4_107, %c0_108, %c0_109], %391 {strides = array<i32>} : memref<8x8x32xf32, #tpu.memory_space<vmem>>, vector<1x8x32xf32>,
    %c3_110 = arith.constant 3 : index
    %c0_111 = arith.constant 0 : index
    %c0_112 = arith.constant 0 : index
    %392 = vector.load %arg7[%c3_110, %c0_111, %c0_112] : memref<8x8x32xf32, #tpu.memory_space<vmem>>, vector<1x8x32xf32>
    %393 = vector.shape_cast %392 : vector<1x8x32xf32> to vector<8x32xf32>
    %394 = vector.shape_cast %388 : vector<8x32xf32> to vector<1x8x32xf32>
    tpu.vector_store %arg7[%c3_110, %c0_111, %c0_112], %394 {strides = array<i32>} : memref<8x8x32xf32, #tpu.memory_space<vmem>>, vector<1x8x32xf32>,
    %c0_113 = arith.constant 0 : index
    %c5_114 = arith.constant 5 : index
    %c0_115 = arith.constant 0 : index
    %c0_116 = arith.constant 0 : index
    %395 = vector.load %arg1[%c0_113, %c5_114, %c0_115, %c0_116] : memref<1x8x8x128xbf16, #tpu.memory_space<vmem>>, vector<1x1x8x128xbf16>
    %396 = vector.shape_cast %395 : vector<1x1x8x128xbf16> to vector<8x128xbf16>
    %397 = arith.extf %396 : vector<8x128xbf16> to vector<8x128xf32>
    %398 = arith.truncf %352 : vector<8x32xf32> to vector<8x32xbf16>
    %cst_117 = arith.constant dense<0.000000e+00> : vector<8x128xf32>
    %399 = tpu.matmul %398, %4, %cst_117 {dimension_numbers = #tpu.dot_dimension_numbers<[1], [0], [0], [1], [0, 0, 1, 1], [], []>} : vector<8x32xbf16>, vector<32x128xbf16>, vector<8x128xf32> -> vector<8x128xf32>
    %400 = arith.addf %397, %399 : vector<8x128xf32>
    %c0_118 = arith.constant 0 : index
    %c2_119 = arith.constant 2 : index
    %c0_120 = arith.constant 0 : index
    %c0_121 = arith.constant 0 : index
    %401 = vector.load %arg2[%c0_118, %c2_119, %c0_120, %c0_121] : memref<1x8x8x128xbf16, #tpu.memory_space<vmem>>, vector<1x1x8x128xbf16>
    %402 = vector.shape_cast %401 : vector<1x1x8x128xbf16> to vector<8x128xbf16>
    %403 = arith.extf %402 : vector<8x128xbf16> to vector<8x128xf32>
    %404 = arith.truncf %381 : vector<8x32xf32> to vector<8x32xbf16>
    %cst_122 = arith.constant dense<0.000000e+00> : vector<8x128xf32>
    %405 = tpu.matmul %404, %6, %cst_122 {dimension_numbers = #tpu.dot_dimension_numbers<[1], [0], [0], [1], [0, 0, 1, 1], [], []>} : vector<8x32xbf16>, vector<32x128xbf16>, vector<8x128xf32> -> vector<8x128xf32>
    %406 = arith.addf %403, %405 : vector<8x128xf32>
    %c5_i32_123 = arith.constant 5 : i32
    %407 = arith.addi %8, %c5_i32_123 : i32
    %408 = vector.extract_strided_slice %400 {offsets = [0, 0], sizes = [8, 96], strides = [1, 1]} : vector<8x128xf32> to vector<8x96xf32>
    %409 = arith.negf %408 : vector<8x96xf32>
    %410 = math.exp %409 : vector<8x96xf32>
    %cst_124 = arith.constant 1.000000e+00 : f32
    %411 = vector.broadcast %cst_124 : f32 to vector<8x96xf32>
    %412 = arith.addf %411, %410 : vector<8x96xf32>
    %413 = arith.divf %411, %412 : vector<8x96xf32>
    %414 = vector.extract_strided_slice %413 {offsets = [0, 0], sizes = [8, 32], strides = [1, 1]} : vector<8x96xf32> to vector<8x32xf32>
    %415 = vector.extract_strided_slice %413 {offsets = [0, 32], sizes = [8, 32], strides = [1, 1]} : vector<8x96xf32> to vector<8x32xf32>
    %416 = vector.extract_strided_slice %413 {offsets = [0, 64], sizes = [8, 32], strides = [1, 1]} : vector<8x96xf32> to vector<8x32xf32>
    %417 = vector.extract_strided_slice %400 {offsets = [0, 96], sizes = [8, 32], strides = [1, 1]} : vector<8x128xf32> to vector<8x32xf32>
    %418 = math.tanh %417 : vector<8x32xf32>
    %419 = arith.mulf %415, %355 : vector<8x32xf32>
    %420 = arith.mulf %414, %418 : vector<8x32xf32>
    %421 = arith.addf %419, %420 : vector<8x32xf32>
    %422 = math.tanh %421 : vector<8x32xf32>
    %423 = arith.mulf %416, %422 : vector<8x32xf32>
    %424 = vector.broadcast %407 : i32 to vector<8x1xi32>
    %425 = arith.cmpi sgt, %7, %424 : vector<8x1xi32>
    %426 = vector.shape_cast %425 : vector<8x1xi1> to vector<8x1xi1>
    %427 = vector.broadcast %426 : vector<8x1xi1> to vector<8x32xi1>
    %428 = arith.select %427, %423, %352 : vector<8x32xi1>, vector<8x32xf32>
    %429 = vector.shape_cast %425 : vector<8x1xi1> to vector<8x1xi1>
    %430 = vector.broadcast %429 : vector<8x1xi1> to vector<8x32xi1>
    %431 = arith.select %430, %421, %355 : vector<8x32xi1>, vector<8x32xf32>
    %cst_125 = arith.constant 0.000000e+00 : f32
    %432 = vector.shape_cast %425 : vector<8x1xi1> to vector<8x1xi1>
    %433 = vector.broadcast %432 : vector<8x1xi1> to vector<8x32xi1>
    %434 = vector.broadcast %cst_125 : f32 to vector<8x32xf32>
    %435 = arith.select %433, %423, %434 : vector<8x32xi1>, vector<8x32xf32>
    %c2_i32_126 = arith.constant 2 : i32
    %436 = arith.addi %10, %c2_i32_126 : i32
    %437 = vector.extract_strided_slice %406 {offsets = [0, 0], sizes = [8, 96], strides = [1, 1]} : vector<8x128xf32> to vector<8x96xf32>
    %438 = arith.negf %437 : vector<8x96xf32>
    %439 = math.exp %438 : vector<8x96xf32>
    %cst_127 = arith.constant 1.000000e+00 : f32
    %440 = vector.broadcast %cst_127 : f32 to vector<8x96xf32>
    %441 = arith.addf %440, %439 : vector<8x96xf32>
    %442 = arith.divf %440, %441 : vector<8x96xf32>
    %443 = vector.extract_strided_slice %442 {offsets = [0, 0], sizes = [8, 32], strides = [1, 1]} : vector<8x96xf32> to vector<8x32xf32>
    %444 = vector.extract_strided_slice %442 {offsets = [0, 32], sizes = [8, 32], strides = [1, 1]} : vector<8x96xf32> to vector<8x32xf32>
    %445 = vector.extract_strided_slice %442 {offsets = [0, 64], sizes = [8, 32], strides = [1, 1]} : vector<8x96xf32> to vector<8x32xf32>
    %446 = vector.extract_strided_slice %406 {offsets = [0, 96], sizes = [8, 32], strides = [1, 1]} : vector<8x128xf32> to vector<8x32xf32>
    %447 = math.tanh %446 : vector<8x32xf32>
    %448 = arith.mulf %444, %384 : vector<8x32xf32>
    %449 = arith.mulf %443, %447 : vector<8x32xf32>
    %450 = arith.addf %448, %449 : vector<8x32xf32>
    %451 = math.tanh %450 : vector<8x32xf32>
    %452 = arith.mulf %445, %451 : vector<8x32xf32>
    %453 = vector.broadcast %436 : i32 to vector<8x1xi32>
    %454 = arith.cmpi sgt, %7, %453 : vector<8x1xi32>
    %455 = vector.shape_cast %454 : vector<8x1xi1> to vector<8x1xi1>
    %456 = vector.broadcast %455 : vector<8x1xi1> to vector<8x32xi1>
    %457 = arith.select %456, %452, %381 : vector<8x32xi1>, vector<8x32xf32>
    %458 = vector.shape_cast %454 : vector<8x1xi1> to vector<8x1xi1>
    %459 = vector.broadcast %458 : vector<8x1xi1> to vector<8x32xi1>
    %460 = arith.select %459, %450, %384 : vector<8x32xi1>, vector<8x32xf32>
    %cst_128 = arith.constant 0.000000e+00 : f32
    %461 = vector.shape_cast %454 : vector<8x1xi1> to vector<8x1xi1>
    %462 = vector.broadcast %461 : vector<8x1xi1> to vector<8x32xi1>
    %463 = vector.broadcast %cst_128 : f32 to vector<8x32xf32>
    %464 = arith.select %462, %452, %463 : vector<8x32xi1>, vector<8x32xf32>
    %c5_129 = arith.constant 5 : index
    %c0_130 = arith.constant 0 : index
    %c0_131 = arith.constant 0 : index
    %465 = vector.load %arg6[%c5_129, %c0_130, %c0_131] : memref<8x8x32xf32, #tpu.memory_space<vmem>>, vector<1x8x32xf32>
    %466 = vector.shape_cast %465 : vector<1x8x32xf32> to vector<8x32xf32>
    %467 = vector.shape_cast %435 : vector<8x32xf32> to vector<1x8x32xf32>
    tpu.vector_store %arg6[%c5_129, %c0_130, %c0_131], %467 {strides = array<i32>} : memref<8x8x32xf32, #tpu.memory_space<vmem>>, vector<1x8x32xf32>,
    %c2_132 = arith.constant 2 : index
    %c0_133 = arith.constant 0 : index
    %c0_134 = arith.constant 0 : index
    %468 = vector.load %arg7[%c2_132, %c0_133, %c0_134] : memref<8x8x32xf32, #tpu.memory_space<vmem>>, vector<1x8x32xf32>
    %469 = vector.shape_cast %468 : vector<1x8x32xf32> to vector<8x32xf32>
    %470 = vector.shape_cast %464 : vector<8x32xf32> to vector<1x8x32xf32>
    tpu.vector_store %arg7[%c2_132, %c0_133, %c0_134], %470 {strides = array<i32>} : memref<8x8x32xf32, #tpu.memory_space<vmem>>, vector<1x8x32xf32>,
    %c0_135 = arith.constant 0 : index
    %c6_136 = arith.constant 6 : index
    %c0_137 = arith.constant 0 : index
    %c0_138 = arith.constant 0 : index
    %471 = vector.load %arg1[%c0_135, %c6_136, %c0_137, %c0_138] : memref<1x8x8x128xbf16, #tpu.memory_space<vmem>>, vector<1x1x8x128xbf16>
    %472 = vector.shape_cast %471 : vector<1x1x8x128xbf16> to vector<8x128xbf16>
    %473 = arith.extf %472 : vector<8x128xbf16> to vector<8x128xf32>
    %474 = arith.truncf %428 : vector<8x32xf32> to vector<8x32xbf16>
    %cst_139 = arith.constant dense<0.000000e+00> : vector<8x128xf32>
    %475 = tpu.matmul %474, %4, %cst_139 {dimension_numbers = #tpu.dot_dimension_numbers<[1], [0], [0], [1], [0, 0, 1, 1], [], []>} : vector<8x32xbf16>, vector<32x128xbf16>, vector<8x128xf32> -> vector<8x128xf32>
    %476 = arith.addf %473, %475 : vector<8x128xf32>
    %c0_140 = arith.constant 0 : index
    %c1_141 = arith.constant 1 : index
    %c0_142 = arith.constant 0 : index
    %c0_143 = arith.constant 0 : index
    %477 = vector.load %arg2[%c0_140, %c1_141, %c0_142, %c0_143] : memref<1x8x8x128xbf16, #tpu.memory_space<vmem>>, vector<1x1x8x128xbf16>
    %478 = vector.shape_cast %477 : vector<1x1x8x128xbf16> to vector<8x128xbf16>
    %479 = arith.extf %478 : vector<8x128xbf16> to vector<8x128xf32>
    %480 = arith.truncf %457 : vector<8x32xf32> to vector<8x32xbf16>
    %cst_144 = arith.constant dense<0.000000e+00> : vector<8x128xf32>
    %481 = tpu.matmul %480, %6, %cst_144 {dimension_numbers = #tpu.dot_dimension_numbers<[1], [0], [0], [1], [0, 0, 1, 1], [], []>} : vector<8x32xbf16>, vector<32x128xbf16>, vector<8x128xf32> -> vector<8x128xf32>
    %482 = arith.addf %479, %481 : vector<8x128xf32>
    %c6_i32_145 = arith.constant 6 : i32
    %483 = arith.addi %8, %c6_i32_145 : i32
    %484 = vector.extract_strided_slice %476 {offsets = [0, 0], sizes = [8, 96], strides = [1, 1]} : vector<8x128xf32> to vector<8x96xf32>
    %485 = arith.negf %484 : vector<8x96xf32>
    %486 = math.exp %485 : vector<8x96xf32>
    %cst_146 = arith.constant 1.000000e+00 : f32
    %487 = vector.broadcast %cst_146 : f32 to vector<8x96xf32>
    %488 = arith.addf %487, %486 : vector<8x96xf32>
    %489 = arith.divf %487, %488 : vector<8x96xf32>
    %490 = vector.extract_strided_slice %489 {offsets = [0, 0], sizes = [8, 32], strides = [1, 1]} : vector<8x96xf32> to vector<8x32xf32>
    %491 = vector.extract_strided_slice %489 {offsets = [0, 32], sizes = [8, 32], strides = [1, 1]} : vector<8x96xf32> to vector<8x32xf32>
    %492 = vector.extract_strided_slice %489 {offsets = [0, 64], sizes = [8, 32], strides = [1, 1]} : vector<8x96xf32> to vector<8x32xf32>
    %493 = vector.extract_strided_slice %476 {offsets = [0, 96], sizes = [8, 32], strides = [1, 1]} : vector<8x128xf32> to vector<8x32xf32>
    %494 = math.tanh %493 : vector<8x32xf32>
    %495 = arith.mulf %491, %431 : vector<8x32xf32>
    %496 = arith.mulf %490, %494 : vector<8x32xf32>
    %497 = arith.addf %495, %496 : vector<8x32xf32>
    %498 = math.tanh %497 : vector<8x32xf32>
    %499 = arith.mulf %492, %498 : vector<8x32xf32>
    %500 = vector.broadcast %483 : i32 to vector<8x1xi32>
    %501 = arith.cmpi sgt, %7, %500 : vector<8x1xi32>
    %502 = vector.shape_cast %501 : vector<8x1xi1> to vector<8x1xi1>
    %503 = vector.broadcast %502 : vector<8x1xi1> to vector<8x32xi1>
    %504 = arith.select %503, %499, %428 : vector<8x32xi1>, vector<8x32xf32>
    %505 = vector.shape_cast %501 : vector<8x1xi1> to vector<8x1xi1>
    %506 = vector.broadcast %505 : vector<8x1xi1> to vector<8x32xi1>
    %507 = arith.select %506, %497, %431 : vector<8x32xi1>, vector<8x32xf32>
    %cst_147 = arith.constant 0.000000e+00 : f32
    %508 = vector.shape_cast %501 : vector<8x1xi1> to vector<8x1xi1>
    %509 = vector.broadcast %508 : vector<8x1xi1> to vector<8x32xi1>
    %510 = vector.broadcast %cst_147 : f32 to vector<8x32xf32>
    %511 = arith.select %509, %499, %510 : vector<8x32xi1>, vector<8x32xf32>
    %c1_i32_148 = arith.constant 1 : i32
    %512 = arith.addi %10, %c1_i32_148 : i32
    %513 = vector.extract_strided_slice %482 {offsets = [0, 0], sizes = [8, 96], strides = [1, 1]} : vector<8x128xf32> to vector<8x96xf32>
    %514 = arith.negf %513 : vector<8x96xf32>
    %515 = math.exp %514 : vector<8x96xf32>
    %cst_149 = arith.constant 1.000000e+00 : f32
    %516 = vector.broadcast %cst_149 : f32 to vector<8x96xf32>
    %517 = arith.addf %516, %515 : vector<8x96xf32>
    %518 = arith.divf %516, %517 : vector<8x96xf32>
    %519 = vector.extract_strided_slice %518 {offsets = [0, 0], sizes = [8, 32], strides = [1, 1]} : vector<8x96xf32> to vector<8x32xf32>
    %520 = vector.extract_strided_slice %518 {offsets = [0, 32], sizes = [8, 32], strides = [1, 1]} : vector<8x96xf32> to vector<8x32xf32>
    %521 = vector.extract_strided_slice %518 {offsets = [0, 64], sizes = [8, 32], strides = [1, 1]} : vector<8x96xf32> to vector<8x32xf32>
    %522 = vector.extract_strided_slice %482 {offsets = [0, 96], sizes = [8, 32], strides = [1, 1]} : vector<8x128xf32> to vector<8x32xf32>
    %523 = math.tanh %522 : vector<8x32xf32>
    %524 = arith.mulf %520, %460 : vector<8x32xf32>
    %525 = arith.mulf %519, %523 : vector<8x32xf32>
    %526 = arith.addf %524, %525 : vector<8x32xf32>
    %527 = math.tanh %526 : vector<8x32xf32>
    %528 = arith.mulf %521, %527 : vector<8x32xf32>
    %529 = vector.broadcast %512 : i32 to vector<8x1xi32>
    %530 = arith.cmpi sgt, %7, %529 : vector<8x1xi32>
    %531 = vector.shape_cast %530 : vector<8x1xi1> to vector<8x1xi1>
    %532 = vector.broadcast %531 : vector<8x1xi1> to vector<8x32xi1>
    %533 = arith.select %532, %528, %457 : vector<8x32xi1>, vector<8x32xf32>
    %534 = vector.shape_cast %530 : vector<8x1xi1> to vector<8x1xi1>
    %535 = vector.broadcast %534 : vector<8x1xi1> to vector<8x32xi1>
    %536 = arith.select %535, %526, %460 : vector<8x32xi1>, vector<8x32xf32>
    %cst_150 = arith.constant 0.000000e+00 : f32
    %537 = vector.shape_cast %530 : vector<8x1xi1> to vector<8x1xi1>
    %538 = vector.broadcast %537 : vector<8x1xi1> to vector<8x32xi1>
    %539 = vector.broadcast %cst_150 : f32 to vector<8x32xf32>
    %540 = arith.select %538, %528, %539 : vector<8x32xi1>, vector<8x32xf32>
    %c6_151 = arith.constant 6 : index
    %c0_152 = arith.constant 0 : index
    %c0_153 = arith.constant 0 : index
    %541 = vector.load %arg6[%c6_151, %c0_152, %c0_153] : memref<8x8x32xf32, #tpu.memory_space<vmem>>, vector<1x8x32xf32>
    %542 = vector.shape_cast %541 : vector<1x8x32xf32> to vector<8x32xf32>
    %543 = vector.shape_cast %511 : vector<8x32xf32> to vector<1x8x32xf32>
    tpu.vector_store %arg6[%c6_151, %c0_152, %c0_153], %543 {strides = array<i32>} : memref<8x8x32xf32, #tpu.memory_space<vmem>>, vector<1x8x32xf32>,
    %c1_154 = arith.constant 1 : index
    %c0_155 = arith.constant 0 : index
    %c0_156 = arith.constant 0 : index
    %544 = vector.load %arg7[%c1_154, %c0_155, %c0_156] : memref<8x8x32xf32, #tpu.memory_space<vmem>>, vector<1x8x32xf32>
    %545 = vector.shape_cast %544 : vector<1x8x32xf32> to vector<8x32xf32>
    %546 = vector.shape_cast %540 : vector<8x32xf32> to vector<1x8x32xf32>
    tpu.vector_store %arg7[%c1_154, %c0_155, %c0_156], %546 {strides = array<i32>} : memref<8x8x32xf32, #tpu.memory_space<vmem>>, vector<1x8x32xf32>,
    %c0_157 = arith.constant 0 : index
    %c7_158 = arith.constant 7 : index
    %c0_159 = arith.constant 0 : index
    %c0_160 = arith.constant 0 : index
    %547 = vector.load %arg1[%c0_157, %c7_158, %c0_159, %c0_160] : memref<1x8x8x128xbf16, #tpu.memory_space<vmem>>, vector<1x1x8x128xbf16>
    %548 = vector.shape_cast %547 : vector<1x1x8x128xbf16> to vector<8x128xbf16>
    %549 = arith.extf %548 : vector<8x128xbf16> to vector<8x128xf32>
    %550 = arith.truncf %504 : vector<8x32xf32> to vector<8x32xbf16>
    %cst_161 = arith.constant dense<0.000000e+00> : vector<8x128xf32>
    %551 = tpu.matmul %550, %4, %cst_161 {dimension_numbers = #tpu.dot_dimension_numbers<[1], [0], [0], [1], [0, 0, 1, 1], [], []>} : vector<8x32xbf16>, vector<32x128xbf16>, vector<8x128xf32> -> vector<8x128xf32>
    %552 = arith.addf %549, %551 : vector<8x128xf32>
    %c0_162 = arith.constant 0 : index
    %c0_163 = arith.constant 0 : index
    %c0_164 = arith.constant 0 : index
    %c0_165 = arith.constant 0 : index
    %553 = vector.load %arg2[%c0_162, %c0_163, %c0_164, %c0_165] : memref<1x8x8x128xbf16, #tpu.memory_space<vmem>>, vector<1x1x8x128xbf16>
    %554 = vector.shape_cast %553 : vector<1x1x8x128xbf16> to vector<8x128xbf16>
    %555 = arith.extf %554 : vector<8x128xbf16> to vector<8x128xf32>
    %556 = arith.truncf %533 : vector<8x32xf32> to vector<8x32xbf16>
    %cst_166 = arith.constant dense<0.000000e+00> : vector<8x128xf32>
    %557 = tpu.matmul %556, %6, %cst_166 {dimension_numbers = #tpu.dot_dimension_numbers<[1], [0], [0], [1], [0, 0, 1, 1], [], []>} : vector<8x32xbf16>, vector<32x128xbf16>, vector<8x128xf32> -> vector<8x128xf32>
    %558 = arith.addf %555, %557 : vector<8x128xf32>
    %c7_i32_167 = arith.constant 7 : i32
    %559 = arith.addi %8, %c7_i32_167 : i32
    %560 = vector.extract_strided_slice %552 {offsets = [0, 0], sizes = [8, 96], strides = [1, 1]} : vector<8x128xf32> to vector<8x96xf32>
    %561 = arith.negf %560 : vector<8x96xf32>
    %562 = math.exp %561 : vector<8x96xf32>
    %cst_168 = arith.constant 1.000000e+00 : f32
    %563 = vector.broadcast %cst_168 : f32 to vector<8x96xf32>
    %564 = arith.addf %563, %562 : vector<8x96xf32>
    %565 = arith.divf %563, %564 : vector<8x96xf32>
    %566 = vector.extract_strided_slice %565 {offsets = [0, 0], sizes = [8, 32], strides = [1, 1]} : vector<8x96xf32> to vector<8x32xf32>
    %567 = vector.extract_strided_slice %565 {offsets = [0, 32], sizes = [8, 32], strides = [1, 1]} : vector<8x96xf32> to vector<8x32xf32>
    %568 = vector.extract_strided_slice %565 {offsets = [0, 64], sizes = [8, 32], strides = [1, 1]} : vector<8x96xf32> to vector<8x32xf32>
    %569 = vector.extract_strided_slice %552 {offsets = [0, 96], sizes = [8, 32], strides = [1, 1]} : vector<8x128xf32> to vector<8x32xf32>
    %570 = math.tanh %569 : vector<8x32xf32>
    %571 = arith.mulf %567, %507 : vector<8x32xf32>
    %572 = arith.mulf %566, %570 : vector<8x32xf32>
    %573 = arith.addf %571, %572 : vector<8x32xf32>
    %574 = math.tanh %573 : vector<8x32xf32>
    %575 = arith.mulf %568, %574 : vector<8x32xf32>
    %576 = vector.broadcast %559 : i32 to vector<8x1xi32>
    %577 = arith.cmpi sgt, %7, %576 : vector<8x1xi32>
    %578 = vector.shape_cast %577 : vector<8x1xi1> to vector<8x1xi1>
    %579 = vector.broadcast %578 : vector<8x1xi1> to vector<8x32xi1>
    %580 = arith.select %579, %575, %504 : vector<8x32xi1>, vector<8x32xf32>
    %581 = vector.shape_cast %577 : vector<8x1xi1> to vector<8x1xi1>
    %582 = vector.broadcast %581 : vector<8x1xi1> to vector<8x32xi1>
    %583 = arith.select %582, %573, %507 : vector<8x32xi1>, vector<8x32xf32>
    %cst_169 = arith.constant 0.000000e+00 : f32
    %584 = vector.shape_cast %577 : vector<8x1xi1> to vector<8x1xi1>
    %585 = vector.broadcast %584 : vector<8x1xi1> to vector<8x32xi1>
    %586 = vector.broadcast %cst_169 : f32 to vector<8x32xf32>
    %587 = arith.select %585, %575, %586 : vector<8x32xi1>, vector<8x32xf32>
    %c0_i32_170 = arith.constant 0 : i32
    %588 = arith.addi %10, %c0_i32_170 : i32
    %589 = vector.extract_strided_slice %558 {offsets = [0, 0], sizes = [8, 96], strides = [1, 1]} : vector<8x128xf32> to vector<8x96xf32>
    %590 = arith.negf %589 : vector<8x96xf32>
    %591 = math.exp %590 : vector<8x96xf32>
    %cst_171 = arith.constant 1.000000e+00 : f32
    %592 = vector.broadcast %cst_171 : f32 to vector<8x96xf32>
    %593 = arith.addf %592, %591 : vector<8x96xf32>
    %594 = arith.divf %592, %593 : vector<8x96xf32>
    %595 = vector.extract_strided_slice %594 {offsets = [0, 0], sizes = [8, 32], strides = [1, 1]} : vector<8x96xf32> to vector<8x32xf32>
    %596 = vector.extract_strided_slice %594 {offsets = [0, 32], sizes = [8, 32], strides = [1, 1]} : vector<8x96xf32> to vector<8x32xf32>
    %597 = vector.extract_strided_slice %594 {offsets = [0, 64], sizes = [8, 32], strides = [1, 1]} : vector<8x96xf32> to vector<8x32xf32>
    %598 = vector.extract_strided_slice %558 {offsets = [0, 96], sizes = [8, 32], strides = [1, 1]} : vector<8x128xf32> to vector<8x32xf32>
    %599 = math.tanh %598 : vector<8x32xf32>
    %600 = arith.mulf %596, %536 : vector<8x32xf32>
    %601 = arith.mulf %595, %599 : vector<8x32xf32>
    %602 = arith.addf %600, %601 : vector<8x32xf32>
    %603 = math.tanh %602 : vector<8x32xf32>
    %604 = arith.mulf %597, %603 : vector<8x32xf32>
    %605 = vector.broadcast %588 : i32 to vector<8x1xi32>
    %606 = arith.cmpi sgt, %7, %605 : vector<8x1xi32>
    %607 = vector.shape_cast %606 : vector<8x1xi1> to vector<8x1xi1>
    %608 = vector.broadcast %607 : vector<8x1xi1> to vector<8x32xi1>
    %609 = arith.select %608, %604, %533 : vector<8x32xi1>, vector<8x32xf32>
    %610 = vector.shape_cast %606 : vector<8x1xi1> to vector<8x1xi1>
    %611 = vector.broadcast %610 : vector<8x1xi1> to vector<8x32xi1>
    %612 = arith.select %611, %602, %536 : vector<8x32xi1>, vector<8x32xf32>
    %cst_172 = arith.constant 0.000000e+00 : f32
    %613 = vector.shape_cast %606 : vector<8x1xi1> to vector<8x1xi1>
    %614 = vector.broadcast %613 : vector<8x1xi1> to vector<8x32xi1>
    %615 = vector.broadcast %cst_172 : f32 to vector<8x32xf32>
    %616 = arith.select %614, %604, %615 : vector<8x32xi1>, vector<8x32xf32>
    %c7_173 = arith.constant 7 : index
    %c0_174 = arith.constant 0 : index
    %c0_175 = arith.constant 0 : index
    %617 = vector.load %arg6[%c7_173, %c0_174, %c0_175] : memref<8x8x32xf32, #tpu.memory_space<vmem>>, vector<1x8x32xf32>
    %618 = vector.shape_cast %617 : vector<1x8x32xf32> to vector<8x32xf32>
    %619 = vector.shape_cast %587 : vector<8x32xf32> to vector<1x8x32xf32>
    tpu.vector_store %arg6[%c7_173, %c0_174, %c0_175], %619 {strides = array<i32>} : memref<8x8x32xf32, #tpu.memory_space<vmem>>, vector<1x8x32xf32>,
    %c0_176 = arith.constant 0 : index
    %c0_177 = arith.constant 0 : index
    %c0_178 = arith.constant 0 : index
    %620 = vector.load %arg7[%c0_176, %c0_177, %c0_178] : memref<8x8x32xf32, #tpu.memory_space<vmem>>, vector<1x8x32xf32>
    %621 = vector.shape_cast %620 : vector<1x8x32xf32> to vector<8x32xf32>
    %622 = vector.shape_cast %616 : vector<8x32xf32> to vector<1x8x32xf32>
    tpu.vector_store %arg7[%c0_176, %c0_177, %c0_178], %622 {strides = array<i32>} : memref<8x8x32xf32, #tpu.memory_space<vmem>>, vector<1x8x32xf32>,
    %c0_179 = arith.constant 0 : index
    %c0_180 = arith.constant 0 : index
    %623 = vector.load %arg8[%c0_179, %c0_180] : memref<8x32xf32, #tpu.memory_space<vmem>>, vector<8x32xf32>
    tpu.vector_store %arg8[%c0_179, %c0_180], %580 {strides = array<i32>} : memref<8x32xf32, #tpu.memory_space<vmem>>, vector<8x32xf32>,
    %c0_181 = arith.constant 0 : index
    %c0_182 = arith.constant 0 : index
    %624 = vector.load %arg9[%c0_181, %c0_182] : memref<8x32xf32, #tpu.memory_space<vmem>>, vector<8x32xf32>
    tpu.vector_store %arg9[%c0_181, %c0_182], %583 {strides = array<i32>} : memref<8x32xf32, #tpu.memory_space<vmem>>, vector<8x32xf32>,
    %c0_183 = arith.constant 0 : index
    %c0_184 = arith.constant 0 : index
    %625 = vector.load %arg10[%c0_183, %c0_184] : memref<8x32xf32, #tpu.memory_space<vmem>>, vector<8x32xf32>
    tpu.vector_store %arg10[%c0_183, %c0_184], %609 {strides = array<i32>} : memref<8x32xf32, #tpu.memory_space<vmem>>, vector<8x32xf32>,
    %c0_185 = arith.constant 0 : index
    %c0_186 = arith.constant 0 : index
    %626 = vector.load %arg11[%c0_185, %c0_186] : memref<8x32xf32, #tpu.memory_space<vmem>>, vector<8x32xf32>
    tpu.vector_store %arg11[%c0_185, %c0_186], %612 {strides = array<i32>} : memref<8x32xf32, #tpu.memory_space<vmem>>, vector<8x32xf32>,
    return
  }
  func.func @transform_0(%arg0: i32) -> (i32, i32, i32, i32) {
    %c0_i32 = arith.constant 0 : i32
    %c0_i32_0 = arith.constant 0 : i32
    %c0_i32_1 = arith.constant 0 : i32
    %c0_i32_2 = arith.constant 0 : i32
    return %c0_i32, %arg0, %c0_i32_0, %c0_i32_1 : i32, i32, i32, i32
  }
  func.func @transform_1(%arg0: i32) -> (i32, i32, i32, i32) {
    %c0_i32 = arith.constant 0 : i32
    %0 = arith.subi %c0_i32, %arg0 : i32
    %c1_i32 = arith.constant 1 : i32
    %c0_i32_0 = arith.constant 0 : i32
    %c0_i32_1 = arith.constant 0 : i32
    %c0_i32_2 = arith.constant 0 : i32
    return %c1_i32, %0, %c0_i32_0, %c0_i32_1 : i32, i32, i32, i32
  }
  func.func @transform_2(%arg0: i32) -> (i32, i32, i32) {
    %c0_i32 = arith.constant 0 : i32
    %c0_i32_0 = arith.constant 0 : i32
    %c0_i32_1 = arith.constant 0 : i32
    %c0_i32_2 = arith.constant 0 : i32
    return %c0_i32, %c0_i32_0, %c0_i32_1 : i32, i32, i32
  }
  func.func @transform_3(%arg0: i32) -> (i32, i32, i32) {
    %c1_i32 = arith.constant 1 : i32
    %c0_i32 = arith.constant 0 : i32
    %c0_i32_0 = arith.constant 0 : i32
    %c0_i32_1 = arith.constant 0 : i32
    return %c1_i32, %c0_i32, %c0_i32_0 : i32, i32, i32
  }
  func.func @transform_4(%arg0: i32) -> (i32, i32) {
    %c0_i32 = arith.constant 0 : i32
    %c0_i32_0 = arith.constant 0 : i32
    %c0_i32_1 = arith.constant 0 : i32
    return %c0_i32, %c0_i32_0 : i32, i32
  }
  func.func @transform_5(%arg0: i32) -> (i32, i32, i32) {
    %c0_i32 = arith.constant 0 : i32
    %c0_i32_0 = arith.constant 0 : i32
    %c0_i32_1 = arith.constant 0 : i32
    return %arg0, %c0_i32, %c0_i32_0 : i32, i32, i32
  }
  func.func @transform_6(%arg0: i32) -> (i32, i32, i32) {
    %c0_i32 = arith.constant 0 : i32
    %0 = arith.subi %c0_i32, %arg0 : i32
    %c0_i32_0 = arith.constant 0 : i32
    %c0_i32_1 = arith.constant 0 : i32
    %c0_i32_2 = arith.constant 0 : i32
    return %0, %c0_i32_0, %c0_i32_1 : i32, i32, i32
  }
}

module attributes {stable_mosaic.version = 11 : i64} {
  func.func @_bilstm_kernel(%arg0: i32, %arg1: memref<1x4x8x128xbf16, #tpu.memory_space<vmem>>, %arg2: memref<1x4x8x128xbf16, #tpu.memory_space<vmem>>, %arg3: memref<1x32x128xbf16, #tpu.memory_space<vmem>>, %arg4: memref<1x32x128xbf16, #tpu.memory_space<vmem>>, %arg5: memref<8x1xi32, #tpu.memory_space<vmem>>, %arg6: memref<4x8x32xf32, #tpu.memory_space<vmem>>, %arg7: memref<4x8x32xf32, #tpu.memory_space<vmem>>, %arg8: memref<8x32xf32, #tpu.memory_space<vmem>>, %arg9: memref<8x32xf32, #tpu.memory_space<vmem>>, %arg10: memref<8x32xf32, #tpu.memory_space<vmem>>, %arg11: memref<8x32xf32, #tpu.memory_space<vmem>>) attributes {dimension_semantics = [#tpu.dimension_semantics<arbitrary>], iteration_bounds = array<i64: 1>, scalar_prefetch = 0 : i64, scratch_operands = 4 : i64, tpu.core_type = #tpu.core_type<tc>, window_params = [{transform_indices = @transform_0, window_bounds = array<i64: 1, 4, 8, 128>}, {transform_indices = @transform_1, window_bounds = array<i64: 1, 4, 8, 128>}, {transform_indices = @transform_2, window_bounds = array<i64: 1, 32, 128>}, {transform_indices = @transform_3, window_bounds = array<i64: 1, 32, 128>}, {pipeline_mode = #tpu.pipeline_mode<synchronous>, transform_indices = @transform_4, window_bounds = array<i64: 8, 1>}, {transform_indices = @transform_5, window_bounds = array<i64: 4, 8, 32>}, {transform_indices = @transform_6, window_bounds = array<i64: 4, 8, 32>}]} {
    %c0_i32 = arith.constant 0 : i32
    %0 = arith.cmpi eq, %arg0, %c0_i32 : i32
    %1 = arith.extui %0 : i1 to i32
    %c0_i32_0 = arith.constant 0 : i32
    %2 = arith.cmpi ne, %1, %c0_i32_0 : i32
    scf.if %2 {
      %cst_107 = arith.constant 0.000000e+00 : f32
      %323 = vector.broadcast %cst_107 : f32 to vector<8x32xf32>
      %c0_108 = arith.constant 0 : index
      %c0_109 = arith.constant 0 : index
      %324 = vector.load %arg8[%c0_108, %c0_109] : memref<8x32xf32, #tpu.memory_space<vmem>>, vector<8x32xf32>
      tpu.vector_store %arg8[%c0_108, %c0_109], %323 {strides = array<i32>} : memref<8x32xf32, #tpu.memory_space<vmem>>, vector<8x32xf32>,
      %cst_110 = arith.constant 0.000000e+00 : f32
      %325 = vector.broadcast %cst_110 : f32 to vector<8x32xf32>
      %c0_111 = arith.constant 0 : index
      %c0_112 = arith.constant 0 : index
      %326 = vector.load %arg9[%c0_111, %c0_112] : memref<8x32xf32, #tpu.memory_space<vmem>>, vector<8x32xf32>
      tpu.vector_store %arg9[%c0_111, %c0_112], %325 {strides = array<i32>} : memref<8x32xf32, #tpu.memory_space<vmem>>, vector<8x32xf32>,
      %cst_113 = arith.constant 0.000000e+00 : f32
      %327 = vector.broadcast %cst_113 : f32 to vector<8x32xf32>
      %c0_114 = arith.constant 0 : index
      %c0_115 = arith.constant 0 : index
      %328 = vector.load %arg10[%c0_114, %c0_115] : memref<8x32xf32, #tpu.memory_space<vmem>>, vector<8x32xf32>
      tpu.vector_store %arg10[%c0_114, %c0_115], %327 {strides = array<i32>} : memref<8x32xf32, #tpu.memory_space<vmem>>, vector<8x32xf32>,
      %cst_116 = arith.constant 0.000000e+00 : f32
      %329 = vector.broadcast %cst_116 : f32 to vector<8x32xf32>
      %c0_117 = arith.constant 0 : index
      %c0_118 = arith.constant 0 : index
      %330 = vector.load %arg11[%c0_117, %c0_118] : memref<8x32xf32, #tpu.memory_space<vmem>>, vector<8x32xf32>
      tpu.vector_store %arg11[%c0_117, %c0_118], %329 {strides = array<i32>} : memref<8x32xf32, #tpu.memory_space<vmem>>, vector<8x32xf32>,
    } else {
    }
    %c0 = arith.constant 0 : index
    %c0_1 = arith.constant 0 : index
    %c0_2 = arith.constant 0 : index
    %3 = vector.load %arg3[%c0, %c0_1, %c0_2] : memref<1x32x128xbf16, #tpu.memory_space<vmem>>, vector<1x32x128xbf16>
    %4 = vector.shape_cast %3 : vector<1x32x128xbf16> to vector<32x128xbf16>
    %c0_3 = arith.constant 0 : index
    %c0_4 = arith.constant 0 : index
    %c0_5 = arith.constant 0 : index
    %5 = vector.load %arg4[%c0_3, %c0_4, %c0_5] : memref<1x32x128xbf16, #tpu.memory_space<vmem>>, vector<1x32x128xbf16>
    %6 = vector.shape_cast %5 : vector<1x32x128xbf16> to vector<32x128xbf16>
    %c0_6 = arith.constant 0 : index
    %c0_7 = arith.constant 0 : index
    %7 = vector.load %arg5[%c0_6, %c0_7] : memref<8x1xi32, #tpu.memory_space<vmem>>, vector<8x1xi32>
    %c4_i32 = arith.constant 4 : i32
    %8 = arith.muli %arg0, %c4_i32 : i32
    %c0_i32_8 = arith.constant 0 : i32
    %9 = arith.subi %c0_i32_8, %arg0 : i32
    %c4_i32_9 = arith.constant 4 : i32
    %10 = arith.muli %9, %c4_i32_9 : i32
    %c0_10 = arith.constant 0 : index
    %c0_11 = arith.constant 0 : index
    %11 = vector.load %arg8[%c0_10, %c0_11] : memref<8x32xf32, #tpu.memory_space<vmem>>, vector<8x32xf32>
    %c0_12 = arith.constant 0 : index
    %c0_13 = arith.constant 0 : index
    %12 = vector.load %arg9[%c0_12, %c0_13] : memref<8x32xf32, #tpu.memory_space<vmem>>, vector<8x32xf32>
    %c0_14 = arith.constant 0 : index
    %c0_15 = arith.constant 0 : index
    %13 = vector.load %arg10[%c0_14, %c0_15] : memref<8x32xf32, #tpu.memory_space<vmem>>, vector<8x32xf32>
    %c0_16 = arith.constant 0 : index
    %c0_17 = arith.constant 0 : index
    %14 = vector.load %arg11[%c0_16, %c0_17] : memref<8x32xf32, #tpu.memory_space<vmem>>, vector<8x32xf32>
    %c0_18 = arith.constant 0 : index
    %c0_19 = arith.constant 0 : index
    %c0_20 = arith.constant 0 : index
    %c0_21 = arith.constant 0 : index
    %15 = vector.load %arg1[%c0_18, %c0_19, %c0_20, %c0_21] : memref<1x4x8x128xbf16, #tpu.memory_space<vmem>>, vector<1x1x8x128xbf16>
    %16 = vector.shape_cast %15 : vector<1x1x8x128xbf16> to vector<8x128xbf16>
    %17 = arith.extf %16 : vector<8x128xbf16> to vector<8x128xf32>
    %18 = arith.truncf %11 : vector<8x32xf32> to vector<8x32xbf16>
    %cst = arith.constant dense<0.000000e+00> : vector<8x128xf32>
    %19 = tpu.matmul %18, %4, %cst {dimension_numbers = #tpu.dot_dimension_numbers<[1], [0], [0], [1], [0, 0, 1, 1], [], []>} : vector<8x32xbf16>, vector<32x128xbf16>, vector<8x128xf32> -> vector<8x128xf32>
    %20 = arith.addf %17, %19 : vector<8x128xf32>
    %c0_22 = arith.constant 0 : index
    %c3 = arith.constant 3 : index
    %c0_23 = arith.constant 0 : index
    %c0_24 = arith.constant 0 : index
    %21 = vector.load %arg2[%c0_22, %c3, %c0_23, %c0_24] : memref<1x4x8x128xbf16, #tpu.memory_space<vmem>>, vector<1x1x8x128xbf16>
    %22 = vector.shape_cast %21 : vector<1x1x8x128xbf16> to vector<8x128xbf16>
    %23 = arith.extf %22 : vector<8x128xbf16> to vector<8x128xf32>
    %24 = arith.truncf %13 : vector<8x32xf32> to vector<8x32xbf16>
    %cst_25 = arith.constant dense<0.000000e+00> : vector<8x128xf32>
    %25 = tpu.matmul %24, %6, %cst_25 {dimension_numbers = #tpu.dot_dimension_numbers<[1], [0], [0], [1], [0, 0, 1, 1], [], []>} : vector<8x32xbf16>, vector<32x128xbf16>, vector<8x128xf32> -> vector<8x128xf32>
    %26 = arith.addf %23, %25 : vector<8x128xf32>
    %c0_i32_26 = arith.constant 0 : i32
    %27 = arith.addi %8, %c0_i32_26 : i32
    %28 = vector.extract_strided_slice %20 {offsets = [0, 0], sizes = [8, 96], strides = [1, 1]} : vector<8x128xf32> to vector<8x96xf32>
    %29 = arith.negf %28 : vector<8x96xf32>
    %30 = math.exp %29 : vector<8x96xf32>
    %cst_27 = arith.constant 1.000000e+00 : f32
    %31 = vector.broadcast %cst_27 : f32 to vector<8x96xf32>
    %32 = arith.addf %31, %30 : vector<8x96xf32>
    %33 = arith.divf %31, %32 : vector<8x96xf32>
    %34 = vector.extract_strided_slice %33 {offsets = [0, 0], sizes = [8, 32], strides = [1, 1]} : vector<8x96xf32> to vector<8x32xf32>
    %35 = vector.extract_strided_slice %33 {offsets = [0, 32], sizes = [8, 32], strides = [1, 1]} : vector<8x96xf32> to vector<8x32xf32>
    %36 = vector.extract_strided_slice %33 {offsets = [0, 64], sizes = [8, 32], strides = [1, 1]} : vector<8x96xf32> to vector<8x32xf32>
    %37 = vector.extract_strided_slice %20 {offsets = [0, 96], sizes = [8, 32], strides = [1, 1]} : vector<8x128xf32> to vector<8x32xf32>
    %38 = math.tanh %37 : vector<8x32xf32>
    %39 = arith.mulf %35, %12 : vector<8x32xf32>
    %40 = arith.mulf %34, %38 : vector<8x32xf32>
    %41 = arith.addf %39, %40 : vector<8x32xf32>
    %42 = math.tanh %41 : vector<8x32xf32>
    %43 = arith.mulf %36, %42 : vector<8x32xf32>
    %44 = vector.broadcast %27 : i32 to vector<8x1xi32>
    %45 = arith.cmpi sgt, %7, %44 : vector<8x1xi32>
    %46 = vector.shape_cast %45 : vector<8x1xi1> to vector<8x1xi1>
    %47 = vector.broadcast %46 : vector<8x1xi1> to vector<8x32xi1>
    %48 = arith.select %47, %43, %11 : vector<8x32xi1>, vector<8x32xf32>
    %49 = vector.shape_cast %45 : vector<8x1xi1> to vector<8x1xi1>
    %50 = vector.broadcast %49 : vector<8x1xi1> to vector<8x32xi1>
    %51 = arith.select %50, %41, %12 : vector<8x32xi1>, vector<8x32xf32>
    %cst_28 = arith.constant 0.000000e+00 : f32
    %52 = vector.shape_cast %45 : vector<8x1xi1> to vector<8x1xi1>
    %53 = vector.broadcast %52 : vector<8x1xi1> to vector<8x32xi1>
    %54 = vector.broadcast %cst_28 : f32 to vector<8x32xf32>
    %55 = arith.select %53, %43, %54 : vector<8x32xi1>, vector<8x32xf32>
    %c3_i32 = arith.constant 3 : i32
    %56 = arith.addi %10, %c3_i32 : i32
    %57 = vector.extract_strided_slice %26 {offsets = [0, 0], sizes = [8, 96], strides = [1, 1]} : vector<8x128xf32> to vector<8x96xf32>
    %58 = arith.negf %57 : vector<8x96xf32>
    %59 = math.exp %58 : vector<8x96xf32>
    %cst_29 = arith.constant 1.000000e+00 : f32
    %60 = vector.broadcast %cst_29 : f32 to vector<8x96xf32>
    %61 = arith.addf %60, %59 : vector<8x96xf32>
    %62 = arith.divf %60, %61 : vector<8x96xf32>
    %63 = vector.extract_strided_slice %62 {offsets = [0, 0], sizes = [8, 32], strides = [1, 1]} : vector<8x96xf32> to vector<8x32xf32>
    %64 = vector.extract_strided_slice %62 {offsets = [0, 32], sizes = [8, 32], strides = [1, 1]} : vector<8x96xf32> to vector<8x32xf32>
    %65 = vector.extract_strided_slice %62 {offsets = [0, 64], sizes = [8, 32], strides = [1, 1]} : vector<8x96xf32> to vector<8x32xf32>
    %66 = vector.extract_strided_slice %26 {offsets = [0, 96], sizes = [8, 32], strides = [1, 1]} : vector<8x128xf32> to vector<8x32xf32>
    %67 = math.tanh %66 : vector<8x32xf32>
    %68 = arith.mulf %64, %14 : vector<8x32xf32>
    %69 = arith.mulf %63, %67 : vector<8x32xf32>
    %70 = arith.addf %68, %69 : vector<8x32xf32>
    %71 = math.tanh %70 : vector<8x32xf32>
    %72 = arith.mulf %65, %71 : vector<8x32xf32>
    %73 = vector.broadcast %56 : i32 to vector<8x1xi32>
    %74 = arith.cmpi sgt, %7, %73 : vector<8x1xi32>
    %75 = vector.shape_cast %74 : vector<8x1xi1> to vector<8x1xi1>
    %76 = vector.broadcast %75 : vector<8x1xi1> to vector<8x32xi1>
    %77 = arith.select %76, %72, %13 : vector<8x32xi1>, vector<8x32xf32>
    %78 = vector.shape_cast %74 : vector<8x1xi1> to vector<8x1xi1>
    %79 = vector.broadcast %78 : vector<8x1xi1> to vector<8x32xi1>
    %80 = arith.select %79, %70, %14 : vector<8x32xi1>, vector<8x32xf32>
    %cst_30 = arith.constant 0.000000e+00 : f32
    %81 = vector.shape_cast %74 : vector<8x1xi1> to vector<8x1xi1>
    %82 = vector.broadcast %81 : vector<8x1xi1> to vector<8x32xi1>
    %83 = vector.broadcast %cst_30 : f32 to vector<8x32xf32>
    %84 = arith.select %82, %72, %83 : vector<8x32xi1>, vector<8x32xf32>
    %c0_31 = arith.constant 0 : index
    %c0_32 = arith.constant 0 : index
    %c0_33 = arith.constant 0 : index
    %85 = vector.load %arg6[%c0_31, %c0_32, %c0_33] : memref<4x8x32xf32, #tpu.memory_space<vmem>>, vector<1x8x32xf32>
    %86 = vector.shape_cast %85 : vector<1x8x32xf32> to vector<8x32xf32>
    %87 = vector.shape_cast %55 : vector<8x32xf32> to vector<1x8x32xf32>
    tpu.vector_store %arg6[%c0_31, %c0_32, %c0_33], %87 {strides = array<i32>} : memref<4x8x32xf32, #tpu.memory_space<vmem>>, vector<1x8x32xf32>,
    %c3_34 = arith.constant 3 : index
    %c0_35 = arith.constant 0 : index
    %c0_36 = arith.constant 0 : index
    %88 = vector.load %arg7[%c3_34, %c0_35, %c0_36] : memref<4x8x32xf32, #tpu.memory_space<vmem>>, vector<1x8x32xf32>
    %89 = vector.shape_cast %88 : vector<1x8x32xf32> to vector<8x32xf32>
    %90 = vector.shape_cast %84 : vector<8x32xf32> to vector<1x8x32xf32>
    tpu.vector_store %arg7[%c3_34, %c0_35, %c0_36], %90 {strides = array<i32>} : memref<4x8x32xf32, #tpu.memory_space<vmem>>, vector<1x8x32xf32>,
    %c0_37 = arith.constant 0 : index
    %c1 = arith.constant 1 : index
    %c0_38 = arith.constant 0 : index
    %c0_39 = arith.constant 0 : index
    %91 = vector.load %arg1[%c0_37, %c1, %c0_38, %c0_39] : memref<1x4x8x128xbf16, #tpu.memory_space<vmem>>, vector<1x1x8x128xbf16>
    %92 = vector.shape_cast %91 : vector<1x1x8x128xbf16> to vector<8x128xbf16>
    %93 = arith.extf %92 : vector<8x128xbf16> to vector<8x128xf32>
    %94 = arith.truncf %48 : vector<8x32xf32> to vector<8x32xbf16>
    %cst_40 = arith.constant dense<0.000000e+00> : vector<8x128xf32>
    %95 = tpu.matmul %94, %4, %cst_40 {dimension_numbers = #tpu.dot_dimension_numbers<[1], [0], [0], [1], [0, 0, 1, 1], [], []>} : vector<8x32xbf16>, vector<32x128xbf16>, vector<8x128xf32> -> vector<8x128xf32>
    %96 = arith.addf %93, %95 : vector<8x128xf32>
    %c0_41 = arith.constant 0 : index
    %c2 = arith.constant 2 : index
    %c0_42 = arith.constant 0 : index
    %c0_43 = arith.constant 0 : index
    %97 = vector.load %arg2[%c0_41, %c2, %c0_42, %c0_43] : memref<1x4x8x128xbf16, #tpu.memory_space<vmem>>, vector<1x1x8x128xbf16>
    %98 = vector.shape_cast %97 : vector<1x1x8x128xbf16> to vector<8x128xbf16>
    %99 = arith.extf %98 : vector<8x128xbf16> to vector<8x128xf32>
    %100 = arith.truncf %77 : vector<8x32xf32> to vector<8x32xbf16>
    %cst_44 = arith.constant dense<0.000000e+00> : vector<8x128xf32>
    %101 = tpu.matmul %100, %6, %cst_44 {dimension_numbers = #tpu.dot_dimension_numbers<[1], [0], [0], [1], [0, 0, 1, 1], [], []>} : vector<8x32xbf16>, vector<32x128xbf16>, vector<8x128xf32> -> vector<8x128xf32>
    %102 = arith.addf %99, %101 : vector<8x128xf32>
    %c1_i32 = arith.constant 1 : i32
    %103 = arith.addi %8, %c1_i32 : i32
    %104 = vector.extract_strided_slice %96 {offsets = [0, 0], sizes = [8, 96], strides = [1, 1]} : vector<8x128xf32> to vector<8x96xf32>
    %105 = arith.negf %104 : vector<8x96xf32>
    %106 = math.exp %105 : vector<8x96xf32>
    %cst_45 = arith.constant 1.000000e+00 : f32
    %107 = vector.broadcast %cst_45 : f32 to vector<8x96xf32>
    %108 = arith.addf %107, %106 : vector<8x96xf32>
    %109 = arith.divf %107, %108 : vector<8x96xf32>
    %110 = vector.extract_strided_slice %109 {offsets = [0, 0], sizes = [8, 32], strides = [1, 1]} : vector<8x96xf32> to vector<8x32xf32>
    %111 = vector.extract_strided_slice %109 {offsets = [0, 32], sizes = [8, 32], strides = [1, 1]} : vector<8x96xf32> to vector<8x32xf32>
    %112 = vector.extract_strided_slice %109 {offsets = [0, 64], sizes = [8, 32], strides = [1, 1]} : vector<8x96xf32> to vector<8x32xf32>
    %113 = vector.extract_strided_slice %96 {offsets = [0, 96], sizes = [8, 32], strides = [1, 1]} : vector<8x128xf32> to vector<8x32xf32>
    %114 = math.tanh %113 : vector<8x32xf32>
    %115 = arith.mulf %111, %51 : vector<8x32xf32>
    %116 = arith.mulf %110, %114 : vector<8x32xf32>
    %117 = arith.addf %115, %116 : vector<8x32xf32>
    %118 = math.tanh %117 : vector<8x32xf32>
    %119 = arith.mulf %112, %118 : vector<8x32xf32>
    %120 = vector.broadcast %103 : i32 to vector<8x1xi32>
    %121 = arith.cmpi sgt, %7, %120 : vector<8x1xi32>
    %122 = vector.shape_cast %121 : vector<8x1xi1> to vector<8x1xi1>
    %123 = vector.broadcast %122 : vector<8x1xi1> to vector<8x32xi1>
    %124 = arith.select %123, %119, %48 : vector<8x32xi1>, vector<8x32xf32>
    %125 = vector.shape_cast %121 : vector<8x1xi1> to vector<8x1xi1>
    %126 = vector.broadcast %125 : vector<8x1xi1> to vector<8x32xi1>
    %127 = arith.select %126, %117, %51 : vector<8x32xi1>, vector<8x32xf32>
    %cst_46 = arith.constant 0.000000e+00 : f32
    %128 = vector.shape_cast %121 : vector<8x1xi1> to vector<8x1xi1>
    %129 = vector.broadcast %128 : vector<8x1xi1> to vector<8x32xi1>
    %130 = vector.broadcast %cst_46 : f32 to vector<8x32xf32>
    %131 = arith.select %129, %119, %130 : vector<8x32xi1>, vector<8x32xf32>
    %c2_i32 = arith.constant 2 : i32
    %132 = arith.addi %10, %c2_i32 : i32
    %133 = vector.extract_strided_slice %102 {offsets = [0, 0], sizes = [8, 96], strides = [1, 1]} : vector<8x128xf32> to vector<8x96xf32>
    %134 = arith.negf %133 : vector<8x96xf32>
    %135 = math.exp %134 : vector<8x96xf32>
    %cst_47 = arith.constant 1.000000e+00 : f32
    %136 = vector.broadcast %cst_47 : f32 to vector<8x96xf32>
    %137 = arith.addf %136, %135 : vector<8x96xf32>
    %138 = arith.divf %136, %137 : vector<8x96xf32>
    %139 = vector.extract_strided_slice %138 {offsets = [0, 0], sizes = [8, 32], strides = [1, 1]} : vector<8x96xf32> to vector<8x32xf32>
    %140 = vector.extract_strided_slice %138 {offsets = [0, 32], sizes = [8, 32], strides = [1, 1]} : vector<8x96xf32> to vector<8x32xf32>
    %141 = vector.extract_strided_slice %138 {offsets = [0, 64], sizes = [8, 32], strides = [1, 1]} : vector<8x96xf32> to vector<8x32xf32>
    %142 = vector.extract_strided_slice %102 {offsets = [0, 96], sizes = [8, 32], strides = [1, 1]} : vector<8x128xf32> to vector<8x32xf32>
    %143 = math.tanh %142 : vector<8x32xf32>
    %144 = arith.mulf %140, %80 : vector<8x32xf32>
    %145 = arith.mulf %139, %143 : vector<8x32xf32>
    %146 = arith.addf %144, %145 : vector<8x32xf32>
    %147 = math.tanh %146 : vector<8x32xf32>
    %148 = arith.mulf %141, %147 : vector<8x32xf32>
    %149 = vector.broadcast %132 : i32 to vector<8x1xi32>
    %150 = arith.cmpi sgt, %7, %149 : vector<8x1xi32>
    %151 = vector.shape_cast %150 : vector<8x1xi1> to vector<8x1xi1>
    %152 = vector.broadcast %151 : vector<8x1xi1> to vector<8x32xi1>
    %153 = arith.select %152, %148, %77 : vector<8x32xi1>, vector<8x32xf32>
    %154 = vector.shape_cast %150 : vector<8x1xi1> to vector<8x1xi1>
    %155 = vector.broadcast %154 : vector<8x1xi1> to vector<8x32xi1>
    %156 = arith.select %155, %146, %80 : vector<8x32xi1>, vector<8x32xf32>
    %cst_48 = arith.constant 0.000000e+00 : f32
    %157 = vector.shape_cast %150 : vector<8x1xi1> to vector<8x1xi1>
    %158 = vector.broadcast %157 : vector<8x1xi1> to vector<8x32xi1>
    %159 = vector.broadcast %cst_48 : f32 to vector<8x32xf32>
    %160 = arith.select %158, %148, %159 : vector<8x32xi1>, vector<8x32xf32>
    %c1_49 = arith.constant 1 : index
    %c0_50 = arith.constant 0 : index
    %c0_51 = arith.constant 0 : index
    %161 = vector.load %arg6[%c1_49, %c0_50, %c0_51] : memref<4x8x32xf32, #tpu.memory_space<vmem>>, vector<1x8x32xf32>
    %162 = vector.shape_cast %161 : vector<1x8x32xf32> to vector<8x32xf32>
    %163 = vector.shape_cast %131 : vector<8x32xf32> to vector<1x8x32xf32>
    tpu.vector_store %arg6[%c1_49, %c0_50, %c0_51], %163 {strides = array<i32>} : memref<4x8x32xf32, #tpu.memory_space<vmem>>, vector<1x8x32xf32>,
    %c2_52 = arith.constant 2 : index
    %c0_53 = arith.constant 0 : index
    %c0_54 = arith.constant 0 : index
    %164 = vector.load %arg7[%c2_52, %c0_53, %c0_54] : memref<4x8x32xf32, #tpu.memory_space<vmem>>, vector<1x8x32xf32>
    %165 = vector.shape_cast %164 : vector<1x8x32xf32> to vector<8x32xf32>
    %166 = vector.shape_cast %160 : vector<8x32xf32> to vector<1x8x32xf32>
    tpu.vector_store %arg7[%c2_52, %c0_53, %c0_54], %166 {strides = array<i32>} : memref<4x8x32xf32, #tpu.memory_space<vmem>>, vector<1x8x32xf32>,
    %c0_55 = arith.constant 0 : index
    %c2_56 = arith.constant 2 : index
    %c0_57 = arith.constant 0 : index
    %c0_58 = arith.constant 0 : index
    %167 = vector.load %arg1[%c0_55, %c2_56, %c0_57, %c0_58] : memref<1x4x8x128xbf16, #tpu.memory_space<vmem>>, vector<1x1x8x128xbf16>
    %168 = vector.shape_cast %167 : vector<1x1x8x128xbf16> to vector<8x128xbf16>
    %169 = arith.extf %168 : vector<8x128xbf16> to vector<8x128xf32>
    %170 = arith.truncf %124 : vector<8x32xf32> to vector<8x32xbf16>
    %cst_59 = arith.constant dense<0.000000e+00> : vector<8x128xf32>
    %171 = tpu.matmul %170, %4, %cst_59 {dimension_numbers = #tpu.dot_dimension_numbers<[1], [0], [0], [1], [0, 0, 1, 1], [], []>} : vector<8x32xbf16>, vector<32x128xbf16>, vector<8x128xf32> -> vector<8x128xf32>
    %172 = arith.addf %169, %171 : vector<8x128xf32>
    %c0_60 = arith.constant 0 : index
    %c1_61 = arith.constant 1 : index
    %c0_62 = arith.constant 0 : index
    %c0_63 = arith.constant 0 : index
    %173 = vector.load %arg2[%c0_60, %c1_61, %c0_62, %c0_63] : memref<1x4x8x128xbf16, #tpu.memory_space<vmem>>, vector<1x1x8x128xbf16>
    %174 = vector.shape_cast %173 : vector<1x1x8x128xbf16> to vector<8x128xbf16>
    %175 = arith.extf %174 : vector<8x128xbf16> to vector<8x128xf32>
    %176 = arith.truncf %153 : vector<8x32xf32> to vector<8x32xbf16>
    %cst_64 = arith.constant dense<0.000000e+00> : vector<8x128xf32>
    %177 = tpu.matmul %176, %6, %cst_64 {dimension_numbers = #tpu.dot_dimension_numbers<[1], [0], [0], [1], [0, 0, 1, 1], [], []>} : vector<8x32xbf16>, vector<32x128xbf16>, vector<8x128xf32> -> vector<8x128xf32>
    %178 = arith.addf %175, %177 : vector<8x128xf32>
    %c2_i32_65 = arith.constant 2 : i32
    %179 = arith.addi %8, %c2_i32_65 : i32
    %180 = vector.extract_strided_slice %172 {offsets = [0, 0], sizes = [8, 96], strides = [1, 1]} : vector<8x128xf32> to vector<8x96xf32>
    %181 = arith.negf %180 : vector<8x96xf32>
    %182 = math.exp %181 : vector<8x96xf32>
    %cst_66 = arith.constant 1.000000e+00 : f32
    %183 = vector.broadcast %cst_66 : f32 to vector<8x96xf32>
    %184 = arith.addf %183, %182 : vector<8x96xf32>
    %185 = arith.divf %183, %184 : vector<8x96xf32>
    %186 = vector.extract_strided_slice %185 {offsets = [0, 0], sizes = [8, 32], strides = [1, 1]} : vector<8x96xf32> to vector<8x32xf32>
    %187 = vector.extract_strided_slice %185 {offsets = [0, 32], sizes = [8, 32], strides = [1, 1]} : vector<8x96xf32> to vector<8x32xf32>
    %188 = vector.extract_strided_slice %185 {offsets = [0, 64], sizes = [8, 32], strides = [1, 1]} : vector<8x96xf32> to vector<8x32xf32>
    %189 = vector.extract_strided_slice %172 {offsets = [0, 96], sizes = [8, 32], strides = [1, 1]} : vector<8x128xf32> to vector<8x32xf32>
    %190 = math.tanh %189 : vector<8x32xf32>
    %191 = arith.mulf %187, %127 : vector<8x32xf32>
    %192 = arith.mulf %186, %190 : vector<8x32xf32>
    %193 = arith.addf %191, %192 : vector<8x32xf32>
    %194 = math.tanh %193 : vector<8x32xf32>
    %195 = arith.mulf %188, %194 : vector<8x32xf32>
    %196 = vector.broadcast %179 : i32 to vector<8x1xi32>
    %197 = arith.cmpi sgt, %7, %196 : vector<8x1xi32>
    %198 = vector.shape_cast %197 : vector<8x1xi1> to vector<8x1xi1>
    %199 = vector.broadcast %198 : vector<8x1xi1> to vector<8x32xi1>
    %200 = arith.select %199, %195, %124 : vector<8x32xi1>, vector<8x32xf32>
    %201 = vector.shape_cast %197 : vector<8x1xi1> to vector<8x1xi1>
    %202 = vector.broadcast %201 : vector<8x1xi1> to vector<8x32xi1>
    %203 = arith.select %202, %193, %127 : vector<8x32xi1>, vector<8x32xf32>
    %cst_67 = arith.constant 0.000000e+00 : f32
    %204 = vector.shape_cast %197 : vector<8x1xi1> to vector<8x1xi1>
    %205 = vector.broadcast %204 : vector<8x1xi1> to vector<8x32xi1>
    %206 = vector.broadcast %cst_67 : f32 to vector<8x32xf32>
    %207 = arith.select %205, %195, %206 : vector<8x32xi1>, vector<8x32xf32>
    %c1_i32_68 = arith.constant 1 : i32
    %208 = arith.addi %10, %c1_i32_68 : i32
    %209 = vector.extract_strided_slice %178 {offsets = [0, 0], sizes = [8, 96], strides = [1, 1]} : vector<8x128xf32> to vector<8x96xf32>
    %210 = arith.negf %209 : vector<8x96xf32>
    %211 = math.exp %210 : vector<8x96xf32>
    %cst_69 = arith.constant 1.000000e+00 : f32
    %212 = vector.broadcast %cst_69 : f32 to vector<8x96xf32>
    %213 = arith.addf %212, %211 : vector<8x96xf32>
    %214 = arith.divf %212, %213 : vector<8x96xf32>
    %215 = vector.extract_strided_slice %214 {offsets = [0, 0], sizes = [8, 32], strides = [1, 1]} : vector<8x96xf32> to vector<8x32xf32>
    %216 = vector.extract_strided_slice %214 {offsets = [0, 32], sizes = [8, 32], strides = [1, 1]} : vector<8x96xf32> to vector<8x32xf32>
    %217 = vector.extract_strided_slice %214 {offsets = [0, 64], sizes = [8, 32], strides = [1, 1]} : vector<8x96xf32> to vector<8x32xf32>
    %218 = vector.extract_strided_slice %178 {offsets = [0, 96], sizes = [8, 32], strides = [1, 1]} : vector<8x128xf32> to vector<8x32xf32>
    %219 = math.tanh %218 : vector<8x32xf32>
    %220 = arith.mulf %216, %156 : vector<8x32xf32>
    %221 = arith.mulf %215, %219 : vector<8x32xf32>
    %222 = arith.addf %220, %221 : vector<8x32xf32>
    %223 = math.tanh %222 : vector<8x32xf32>
    %224 = arith.mulf %217, %223 : vector<8x32xf32>
    %225 = vector.broadcast %208 : i32 to vector<8x1xi32>
    %226 = arith.cmpi sgt, %7, %225 : vector<8x1xi32>
    %227 = vector.shape_cast %226 : vector<8x1xi1> to vector<8x1xi1>
    %228 = vector.broadcast %227 : vector<8x1xi1> to vector<8x32xi1>
    %229 = arith.select %228, %224, %153 : vector<8x32xi1>, vector<8x32xf32>
    %230 = vector.shape_cast %226 : vector<8x1xi1> to vector<8x1xi1>
    %231 = vector.broadcast %230 : vector<8x1xi1> to vector<8x32xi1>
    %232 = arith.select %231, %222, %156 : vector<8x32xi1>, vector<8x32xf32>
    %cst_70 = arith.constant 0.000000e+00 : f32
    %233 = vector.shape_cast %226 : vector<8x1xi1> to vector<8x1xi1>
    %234 = vector.broadcast %233 : vector<8x1xi1> to vector<8x32xi1>
    %235 = vector.broadcast %cst_70 : f32 to vector<8x32xf32>
    %236 = arith.select %234, %224, %235 : vector<8x32xi1>, vector<8x32xf32>
    %c2_71 = arith.constant 2 : index
    %c0_72 = arith.constant 0 : index
    %c0_73 = arith.constant 0 : index
    %237 = vector.load %arg6[%c2_71, %c0_72, %c0_73] : memref<4x8x32xf32, #tpu.memory_space<vmem>>, vector<1x8x32xf32>
    %238 = vector.shape_cast %237 : vector<1x8x32xf32> to vector<8x32xf32>
    %239 = vector.shape_cast %207 : vector<8x32xf32> to vector<1x8x32xf32>
    tpu.vector_store %arg6[%c2_71, %c0_72, %c0_73], %239 {strides = array<i32>} : memref<4x8x32xf32, #tpu.memory_space<vmem>>, vector<1x8x32xf32>,
    %c1_74 = arith.constant 1 : index
    %c0_75 = arith.constant 0 : index
    %c0_76 = arith.constant 0 : index
    %240 = vector.load %arg7[%c1_74, %c0_75, %c0_76] : memref<4x8x32xf32, #tpu.memory_space<vmem>>, vector<1x8x32xf32>
    %241 = vector.shape_cast %240 : vector<1x8x32xf32> to vector<8x32xf32>
    %242 = vector.shape_cast %236 : vector<8x32xf32> to vector<1x8x32xf32>
    tpu.vector_store %arg7[%c1_74, %c0_75, %c0_76], %242 {strides = array<i32>} : memref<4x8x32xf32, #tpu.memory_space<vmem>>, vector<1x8x32xf32>,
    %c0_77 = arith.constant 0 : index
    %c3_78 = arith.constant 3 : index
    %c0_79 = arith.constant 0 : index
    %c0_80 = arith.constant 0 : index
    %243 = vector.load %arg1[%c0_77, %c3_78, %c0_79, %c0_80] : memref<1x4x8x128xbf16, #tpu.memory_space<vmem>>, vector<1x1x8x128xbf16>
    %244 = vector.shape_cast %243 : vector<1x1x8x128xbf16> to vector<8x128xbf16>
    %245 = arith.extf %244 : vector<8x128xbf16> to vector<8x128xf32>
    %246 = arith.truncf %200 : vector<8x32xf32> to vector<8x32xbf16>
    %cst_81 = arith.constant dense<0.000000e+00> : vector<8x128xf32>
    %247 = tpu.matmul %246, %4, %cst_81 {dimension_numbers = #tpu.dot_dimension_numbers<[1], [0], [0], [1], [0, 0, 1, 1], [], []>} : vector<8x32xbf16>, vector<32x128xbf16>, vector<8x128xf32> -> vector<8x128xf32>
    %248 = arith.addf %245, %247 : vector<8x128xf32>
    %c0_82 = arith.constant 0 : index
    %c0_83 = arith.constant 0 : index
    %c0_84 = arith.constant 0 : index
    %c0_85 = arith.constant 0 : index
    %249 = vector.load %arg2[%c0_82, %c0_83, %c0_84, %c0_85] : memref<1x4x8x128xbf16, #tpu.memory_space<vmem>>, vector<1x1x8x128xbf16>
    %250 = vector.shape_cast %249 : vector<1x1x8x128xbf16> to vector<8x128xbf16>
    %251 = arith.extf %250 : vector<8x128xbf16> to vector<8x128xf32>
    %252 = arith.truncf %229 : vector<8x32xf32> to vector<8x32xbf16>
    %cst_86 = arith.constant dense<0.000000e+00> : vector<8x128xf32>
    %253 = tpu.matmul %252, %6, %cst_86 {dimension_numbers = #tpu.dot_dimension_numbers<[1], [0], [0], [1], [0, 0, 1, 1], [], []>} : vector<8x32xbf16>, vector<32x128xbf16>, vector<8x128xf32> -> vector<8x128xf32>
    %254 = arith.addf %251, %253 : vector<8x128xf32>
    %c3_i32_87 = arith.constant 3 : i32
    %255 = arith.addi %8, %c3_i32_87 : i32
    %256 = vector.extract_strided_slice %248 {offsets = [0, 0], sizes = [8, 96], strides = [1, 1]} : vector<8x128xf32> to vector<8x96xf32>
    %257 = arith.negf %256 : vector<8x96xf32>
    %258 = math.exp %257 : vector<8x96xf32>
    %cst_88 = arith.constant 1.000000e+00 : f32
    %259 = vector.broadcast %cst_88 : f32 to vector<8x96xf32>
    %260 = arith.addf %259, %258 : vector<8x96xf32>
    %261 = arith.divf %259, %260 : vector<8x96xf32>
    %262 = vector.extract_strided_slice %261 {offsets = [0, 0], sizes = [8, 32], strides = [1, 1]} : vector<8x96xf32> to vector<8x32xf32>
    %263 = vector.extract_strided_slice %261 {offsets = [0, 32], sizes = [8, 32], strides = [1, 1]} : vector<8x96xf32> to vector<8x32xf32>
    %264 = vector.extract_strided_slice %261 {offsets = [0, 64], sizes = [8, 32], strides = [1, 1]} : vector<8x96xf32> to vector<8x32xf32>
    %265 = vector.extract_strided_slice %248 {offsets = [0, 96], sizes = [8, 32], strides = [1, 1]} : vector<8x128xf32> to vector<8x32xf32>
    %266 = math.tanh %265 : vector<8x32xf32>
    %267 = arith.mulf %263, %203 : vector<8x32xf32>
    %268 = arith.mulf %262, %266 : vector<8x32xf32>
    %269 = arith.addf %267, %268 : vector<8x32xf32>
    %270 = math.tanh %269 : vector<8x32xf32>
    %271 = arith.mulf %264, %270 : vector<8x32xf32>
    %272 = vector.broadcast %255 : i32 to vector<8x1xi32>
    %273 = arith.cmpi sgt, %7, %272 : vector<8x1xi32>
    %274 = vector.shape_cast %273 : vector<8x1xi1> to vector<8x1xi1>
    %275 = vector.broadcast %274 : vector<8x1xi1> to vector<8x32xi1>
    %276 = arith.select %275, %271, %200 : vector<8x32xi1>, vector<8x32xf32>
    %277 = vector.shape_cast %273 : vector<8x1xi1> to vector<8x1xi1>
    %278 = vector.broadcast %277 : vector<8x1xi1> to vector<8x32xi1>
    %279 = arith.select %278, %269, %203 : vector<8x32xi1>, vector<8x32xf32>
    %cst_89 = arith.constant 0.000000e+00 : f32
    %280 = vector.shape_cast %273 : vector<8x1xi1> to vector<8x1xi1>
    %281 = vector.broadcast %280 : vector<8x1xi1> to vector<8x32xi1>
    %282 = vector.broadcast %cst_89 : f32 to vector<8x32xf32>
    %283 = arith.select %281, %271, %282 : vector<8x32xi1>, vector<8x32xf32>
    %c0_i32_90 = arith.constant 0 : i32
    %284 = arith.addi %10, %c0_i32_90 : i32
    %285 = vector.extract_strided_slice %254 {offsets = [0, 0], sizes = [8, 96], strides = [1, 1]} : vector<8x128xf32> to vector<8x96xf32>
    %286 = arith.negf %285 : vector<8x96xf32>
    %287 = math.exp %286 : vector<8x96xf32>
    %cst_91 = arith.constant 1.000000e+00 : f32
    %288 = vector.broadcast %cst_91 : f32 to vector<8x96xf32>
    %289 = arith.addf %288, %287 : vector<8x96xf32>
    %290 = arith.divf %288, %289 : vector<8x96xf32>
    %291 = vector.extract_strided_slice %290 {offsets = [0, 0], sizes = [8, 32], strides = [1, 1]} : vector<8x96xf32> to vector<8x32xf32>
    %292 = vector.extract_strided_slice %290 {offsets = [0, 32], sizes = [8, 32], strides = [1, 1]} : vector<8x96xf32> to vector<8x32xf32>
    %293 = vector.extract_strided_slice %290 {offsets = [0, 64], sizes = [8, 32], strides = [1, 1]} : vector<8x96xf32> to vector<8x32xf32>
    %294 = vector.extract_strided_slice %254 {offsets = [0, 96], sizes = [8, 32], strides = [1, 1]} : vector<8x128xf32> to vector<8x32xf32>
    %295 = math.tanh %294 : vector<8x32xf32>
    %296 = arith.mulf %292, %232 : vector<8x32xf32>
    %297 = arith.mulf %291, %295 : vector<8x32xf32>
    %298 = arith.addf %296, %297 : vector<8x32xf32>
    %299 = math.tanh %298 : vector<8x32xf32>
    %300 = arith.mulf %293, %299 : vector<8x32xf32>
    %301 = vector.broadcast %284 : i32 to vector<8x1xi32>
    %302 = arith.cmpi sgt, %7, %301 : vector<8x1xi32>
    %303 = vector.shape_cast %302 : vector<8x1xi1> to vector<8x1xi1>
    %304 = vector.broadcast %303 : vector<8x1xi1> to vector<8x32xi1>
    %305 = arith.select %304, %300, %229 : vector<8x32xi1>, vector<8x32xf32>
    %306 = vector.shape_cast %302 : vector<8x1xi1> to vector<8x1xi1>
    %307 = vector.broadcast %306 : vector<8x1xi1> to vector<8x32xi1>
    %308 = arith.select %307, %298, %232 : vector<8x32xi1>, vector<8x32xf32>
    %cst_92 = arith.constant 0.000000e+00 : f32
    %309 = vector.shape_cast %302 : vector<8x1xi1> to vector<8x1xi1>
    %310 = vector.broadcast %309 : vector<8x1xi1> to vector<8x32xi1>
    %311 = vector.broadcast %cst_92 : f32 to vector<8x32xf32>
    %312 = arith.select %310, %300, %311 : vector<8x32xi1>, vector<8x32xf32>
    %c3_93 = arith.constant 3 : index
    %c0_94 = arith.constant 0 : index
    %c0_95 = arith.constant 0 : index
    %313 = vector.load %arg6[%c3_93, %c0_94, %c0_95] : memref<4x8x32xf32, #tpu.memory_space<vmem>>, vector<1x8x32xf32>
    %314 = vector.shape_cast %313 : vector<1x8x32xf32> to vector<8x32xf32>
    %315 = vector.shape_cast %283 : vector<8x32xf32> to vector<1x8x32xf32>
    tpu.vector_store %arg6[%c3_93, %c0_94, %c0_95], %315 {strides = array<i32>} : memref<4x8x32xf32, #tpu.memory_space<vmem>>, vector<1x8x32xf32>,
    %c0_96 = arith.constant 0 : index
    %c0_97 = arith.constant 0 : index
    %c0_98 = arith.constant 0 : index
    %316 = vector.load %arg7[%c0_96, %c0_97, %c0_98] : memref<4x8x32xf32, #tpu.memory_space<vmem>>, vector<1x8x32xf32>
    %317 = vector.shape_cast %316 : vector<1x8x32xf32> to vector<8x32xf32>
    %318 = vector.shape_cast %312 : vector<8x32xf32> to vector<1x8x32xf32>
    tpu.vector_store %arg7[%c0_96, %c0_97, %c0_98], %318 {strides = array<i32>} : memref<4x8x32xf32, #tpu.memory_space<vmem>>, vector<1x8x32xf32>,
    %c0_99 = arith.constant 0 : index
    %c0_100 = arith.constant 0 : index
    %319 = vector.load %arg8[%c0_99, %c0_100] : memref<8x32xf32, #tpu.memory_space<vmem>>, vector<8x32xf32>
    tpu.vector_store %arg8[%c0_99, %c0_100], %276 {strides = array<i32>} : memref<8x32xf32, #tpu.memory_space<vmem>>, vector<8x32xf32>,
    %c0_101 = arith.constant 0 : index
    %c0_102 = arith.constant 0 : index
    %320 = vector.load %arg9[%c0_101, %c0_102] : memref<8x32xf32, #tpu.memory_space<vmem>>, vector<8x32xf32>
    tpu.vector_store %arg9[%c0_101, %c0_102], %279 {strides = array<i32>} : memref<8x32xf32, #tpu.memory_space<vmem>>, vector<8x32xf32>,
    %c0_103 = arith.constant 0 : index
    %c0_104 = arith.constant 0 : index
    %321 = vector.load %arg10[%c0_103, %c0_104] : memref<8x32xf32, #tpu.memory_space<vmem>>, vector<8x32xf32>
    tpu.vector_store %arg10[%c0_103, %c0_104], %305 {strides = array<i32>} : memref<8x32xf32, #tpu.memory_space<vmem>>, vector<8x32xf32>,
    %c0_105 = arith.constant 0 : index
    %c0_106 = arith.constant 0 : index
    %322 = vector.load %arg11[%c0_105, %c0_106] : memref<8x32xf32, #tpu.memory_space<vmem>>, vector<8x32xf32>
    tpu.vector_store %arg11[%c0_105, %c0_106], %308 {strides = array<i32>} : memref<8x32xf32, #tpu.memory_space<vmem>>, vector<8x32xf32>,
    return
  }
  func.func @transform_0(%arg0: i32) -> (i32, i32, i32, i32) {
    %c0_i32 = arith.constant 0 : i32
    %c0_i32_0 = arith.constant 0 : i32
    %c0_i32_1 = arith.constant 0 : i32
    %c0_i32_2 = arith.constant 0 : i32
    return %c0_i32, %arg0, %c0_i32_0, %c0_i32_1 : i32, i32, i32, i32
  }
  func.func @transform_1(%arg0: i32) -> (i32, i32, i32, i32) {
    %c0_i32 = arith.constant 0 : i32
    %0 = arith.subi %c0_i32, %arg0 : i32
    %c1_i32 = arith.constant 1 : i32
    %c0_i32_0 = arith.constant 0 : i32
    %c0_i32_1 = arith.constant 0 : i32
    %c0_i32_2 = arith.constant 0 : i32
    return %c1_i32, %0, %c0_i32_0, %c0_i32_1 : i32, i32, i32, i32
  }
  func.func @transform_2(%arg0: i32) -> (i32, i32, i32) {
    %c0_i32 = arith.constant 0 : i32
    %c0_i32_0 = arith.constant 0 : i32
    %c0_i32_1 = arith.constant 0 : i32
    %c0_i32_2 = arith.constant 0 : i32
    return %c0_i32, %c0_i32_0, %c0_i32_1 : i32, i32, i32
  }
  func.func @transform_3(%arg0: i32) -> (i32, i32, i32) {
    %c1_i32 = arith.constant 1 : i32
    %c0_i32 = arith.constant 0 : i32
    %c0_i32_0 = arith.constant 0 : i32
    %c0_i32_1 = arith.constant 0 : i32
    return %c1_i32, %c0_i32, %c0_i32_0 : i32, i32, i32
  }
  func.func @transform_4(%arg0: i32) -> (i32, i32) {
    %c0_i32 = arith.constant 0 : i32
    %c0_i32_0 = arith.constant 0 : i32
    %c0_i32_1 = arith.constant 0 : i32
    return %c0_i32, %c0_i32_0 : i32, i32
  }
  func.func @transform_5(%arg0: i32) -> (i32, i32, i32) {
    %c0_i32 = arith.constant 0 : i32
    %c0_i32_0 = arith.constant 0 : i32
    %c0_i32_1 = arith.constant 0 : i32
    return %arg0, %c0_i32, %c0_i32_0 : i32, i32, i32
  }
  func.func @transform_6(%arg0: i32) -> (i32, i32, i32) {
    %c0_i32 = arith.constant 0 : i32
    %0 = arith.subi %c0_i32, %arg0 : i32
    %c0_i32_0 = arith.constant 0 : i32
    %c0_i32_1 = arith.constant 0 : i32
    %c0_i32_2 = arith.constant 0 : i32
    return %0, %c0_i32_0, %c0_i32_1 : i32, i32, i32
  }
}

module attributes {stable_mosaic.version = 11 : i64} {
  func.func @_bilstm_kernel(%arg0: i32, %arg1: memref<1x2x8x128xbf16, #tpu.memory_space<vmem>>, %arg2: memref<1x2x8x128xbf16, #tpu.memory_space<vmem>>, %arg3: memref<1x32x128xbf16, #tpu.memory_space<vmem>>, %arg4: memref<1x32x128xbf16, #tpu.memory_space<vmem>>, %arg5: memref<8x1xi32, #tpu.memory_space<vmem>>, %arg6: memref<2x8x32xf32, #tpu.memory_space<vmem>>, %arg7: memref<2x8x32xf32, #tpu.memory_space<vmem>>, %arg8: memref<8x32xf32, #tpu.memory_space<vmem>>, %arg9: memref<8x32xf32, #tpu.memory_space<vmem>>, %arg10: memref<8x32xf32, #tpu.memory_space<vmem>>, %arg11: memref<8x32xf32, #tpu.memory_space<vmem>>) attributes {dimension_semantics = [#tpu.dimension_semantics<arbitrary>], iteration_bounds = array<i64: 1>, scalar_prefetch = 0 : i64, scratch_operands = 4 : i64, tpu.core_type = #tpu.core_type<tc>, window_params = [{transform_indices = @transform_0, window_bounds = array<i64: 1, 2, 8, 128>}, {transform_indices = @transform_1, window_bounds = array<i64: 1, 2, 8, 128>}, {transform_indices = @transform_2, window_bounds = array<i64: 1, 32, 128>}, {transform_indices = @transform_3, window_bounds = array<i64: 1, 32, 128>}, {pipeline_mode = #tpu.pipeline_mode<synchronous>, transform_indices = @transform_4, window_bounds = array<i64: 8, 1>}, {transform_indices = @transform_5, window_bounds = array<i64: 2, 8, 32>}, {transform_indices = @transform_6, window_bounds = array<i64: 2, 8, 32>}]} {
    %c0_i32 = arith.constant 0 : i32
    %0 = arith.cmpi eq, %arg0, %c0_i32 : i32
    %1 = arith.extui %0 : i1 to i32
    %c0_i32_0 = arith.constant 0 : i32
    %2 = arith.cmpi ne, %1, %c0_i32_0 : i32
    scf.if %2 {
      %cst_67 = arith.constant 0.000000e+00 : f32
      %171 = vector.broadcast %cst_67 : f32 to vector<8x32xf32>
      %c0_68 = arith.constant 0 : index
      %c0_69 = arith.constant 0 : index
      %172 = vector.load %arg8[%c0_68, %c0_69] : memref<8x32xf32, #tpu.memory_space<vmem>>, vector<8x32xf32>
      tpu.vector_store %arg8[%c0_68, %c0_69], %171 {strides = array<i32>} : memref<8x32xf32, #tpu.memory_space<vmem>>, vector<8x32xf32>,
      %cst_70 = arith.constant 0.000000e+00 : f32
      %173 = vector.broadcast %cst_70 : f32 to vector<8x32xf32>
      %c0_71 = arith.constant 0 : index
      %c0_72 = arith.constant 0 : index
      %174 = vector.load %arg9[%c0_71, %c0_72] : memref<8x32xf32, #tpu.memory_space<vmem>>, vector<8x32xf32>
      tpu.vector_store %arg9[%c0_71, %c0_72], %173 {strides = array<i32>} : memref<8x32xf32, #tpu.memory_space<vmem>>, vector<8x32xf32>,
      %cst_73 = arith.constant 0.000000e+00 : f32
      %175 = vector.broadcast %cst_73 : f32 to vector<8x32xf32>
      %c0_74 = arith.constant 0 : index
      %c0_75 = arith.constant 0 : index
      %176 = vector.load %arg10[%c0_74, %c0_75] : memref<8x32xf32, #tpu.memory_space<vmem>>, vector<8x32xf32>
      tpu.vector_store %arg10[%c0_74, %c0_75], %175 {strides = array<i32>} : memref<8x32xf32, #tpu.memory_space<vmem>>, vector<8x32xf32>,
      %cst_76 = arith.constant 0.000000e+00 : f32
      %177 = vector.broadcast %cst_76 : f32 to vector<8x32xf32>
      %c0_77 = arith.constant 0 : index
      %c0_78 = arith.constant 0 : index
      %178 = vector.load %arg11[%c0_77, %c0_78] : memref<8x32xf32, #tpu.memory_space<vmem>>, vector<8x32xf32>
      tpu.vector_store %arg11[%c0_77, %c0_78], %177 {strides = array<i32>} : memref<8x32xf32, #tpu.memory_space<vmem>>, vector<8x32xf32>,
    } else {
    }
    %c0 = arith.constant 0 : index
    %c0_1 = arith.constant 0 : index
    %c0_2 = arith.constant 0 : index
    %3 = vector.load %arg3[%c0, %c0_1, %c0_2] : memref<1x32x128xbf16, #tpu.memory_space<vmem>>, vector<1x32x128xbf16>
    %4 = vector.shape_cast %3 : vector<1x32x128xbf16> to vector<32x128xbf16>
    %c0_3 = arith.constant 0 : index
    %c0_4 = arith.constant 0 : index
    %c0_5 = arith.constant 0 : index
    %5 = vector.load %arg4[%c0_3, %c0_4, %c0_5] : memref<1x32x128xbf16, #tpu.memory_space<vmem>>, vector<1x32x128xbf16>
    %6 = vector.shape_cast %5 : vector<1x32x128xbf16> to vector<32x128xbf16>
    %c0_6 = arith.constant 0 : index
    %c0_7 = arith.constant 0 : index
    %7 = vector.load %arg5[%c0_6, %c0_7] : memref<8x1xi32, #tpu.memory_space<vmem>>, vector<8x1xi32>
    %c2_i32 = arith.constant 2 : i32
    %8 = arith.muli %arg0, %c2_i32 : i32
    %c0_i32_8 = arith.constant 0 : i32
    %9 = arith.subi %c0_i32_8, %arg0 : i32
    %c2_i32_9 = arith.constant 2 : i32
    %10 = arith.muli %9, %c2_i32_9 : i32
    %c0_10 = arith.constant 0 : index
    %c0_11 = arith.constant 0 : index
    %11 = vector.load %arg8[%c0_10, %c0_11] : memref<8x32xf32, #tpu.memory_space<vmem>>, vector<8x32xf32>
    %c0_12 = arith.constant 0 : index
    %c0_13 = arith.constant 0 : index
    %12 = vector.load %arg9[%c0_12, %c0_13] : memref<8x32xf32, #tpu.memory_space<vmem>>, vector<8x32xf32>
    %c0_14 = arith.constant 0 : index
    %c0_15 = arith.constant 0 : index
    %13 = vector.load %arg10[%c0_14, %c0_15] : memref<8x32xf32, #tpu.memory_space<vmem>>, vector<8x32xf32>
    %c0_16 = arith.constant 0 : index
    %c0_17 = arith.constant 0 : index
    %14 = vector.load %arg11[%c0_16, %c0_17] : memref<8x32xf32, #tpu.memory_space<vmem>>, vector<8x32xf32>
    %c0_18 = arith.constant 0 : index
    %c0_19 = arith.constant 0 : index
    %c0_20 = arith.constant 0 : index
    %c0_21 = arith.constant 0 : index
    %15 = vector.load %arg1[%c0_18, %c0_19, %c0_20, %c0_21] : memref<1x2x8x128xbf16, #tpu.memory_space<vmem>>, vector<1x1x8x128xbf16>
    %16 = vector.shape_cast %15 : vector<1x1x8x128xbf16> to vector<8x128xbf16>
    %17 = arith.extf %16 : vector<8x128xbf16> to vector<8x128xf32>
    %18 = arith.truncf %11 : vector<8x32xf32> to vector<8x32xbf16>
    %cst = arith.constant dense<0.000000e+00> : vector<8x128xf32>
    %19 = tpu.matmul %18, %4, %cst {dimension_numbers = #tpu.dot_dimension_numbers<[1], [0], [0], [1], [0, 0, 1, 1], [], []>} : vector<8x32xbf16>, vector<32x128xbf16>, vector<8x128xf32> -> vector<8x128xf32>
    %20 = arith.addf %17, %19 : vector<8x128xf32>
    %c0_22 = arith.constant 0 : index
    %c1 = arith.constant 1 : index
    %c0_23 = arith.constant 0 : index
    %c0_24 = arith.constant 0 : index
    %21 = vector.load %arg2[%c0_22, %c1, %c0_23, %c0_24] : memref<1x2x8x128xbf16, #tpu.memory_space<vmem>>, vector<1x1x8x128xbf16>
    %22 = vector.shape_cast %21 : vector<1x1x8x128xbf16> to vector<8x128xbf16>
    %23 = arith.extf %22 : vector<8x128xbf16> to vector<8x128xf32>
    %24 = arith.truncf %13 : vector<8x32xf32> to vector<8x32xbf16>
    %cst_25 = arith.constant dense<0.000000e+00> : vector<8x128xf32>
    %25 = tpu.matmul %24, %6, %cst_25 {dimension_numbers = #tpu.dot_dimension_numbers<[1], [0], [0], [1], [0, 0, 1, 1], [], []>} : vector<8x32xbf16>, vector<32x128xbf16>, vector<8x128xf32> -> vector<8x128xf32>
    %26 = arith.addf %23, %25 : vector<8x128xf32>
    %c0_i32_26 = arith.constant 0 : i32
    %27 = arith.addi %8, %c0_i32_26 : i32
    %28 = vector.extract_strided_slice %20 {offsets = [0, 0], sizes = [8, 96], strides = [1, 1]} : vector<8x128xf32> to vector<8x96xf32>
    %29 = arith.negf %28 : vector<8x96xf32>
    %30 = math.exp %29 : vector<8x96xf32>
    %cst_27 = arith.constant 1.000000e+00 : f32
    %31 = vector.broadcast %cst_27 : f32 to vector<8x96xf32>
    %32 = arith.addf %31, %30 : vector<8x96xf32>
    %33 = arith.divf %31, %32 : vector<8x96xf32>
    %34 = vector.extract_strided_slice %33 {offsets = [0, 0], sizes = [8, 32], strides = [1, 1]} : vector<8x96xf32> to vector<8x32xf32>
    %35 = vector.extract_strided_slice %33 {offsets = [0, 32], sizes = [8, 32], strides = [1, 1]} : vector<8x96xf32> to vector<8x32xf32>
    %36 = vector.extract_strided_slice %33 {offsets = [0, 64], sizes = [8, 32], strides = [1, 1]} : vector<8x96xf32> to vector<8x32xf32>
    %37 = vector.extract_strided_slice %20 {offsets = [0, 96], sizes = [8, 32], strides = [1, 1]} : vector<8x128xf32> to vector<8x32xf32>
    %38 = math.tanh %37 : vector<8x32xf32>
    %39 = arith.mulf %35, %12 : vector<8x32xf32>
    %40 = arith.mulf %34, %38 : vector<8x32xf32>
    %41 = arith.addf %39, %40 : vector<8x32xf32>
    %42 = math.tanh %41 : vector<8x32xf32>
    %43 = arith.mulf %36, %42 : vector<8x32xf32>
    %44 = vector.broadcast %27 : i32 to vector<8x1xi32>
    %45 = arith.cmpi sgt, %7, %44 : vector<8x1xi32>
    %46 = vector.shape_cast %45 : vector<8x1xi1> to vector<8x1xi1>
    %47 = vector.broadcast %46 : vector<8x1xi1> to vector<8x32xi1>
    %48 = arith.select %47, %43, %11 : vector<8x32xi1>, vector<8x32xf32>
    %49 = vector.shape_cast %45 : vector<8x1xi1> to vector<8x1xi1>
    %50 = vector.broadcast %49 : vector<8x1xi1> to vector<8x32xi1>
    %51 = arith.select %50, %41, %12 : vector<8x32xi1>, vector<8x32xf32>
    %cst_28 = arith.constant 0.000000e+00 : f32
    %52 = vector.shape_cast %45 : vector<8x1xi1> to vector<8x1xi1>
    %53 = vector.broadcast %52 : vector<8x1xi1> to vector<8x32xi1>
    %54 = vector.broadcast %cst_28 : f32 to vector<8x32xf32>
    %55 = arith.select %53, %43, %54 : vector<8x32xi1>, vector<8x32xf32>
    %c1_i32 = arith.constant 1 : i32
    %56 = arith.addi %10, %c1_i32 : i32
    %57 = vector.extract_strided_slice %26 {offsets = [0, 0], sizes = [8, 96], strides = [1, 1]} : vector<8x128xf32> to vector<8x96xf32>
    %58 = arith.negf %57 : vector<8x96xf32>
    %59 = math.exp %58 : vector<8x96xf32>
    %cst_29 = arith.constant 1.000000e+00 : f32
    %60 = vector.broadcast %cst_29 : f32 to vector<8x96xf32>
    %61 = arith.addf %60, %59 : vector<8x96xf32>
    %62 = arith.divf %60, %61 : vector<8x96xf32>
    %63 = vector.extract_strided_slice %62 {offsets = [0, 0], sizes = [8, 32], strides = [1, 1]} : vector<8x96xf32> to vector<8x32xf32>
    %64 = vector.extract_strided_slice %62 {offsets = [0, 32], sizes = [8, 32], strides = [1, 1]} : vector<8x96xf32> to vector<8x32xf32>
    %65 = vector.extract_strided_slice %62 {offsets = [0, 64], sizes = [8, 32], strides = [1, 1]} : vector<8x96xf32> to vector<8x32xf32>
    %66 = vector.extract_strided_slice %26 {offsets = [0, 96], sizes = [8, 32], strides = [1, 1]} : vector<8x128xf32> to vector<8x32xf32>
    %67 = math.tanh %66 : vector<8x32xf32>
    %68 = arith.mulf %64, %14 : vector<8x32xf32>
    %69 = arith.mulf %63, %67 : vector<8x32xf32>
    %70 = arith.addf %68, %69 : vector<8x32xf32>
    %71 = math.tanh %70 : vector<8x32xf32>
    %72 = arith.mulf %65, %71 : vector<8x32xf32>
    %73 = vector.broadcast %56 : i32 to vector<8x1xi32>
    %74 = arith.cmpi sgt, %7, %73 : vector<8x1xi32>
    %75 = vector.shape_cast %74 : vector<8x1xi1> to vector<8x1xi1>
    %76 = vector.broadcast %75 : vector<8x1xi1> to vector<8x32xi1>
    %77 = arith.select %76, %72, %13 : vector<8x32xi1>, vector<8x32xf32>
    %78 = vector.shape_cast %74 : vector<8x1xi1> to vector<8x1xi1>
    %79 = vector.broadcast %78 : vector<8x1xi1> to vector<8x32xi1>
    %80 = arith.select %79, %70, %14 : vector<8x32xi1>, vector<8x32xf32>
    %cst_30 = arith.constant 0.000000e+00 : f32
    %81 = vector.shape_cast %74 : vector<8x1xi1> to vector<8x1xi1>
    %82 = vector.broadcast %81 : vector<8x1xi1> to vector<8x32xi1>
    %83 = vector.broadcast %cst_30 : f32 to vector<8x32xf32>
    %84 = arith.select %82, %72, %83 : vector<8x32xi1>, vector<8x32xf32>
    %c0_31 = arith.constant 0 : index
    %c0_32 = arith.constant 0 : index
    %c0_33 = arith.constant 0 : index
    %85 = vector.load %arg6[%c0_31, %c0_32, %c0_33] : memref<2x8x32xf32, #tpu.memory_space<vmem>>, vector<1x8x32xf32>
    %86 = vector.shape_cast %85 : vector<1x8x32xf32> to vector<8x32xf32>
    %87 = vector.shape_cast %55 : vector<8x32xf32> to vector<1x8x32xf32>
    tpu.vector_store %arg6[%c0_31, %c0_32, %c0_33], %87 {strides = array<i32>} : memref<2x8x32xf32, #tpu.memory_space<vmem>>, vector<1x8x32xf32>,
    %c1_34 = arith.constant 1 : index
    %c0_35 = arith.constant 0 : index
    %c0_36 = arith.constant 0 : index
    %88 = vector.load %arg7[%c1_34, %c0_35, %c0_36] : memref<2x8x32xf32, #tpu.memory_space<vmem>>, vector<1x8x32xf32>
    %89 = vector.shape_cast %88 : vector<1x8x32xf32> to vector<8x32xf32>
    %90 = vector.shape_cast %84 : vector<8x32xf32> to vector<1x8x32xf32>
    tpu.vector_store %arg7[%c1_34, %c0_35, %c0_36], %90 {strides = array<i32>} : memref<2x8x32xf32, #tpu.memory_space<vmem>>, vector<1x8x32xf32>,
    %c0_37 = arith.constant 0 : index
    %c1_38 = arith.constant 1 : index
    %c0_39 = arith.constant 0 : index
    %c0_40 = arith.constant 0 : index
    %91 = vector.load %arg1[%c0_37, %c1_38, %c0_39, %c0_40] : memref<1x2x8x128xbf16, #tpu.memory_space<vmem>>, vector<1x1x8x128xbf16>
    %92 = vector.shape_cast %91 : vector<1x1x8x128xbf16> to vector<8x128xbf16>
    %93 = arith.extf %92 : vector<8x128xbf16> to vector<8x128xf32>
    %94 = arith.truncf %48 : vector<8x32xf32> to vector<8x32xbf16>
    %cst_41 = arith.constant dense<0.000000e+00> : vector<8x128xf32>
    %95 = tpu.matmul %94, %4, %cst_41 {dimension_numbers = #tpu.dot_dimension_numbers<[1], [0], [0], [1], [0, 0, 1, 1], [], []>} : vector<8x32xbf16>, vector<32x128xbf16>, vector<8x128xf32> -> vector<8x128xf32>
    %96 = arith.addf %93, %95 : vector<8x128xf32>
    %c0_42 = arith.constant 0 : index
    %c0_43 = arith.constant 0 : index
    %c0_44 = arith.constant 0 : index
    %c0_45 = arith.constant 0 : index
    %97 = vector.load %arg2[%c0_42, %c0_43, %c0_44, %c0_45] : memref<1x2x8x128xbf16, #tpu.memory_space<vmem>>, vector<1x1x8x128xbf16>
    %98 = vector.shape_cast %97 : vector<1x1x8x128xbf16> to vector<8x128xbf16>
    %99 = arith.extf %98 : vector<8x128xbf16> to vector<8x128xf32>
    %100 = arith.truncf %77 : vector<8x32xf32> to vector<8x32xbf16>
    %cst_46 = arith.constant dense<0.000000e+00> : vector<8x128xf32>
    %101 = tpu.matmul %100, %6, %cst_46 {dimension_numbers = #tpu.dot_dimension_numbers<[1], [0], [0], [1], [0, 0, 1, 1], [], []>} : vector<8x32xbf16>, vector<32x128xbf16>, vector<8x128xf32> -> vector<8x128xf32>
    %102 = arith.addf %99, %101 : vector<8x128xf32>
    %c1_i32_47 = arith.constant 1 : i32
    %103 = arith.addi %8, %c1_i32_47 : i32
    %104 = vector.extract_strided_slice %96 {offsets = [0, 0], sizes = [8, 96], strides = [1, 1]} : vector<8x128xf32> to vector<8x96xf32>
    %105 = arith.negf %104 : vector<8x96xf32>
    %106 = math.exp %105 : vector<8x96xf32>
    %cst_48 = arith.constant 1.000000e+00 : f32
    %107 = vector.broadcast %cst_48 : f32 to vector<8x96xf32>
    %108 = arith.addf %107, %106 : vector<8x96xf32>
    %109 = arith.divf %107, %108 : vector<8x96xf32>
    %110 = vector.extract_strided_slice %109 {offsets = [0, 0], sizes = [8, 32], strides = [1, 1]} : vector<8x96xf32> to vector<8x32xf32>
    %111 = vector.extract_strided_slice %109 {offsets = [0, 32], sizes = [8, 32], strides = [1, 1]} : vector<8x96xf32> to vector<8x32xf32>
    %112 = vector.extract_strided_slice %109 {offsets = [0, 64], sizes = [8, 32], strides = [1, 1]} : vector<8x96xf32> to vector<8x32xf32>
    %113 = vector.extract_strided_slice %96 {offsets = [0, 96], sizes = [8, 32], strides = [1, 1]} : vector<8x128xf32> to vector<8x32xf32>
    %114 = math.tanh %113 : vector<8x32xf32>
    %115 = arith.mulf %111, %51 : vector<8x32xf32>
    %116 = arith.mulf %110, %114 : vector<8x32xf32>
    %117 = arith.addf %115, %116 : vector<8x32xf32>
    %118 = math.tanh %117 : vector<8x32xf32>
    %119 = arith.mulf %112, %118 : vector<8x32xf32>
    %120 = vector.broadcast %103 : i32 to vector<8x1xi32>
    %121 = arith.cmpi sgt, %7, %120 : vector<8x1xi32>
    %122 = vector.shape_cast %121 : vector<8x1xi1> to vector<8x1xi1>
    %123 = vector.broadcast %122 : vector<8x1xi1> to vector<8x32xi1>
    %124 = arith.select %123, %119, %48 : vector<8x32xi1>, vector<8x32xf32>
    %125 = vector.shape_cast %121 : vector<8x1xi1> to vector<8x1xi1>
    %126 = vector.broadcast %125 : vector<8x1xi1> to vector<8x32xi1>
    %127 = arith.select %126, %117, %51 : vector<8x32xi1>, vector<8x32xf32>
    %cst_49 = arith.constant 0.000000e+00 : f32
    %128 = vector.shape_cast %121 : vector<8x1xi1> to vector<8x1xi1>
    %129 = vector.broadcast %128 : vector<8x1xi1> to vector<8x32xi1>
    %130 = vector.broadcast %cst_49 : f32 to vector<8x32xf32>
    %131 = arith.select %129, %119, %130 : vector<8x32xi1>, vector<8x32xf32>
    %c0_i32_50 = arith.constant 0 : i32
    %132 = arith.addi %10, %c0_i32_50 : i32
    %133 = vector.extract_strided_slice %102 {offsets = [0, 0], sizes = [8, 96], strides = [1, 1]} : vector<8x128xf32> to vector<8x96xf32>
    %134 = arith.negf %133 : vector<8x96xf32>
    %135 = math.exp %134 : vector<8x96xf32>
    %cst_51 = arith.constant 1.000000e+00 : f32
    %136 = vector.broadcast %cst_51 : f32 to vector<8x96xf32>
    %137 = arith.addf %136, %135 : vector<8x96xf32>
    %138 = arith.divf %136, %137 : vector<8x96xf32>
    %139 = vector.extract_strided_slice %138 {offsets = [0, 0], sizes = [8, 32], strides = [1, 1]} : vector<8x96xf32> to vector<8x32xf32>
    %140 = vector.extract_strided_slice %138 {offsets = [0, 32], sizes = [8, 32], strides = [1, 1]} : vector<8x96xf32> to vector<8x32xf32>
    %141 = vector.extract_strided_slice %138 {offsets = [0, 64], sizes = [8, 32], strides = [1, 1]} : vector<8x96xf32> to vector<8x32xf32>
    %142 = vector.extract_strided_slice %102 {offsets = [0, 96], sizes = [8, 32], strides = [1, 1]} : vector<8x128xf32> to vector<8x32xf32>
    %143 = math.tanh %142 : vector<8x32xf32>
    %144 = arith.mulf %140, %80 : vector<8x32xf32>
    %145 = arith.mulf %139, %143 : vector<8x32xf32>
    %146 = arith.addf %144, %145 : vector<8x32xf32>
    %147 = math.tanh %146 : vector<8x32xf32>
    %148 = arith.mulf %141, %147 : vector<8x32xf32>
    %149 = vector.broadcast %132 : i32 to vector<8x1xi32>
    %150 = arith.cmpi sgt, %7, %149 : vector<8x1xi32>
    %151 = vector.shape_cast %150 : vector<8x1xi1> to vector<8x1xi1>
    %152 = vector.broadcast %151 : vector<8x1xi1> to vector<8x32xi1>
    %153 = arith.select %152, %148, %77 : vector<8x32xi1>, vector<8x32xf32>
    %154 = vector.shape_cast %150 : vector<8x1xi1> to vector<8x1xi1>
    %155 = vector.broadcast %154 : vector<8x1xi1> to vector<8x32xi1>
    %156 = arith.select %155, %146, %80 : vector<8x32xi1>, vector<8x32xf32>
    %cst_52 = arith.constant 0.000000e+00 : f32
    %157 = vector.shape_cast %150 : vector<8x1xi1> to vector<8x1xi1>
    %158 = vector.broadcast %157 : vector<8x1xi1> to vector<8x32xi1>
    %159 = vector.broadcast %cst_52 : f32 to vector<8x32xf32>
    %160 = arith.select %158, %148, %159 : vector<8x32xi1>, vector<8x32xf32>
    %c1_53 = arith.constant 1 : index
    %c0_54 = arith.constant 0 : index
    %c0_55 = arith.constant 0 : index
    %161 = vector.load %arg6[%c1_53, %c0_54, %c0_55] : memref<2x8x32xf32, #tpu.memory_space<vmem>>, vector<1x8x32xf32>
    %162 = vector.shape_cast %161 : vector<1x8x32xf32> to vector<8x32xf32>
    %163 = vector.shape_cast %131 : vector<8x32xf32> to vector<1x8x32xf32>
    tpu.vector_store %arg6[%c1_53, %c0_54, %c0_55], %163 {strides = array<i32>} : memref<2x8x32xf32, #tpu.memory_space<vmem>>, vector<1x8x32xf32>,
    %c0_56 = arith.constant 0 : index
    %c0_57 = arith.constant 0 : index
    %c0_58 = arith.constant 0 : index
    %164 = vector.load %arg7[%c0_56, %c0_57, %c0_58] : memref<2x8x32xf32, #tpu.memory_space<vmem>>, vector<1x8x32xf32>
    %165 = vector.shape_cast %164 : vector<1x8x32xf32> to vector<8x32xf32>
    %166 = vector.shape_cast %160 : vector<8x32xf32> to vector<1x8x32xf32>
    tpu.vector_store %arg7[%c0_56, %c0_57, %c0_58], %166 {strides = array<i32>} : memref<2x8x32xf32, #tpu.memory_space<vmem>>, vector<1x8x32xf32>,
    %c0_59 = arith.constant 0 : index
    %c0_60 = arith.constant 0 : index
    %167 = vector.load %arg8[%c0_59, %c0_60] : memref<8x32xf32, #tpu.memory_space<vmem>>, vector<8x32xf32>
    tpu.vector_store %arg8[%c0_59, %c0_60], %124 {strides = array<i32>} : memref<8x32xf32, #tpu.memory_space<vmem>>, vector<8x32xf32>,
    %c0_61 = arith.constant 0 : index
    %c0_62 = arith.constant 0 : index
    %168 = vector.load %arg9[%c0_61, %c0_62] : memref<8x32xf32, #tpu.memory_space<vmem>>, vector<8x32xf32>
    tpu.vector_store %arg9[%c0_61, %c0_62], %127 {strides = array<i32>} : memref<8x32xf32, #tpu.memory_space<vmem>>, vector<8x32xf32>,
    %c0_63 = arith.constant 0 : index
    %c0_64 = arith.constant 0 : index
    %169 = vector.load %arg10[%c0_63, %c0_64] : memref<8x32xf32, #tpu.memory_space<vmem>>, vector<8x32xf32>
    tpu.vector_store %arg10[%c0_63, %c0_64], %153 {strides = array<i32>} : memref<8x32xf32, #tpu.memory_space<vmem>>, vector<8x32xf32>,
    %c0_65 = arith.constant 0 : index
    %c0_66 = arith.constant 0 : index
    %170 = vector.load %arg11[%c0_65, %c0_66] : memref<8x32xf32, #tpu.memory_space<vmem>>, vector<8x32xf32>
    tpu.vector_store %arg11[%c0_65, %c0_66], %156 {strides = array<i32>} : memref<8x32xf32, #tpu.memory_space<vmem>>, vector<8x32xf32>,
    return
  }
  func.func @transform_0(%arg0: i32) -> (i32, i32, i32, i32) {
    %c0_i32 = arith.constant 0 : i32
    %c0_i32_0 = arith.constant 0 : i32
    %c0_i32_1 = arith.constant 0 : i32
    %c0_i32_2 = arith.constant 0 : i32
    return %c0_i32, %arg0, %c0_i32_0, %c0_i32_1 : i32, i32, i32, i32
  }
  func.func @transform_1(%arg0: i32) -> (i32, i32, i32, i32) {
    %c0_i32 = arith.constant 0 : i32
    %0 = arith.subi %c0_i32, %arg0 : i32
    %c1_i32 = arith.constant 1 : i32
    %c0_i32_0 = arith.constant 0 : i32
    %c0_i32_1 = arith.constant 0 : i32
    %c0_i32_2 = arith.constant 0 : i32
    return %c1_i32, %0, %c0_i32_0, %c0_i32_1 : i32, i32, i32, i32
  }
  func.func @transform_2(%arg0: i32) -> (i32, i32, i32) {
    %c0_i32 = arith.constant 0 : i32
    %c0_i32_0 = arith.constant 0 : i32
    %c0_i32_1 = arith.constant 0 : i32
    %c0_i32_2 = arith.constant 0 : i32
    return %c0_i32, %c0_i32_0, %c0_i32_1 : i32, i32, i32
  }
  func.func @transform_3(%arg0: i32) -> (i32, i32, i32) {
    %c1_i32 = arith.constant 1 : i32
    %c0_i32 = arith.constant 0 : i32
    %c0_i32_0 = arith.constant 0 : i32
    %c0_i32_1 = arith.constant 0 : i32
    return %c1_i32, %c0_i32, %c0_i32_0 : i32, i32, i32
  }
  func.func @transform_4(%arg0: i32) -> (i32, i32) {
    %c0_i32 = arith.constant 0 : i32
    %c0_i32_0 = arith.constant 0 : i32
    %c0_i32_1 = arith.constant 0 : i32
    return %c0_i32, %c0_i32_0 : i32, i32
  }
  func.func @transform_5(%arg0: i32) -> (i32, i32, i32) {
    %c0_i32 = arith.constant 0 : i32
    %c0_i32_0 = arith.constant 0 : i32
    %c0_i32_1 = arith.constant 0 : i32
    return %arg0, %c0_i32, %c0_i32_0 : i32, i32, i32
  }
  func.func @transform_6(%arg0: i32) -> (i32, i32, i32) {
    %c0_i32 = arith.constant 0 : i32
    %0 = arith.subi %c0_i32, %arg0 : i32
    %c0_i32_0 = arith.constant 0 : i32
    %c0_i32_1 = arith.constant 0 : i32
    %c0_i32_2 = arith.constant 0 : i32
    return %0, %c0_i32_0, %c0_i32_1 : i32, i32, i32
  }
}

</mosaic_0001>

<llo_original>
// kernel: _lambda_.12
$region0: #{_lambda_.12}
  #allocation0 [shape = 'u32[]', space=smem, size = 0x4, offset = 0x4, fixed_abs, tag = 'smem constant byte address 0x4 - core index']
  #allocation1 [shape = 'u32[144,128]{1,0:T(1,128)}', space=vmem, size = 0x12000, scoped, tag = 'internal scratch']
  #allocation2 [shape = 'f32[8,32]{1,0:T(8,128)}', space=vmem, size = 0x1000, scoped, tag = 'scratch operand']
  #allocation3 [shape = 'f32[8,32]{1,0:T(8,128)}', space=vmem, size = 0x1000, scoped, tag = 'scratch operand']
  #allocation4 [shape = 'f32[8,32]{1,0:T(8,128)}', space=vmem, size = 0x1000, scoped, tag = 'scratch operand']
  #allocation5 [shape = 'f32[8,32]{1,0:T(8,128)}', space=vmem, size = 0x1000, scoped, tag = 'scratch operand']
  %s0 = inlined_call_operand.vmem [shape: bf16[2,8,8,128], index: 0, kind: input, shape index: {}, may-alias: {0,1}]
  %s1 = inlined_call_operand.vmem [shape: bf16[2,8,8,128], index: 1, kind: input, shape index: {}, may-alias: {0,1}]
  %s2 = inlined_call_operand.vmem [shape: bf16[2,32,128], index: 2, kind: input, shape index: {}, may-alias: {2,3}]
  %s3 = inlined_call_operand.vmem [shape: bf16[2,32,128], index: 3, kind: input, shape index: {}, may-alias: {2,3}]
  %s4 = inlined_call_operand.vmem [shape: s32[8,1], index: 4, kind: input, shape index: {}]
  %s5 = inlined_call_operand.vmem [shape: f32[8,8,32], index: 5, kind: output, shape index: {0}]
  %s6 = inlined_call_operand.vmem [shape: f32[8,8,32], index: 6, kind: output, shape index: {1}]
  %7 = xla_tuple %s5, %s6
  %s8 = sld [smem:[#allocation0]]
  $region42: #{_lambda_.12} parent=0
    _
  %s10 = ssub.s32 1, %s8
  %s11 = scalar_select 0, %s10, %s8
  // Predicated region
  $region2: #{_lambda_.12} parent=0 // pred_check
    _
  $region3: #{_lambda_.12} parent=0 // pred_check_branch
    %13 = sbr.rel (0) target = $region5
  $region4: #{_lambda_.12} parent=0 // pred_region
    _
  $region5: #{_lambda_.12} parent=0 // pred_fallthru
    _
  // Predicated region
  $region6: #{_lambda_.12} parent=0 // pred_check
    _
  $region7: #{_lambda_.12} parent=0 // pred_check_branch
    %15 = sbr.rel (0) target = $region9
  $region8: #{_lambda_.12} parent=0 // pred_region
    %s16 = ssub.s32 0, 0
    %s17 = smul.u32 8, %s16
    %p18 = scmp.lt.s32.totalorder %s17, 7
    %s19 = scalar_select %p18, %s17, 7
    %s20 = sadd.s32 %s19, 8
    %s21 = smul.addr %s20, 4
    %s22 = scalar_lea.vmem %s1, %s21
    %s23 = ssub.s32 0, 0
    %s24 = smul.u32 8, %s23
  $region9: #{_lambda_.12} parent=0 // pred_fallthru
    _
  // Predicated region
  $region10: #{_lambda_.12} parent=0 // pred_check
    _
  $region11: #{_lambda_.12} parent=0 // pred_check_branch
    %26 = sbr.rel (0) target = $region13
  $region12: #{_lambda_.12} parent=0 // pred_region
    _
  $region13: #{_lambda_.12} parent=0 // pred_fallthru
    _
  // Predicated region
  $region14: #{_lambda_.12} parent=0 // pred_check
    _
  $region15: #{_lambda_.12} parent=0 // pred_check_branch
    %28 = sbr.rel (0) target = $region17
  $region16: #{_lambda_.12} parent=0 // pred_region
    %s29 = scalar_lea.vmem %s3, 16
  $region17: #{_lambda_.12} parent=0 // pred_fallthru
    _
  // Predicated region
  $region18: #{_lambda_.12} parent=0 // pred_check
    _
  $region19: #{_lambda_.12} parent=0 // pred_check_branch
    %31 = sbr.rel (0) target = $region21
  $region20: #{_lambda_.12} parent=0 // pred_region
    _
  $region21: #{_lambda_.12} parent=0 // pred_fallthru
    _
  %s32 = ssub.s32 0, 0
  %s33 = smul.u32 8, %s32
  %p34 = scmp.lt.s32.totalorder %s33, 7
  %s35 = scalar_select %p34, %s33, 7
  %s36 = sadd.s32 %s35, 8
  %s37 = smul.addr %s36, 4
  %s38 = scalar_lea.vmem %s1, %s37
  %s39 = scalar_lea.vmem %s3, 16
  %s40 = ssub.s32 0, 0
  %s41 = smul.u32 8, %s40
  %p42 = scmp.lt.s32.totalorder %s41, 7
  %s43 = scalar_select %p42, %s41, 7
  %s44 = smul.addr %s43, 8
  %s45 = scalar_lea.vmem %s6, %s44
  %s46 = ssub.s32 0, 0
  %s47 = smul.u32 8, %s46
  %p48 = scmp.lt.s32.totalorder %s47, 7
  %s49 = scalar_select %p48, %s47, 7
  %s50 = sadd.s32 %s49, 8
  %s51 = smul.addr %s50, 4
  %s52 = scalar_lea.vmem %s1, %s51
  %s53 = ssub.s32 0, 0
  %s54 = smul.u32 8, %s53
  %s55 = scalar_lea.vmem %s3, 16
  %s56 = ssub.s32 0, 0
  %s57 = smul.u32 8, %s56
  %p58 = scmp.lt.s32.totalorder %s57, 7
  %s59 = scalar_select %p58, %s57, 7
  %s60 = smul.addr %s59, 8
  %s61 = scalar_lea.vmem %s6, %s60
  %s62 = ssub.s32 0, 0
  %s63 = smul.u32 8, %s62
  %p65 = scmp.eq.s32.totalorder 0, 0
  // Predicated region
  $region22: #{_lambda_.12} parent=0 // pred_check
    %p66 = pneg %p65
  $region23: #{_lambda_.12} parent=0 // pred_check_branch
    %68 = sbr.rel (%p66) target = $region25
  $region24: #{_lambda_.12} parent=0 // pred_region
    %vm69 = vcmask 261120
    %70 = vst.msk [vmem:[#allocation2] sm:$0xff] %vm69, 0.0
    %71 = vst.msk [vmem:[#allocation3] sm:$0xff] %vm69, 0.0
    %72 = vst.msk [vmem:[#allocation4] sm:$0xff] %vm69, 0.0
    %73 = vst.msk [vmem:[#allocation5] sm:$0xff] %vm69, 0.0
  $region25: #{_lambda_.12} parent=0 // pred_fallthru
    _
  %v74 = vld [vmem:[%s2] sm:$0xf]
  %v75 = vld [vmem:[%s2 + $0x4] sm:$0xf]
  %v76 = vld [vmem:[%s2 + $0x8] sm:$0xf]
  %v77 = vld [vmem:[%s2 + $0xc] sm:$0xf]
  %v78 = vld [vmem:[%s55] sm:$0xf]
  %v79 = vld [vmem:[%s55 + $0x4] sm:$0xf]
  %v80 = vld [vmem:[%s55 + $0x8] sm:$0xf]
  %v81 = vld [vmem:[%s55 + $0xc] sm:$0xf]
  %v82 = vld [vmem:[%s4] sm:$0xff]
  %s83 = smul.u32 0, 8
  %s84 = ssub.s32 0, 0
  %s85 = smul.u32 %s84, 8
  %v86 = vld [vmem:[#allocation2] sm:$0xff]
  %v87 = vld [vmem:[#allocation3] sm:$0xff]
  %v88 = vld [vmem:[#allocation4] sm:$0xff]
  %v89 = vld [vmem:[#allocation5] sm:$0xff]
  %v90 = vld [vmem:[%s0] sm:$0xf]
  %v91 = vunpack.c.l.bf16 %v90
  %v92 = vpack.c.bf16 %v86, %v86
  %v97 = vunpack.c.l.b16 %v74
  %v98 = vunpack.c.l.b16 %v75
  %v99 = vunpack.c.l.b16 %v76
  %v100 = vunpack.c.l.b16 %v77
  %v101 = vpack.c.b16 %v98, %v97
  %v102 = vpack.c.b16 %v100, %v99
  %vm105 = vcmask 261120
  %v107 = vsel %vm105, %v92, 0
  %109 = vmatprep.subr.bf16.mxu0 0
  %110 = vmatpush1.bf16.msra.mxu0 %v101
  %111 = vmatprep.subr.bf16.mxu0 0
  %112 = vmatpush1.bf16.msra.mxu0 %v102
  %113 = vmatprep.subr.bf16.mxu0 0
  %114 = vmatpush1.bf16.msra.mxu0 0
  %115 = vmatprep.subr.bf16.mxu0 0
  %116 = vmatpush1.bf16.msra.mxu0 0
  %117 = vmatprep.subr.bf16.mxu0 0
  %118 = vmatpush1.bf16.msra.mxu0 0
  %119 = vmatprep.subr.bf16.mxu0 0
  %120 = vmatpush1.bf16.msra.mxu0 0
  %121 = vmatprep.subr.bf16.mxu0 0
  %122 = vmatpush1.bf16.msra.mxu0 0
  %123 = vmatprep.subr.bf16.mxu0 0
  %124 = vmatpush1.bf16.msra.mxu0 0
  %125 = vmatprep.subr.bf16.mxu0 0
  %126 = vmatpush1.bf16.msra.mxu0 0
  %127 = vmatprep.subr.bf16.mxu0 0
  %128 = vmatpush1.bf16.msra.mxu0 0
  %129 = vmatprep.subr.bf16.mxu0 0
  %130 = vmatpush1.bf16.msra.mxu0 0
  %131 = vmatprep.subr.bf16.mxu0 0
  %132 = vmatpush1.bf16.msra.mxu0 0
  %133 = vmatprep.subr.bf16.mxu0 0
  %134 = vmatpush1.bf16.msra.mxu0 0
  %135 = vmatprep.subr.bf16.mxu0 0
  %136 = vmatpush1.bf16.msra.mxu0 0
  %137 = vmatprep.subr.bf16.mxu0 0
  %138 = vmatpush1.bf16.msra.mxu0 0
  %139 = vmatprep.subr.bf16.mxu0 0
  %140 = vmatpush1.bf16.msra.mxu0 0
  %141 = vmatprep.mubr.bf16.mxu0 0
  %142 = vmatmul.mubr.bf16.gmra.mrb[0].mxu0 %v107
  %v143 = vpop.f32.mrb[0].mxu0
  %v144 = vadd.f32 0.0, %v143
  %v145 = vpop.f32.mrb[0].mxu0
  %v146 = vpop.f32.mrb[0].mxu0
  %v147 = vpop.f32.mrb[0].mxu0
  %148 = vdwg.mxu0
  %v149 = vadd.f32 %v91, %v144
  %s150 = scalar_lea.vmem %s52, 28
  %v151 = vld [vmem:[%s150] sm:$0xf]
  %v152 = vunpack.c.l.bf16 %v151
  %v153 = vpack.c.bf16 %v88, %v88
  %v158 = vunpack.c.l.b16 %v78
  %v159 = vunpack.c.l.b16 %v79
  %v160 = vunpack.c.l.b16 %v80
  %v161 = vunpack.c.l.b16 %v81
  %v162 = vpack.c.b16 %v159, %v158
  %v163 = vpack.c.b16 %v161, %v160
  %v167 = vsel %vm105, %v153, 0
  %169 = vmatprep.subr.bf16.mxu0 0
  %170 = vmatpush1.bf16.msra.mxu0 %v162
  %171 = vmatprep.subr.bf16.mxu0 0
  %172 = vmatpush1.bf16.msra.mxu0 %v163
  %173 = vmatprep.subr.bf16.mxu0 0
  %174 = vmatpush1.bf16.msra.mxu0 0
  %175 = vmatprep.subr.bf16.mxu0 0
  %176 = vmatpush1.bf16.msra.mxu0 0
  %177 = vmatprep.subr.bf16.mxu0 0
  %178 = vmatpush1.bf16.msra.mxu0 0
  %179 = vmatprep.subr.bf16.mxu0 0
  %180 = vmatpush1.bf16.msra.mxu0 0
  %181 = vmatprep.subr.bf16.mxu0 0
  %182 = vmatpush1.bf16.msra.mxu0 0
  %183 = vmatprep.subr.bf16.mxu0 0
  %184 = vmatpush1.bf16.msra.mxu0 0
  %185 = vmatprep.subr.bf16.mxu0 0
  %186 = vmatpush1.bf16.msra.mxu0 0
  %187 = vmatprep.subr.bf16.mxu0 0
  %188 = vmatpush1.bf16.msra.mxu0 0
  %189 = vmatprep.subr.bf16.mxu0 0
  %190 = vmatpush1.bf16.msra.mxu0 0
  %191 = vmatprep.subr.bf16.mxu0 0
  %192 = vmatpush1.bf16.msra.mxu0 0
  %193 = vmatprep.subr.bf16.mxu0 0
  %194 = vmatpush1.bf16.msra.mxu0 0
  %195 = vmatprep.subr.bf16.mxu0 0
  %196 = vmatpush1.bf16.msra.mxu0 0
  %197 = vmatprep.subr.bf16.mxu0 0
  %198 = vmatpush1.bf16.msra.mxu0 0
  %199 = vmatprep.subr.bf16.mxu0 0
  %200 = vmatpush1.bf16.msra.mxu0 0
  %201 = vmatprep.mubr.bf16.mxu0 0
  %202 = vmatmul.mubr.bf16.gmra.mrb[0].mxu0 %v167
  %v203 = vpop.f32.mrb[0].mxu0
  %v204 = vadd.f32 0.0, %v203
  %v205 = vpop.f32.mrb[0].mxu0
  %v206 = vpop.f32.mrb[0].mxu0
  %v207 = vpop.f32.mrb[0].mxu0
  %208 = vdwg.mxu0
  %v209 = vadd.f32 %v152, %v204
  %v210 = vxor.u32 %v149, 2147483648
  %v211 = vmul.f32 %v210, 1.442695
  %v212 = vpow.pop %v211
  %v213 = vadd.f32 %v212, 1.0
  %v214 = vrcp.pop %v213
  %v215 = vmul.f32 1.0, %v214
  %v216 = vtanh.pop %v149
  %218 = vrot.lane.b32.xlu0 %v87, 32
  %v219 = vpop.permute.xlu0 %218
  %v221 = vmul.f32 %v215, %v219
  %223 = vrot.lane.b32.xlu0 %v216, 32
  %v224 = vpop.permute.xlu0 %223
  %v226 = vmul.f32 %v215, %v224
  %228 = vrot.lane.b32.xlu0 %v226, 32
  %v229 = vpop.permute.xlu0 %228
  %v231 = vadd.f32 %v221, %v229
  %v232 = vtanh.pop %v231
  %234 = vrot.lane.b32.xlu0 %v232, 32
  %v235 = vpop.permute.xlu0 %234
  %v237 = vmul.f32 %v215, %v235
  %v238 = vstv %s83
  %vm239 = vcmp.gt.s32.totalorder %v82, %v238
  %v240 = vsel %vm239, 1, 0
  %241 = vset.pattern.permute.xlu0 0
  %242 = vperm.xlu0 %241, %v240
  %v243 = vpop.permute.xlu0 %242
  %vm244 = vcmp.eq.s32.totalorder %v243, 1
  %246 = vrot.lane.b32.xlu0 %v86, 64
  %v247 = vpop.permute.xlu0 %246
  %v249 = vsel %vm244, %v237, %v247
  %v250 = vsel %vm244, %v231, %v219
  %v251 = vsel %vm244, %v237, 0.0
  %s252 = sadd.s32 %s85, 7
  %v253 = vxor.u32 %v209, 2147483648
  %v254 = vmul.f32 %v253, 1.442695
  %v255 = vpow.pop %v254
  %v256 = vadd.f32 %v255, 1.0
  %v257 = vrcp.pop %v256
  %v258 = vmul.f32 1.0, %v257
  %v259 = vtanh.pop %v209
  %261 = vrot.lane.b32.xlu0 %v89, 32
  %v262 = vpop.permute.xlu0 %261
  %v264 = vmul.f32 %v258, %v262
  %266 = vrot.lane.b32.xlu0 %v259, 32
  %v267 = vpop.permute.xlu0 %266
  %v269 = vmul.f32 %v258, %v267
  %271 = vrot.lane.b32.xlu0 %v269, 32
  %v272 = vpop.permute.xlu0 %271
  %v274 = vadd.f32 %v264, %v272
  %v275 = vtanh.pop %v274
  %277 = vrot.lane.b32.xlu0 %v275, 32
  %v278 = vpop.permute.xlu0 %277
  %v280 = vmul.f32 %v258, %v278
  %v281 = vstv %s252
  %vm282 = vcmp.gt.s32.totalorder %v82, %v281
  %v283 = vsel %vm282, 1, 0
  %284 = vset.pattern.permute.xlu0 0
  %285 = vperm.xlu0 %284, %v283
  %v286 = vpop.permute.xlu0 %285
  %vm287 = vcmp.eq.s32.totalorder %v286, 1
  %289 = vrot.lane.b32.xlu0 %v88, 64
  %v290 = vpop.permute.xlu0 %289
  %v292 = vsel %vm287, %v280, %v290
  %v293 = vsel %vm287, %v274, %v262
  %v294 = vsel %vm287, %v280, 0.0
  %296 = vrot.lane.b32.xlu0 %v251, 64
  %v297 = vpop.permute.xlu0 %296
  %299 = vst.msk [vmem:[%s5] sm:$0xff] %vm105, %v297
  %301 = vrot.lane.b32.xlu0 %v294, 64
  %v302 = vpop.permute.xlu0 %301
  %s304 = scalar_lea.vmem %s61, 56
  %305 = vst.msk [vmem:[%s304] sm:$0xff] %vm105, %v302
  %s306 = scalar_lea.vmem %s0, 4
  %v307 = vld [vmem:[%s306] sm:$0xf]
  %v308 = vunpack.c.l.bf16 %v307
  %v309 = vpack.c.bf16 %v249, %v249
  %311 = vrot.lane.b32.xlu0 %v309, 64
  %v312 = vpop.permute.xlu0 %311
  %v314 = vsel %vm105, %v312, 0
  %316 = vmatprep.subr.bf16.mxu0 0
  %317 = vmatpush1.bf16.msra.mxu0 %v101
  %318 = vmatprep.subr.bf16.mxu0 0
  %319 = vmatpush1.bf16.msra.mxu0 %v102
  %320 = vmatprep.subr.bf16.mxu0 0
  %321 = vmatpush1.bf16.msra.mxu0 0
  %322 = vmatprep.subr.bf16.mxu0 0
  %323 = vmatpush1.bf16.msra.mxu0 0
  %324 = vmatprep.subr.bf16.mxu0 0
  %325 = vmatpush1.bf16.msra.mxu0 0
  %326 = vmatprep.subr.bf16.mxu0 0
  %327 = vmatpush1.bf16.msra.mxu0 0
  %328 = vmatprep.subr.bf16.mxu0 0
  %329 = vmatpush1.bf16.msra.mxu0 0
  %330 = vmatprep.subr.bf16.mxu0 0
  %331 = vmatpush1.bf16.msra.mxu0 0
  %332 = vmatprep.subr.bf16.mxu0 0
  %333 = vmatpush1.bf16.msra.mxu0 0
  %334 = vmatprep.subr.bf16.mxu0 0
  %335 = vmatpush1.bf16.msra.mxu0 0
  %336 = vmatprep.subr.bf16.mxu0 0
  %337 = vmatpush1.bf16.msra.mxu0 0
  %338 = vmatprep.subr.bf16.mxu0 0
  %339 = vmatpush1.bf16.msra.mxu0 0
  %340 = vmatprep.subr.bf16.mxu0 0
  %341 = vmatpush1.bf16.msra.mxu0 0
  %342 = vmatprep.subr.bf16.mxu0 0
  %343 = vmatpush1.bf16.msra.mxu0 0
  %344 = vmatprep.subr.bf16.mxu0 0
  %345 = vmatpush1.bf16.msra.mxu0 0
  %346 = vmatprep.subr.bf16.mxu0 0
  %347 = vmatpush1.bf16.msra.mxu0 0
  %348 = vmatprep.mubr.bf16.mxu0 0
  %349 = vmatmul.mubr.bf16.gmra.mrb[0].mxu0 %v314
  %v350 = vpop.f32.mrb[0].mxu0
  %v351 = vadd.f32 0.0, %v350
  %v352 = vpop.f32.mrb[0].mxu0
  %v353 = vpop.f32.mrb[0].mxu0
  %v354 = vpop.f32.mrb[0].mxu0
  %355 = vdwg.mxu0
  %v356 = vadd.f32 %v308, %v351
  %s357 = scalar_lea.vmem %s52, 24
  %v358 = vld [vmem:[%s357] sm:$0xf]
  %v359 = vunpack.c.l.bf16 %v358
  %v360 = vpack.c.bf16 %v292, %v292
  %362 = vrot.lane.b32.xlu0 %v360, 64
  %v363 = vpop.permute.xlu0 %362
  %v365 = vsel %vm105, %v363, 0
  %367 = vmatprep.subr.bf16.mxu0 0
  %368 = vmatpush1.bf16.msra.mxu0 %v162
  %369 = vmatprep.subr.bf16.mxu0 0
  %370 = vmatpush1.bf16.msra.mxu0 %v163
  %371 = vmatprep.subr.bf16.mxu0 0
  %372 = vmatpush1.bf16.msra.mxu0 0
  %373 = vmatprep.subr.bf16.mxu0 0
  %374 = vmatpush1.bf16.msra.mxu0 0
  %375 = vmatprep.subr.bf16.mxu0 0
  %376 = vmatpush1.bf16.msra.mxu0 0
  %377 = vmatprep.subr.bf16.mxu0 0
  %378 = vmatpush1.bf16.msra.mxu0 0
  %379 = vmatprep.subr.bf16.mxu0 0
  %380 = vmatpush1.bf16.msra.mxu0 0
  %381 = vmatprep.subr.bf16.mxu0 0
  %382 = vmatpush1.bf16.msra.mxu0 0
  %383 = vmatprep.subr.bf16.mxu0 0
  %384 = vmatpush1.bf16.msra.mxu0 0
  %385 = vmatprep.subr.bf16.mxu0 0
  %386 = vmatpush1.bf16.msra.mxu0 0
  %387 = vmatprep.subr.bf16.mxu0 0
  %388 = vmatpush1.bf16.msra.mxu0 0
  %389 = vmatprep.subr.bf16.mxu0 0
  %390 = vmatpush1.bf16.msra.mxu0 0
  %391 = vmatprep.subr.bf16.mxu0 0
  %392 = vmatpush1.bf16.msra.mxu0 0
  %393 = vmatprep.subr.bf16.mxu0 0
  %394 = vmatpush1.bf16.msra.mxu0 0
  %395 = vmatprep.subr.bf16.mxu0 0
  %396 = vmatpush1.bf16.msra.mxu0 0
  %397 = vmatprep.subr.bf16.mxu0 0
  %398 = vmatpush1.bf16.msra.mxu0 0
  %399 = vmatprep.mubr.bf16.mxu0 0
  %400 = vmatmul.mubr.bf16.gmra.mrb[0].mxu0 %v365
  %v401 = vpop.f32.mrb[0].mxu0
  %v402 = vadd.f32 0.0, %v401
  %v403 = vpop.f32.mrb[0].mxu0
  %v404 = vpop.f32.mrb[0].mxu0
  %v405 = vpop.f32.mrb[0].mxu0
  %406 = vdwg.mxu0
  %v407 = vadd.f32 %v359, %v402
  %s408 = sadd.s32 %s83, 1
  %v409 = vxor.u32 %v356, 2147483648
  %v410 = vmul.f32 %v409, 1.442695
  %v411 = vpow.pop %v410
  %v412 = vadd.f32 %v411, 1.0
  %v413 = vrcp.pop %v412
  %v414 = vmul.f32 1.0, %v413
  %v415 = vtanh.pop %v356
  %v416 = vmul.f32 %v414, %v250
  %418 = vrot.lane.b32.xlu0 %v415, 32
  %v419 = vpop.permute.xlu0 %418
  %v421 = vmul.f32 %v414, %v419
  %423 = vrot.lane.b32.xlu0 %v421, 32
  %v424 = vpop.permute.xlu0 %423
  %v426 = vadd.f32 %v416, %v424
  %v427 = vtanh.pop %v426
  %429 = vrot.lane.b32.xlu0 %v427, 32
  %v430 = vpop.permute.xlu0 %429
  %v432 = vmul.f32 %v414, %v430
  %v433 = vstv %s408
  %vm434 = vcmp.gt.s32.totalorder %v82, %v433
  %v435 = vsel %vm434, 1, 0
  %436 = vset.pattern.permute.xlu0 0
  %437 = vperm.xlu0 %436, %v435
  %v438 = vpop.permute.xlu0 %437
  %vm439 = vcmp.eq.s32.totalorder %v438, 1
  %v440 = vsel %vm439, %v432, %v249
  %v441 = vsel %vm439, %v426, %v250
  %v442 = vsel %vm439, %v432, 0.0
  %s443 = sadd.s32 %s85, 6
  %v444 = vxor.u32 %v407, 2147483648
  %v445 = vmul.f32 %v444, 1.442695
  %v446 = vpow.pop %v445
  %v447 = vadd.f32 %v446, 1.0
  %v448 = vrcp.pop %v447
  %v449 = vmul.f32 1.0, %v448
  %v450 = vtanh.pop %v407
  %v451 = vmul.f32 %v449, %v293
  %453 = vrot.lane.b32.xlu0 %v450, 32
  %v454 = vpop.permute.xlu0 %453
  %v456 = vmul.f32 %v449, %v454
  %458 = vrot.lane.b32.xlu0 %v456, 32
  %v459 = vpop.permute.xlu0 %458
  %v461 = vadd.f32 %v451, %v459
  %v462 = vtanh.pop %v461
  %464 = vrot.lane.b32.xlu0 %v462, 32
  %v465 = vpop.permute.xlu0 %464
  %v467 = vmul.f32 %v449, %v465
  %v468 = vstv %s443
  %vm469 = vcmp.gt.s32.totalorder %v82, %v468
  %v470 = vsel %vm469, 1, 0
  %471 = vset.pattern.permute.xlu0 0
  %472 = vperm.xlu0 %471, %v470
  %v473 = vpop.permute.xlu0 %472
  %vm474 = vcmp.eq.s32.totalorder %v473, 1
  %v475 = vsel %vm474, %v467, %v292
  %v476 = vsel %vm474, %v461, %v293
  %v477 = vsel %vm474, %v467, 0.0
  %479 = vrot.lane.b32.xlu0 %v442, 64
  %v480 = vpop.permute.xlu0 %479
  %s482 = scalar_lea.vmem %s5, 8
  %483 = vst.msk [vmem:[%s482] sm:$0xff] %vm105, %v480
  %485 = vrot.lane.b32.xlu0 %v477, 64
  %v486 = vpop.permute.xlu0 %485
  %s488 = scalar_lea.vmem %s61, 48
  %489 = vst.msk [vmem:[%s488] sm:$0xff] %vm105, %v486
  %s490 = scalar_lea.vmem %s0, 8
  %v491 = vld [vmem:[%s490] sm:$0xf]
  %v492 = vunpack.c.l.bf16 %v491
  %v493 = vpack.c.bf16 %v440, %v440
  %495 = vrot.lane.b32.xlu0 %v493, 64
  %v496 = vpop.permute.xlu0 %495
  %v498 = vsel %vm105, %v496, 0
  %500 = vmatprep.subr.bf16.mxu0 0
  %501 = vmatpush1.bf16.msra.mxu0 %v101
  %502 = vmatprep.subr.bf16.mxu0 0
  %503 = vmatpush1.bf16.msra.mxu0 %v102
  %504 = vmatprep.subr.bf16.mxu0 0
  %505 = vmatpush1.bf16.msra.mxu0 0
  %506 = vmatprep.subr.bf16.mxu0 0
  %507 = vmatpush1.bf16.msra.mxu0 0
  %508 = vmatprep.subr.bf16.mxu0 0
  %509 = vmatpush1.bf16.msra.mxu0 0
  %510 = vmatprep.subr.bf16.mxu0 0
  %511 = vmatpush1.bf16.msra.mxu0 0
  %512 = vmatprep.subr.bf16.mxu0 0
  %513 = vmatpush1.bf16.msra.mxu0 0
  %514 = vmatprep.subr.bf16.mxu0 0
  %515 = vmatpush1.bf16.msra.mxu0 0
  %516 = vmatprep.subr.bf16.mxu0 0
  %517 = vmatpush1.bf16.msra.mxu0 0
  %518 = vmatprep.subr.bf16.mxu0 0
  %519 = vmatpush1.bf16.msra.mxu0 0
  %520 = vmatprep.subr.bf16.mxu0 0
  %521 = vmatpush1.bf16.msra.mxu0 0
  %522 = vmatprep.subr.bf16.mxu0 0
  %523 = vmatpush1.bf16.msra.mxu0 0
  %524 = vmatprep.subr.bf16.mxu0 0
  %525 = vmatpush1.bf16.msra.mxu0 0
  %526 = vmatprep.subr.bf16.mxu0 0
  %527 = vmatpush1.bf16.msra.mxu0 0
  %528 = vmatprep.subr.bf16.mxu0 0
  %529 = vmatpush1.bf16.msra.mxu0 0
  %530 = vmatprep.subr.bf16.mxu0 0
  %531 = vmatpush1.bf16.msra.mxu0 0
  %532 = vmatprep.mubr.bf16.mxu0 0
  %533 = vmatmul.mubr.bf16.gmra.mrb[0].mxu0 %v498
  %v534 = vpop.f32.mrb[0].mxu0
  %v535 = vadd.f32 0.0, %v534
  %v536 = vpop.f32.mrb[0].mxu0
  %v537 = vpop.f32.mrb[0].mxu0
  %v538 = vpop.f32.mrb[0].mxu0
  %539 = vdwg.mxu0
  %v540 = vadd.f32 %v492, %v535
  %s541 = scalar_lea.vmem %s52, 20
  %v542 = vld [vmem:[%s541] sm:$0xf]
  %v543 = vunpack.c.l.bf16 %v542
  %v544 = vpack.c.bf16 %v475, %v475
  %546 = vrot.lane.b32.xlu0 %v544, 64
  %v547 = vpop.permute.xlu0 %546
  %v549 = vsel %vm105, %v547, 0
  %551 = vmatprep.subr.bf16.mxu0 0
  %552 = vmatpush1.bf16.msra.mxu0 %v162
  %553 = vmatprep.subr.bf16.mxu0 0
  %554 = vmatpush1.bf16.msra.mxu0 %v163
  %555 = vmatprep.subr.bf16.mxu0 0
  %556 = vmatpush1.bf16.msra.mxu0 0
  %557 = vmatprep.subr.bf16.mxu0 0
  %558 = vmatpush1.bf16.msra.mxu0 0
  %559 = vmatprep.subr.bf16.mxu0 0
  %560 = vmatpush1.bf16.msra.mxu0 0
  %561 = vmatprep.subr.bf16.mxu0 0
  %562 = vmatpush1.bf16.msra.mxu0 0
  %563 = vmatprep.subr.bf16.mxu0 0
  %564 = vmatpush1.bf16.msra.mxu0 0
  %565 = vmatprep.subr.bf16.mxu0 0
  %566 = vmatpush1.bf16.msra.mxu0 0
  %567 = vmatprep.subr.bf16.mxu0 0
  %568 = vmatpush1.bf16.msra.mxu0 0
  %569 = vmatprep.subr.bf16.mxu0 0
  %570 = vmatpush1.bf16.msra.mxu0 0
  %571 = vmatprep.subr.bf16.mxu0 0
  %572 = vmatpush1.bf16.msra.mxu0 0
  %573 = vmatprep.subr.bf16.mxu0 0
  %574 = vmatpush1.bf16.msra.mxu0 0
  %575 = vmatprep.subr.bf16.mxu0 0
  %576 = vmatpush1.bf16.msra.mxu0 0
  %577 = vmatprep.subr.bf16.mxu0 0
  %578 = vmatpush1.bf16.msra.mxu0 0
  %579 = vmatprep.subr.bf16.mxu0 0
  %580 = vmatpush1.bf16.msra.mxu0 0
  %581 = vmatprep.subr.bf16.mxu0 0
  %582 = vmatpush1.bf16.msra.mxu0 0
  %583 = vmatprep.mubr.bf16.mxu0 0
  %584 = vmatmul.mubr.bf16.gmra.mrb[0].mxu0 %v549
  %v585 = vpop.f32.mrb[0].mxu0
  %v586 = vadd.f32 0.0, %v585
  %v587 = vpop.f32.mrb[0].mxu0
  %v588 = vpop.f32.mrb[0].mxu0
  %v589 = vpop.f32.mrb[0].mxu0
  %590 = vdwg.mxu0
  %v591 = vadd.f32 %v543, %v586
  %s592 = sadd.s32 %s83, 2
  %v593 = vxor.u32 %v540, 2147483648
  %v594 = vmul.f32 %v593, 1.442695
  %v595 = vpow.pop %v594
  %v596 = vadd.f32 %v595, 1.0
  %v597 = vrcp.pop %v596
  %v598 = vmul.f32 1.0, %v597
  %v599 = vtanh.pop %v540
  %v600 = vmul.f32 %v598, %v441
  %602 = vrot.lane.b32.xlu0 %v599, 32
  %v603 = vpop.permute.xlu0 %602
  %v605 = vmul.f32 %v598, %v603
  %607 = vrot.lane.b32.xlu0 %v605, 32
  %v608 = vpop.permute.xlu0 %607
  %v610 = vadd.f32 %v600, %v608
  %v611 = vtanh.pop %v610
  %613 = vrot.lane.b32.xlu0 %v611, 32
  %v614 = vpop.permute.xlu0 %613
  %v616 = vmul.f32 %v598, %v614
  %v617 = vstv %s592
  %vm618 = vcmp.gt.s32.totalorder %v82, %v617
  %v619 = vsel %vm618, 1, 0
  %620 = vset.pattern.permute.xlu0 0
  %621 = vperm.xlu0 %620, %v619
  %v622 = vpop.permute.xlu0 %621
  %vm623 = vcmp.eq.s32.totalorder %v622, 1
  %v624 = vsel %vm623, %v616, %v440
  %v625 = vsel %vm623, %v610, %v441
  %v626 = vsel %vm623, %v616, 0.0
  %s627 = sadd.s32 %s85, 5
  %v628 = vxor.u32 %v591, 2147483648
  %v629 = vmul.f32 %v628, 1.442695
  %v630 = vpow.pop %v629
  %v631 = vadd.f32 %v630, 1.0
  %v632 = vrcp.pop %v631
  %v633 = vmul.f32 1.0, %v632
  %v634 = vtanh.pop %v591
  %v635 = vmul.f32 %v633, %v476
  %637 = vrot.lane.b32.xlu0 %v634, 32
  %v638 = vpop.permute.xlu0 %637
  %v640 = vmul.f32 %v633, %v638
  %642 = vrot.lane.b32.xlu0 %v640, 32
  %v643 = vpop.permute.xlu0 %642
  %v645 = vadd.f32 %v635, %v643
  %v646 = vtanh.pop %v645
  %648 = vrot.lane.b32.xlu0 %v646, 32
  %v649 = vpop.permute.xlu0 %648
  %v651 = vmul.f32 %v633, %v649
  %v652 = vstv %s627
  %vm653 = vcmp.gt.s32.totalorder %v82, %v652
  %v654 = vsel %vm653, 1, 0
  %655 = vset.pattern.permute.xlu0 0
  %656 = vperm.xlu0 %655, %v654
  %v657 = vpop.permute.xlu0 %656
  %vm658 = vcmp.eq.s32.totalorder %v657, 1
  %v659 = vsel %vm658, %v651, %v475
  %v660 = vsel %vm658, %v645, %v476
  %v661 = vsel %vm658, %v651, 0.0
  %663 = vrot.lane.b32.xlu0 %v626, 64
  %v664 = vpop.permute.xlu0 %663
  %s666 = scalar_lea.vmem %s5, 16
  %667 = vst.msk [vmem:[%s666] sm:$0xff] %vm105, %v664
  %669 = vrot.lane.b32.xlu0 %v661, 64
  %v670 = vpop.permute.xlu0 %669
  %s672 = scalar_lea.vmem %s61, 40
  %673 = vst.msk [vmem:[%s672] sm:$0xff] %vm105, %v670
  %s674 = scalar_lea.vmem %s0, 12
  %v675 = vld [vmem:[%s674] sm:$0xf]
  %v676 = vunpack.c.l.bf16 %v675
  %v677 = vpack.c.bf16 %v624, %v624
  %679 = vrot.lane.b32.xlu0 %v677, 64
  %v680 = vpop.permute.xlu0 %679
  %v682 = vsel %vm105, %v680, 0
  %684 = vmatprep.subr.bf16.mxu0 0
  %685 = vmatpush1.bf16.msra.mxu0 %v101
  %686 = vmatprep.subr.bf16.mxu0 0
  %687 = vmatpush1.bf16.msra.mxu0 %v102
  %688 = vmatprep.subr.bf16.mxu0 0
  %689 = vmatpush1.bf16.msra.mxu0 0
  %690 = vmatprep.subr.bf16.mxu0 0
  %691 = vmatpush1.bf16.msra.mxu0 0
  %692 = vmatprep.subr.bf16.mxu0 0
  %693 = vmatpush1.bf16.msra.mxu0 0
  %694 = vmatprep.subr.bf16.mxu0 0
  %695 = vmatpush1.bf16.msra.mxu0 0
  %696 = vmatprep.subr.bf16.mxu0 0
  %697 = vmatpush1.bf16.msra.mxu0 0
  %698 = vmatprep.subr.bf16.mxu0 0
  %699 = vmatpush1.bf16.msra.mxu0 0
  %700 = vmatprep.subr.bf16.mxu0 0
  %701 = vmatpush1.bf16.msra.mxu0 0
  %702 = vmatprep.subr.bf16.mxu0 0
  %703 = vmatpush1.bf16.msra.mxu0 0
  %704 = vmatprep.subr.bf16.mxu0 0
  %705 = vmatpush1.bf16.msra.mxu0 0
  %706 = vmatprep.subr.bf16.mxu0 0
  %707 = vmatpush1.bf16.msra.mxu0 0
  %708 = vmatprep.subr.bf16.mxu0 0
  %709 = vmatpush1.bf16.msra.mxu0 0
  %710 = vmatprep.subr.bf16.mxu0 0
  %711 = vmatpush1.bf16.msra.mxu0 0
  %712 = vmatprep.subr.bf16.mxu0 0
  %713 = vmatpush1.bf16.msra.mxu0 0
  %714 = vmatprep.subr.bf16.mxu0 0
  %715 = vmatpush1.bf16.msra.mxu0 0
  %716 = vmatprep.mubr.bf16.mxu0 0
  %717 = vmatmul.mubr.bf16.gmra.mrb[0].mxu0 %v682
  %v718 = vpop.f32.mrb[0].mxu0
  %v719 = vadd.f32 0.0, %v718
  %v720 = vpop.f32.mrb[0].mxu0
  %v721 = vpop.f32.mrb[0].mxu0
  %v722 = vpop.f32.mrb[0].mxu0
  %723 = vdwg.mxu0
  %v724 = vadd.f32 %v676, %v719
  %s725 = scalar_lea.vmem %s52, 16
  %v726 = vld [vmem:[%s725] sm:$0xf]
  %v727 = vunpack.c.l.bf16 %v726
  %v728 = vpack.c.bf16 %v659, %v659
  %730 = vrot.lane.b32.xlu0 %v728, 64
  %v731 = vpop.permute.xlu0 %730
  %v733 = vsel %vm105, %v731, 0
  %735 = vmatprep.subr.bf16.mxu0 0
  %736 = vmatpush1.bf16.msra.mxu0 %v162
  %737 = vmatprep.subr.bf16.mxu0 0
  %738 = vmatpush1.bf16.msra.mxu0 %v163
  %739 = vmatprep.subr.bf16.mxu0 0
  %740 = vmatpush1.bf16.msra.mxu0 0
  %741 = vmatprep.subr.bf16.mxu0 0
  %742 = vmatpush1.bf16.msra.mxu0 0
  %743 = vmatprep.subr.bf16.mxu0 0
  %744 = vmatpush1.bf16.msra.mxu0 0
  %745 = vmatprep.subr.bf16.mxu0 0
  %746 = vmatpush1.bf16.msra.mxu0 0
  %747 = vmatprep.subr.bf16.mxu0 0
  %748 = vmatpush1.bf16.msra.mxu0 0
  %749 = vmatprep.subr.bf16.mxu0 0
  %750 = vmatpush1.bf16.msra.mxu0 0
  %751 = vmatprep.subr.bf16.mxu0 0
  %752 = vmatpush1.bf16.msra.mxu0 0
  %753 = vmatprep.subr.bf16.mxu0 0
  %754 = vmatpush1.bf16.msra.mxu0 0
  %755 = vmatprep.subr.bf16.mxu0 0
  %756 = vmatpush1.bf16.msra.mxu0 0
  %757 = vmatprep.subr.bf16.mxu0 0
  %758 = vmatpush1.bf16.msra.mxu0 0
  %759 = vmatprep.subr.bf16.mxu0 0
  %760 = vmatpush1.bf16.msra.mxu0 0
  %761 = vmatprep.subr.bf16.mxu0 0
  %762 = vmatpush1.bf16.msra.mxu0 0
  %763 = vmatprep.subr.bf16.mxu0 0
  %764 = vmatpush1.bf16.msra.mxu0 0
  %765 = vmatprep.subr.bf16.mxu0 0
  %766 = vmatpush1.bf16.msra.mxu0 0
  %767 = vmatprep.mubr.bf16.mxu0 0
  %768 = vmatmul.mubr.bf16.gmra.mrb[0].mxu0 %v733
  %v769 = vpop.f32.mrb[0].mxu0
  %v770 = vadd.f32 0.0, %v769
  %v771 = vpop.f32.mrb[0].mxu0
  %v772 = vpop.f32.mrb[0].mxu0
  %v773 = vpop.f32.mrb[0].mxu0
  %774 = vdwg.mxu0
  %v775 = vadd.f32 %v727, %v770
  %s776 = sadd.s32 %s83, 3
  %v777 = vxor.u32 %v724, 2147483648
  %v778 = vmul.f32 %v777, 1.442695
  %v779 = vpow.pop %v778
  %v780 = vadd.f32 %v779, 1.0
  %v781 = vrcp.pop %v780
  %v782 = vmul.f32 1.0, %v781
  %v783 = vtanh.pop %v724
  %v784 = vmul.f32 %v782, %v625
  %786 = vrot.lane.b32.xlu0 %v783, 32
  %v787 = vpop.permute.xlu0 %786
  %v789 = vmul.f32 %v782, %v787
  %791 = vrot.lane.b32.xlu0 %v789, 32
  %v792 = vpop.permute.xlu0 %791
  %v794 = vadd.f32 %v784, %v792
  %v795 = vtanh.pop %v794
  %797 = vrot.lane.b32.xlu0 %v795, 32
  %v798 = vpop.permute.xlu0 %797
  %v800 = vmul.f32 %v782, %v798
  %v801 = vstv %s776
  %vm802 = vcmp.gt.s32.totalorder %v82, %v801
  %v803 = vsel %vm802, 1, 0
  %804 = vset.pattern.permute.xlu0 0
  %805 = vperm.xlu0 %804, %v803
  %v806 = vpop.permute.xlu0 %805
  %vm807 = vcmp.eq.s32.totalorder %v806, 1
  %v808 = vsel %vm807, %v800, %v624
  %v809 = vsel %vm807, %v794, %v625
  %v810 = vsel %vm807, %v800, 0.0
  %s811 = sadd.s32 %s85, 4
  %v812 = vxor.u32 %v775, 2147483648
  %v813 = vmul.f32 %v812, 1.442695
  %v814 = vpow.pop %v813
  %v815 = vadd.f32 %v814, 1.0
  %v816 = vrcp.pop %v815
  %v817 = vmul.f32 1.0, %v816
  %v818 = vtanh.pop %v775
  %v819 = vmul.f32 %v817, %v660
  %821 = vrot.lane.b32.xlu0 %v818, 32
  %v822 = vpop.permute.xlu0 %821
  %v824 = vmul.f32 %v817, %v822
  %826 = vrot.lane.b32.xlu0 %v824, 32
  %v827 = vpop.permute.xlu0 %826
  %v829 = vadd.f32 %v819, %v827
  %v830 = vtanh.pop %v829
  %832 = vrot.lane.b32.xlu0 %v830, 32
  %v833 = vpop.permute.xlu0 %832
  %v835 = vmul.f32 %v817, %v833
  %v836 = vstv %s811
  %vm837 = vcmp.gt.s32.totalorder %v82, %v836
  %v838 = vsel %vm837, 1, 0
  %839 = vset.pattern.permute.xlu0 0
  %840 = vperm.xlu0 %839, %v838
  %v841 = vpop.permute.xlu0 %840
  %vm842 = vcmp.eq.s32.totalorder %v841, 1
  %v843 = vsel %vm842, %v835, %v659
  %v844 = vsel %vm842, %v829, %v660
  %v845 = vsel %vm842, %v835, 0.0
  %847 = vrot.lane.b32.xlu0 %v810, 64
  %v848 = vpop.permute.xlu0 %847
  %s850 = scalar_lea.vmem %s5, 24
  %851 = vst.msk [vmem:[%s850] sm:$0xff] %vm105, %v848
  %853 = vrot.lane.b32.xlu0 %v845, 64
  %v854 = vpop.permute.xlu0 %853
  %s856 = scalar_lea.vmem %s61, 32
  %857 = vst.msk [vmem:[%s856] sm:$0xff] %vm105, %v854
  %s858 = scalar_lea.vmem %s0, 16
  %v859 = vld [vmem:[%s858] sm:$0xf]
  %v860 = vunpack.c.l.bf16 %v859
  %v861 = vpack.c.bf16 %v808, %v808
  %863 = vrot.lane.b32.xlu0 %v861, 64
  %v864 = vpop.permute.xlu0 %863
  %v866 = vsel %vm105, %v864, 0
  %868 = vmatprep.subr.bf16.mxu0 0
  %869 = vmatpush1.bf16.msra.mxu0 %v101
  %870 = vmatprep.subr.bf16.mxu0 0
  %871 = vmatpush1.bf16.msra.mxu0 %v102
  %872 = vmatprep.subr.bf16.mxu0 0
  %873 = vmatpush1.bf16.msra.mxu0 0
  %874 = vmatprep.subr.bf16.mxu0 0
  %875 = vmatpush1.bf16.msra.mxu0 0
  %876 = vmatprep.subr.bf16.mxu0 0
  %877 = vmatpush1.bf16.msra.mxu0 0
  %878 = vmatprep.subr.bf16.mxu0 0
  %879 = vmatpush1.bf16.msra.mxu0 0
  %880 = vmatprep.subr.bf16.mxu0 0
  %881 = vmatpush1.bf16.msra.mxu0 0
  %882 = vmatprep.subr.bf16.mxu0 0
  %883 = vmatpush1.bf16.msra.mxu0 0
  %884 = vmatprep.subr.bf16.mxu0 0
  %885 = vmatpush1.bf16.msra.mxu0 0
  %886 = vmatprep.subr.bf16.mxu0 0
  %887 = vmatpush1.bf16.msra.mxu0 0
  %888 = vmatprep.subr.bf16.mxu0 0
  %889 = vmatpush1.bf16.msra.mxu0 0
  %890 = vmatprep.subr.bf16.mxu0 0
  %891 = vmatpush1.bf16.msra.mxu0 0
  %892 = vmatprep.subr.bf16.mxu0 0
  %893 = vmatpush1.bf16.msra.mxu0 0
  %894 = vmatprep.subr.bf16.mxu0 0
  %895 = vmatpush1.bf16.msra.mxu0 0
  %896 = vmatprep.subr.bf16.mxu0 0
  %897 = vmatpush1.bf16.msra.mxu0 0
  %898 = vmatprep.subr.bf16.mxu0 0
  %899 = vmatpush1.bf16.msra.mxu0 0
  %900 = vmatprep.mubr.bf16.mxu0 0
  %901 = vmatmul.mubr.bf16.gmra.mrb[0].mxu0 %v866
  %v902 = vpop.f32.mrb[0].mxu0
  %v903 = vadd.f32 0.0, %v902
  %v904 = vpop.f32.mrb[0].mxu0
  %v905 = vpop.f32.mrb[0].mxu0
  %v906 = vpop.f32.mrb[0].mxu0
  %907 = vdwg.mxu0
  %v908 = vadd.f32 %v860, %v903
  %s909 = scalar_lea.vmem %s52, 12
  %v910 = vld [vmem:[%s909] sm:$0xf]
  %v911 = vunpack.c.l.bf16 %v910
  %v912 = vpack.c.bf16 %v843, %v843
  %914 = vrot.lane.b32.xlu0 %v912, 64
  %v915 = vpop.permute.xlu0 %914
  %v917 = vsel %vm105, %v915, 0
  %919 = vmatprep.subr.bf16.mxu0 0
  %920 = vmatpush1.bf16.msra.mxu0 %v162
  %921 = vmatprep.subr.bf16.mxu0 0
  %922 = vmatpush1.bf16.msra.mxu0 %v163
  %923 = vmatprep.subr.bf16.mxu0 0
  %924 = vmatpush1.bf16.msra.mxu0 0
  %925 = vmatprep.subr.bf16.mxu0 0
  %926 = vmatpush1.bf16.msra.mxu0 0
  %927 = vmatprep.subr.bf16.mxu0 0
  %928 = vmatpush1.bf16.msra.mxu0 0
  %929 = vmatprep.subr.bf16.mxu0 0
  %930 = vmatpush1.bf16.msra.mxu0 0
  %931 = vmatprep.subr.bf16.mxu0 0
  %932 = vmatpush1.bf16.msra.mxu0 0
  %933 = vmatprep.subr.bf16.mxu0 0
  %934 = vmatpush1.bf16.msra.mxu0 0
  %935 = vmatprep.subr.bf16.mxu0 0
  %936 = vmatpush1.bf16.msra.mxu0 0
  %937 = vmatprep.subr.bf16.mxu0 0
  %938 = vmatpush1.bf16.msra.mxu0 0
  %939 = vmatprep.subr.bf16.mxu0 0
  %940 = vmatpush1.bf16.msra.mxu0 0
  %941 = vmatprep.subr.bf16.mxu0 0
  %942 = vmatpush1.bf16.msra.mxu0 0
  %943 = vmatprep.subr.bf16.mxu0 0
  %944 = vmatpush1.bf16.msra.mxu0 0
  %945 = vmatprep.subr.bf16.mxu0 0
  %946 = vmatpush1.bf16.msra.mxu0 0
  %947 = vmatprep.subr.bf16.mxu0 0
  %948 = vmatpush1.bf16.msra.mxu0 0
  %949 = vmatprep.subr.bf16.mxu0 0
  %950 = vmatpush1.bf16.msra.mxu0 0
  %951 = vmatprep.mubr.bf16.mxu0 0
  %952 = vmatmul.mubr.bf16.gmra.mrb[0].mxu0 %v917
  %v953 = vpop.f32.mrb[0].mxu0
  %v954 = vadd.f32 0.0, %v953
  %v955 = vpop.f32.mrb[0].mxu0
  %v956 = vpop.f32.mrb[0].mxu0
  %v957 = vpop.f32.mrb[0].mxu0
  %958 = vdwg.mxu0
  %v959 = vadd.f32 %v911, %v954
  %s960 = sadd.s32 %s83, 4
  %v961 = vxor.u32 %v908, 2147483648
  %v962 = vmul.f32 %v961, 1.442695
  %v963 = vpow.pop %v962
  %v964 = vadd.f32 %v963, 1.0
  %v965 = vrcp.pop %v964
  %v966 = vmul.f32 1.0, %v965
  %v967 = vtanh.pop %v908
  %v968 = vmul.f32 %v966, %v809
  %970 = vrot.lane.b32.xlu0 %v967, 32
  %v971 = vpop.permute.xlu0 %970
  %v973 = vmul.f32 %v966, %v971
  %975 = vrot.lane.b32.xlu0 %v973, 32
  %v976 = vpop.permute.xlu0 %975
  %v978 = vadd.f32 %v968, %v976
  %v979 = vtanh.pop %v978
  %981 = vrot.lane.b32.xlu0 %v979, 32
  %v982 = vpop.permute.xlu0 %981
  %v984 = vmul.f32 %v966, %v982
  %v985 = vstv %s960
  %vm986 = vcmp.gt.s32.totalorder %v82, %v985
  %v987 = vsel %vm986, 1, 0
  %988 = vset.pattern.permute.xlu0 0
  %989 = vperm.xlu0 %988, %v987
  %v990 = vpop.permute.xlu0 %989
  %vm991 = vcmp.eq.s32.totalorder %v990, 1
  %v992 = vsel %vm991, %v984, %v808
  %v993 = vsel %vm991, %v978, %v809
  %v994 = vsel %vm991, %v984, 0.0
  %s995 = sadd.s32 %s85, 3
  %v996 = vxor.u32 %v959, 2147483648
  %v997 = vmul.f32 %v996, 1.442695
  %v998 = vpow.pop %v997
  %v999 = vadd.f32 %v998, 1.0
  %v1000 = vrcp.pop %v999
  %v1001 = vmul.f32 1.0, %v1000
  %v1002 = vtanh.pop %v959
  %v1003 = vmul.f32 %v1001, %v844
  %1005 = vrot.lane.b32.xlu0 %v1002, 32
  %v1006 = vpop.permute.xlu0 %1005
  %v1008 = vmul.f32 %v1001, %v1006
  %1010 = vrot.lane.b32.xlu0 %v1008, 32
  %v1011 = vpop.permute.xlu0 %1010
  %v1013 = vadd.f32 %v1003, %v1011
  %v1014 = vtanh.pop %v1013
  %1016 = vrot.lane.b32.xlu0 %v1014, 32
  %v1017 = vpop.permute.xlu0 %1016
  %v1019 = vmul.f32 %v1001, %v1017
  %v1020 = vstv %s995
  %vm1021 = vcmp.gt.s32.totalorder %v82, %v1020
  %v1022 = vsel %vm1021, 1, 0
  %1023 = vset.pattern.permute.xlu0 0
  %1024 = vperm.xlu0 %1023, %v1022
  %v1025 = vpop.permute.xlu0 %1024
  %vm1026 = vcmp.eq.s32.totalorder %v1025, 1
  %v1027 = vsel %vm1026, %v1019, %v843
  %v1028 = vsel %vm1026, %v1013, %v844
  %v1029 = vsel %vm1026, %v1019, 0.0
  %1031 = vrot.lane.b32.xlu0 %v994, 64
  %v1032 = vpop.permute.xlu0 %1031
  %s1034 = scalar_lea.vmem %s5, 32
  %1035 = vst.msk [vmem:[%s1034] sm:$0xff] %vm105, %v1032
  %1037 = vrot.lane.b32.xlu0 %v1029, 64
  %v1038 = vpop.permute.xlu0 %1037
  %s1040 = scalar_lea.vmem %s61, 24
  %1041 = vst.msk [vmem:[%s1040] sm:$0xff] %vm105, %v1038
  %s1042 = scalar_lea.vmem %s0, 20
  %v1043 = vld [vmem:[%s1042] sm:$0xf]
  %v1044 = vunpack.c.l.bf16 %v1043
  %v1045 = vpack.c.bf16 %v992, %v992
  %1047 = vrot.lane.b32.xlu0 %v1045, 64
  %v1048 = vpop.permute.xlu0 %1047
  %v1050 = vsel %vm105, %v1048, 0
  %1052 = vmatprep.subr.bf16.mxu0 0
  %1053 = vmatpush1.bf16.msra.mxu0 %v101
  %1054 = vmatprep.subr.bf16.mxu0 0
  %1055 = vmatpush1.bf16.msra.mxu0 %v102
  %1056 = vmatprep.subr.bf16.mxu0 0
  %1057 = vmatpush1.bf16.msra.mxu0 0
  %1058 = vmatprep.subr.bf16.mxu0 0
  %1059 = vmatpush1.bf16.msra.mxu0 0
  %1060 = vmatprep.subr.bf16.mxu0 0
  %1061 = vmatpush1.bf16.msra.mxu0 0
  %1062 = vmatprep.subr.bf16.mxu0 0
  %1063 = vmatpush1.bf16.msra.mxu0 0
  %1064 = vmatprep.subr.bf16.mxu0 0
  %1065 = vmatpush1.bf16.msra.mxu0 0
  %1066 = vmatprep.subr.bf16.mxu0 0
  %1067 = vmatpush1.bf16.msra.mxu0 0
  %1068 = vmatprep.subr.bf16.mxu0 0
  %1069 = vmatpush1.bf16.msra.mxu0 0
  %1070 = vmatprep.subr.bf16.mxu0 0
  %1071 = vmatpush1.bf16.msra.mxu0 0
  %1072 = vmatprep.subr.bf16.mxu0 0
  %1073 = vmatpush1.bf16.msra.mxu0 0
  %1074 = vmatprep.subr.bf16.mxu0 0
  %1075 = vmatpush1.bf16.msra.mxu0 0
  %1076 = vmatprep.subr.bf16.mxu0 0
  %1077 = vmatpush1.bf16.msra.mxu0 0
  %1078 = vmatprep.subr.bf16.mxu0 0
  %1079 = vmatpush1.bf16.msra.mxu0 0
  %1080 = vmatprep.subr.bf16.mxu0 0
  %1081 = vmatpush1.bf16.msra.mxu0 0
  %1082 = vmatprep.subr.bf16.mxu0 0
  %1083 = vmatpush1.bf16.msra.mxu0 0
  %1084 = vmatprep.mubr.bf16.mxu0 0
  %1085 = vmatmul.mubr.bf16.gmra.mrb[0].mxu0 %v1050
  %v1086 = vpop.f32.mrb[0].mxu0
  %v1087 = vadd.f32 0.0, %v1086
  %v1088 = vpop.f32.mrb[0].mxu0
  %v1089 = vpop.f32.mrb[0].mxu0
  %v1090 = vpop.f32.mrb[0].mxu0
  %1091 = vdwg.mxu0
  %v1092 = vadd.f32 %v1044, %v1087
  %s1093 = scalar_lea.vmem %s52, 8
  %v1094 = vld [vmem:[%s1093] sm:$0xf]
  %v1095 = vunpack.c.l.bf16 %v1094
  %v1096 = vpack.c.bf16 %v1027, %v1027
  %1098 = vrot.lane.b32.xlu0 %v1096, 64
  %v1099 = vpop.permute.xlu0 %1098
  %v1101 = vsel %vm105, %v1099, 0
  %1103 = vmatprep.subr.bf16.mxu0 0
  %1104 = vmatpush1.bf16.msra.mxu0 %v162
  %1105 = vmatprep.subr.bf16.mxu0 0
  %1106 = vmatpush1.bf16.msra.mxu0 %v163
  %1107 = vmatprep.subr.bf16.mxu0 0
  %1108 = vmatpush1.bf16.msra.mxu0 0
  %1109 = vmatprep.subr.bf16.mxu0 0
  %1110 = vmatpush1.bf16.msra.mxu0 0
  %1111 = vmatprep.subr.bf16.mxu0 0
  %1112 = vmatpush1.bf16.msra.mxu0 0
  %1113 = vmatprep.subr.bf16.mxu0 0
  %1114 = vmatpush1.bf16.msra.mxu0 0
  %1115 = vmatprep.subr.bf16.mxu0 0
  %1116 = vmatpush1.bf16.msra.mxu0 0
  %1117 = vmatprep.subr.bf16.mxu0 0
  %1118 = vmatpush1.bf16.msra.mxu0 0
  %1119 = vmatprep.subr.bf16.mxu0 0
  %1120 = vmatpush1.bf16.msra.mxu0 0
  %1121 = vmatprep.subr.bf16.mxu0 0
  %1122 = vmatpush1.bf16.msra.mxu0 0
  %1123 = vmatprep.subr.bf16.mxu0 0
  %1124 = vmatpush1.bf16.msra.mxu0 0
  %1125 = vmatprep.subr.bf16.mxu0 0
  %1126 = vmatpush1.bf16.msra.mxu0 0
  %1127 = vmatprep.subr.bf16.mxu0 0
  %1128 = vmatpush1.bf16.msra.mxu0 0
  %1129 = vmatprep.subr.bf16.mxu0 0
  %1130 = vmatpush1.bf16.msra.mxu0 0
  %1131 = vmatprep.subr.bf16.mxu0 0
  %1132 = vmatpush1.bf16.msra.mxu0 0
  %1133 = vmatprep.subr.bf16.mxu0 0
  %1134 = vmatpush1.bf16.msra.mxu0 0
  %1135 = vmatprep.mubr.bf16.mxu0 0
  %1136 = vmatmul.mubr.bf16.gmra.mrb[0].mxu0 %v1101
  %v1137 = vpop.f32.mrb[0].mxu0
  %v1138 = vadd.f32 0.0, %v1137
  %v1139 = vpop.f32.mrb[0].mxu0
  %v1140 = vpop.f32.mrb[0].mxu0
  %v1141 = vpop.f32.mrb[0].mxu0
  %1142 = vdwg.mxu0
  %v1143 = vadd.f32 %v1095, %v1138
  %s1144 = sadd.s32 %s83, 5
  %v1145 = vxor.u32 %v1092, 2147483648
  %v1146 = vmul.f32 %v1145, 1.442695
  %v1147 = vpow.pop %v1146
  %v1148 = vadd.f32 %v1147, 1.0
  %v1149 = vrcp.pop %v1148
  %v1150 = vmul.f32 1.0, %v1149
  %v1151 = vtanh.pop %v1092
  %v1152 = vmul.f32 %v1150, %v993
  %1154 = vrot.lane.b32.xlu0 %v1151, 32
  %v1155 = vpop.permute.xlu0 %1154
  %v1157 = vmul.f32 %v1150, %v1155
  %1159 = vrot.lane.b32.xlu0 %v1157, 32
  %v1160 = vpop.permute.xlu0 %1159
  %v1162 = vadd.f32 %v1152, %v1160
  %v1163 = vtanh.pop %v1162
  %1165 = vrot.lane.b32.xlu0 %v1163, 32
  %v1166 = vpop.permute.xlu0 %1165
  %v1168 = vmul.f32 %v1150, %v1166
  %v1169 = vstv %s1144
  %vm1170 = vcmp.gt.s32.totalorder %v82, %v1169
  %v1171 = vsel %vm1170, 1, 0
  %1172 = vset.pattern.permute.xlu0 0
  %1173 = vperm.xlu0 %1172, %v1171
  %v1174 = vpop.permute.xlu0 %1173
  %vm1175 = vcmp.eq.s32.totalorder %v1174, 1
  %v1176 = vsel %vm1175, %v1168, %v992
  %v1177 = vsel %vm1175, %v1162, %v993
  %v1178 = vsel %vm1175, %v1168, 0.0
  %s1179 = sadd.s32 %s85, 2
  %v1180 = vxor.u32 %v1143, 2147483648
  %v1181 = vmul.f32 %v1180, 1.442695
  %v1182 = vpow.pop %v1181
  %v1183 = vadd.f32 %v1182, 1.0
  %v1184 = vrcp.pop %v1183
  %v1185 = vmul.f32 1.0, %v1184
  %v1186 = vtanh.pop %v1143
  %v1187 = vmul.f32 %v1185, %v1028
  %1189 = vrot.lane.b32.xlu0 %v1186, 32
  %v1190 = vpop.permute.xlu0 %1189
  %v1192 = vmul.f32 %v1185, %v1190
  %1194 = vrot.lane.b32.xlu0 %v1192, 32
  %v1195 = vpop.permute.xlu0 %1194
  %v1197 = vadd.f32 %v1187, %v1195
  %v1198 = vtanh.pop %v1197
  %1200 = vrot.lane.b32.xlu0 %v1198, 32
  %v1201 = vpop.permute.xlu0 %1200
  %v1203 = vmul.f32 %v1185, %v1201
  %v1204 = vstv %s1179
  %vm1205 = vcmp.gt.s32.totalorder %v82, %v1204
  %v1206 = vsel %vm1205, 1, 0
  %1207 = vset.pattern.permute.xlu0 0
  %1208 = vperm.xlu0 %1207, %v1206
  %v1209 = vpop.permute.xlu0 %1208
  %vm1210 = vcmp.eq.s32.totalorder %v1209, 1
  %v1211 = vsel %vm1210, %v1203, %v1027
  %v1212 = vsel %vm1210, %v1197, %v1028
  %v1213 = vsel %vm1210, %v1203, 0.0
  %1215 = vrot.lane.b32.xlu0 %v1178, 64
  %v1216 = vpop.permute.xlu0 %1215
  %s1218 = scalar_lea.vmem %s5, 40
  %1219 = vst.msk [vmem:[%s1218] sm:$0xff] %vm105, %v1216
  %1221 = vrot.lane.b32.xlu0 %v1213, 64
  %v1222 = vpop.permute.xlu0 %1221
  %s1224 = scalar_lea.vmem %s61, 16
  %1225 = vst.msk [vmem:[%s1224] sm:$0xff] %vm105, %v1222
  %s1226 = scalar_lea.vmem %s0, 24
  %v1227 = vld [vmem:[%s1226] sm:$0xf]
  %v1228 = vunpack.c.l.bf16 %v1227
  %v1229 = vpack.c.bf16 %v1176, %v1176
  %1231 = vrot.lane.b32.xlu0 %v1229, 64
  %v1232 = vpop.permute.xlu0 %1231
  %v1234 = vsel %vm105, %v1232, 0
  %1236 = vmatprep.subr.bf16.mxu0 0
  %1237 = vmatpush1.bf16.msra.mxu0 %v101
  %1238 = vmatprep.subr.bf16.mxu0 0
  %1239 = vmatpush1.bf16.msra.mxu0 %v102
  %1240 = vmatprep.subr.bf16.mxu0 0
  %1241 = vmatpush1.bf16.msra.mxu0 0
  %1242 = vmatprep.subr.bf16.mxu0 0
  %1243 = vmatpush1.bf16.msra.mxu0 0
  %1244 = vmatprep.subr.bf16.mxu0 0
  %1245 = vmatpush1.bf16.msra.mxu0 0
  %1246 = vmatprep.subr.bf16.mxu0 0
  %1247 = vmatpush1.bf16.msra.mxu0 0
  %1248 = vmatprep.subr.bf16.mxu0 0
  %1249 = vmatpush1.bf16.msra.mxu0 0
  %1250 = vmatprep.subr.bf16.mxu0 0
  %1251 = vmatpush1.bf16.msra.mxu0 0
  %1252 = vmatprep.subr.bf16.mxu0 0
  %1253 = vmatpush1.bf16.msra.mxu0 0
  %1254 = vmatprep.subr.bf16.mxu0 0
  %1255 = vmatpush1.bf16.msra.mxu0 0
  %1256 = vmatprep.subr.bf16.mxu0 0
  %1257 = vmatpush1.bf16.msra.mxu0 0
  %1258 = vmatprep.subr.bf16.mxu0 0
  %1259 = vmatpush1.bf16.msra.mxu0 0
  %1260 = vmatprep.subr.bf16.mxu0 0
  %1261 = vmatpush1.bf16.msra.mxu0 0
  %1262 = vmatprep.subr.bf16.mxu0 0
  %1263 = vmatpush1.bf16.msra.mxu0 0
  %1264 = vmatprep.subr.bf16.mxu0 0
  %1265 = vmatpush1.bf16.msra.mxu0 0
  %1266 = vmatprep.subr.bf16.mxu0 0
  %1267 = vmatpush1.bf16.msra.mxu0 0
  %1268 = vmatprep.mubr.bf16.mxu0 0
  %1269 = vmatmul.mubr.bf16.gmra.mrb[0].mxu0 %v1234
  %v1270 = vpop.f32.mrb[0].mxu0
  %v1271 = vadd.f32 0.0, %v1270
  %v1272 = vpop.f32.mrb[0].mxu0
  %v1273 = vpop.f32.mrb[0].mxu0
  %v1274 = vpop.f32.mrb[0].mxu0
  %1275 = vdwg.mxu0
  %v1276 = vadd.f32 %v1228, %v1271
  %s1277 = scalar_lea.vmem %s52, 4
  %v1278 = vld [vmem:[%s1277] sm:$0xf]
  %v1279 = vunpack.c.l.bf16 %v1278
  %v1280 = vpack.c.bf16 %v1211, %v1211
  %1282 = vrot.lane.b32.xlu0 %v1280, 64
  %v1283 = vpop.permute.xlu0 %1282
  %v1285 = vsel %vm105, %v1283, 0
  %1287 = vmatprep.subr.bf16.mxu0 0
  %1288 = vmatpush1.bf16.msra.mxu0 %v162
  %1289 = vmatprep.subr.bf16.mxu0 0
  %1290 = vmatpush1.bf16.msra.mxu0 %v163
  %1291 = vmatprep.subr.bf16.mxu0 0
  %1292 = vmatpush1.bf16.msra.mxu0 0
  %1293 = vmatprep.subr.bf16.mxu0 0
  %1294 = vmatpush1.bf16.msra.mxu0 0
  %1295 = vmatprep.subr.bf16.mxu0 0
  %1296 = vmatpush1.bf16.msra.mxu0 0
  %1297 = vmatprep.subr.bf16.mxu0 0
  %1298 = vmatpush1.bf16.msra.mxu0 0
  %1299 = vmatprep.subr.bf16.mxu0 0
  %1300 = vmatpush1.bf16.msra.mxu0 0
  %1301 = vmatprep.subr.bf16.mxu0 0
  %1302 = vmatpush1.bf16.msra.mxu0 0
  %1303 = vmatprep.subr.bf16.mxu0 0
  %1304 = vmatpush1.bf16.msra.mxu0 0
  %1305 = vmatprep.subr.bf16.mxu0 0
  %1306 = vmatpush1.bf16.msra.mxu0 0
  %1307 = vmatprep.subr.bf16.mxu0 0
  %1308 = vmatpush1.bf16.msra.mxu0 0
  %1309 = vmatprep.subr.bf16.mxu0 0
  %1310 = vmatpush1.bf16.msra.mxu0 0
  %1311 = vmatprep.subr.bf16.mxu0 0
  %1312 = vmatpush1.bf16.msra.mxu0 0
  %1313 = vmatprep.subr.bf16.mxu0 0
  %1314 = vmatpush1.bf16.msra.mxu0 0
  %1315 = vmatprep.subr.bf16.mxu0 0
  %1316 = vmatpush1.bf16.msra.mxu0 0
  %1317 = vmatprep.subr.bf16.mxu0 0
  %1318 = vmatpush1.bf16.msra.mxu0 0
  %1319 = vmatprep.mubr.bf16.mxu0 0
  %1320 = vmatmul.mubr.bf16.gmra.mrb[0].mxu0 %v1285
  %v1321 = vpop.f32.mrb[0].mxu0
  %v1322 = vadd.f32 0.0, %v1321
  %v1323 = vpop.f32.mrb[0].mxu0
  %v1324 = vpop.f32.mrb[0].mxu0
  %v1325 = vpop.f32.mrb[0].mxu0
  %1326 = vdwg.mxu0
  %v1327 = vadd.f32 %v1279, %v1322
  %s1328 = sadd.s32 %s83, 6
  %v1329 = vxor.u32 %v1276, 2147483648
  %v1330 = vmul.f32 %v1329, 1.442695
  %v1331 = vpow.pop %v1330
  %v1332 = vadd.f32 %v1331, 1.0
  %v1333 = vrcp.pop %v1332
  %v1334 = vmul.f32 1.0, %v1333
  %v1335 = vtanh.pop %v1276
  %v1336 = vmul.f32 %v1334, %v1177
  %1338 = vrot.lane.b32.xlu0 %v1335, 32
  %v1339 = vpop.permute.xlu0 %1338
  %v1341 = vmul.f32 %v1334, %v1339
  %1343 = vrot.lane.b32.xlu0 %v1341, 32
  %v1344 = vpop.permute.xlu0 %1343
  %v1346 = vadd.f32 %v1336, %v1344
  %v1347 = vtanh.pop %v1346
  %1349 = vrot.lane.b32.xlu0 %v1347, 32
  %v1350 = vpop.permute.xlu0 %1349
  %v1352 = vmul.f32 %v1334, %v1350
  %v1353 = vstv %s1328
  %vm1354 = vcmp.gt.s32.totalorder %v82, %v1353
  %v1355 = vsel %vm1354, 1, 0
  %1356 = vset.pattern.permute.xlu0 0
  %1357 = vperm.xlu0 %1356, %v1355
  %v1358 = vpop.permute.xlu0 %1357
  %vm1359 = vcmp.eq.s32.totalorder %v1358, 1
  %v1360 = vsel %vm1359, %v1352, %v1176
  %v1361 = vsel %vm1359, %v1346, %v1177
  %v1362 = vsel %vm1359, %v1352, 0.0
  %s1363 = sadd.s32 %s85, 1
  %v1364 = vxor.u32 %v1327, 2147483648
  %v1365 = vmul.f32 %v1364, 1.442695
  %v1366 = vpow.pop %v1365
  %v1367 = vadd.f32 %v1366, 1.0
  %v1368 = vrcp.pop %v1367
  %v1369 = vmul.f32 1.0, %v1368
  %v1370 = vtanh.pop %v1327
  %v1371 = vmul.f32 %v1369, %v1212
  %1373 = vrot.lane.b32.xlu0 %v1370, 32
  %v1374 = vpop.permute.xlu0 %1373
  %v1376 = vmul.f32 %v1369, %v1374
  %1378 = vrot.lane.b32.xlu0 %v1376, 32
  %v1379 = vpop.permute.xlu0 %1378
  %v1381 = vadd.f32 %v1371, %v1379
  %v1382 = vtanh.pop %v1381
  %1384 = vrot.lane.b32.xlu0 %v1382, 32
  %v1385 = vpop.permute.xlu0 %1384
  %v1387 = vmul.f32 %v1369, %v1385
  %v1388 = vstv %s1363
  %vm1389 = vcmp.gt.s32.totalorder %v82, %v1388
  %v1390 = vsel %vm1389, 1, 0
  %1391 = vset.pattern.permute.xlu0 0
  %1392 = vperm.xlu0 %1391, %v1390
  %v1393 = vpop.permute.xlu0 %1392
  %vm1394 = vcmp.eq.s32.totalorder %v1393, 1
  %v1395 = vsel %vm1394, %v1387, %v1211
  %v1396 = vsel %vm1394, %v1381, %v1212
  %v1397 = vsel %vm1394, %v1387, 0.0
  %1399 = vrot.lane.b32.xlu0 %v1362, 64
  %v1400 = vpop.permute.xlu0 %1399
  %s1402 = scalar_lea.vmem %s5, 48
  %1403 = vst.msk [vmem:[%s1402] sm:$0xff] %vm105, %v1400
  %1405 = vrot.lane.b32.xlu0 %v1397, 64
  %v1406 = vpop.permute.xlu0 %1405
  %s1408 = scalar_lea.vmem %s61, 8
  %1409 = vst.msk [vmem:[%s1408] sm:$0xff] %vm105, %v1406
  %s1410 = scalar_lea.vmem %s0, 28
  %v1411 = vld [vmem:[%s1410] sm:$0xf]
  %v1412 = vunpack.c.l.bf16 %v1411
  %v1413 = vpack.c.bf16 %v1360, %v1360
  %1415 = vrot.lane.b32.xlu0 %v1413, 64
  %v1416 = vpop.permute.xlu0 %1415
  %v1418 = vsel %vm105, %v1416, 0
  %1420 = vmatprep.subr.bf16.mxu0 0
  %1421 = vmatpush1.bf16.msra.mxu0 %v101
  %1422 = vmatprep.subr.bf16.mxu0 0
  %1423 = vmatpush1.bf16.msra.mxu0 %v102
  %1424 = vmatprep.subr.bf16.mxu0 0
  %1425 = vmatpush1.bf16.msra.mxu0 0
  %1426 = vmatprep.subr.bf16.mxu0 0
  %1427 = vmatpush1.bf16.msra.mxu0 0
  %1428 = vmatprep.subr.bf16.mxu0 0
  %1429 = vmatpush1.bf16.msra.mxu0 0
  %1430 = vmatprep.subr.bf16.mxu0 0
  %1431 = vmatpush1.bf16.msra.mxu0 0
  %1432 = vmatprep.subr.bf16.mxu0 0
  %1433 = vmatpush1.bf16.msra.mxu0 0
  %1434 = vmatprep.subr.bf16.mxu0 0
  %1435 = vmatpush1.bf16.msra.mxu0 0
  %1436 = vmatprep.subr.bf16.mxu0 0
  %1437 = vmatpush1.bf16.msra.mxu0 0
  %1438 = vmatprep.subr.bf16.mxu0 0
  %1439 = vmatpush1.bf16.msra.mxu0 0
  %1440 = vmatprep.subr.bf16.mxu0 0
  %1441 = vmatpush1.bf16.msra.mxu0 0
  %1442 = vmatprep.subr.bf16.mxu0 0
  %1443 = vmatpush1.bf16.msra.mxu0 0
  %1444 = vmatprep.subr.bf16.mxu0 0
  %1445 = vmatpush1.bf16.msra.mxu0 0
  %1446 = vmatprep.subr.bf16.mxu0 0
  %1447 = vmatpush1.bf16.msra.mxu0 0
  %1448 = vmatprep.subr.bf16.mxu0 0
  %1449 = vmatpush1.bf16.msra.mxu0 0
  %1450 = vmatprep.subr.bf16.mxu0 0
  %1451 = vmatpush1.bf16.msra.mxu0 0
  %1452 = vmatprep.mubr.bf16.mxu0 0
  %1453 = vmatmul.mubr.bf16.gmra.mrb[0].mxu0 %v1418
  %v1454 = vpop.f32.mrb[0].mxu0
  %v1455 = vadd.f32 0.0, %v1454
  %v1456 = vpop.f32.mrb[0].mxu0
  %v1457 = vpop.f32.mrb[0].mxu0
  %v1458 = vpop.f32.mrb[0].mxu0
  %1459 = vdwg.mxu0
  %v1460 = vadd.f32 %v1412, %v1455
  %v1461 = vld [vmem:[%s52] sm:$0xf]
  %v1462 = vunpack.c.l.bf16 %v1461
  %v1463 = vpack.c.bf16 %v1395, %v1395
  %1465 = vrot.lane.b32.xlu0 %v1463, 64
  %v1466 = vpop.permute.xlu0 %1465
  %v1468 = vsel %vm105, %v1466, 0
  %1470 = vmatprep.subr.bf16.mxu0 0
  %1471 = vmatpush1.bf16.msra.mxu0 %v162
  %1472 = vmatprep.subr.bf16.mxu0 0
  %1473 = vmatpush1.bf16.msra.mxu0 %v163
  %1474 = vmatprep.subr.bf16.mxu0 0
  %1475 = vmatpush1.bf16.msra.mxu0 0
  %1476 = vmatprep.subr.bf16.mxu0 0
  %1477 = vmatpush1.bf16.msra.mxu0 0
  %1478 = vmatprep.subr.bf16.mxu0 0
  %1479 = vmatpush1.bf16.msra.mxu0 0
  %1480 = vmatprep.subr.bf16.mxu0 0
  %1481 = vmatpush1.bf16.msra.mxu0 0
  %1482 = vmatprep.subr.bf16.mxu0 0
  %1483 = vmatpush1.bf16.msra.mxu0 0
  %1484 = vmatprep.subr.bf16.mxu0 0
  %1485 = vmatpush1.bf16.msra.mxu0 0
  %1486 = vmatprep.subr.bf16.mxu0 0
  %1487 = vmatpush1.bf16.msra.mxu0 0
  %1488 = vmatprep.subr.bf16.mxu0 0
  %1489 = vmatpush1.bf16.msra.mxu0 0
  %1490 = vmatprep.subr.bf16.mxu0 0
  %1491 = vmatpush1.bf16.msra.mxu0 0
  %1492 = vmatprep.subr.bf16.mxu0 0
  %1493 = vmatpush1.bf16.msra.mxu0 0
  %1494 = vmatprep.subr.bf16.mxu0 0
  %1495 = vmatpush1.bf16.msra.mxu0 0
  %1496 = vmatprep.subr.bf16.mxu0 0
  %1497 = vmatpush1.bf16.msra.mxu0 0
  %1498 = vmatprep.subr.bf16.mxu0 0
  %1499 = vmatpush1.bf16.msra.mxu0 0
  %1500 = vmatprep.subr.bf16.mxu0 0
  %1501 = vmatpush1.bf16.msra.mxu0 0
  %1502 = vmatprep.mubr.bf16.mxu0 0
  %1503 = vmatmul.mubr.bf16.gmra.mrb[0].mxu0 %v1468
  %v1504 = vpop.f32.mrb[0].mxu0
  %v1505 = vadd.f32 0.0, %v1504
  %v1506 = vpop.f32.mrb[0].mxu0
  %v1507 = vpop.f32.mrb[0].mxu0
  %v1508 = vpop.f32.mrb[0].mxu0
  %1509 = vdwg.mxu0
  %v1510 = vadd.f32 %v1462, %v1505
  %s1511 = sadd.s32 %s83, 7
  %v1512 = vxor.u32 %v1460, 2147483648
  %v1513 = vmul.f32 %v1512, 1.442695
  %v1514 = vpow.pop %v1513
  %v1515 = vadd.f32 %v1514, 1.0
  %v1516 = vrcp.pop %v1515
  %v1517 = vmul.f32 1.0, %v1516
  %v1518 = vtanh.pop %v1460
  %v1519 = vmul.f32 %v1517, %v1361
  %1521 = vrot.lane.b32.xlu0 %v1518, 32
  %v1522 = vpop.permute.xlu0 %1521
  %v1524 = vmul.f32 %v1517, %v1522
  %1526 = vrot.lane.b32.xlu0 %v1524, 32
  %v1527 = vpop.permute.xlu0 %1526
  %v1529 = vadd.f32 %v1519, %v1527
  %v1530 = vtanh.pop %v1529
  %1532 = vrot.lane.b32.xlu0 %v1530, 32
  %v1533 = vpop.permute.xlu0 %1532
  %v1535 = vmul.f32 %v1517, %v1533
  %v1536 = vstv %s1511
  %vm1537 = vcmp.gt.s32.totalorder %v82, %v1536
  %v1538 = vsel %vm1537, 1, 0
  %1539 = vset.pattern.permute.xlu0 0
  %1540 = vperm.xlu0 %1539, %v1538
  %v1541 = vpop.permute.xlu0 %1540
  %vm1542 = vcmp.eq.s32.totalorder %v1541, 1
  %v1543 = vsel %vm1542, %v1535, %v1360
  %v1544 = vsel %vm1542, %v1529, %v1361
  %v1545 = vsel %vm1542, %v1535, 0.0
  %v1546 = vxor.u32 %v1510, 2147483648
  %v1547 = vmul.f32 %v1546, 1.442695
  %v1548 = vpow.pop %v1547
  %v1549 = vadd.f32 %v1548, 1.0
  %v1550 = vrcp.pop %v1549
  %v1551 = vmul.f32 1.0, %v1550
  %v1552 = vtanh.pop %v1510
  %v1553 = vmul.f32 %v1551, %v1396
  %1555 = vrot.lane.b32.xlu0 %v1552, 32
  %v1556 = vpop.permute.xlu0 %1555
  %v1558 = vmul.f32 %v1551, %v1556
  %1560 = vrot.lane.b32.xlu0 %v1558, 32
  %v1561 = vpop.permute.xlu0 %1560
  %v1563 = vadd.f32 %v1553, %v1561
  %v1564 = vtanh.pop %v1563
  %1566 = vrot.lane.b32.xlu0 %v1564, 32
  %v1567 = vpop.permute.xlu0 %1566
  %v1569 = vmul.f32 %v1551, %v1567
  %v1570 = vstv %s85
  %vm1571 = vcmp.gt.s32.totalorder %v82, %v1570
  %v1572 = vsel %vm1571, 1, 0
  %1573 = vset.pattern.permute.xlu0 0
  %1574 = vperm.xlu0 %1573, %v1572
  %v1575 = vpop.permute.xlu0 %1574
  %vm1576 = vcmp.eq.s32.totalorder %v1575, 1
  %v1577 = vsel %vm1576, %v1569, %v1395
  %v1578 = vsel %vm1576, %v1563, %v1396
  %v1579 = vsel %vm1576, %v1569, 0.0
  %1581 = vrot.lane.b32.xlu0 %v1545, 64
  %v1582 = vpop.permute.xlu0 %1581
  %s1584 = scalar_lea.vmem %s5, 56
  %1585 = vst.msk [vmem:[%s1584] sm:$0xff] %vm105, %v1582
  %1587 = vrot.lane.b32.xlu0 %v1579, 64
  %v1588 = vpop.permute.xlu0 %1587
  %1590 = vst.msk [vmem:[%s61] sm:$0xff] %vm105, %v1588
  %1592 = vrot.lane.b32.xlu0 %v1543, 64
  %v1593 = vpop.permute.xlu0 %1592
  %1595 = vst.msk [vmem:[#allocation2] sm:$0xff] %vm105, %v1593
  %1597 = vrot.lane.b32.xlu0 %v1544, 96
  %v1598 = vpop.permute.xlu0 %1597
  %1600 = vst.msk [vmem:[#allocation3] sm:$0xff] %vm105, %v1598
  %1602 = vrot.lane.b32.xlu0 %v1577, 64
  %v1603 = vpop.permute.xlu0 %1602
  %1605 = vst.msk [vmem:[#allocation4] sm:$0xff] %vm105, %v1603
  %1607 = vrot.lane.b32.xlu0 %v1578, 96
  %v1608 = vpop.permute.xlu0 %1607
  %1610 = vst.msk [vmem:[#allocation5] sm:$0xff] %vm105, %v1608
  %s1611 = ssub.s32 0, 0
  %s1612 = smul.u32 8, %s1611
  %p1613 = scmp.lt.s32.totalorder %s1612, 7
  %s1614 = scalar_select %p1613, %s1612, 7
  %s1615 = smul.addr %s1614, 8
  %s1616 = scalar_lea.vmem %s6, %s1615
  // Predicated region
  $region26: #{_lambda_.12} parent=0 // pred_check
    _
  $region27: #{_lambda_.12} parent=0 // pred_check_branch
    %1618 = sbr.rel (0) target = $region29
  $region28: #{_lambda_.12} parent=0 // pred_region
    _
  $region29: #{_lambda_.12} parent=0 // pred_fallthru
    _
  // Predicated region
  $region30: #{_lambda_.12} parent=0 // pred_check
    _
  $region31: #{_lambda_.12} parent=0 // pred_check_branch
    %1620 = sbr.rel (0) target = $region33
  $region32: #{_lambda_.12} parent=0 // pred_region
    %s1621 = ssub.s32 0, 0
    %s1622 = smul.u32 8, %s1621
  $region33: #{_lambda_.12} parent=0 // pred_fallthru
    _
  // Predicated region
  $region34: #{_lambda_.12} parent=0 // pred_check
    _
  $region35: #{_lambda_.12} parent=0 // pred_check_branch
    %1624 = sbr.rel (0) target = $region37
  $region36: #{_lambda_.12} parent=0 // pred_region
    _
  $region37: #{_lambda_.12} parent=0 // pred_fallthru
    _
  // Predicated region
  $region38: #{_lambda_.12} parent=0 // pred_check
    _
  $region39: #{_lambda_.12} parent=0 // pred_check_branch
    %1626 = sbr.rel (0) target = $region41
  $region40: #{_lambda_.12} parent=0 // pred_region
    %s1627 = ssub.s32 0, 0
    %s1628 = smul.u32 8, %s1627
    %p1629 = scmp.lt.s32.totalorder %s1628, 7
    %s1630 = scalar_select %p1629, %s1628, 7
    %s1631 = smul.addr %s1630, 8
    %s1632 = scalar_lea.vmem %s6, %s1631
  $region41: #{_lambda_.12} parent=0 // pred_fallthru
    _

// kernel: _lambda_.9
$region0: #{_lambda_.9}
  #allocation0 [shape = 'u32[]', space=smem, size = 0x4, offset = 0x4, fixed_abs, tag = 'smem constant byte address 0x4 - core index']
  #allocation1 [shape = 'u32[144,128]{1,0:T(1,128)}', space=vmem, size = 0x12000, scoped, tag = 'internal scratch']
  #allocation2 [shape = 'f32[8,32]{1,0:T(8,128)}', space=vmem, size = 0x1000, scoped, tag = 'scratch operand']
  #allocation3 [shape = 'f32[8,32]{1,0:T(8,128)}', space=vmem, size = 0x1000, scoped, tag = 'scratch operand']
  #allocation4 [shape = 'f32[8,32]{1,0:T(8,128)}', space=vmem, size = 0x1000, scoped, tag = 'scratch operand']
  #allocation5 [shape = 'f32[8,32]{1,0:T(8,128)}', space=vmem, size = 0x1000, scoped, tag = 'scratch operand']
  %s0 = inlined_call_operand.vmem [shape: bf16[2,16,8,128], index: 0, kind: input, shape index: {}, may-alias: {0,1}]
  %s1 = inlined_call_operand.vmem [shape: bf16[2,16,8,128], index: 1, kind: input, shape index: {}, may-alias: {0,1}]
  %s2 = inlined_call_operand.vmem [shape: bf16[2,32,128], index: 2, kind: input, shape index: {}, may-alias: {2,3}]
  %s3 = inlined_call_operand.vmem [shape: bf16[2,32,128], index: 3, kind: input, shape index: {}, may-alias: {2,3}]
  %s4 = inlined_call_operand.vmem [shape: s32[8,1], index: 4, kind: input, shape index: {}]
  %s5 = inlined_call_operand.vmem [shape: f32[16,8,32], index: 5, kind: output, shape index: {0}]
  %s6 = inlined_call_operand.vmem [shape: f32[16,8,32], index: 6, kind: output, shape index: {1}]
  %7 = xla_tuple %s5, %s6
  %s8 = sld [smem:[#allocation0]]
  $region42: #{_lambda_.9} parent=0
    _
  %s10 = ssub.s32 1, %s8
  %s11 = scalar_select 0, %s10, %s8
  // Predicated region
  $region2: #{_lambda_.9} parent=0 // pred_check
    _
  $region3: #{_lambda_.9} parent=0 // pred_check_branch
    %13 = sbr.rel (0) target = $region5
  $region4: #{_lambda_.9} parent=0 // pred_region
    _
  $region5: #{_lambda_.9} parent=0 // pred_fallthru
    _
  // Predicated region
  $region6: #{_lambda_.9} parent=0 // pred_check
    _
  $region7: #{_lambda_.9} parent=0 // pred_check_branch
    %15 = sbr.rel (0) target = $region9
  $region8: #{_lambda_.9} parent=0 // pred_region
    %s16 = ssub.s32 0, 0
    %s17 = smul.u32 16, %s16
    %p18 = scmp.lt.s32.totalorder %s17, 15
    %s19 = scalar_select %p18, %s17, 15
    %s20 = sadd.s32 %s19, 16
    %s21 = smul.addr %s20, 4
    %s22 = scalar_lea.vmem %s1, %s21
    %s23 = ssub.s32 0, 0
    %s24 = smul.u32 16, %s23
  $region9: #{_lambda_.9} parent=0 // pred_fallthru
    _
  // Predicated region
  $region10: #{_lambda_.9} parent=0 // pred_check
    _
  $region11: #{_lambda_.9} parent=0 // pred_check_branch
    %26 = sbr.rel (0) target = $region13
  $region12: #{_lambda_.9} parent=0 // pred_region
    _
  $region13: #{_lambda_.9} parent=0 // pred_fallthru
    _
  // Predicated region
  $region14: #{_lambda_.9} parent=0 // pred_check
    _
  $region15: #{_lambda_.9} parent=0 // pred_check_branch
    %28 = sbr.rel (0) target = $region17
  $region16: #{_lambda_.9} parent=0 // pred_region
    %s29 = scalar_lea.vmem %s3, 16
  $region17: #{_lambda_.9} parent=0 // pred_fallthru
    _
  // Predicated region
  $region18: #{_lambda_.9} parent=0 // pred_check
    _
  $region19: #{_lambda_.9} parent=0 // pred_check_branch
    %31 = sbr.rel (0) target = $region21
  $region20: #{_lambda_.9} parent=0 // pred_region
    _
  $region21: #{_lambda_.9} parent=0 // pred_fallthru
    _
  %s32 = ssub.s32 0, 0
  %s33 = smul.u32 16, %s32
  %p34 = scmp.lt.s32.totalorder %s33, 15
  %s35 = scalar_select %p34, %s33, 15
  %s36 = sadd.s32 %s35, 16
  %s37 = smul.addr %s36, 4
  %s38 = scalar_lea.vmem %s1, %s37
  %s39 = scalar_lea.vmem %s3, 16
  %s40 = ssub.s32 0, 0
  %s41 = smul.u32 16, %s40
  %p42 = scmp.lt.s32.totalorder %s41, 15
  %s43 = scalar_select %p42, %s41, 15
  %s44 = smul.addr %s43, 8
  %s45 = scalar_lea.vmem %s6, %s44
  %s46 = ssub.s32 0, 0
  %s47 = smul.u32 16, %s46
  %p48 = scmp.lt.s32.totalorder %s47, 15
  %s49 = scalar_select %p48, %s47, 15
  %s50 = sadd.s32 %s49, 16
  %s51 = smul.addr %s50, 4
  %s52 = scalar_lea.vmem %s1, %s51
  %s53 = ssub.s32 0, 0
  %s54 = smul.u32 16, %s53
  %s55 = scalar_lea.vmem %s3, 16
  %s56 = ssub.s32 0, 0
  %s57 = smul.u32 16, %s56
  %p58 = scmp.lt.s32.totalorder %s57, 15
  %s59 = scalar_select %p58, %s57, 15
  %s60 = smul.addr %s59, 8
  %s61 = scalar_lea.vmem %s6, %s60
  %s62 = ssub.s32 0, 0
  %s63 = smul.u32 16, %s62
  %p65 = scmp.eq.s32.totalorder 0, 0
  // Predicated region
  $region22: #{_lambda_.9} parent=0 // pred_check
    %p66 = pneg %p65
  $region23: #{_lambda_.9} parent=0 // pred_check_branch
    %68 = sbr.rel (%p66) target = $region25
  $region24: #{_lambda_.9} parent=0 // pred_region
    %vm69 = vcmask 261120
    %70 = vst.msk [vmem:[#allocation2] sm:$0xff] %vm69, 0.0
    %71 = vst.msk [vmem:[#allocation3] sm:$0xff] %vm69, 0.0
    %72 = vst.msk [vmem:[#allocation4] sm:$0xff] %vm69, 0.0
    %73 = vst.msk [vmem:[#allocation5] sm:$0xff] %vm69, 0.0
  $region25: #{_lambda_.9} parent=0 // pred_fallthru
    _
  %v74 = vld [vmem:[%s2] sm:$0xf]
  %v75 = vld [vmem:[%s2 + $0x4] sm:$0xf]
  %v76 = vld [vmem:[%s2 + $0x8] sm:$0xf]
  %v77 = vld [vmem:[%s2 + $0xc] sm:$0xf]
  %v78 = vld [vmem:[%s55] sm:$0xf]
  %v79 = vld [vmem:[%s55 + $0x4] sm:$0xf]
  %v80 = vld [vmem:[%s55 + $0x8] sm:$0xf]
  %v81 = vld [vmem:[%s55 + $0xc] sm:$0xf]
  %v82 = vld [vmem:[%s4] sm:$0xff]
  %s83 = smul.u32 0, 16
  %s84 = ssub.s32 0, 0
  %s85 = smul.u32 %s84, 16
  %v86 = vld [vmem:[#allocation2] sm:$0xff]
  %v87 = vld [vmem:[#allocation3] sm:$0xff]
  %v88 = vld [vmem:[#allocation4] sm:$0xff]
  %v89 = vld [vmem:[#allocation5] sm:$0xff]
  %v90 = vld [vmem:[%s0] sm:$0xf]
  %v91 = vunpack.c.l.bf16 %v90
  %v92 = vpack.c.bf16 %v86, %v86
  %v97 = vunpack.c.l.b16 %v74
  %v98 = vunpack.c.l.b16 %v75
  %v99 = vunpack.c.l.b16 %v76
  %v100 = vunpack.c.l.b16 %v77
  %v101 = vpack.c.b16 %v98, %v97
  %v102 = vpack.c.b16 %v100, %v99
  %vm105 = vcmask 261120
  %v107 = vsel %vm105, %v92, 0
  %109 = vmatprep.subr.bf16.mxu0 0
  %110 = vmatpush1.bf16.msra.mxu0 %v101
  %111 = vmatprep.subr.bf16.mxu0 0
  %112 = vmatpush1.bf16.msra.mxu0 %v102
  %113 = vmatprep.subr.bf16.mxu0 0
  %114 = vmatpush1.bf16.msra.mxu0 0
  %115 = vmatprep.subr.bf16.mxu0 0
  %116 = vmatpush1.bf16.msra.mxu0 0
  %117 = vmatprep.subr.bf16.mxu0 0
  %118 = vmatpush1.bf16.msra.mxu0 0
  %119 = vmatprep.subr.bf16.mxu0 0
  %120 = vmatpush1.bf16.msra.mxu0 0
  %121 = vmatprep.subr.bf16.mxu0 0
  %122 = vmatpush1.bf16.msra.mxu0 0
  %123 = vmatprep.subr.bf16.mxu0 0
  %124 = vmatpush1.bf16.msra.mxu0 0
  %125 = vmatprep.subr.bf16.mxu0 0
  %126 = vmatpush1.bf16.msra.mxu0 0
  %127 = vmatprep.subr.bf16.mxu0 0
  %128 = vmatpush1.bf16.msra.mxu0 0
  %129 = vmatprep.subr.bf16.mxu0 0
  %130 = vmatpush1.bf16.msra.mxu0 0
  %131 = vmatprep.subr.bf16.mxu0 0
  %132 = vmatpush1.bf16.msra.mxu0 0
  %133 = vmatprep.subr.bf16.mxu0 0
  %134 = vmatpush1.bf16.msra.mxu0 0
  %135 = vmatprep.subr.bf16.mxu0 0
  %136 = vmatpush1.bf16.msra.mxu0 0
  %137 = vmatprep.subr.bf16.mxu0 0
  %138 = vmatpush1.bf16.msra.mxu0 0
  %139 = vmatprep.subr.bf16.mxu0 0
  %140 = vmatpush1.bf16.msra.mxu0 0
  %141 = vmatprep.mubr.bf16.mxu0 0
  %142 = vmatmul.mubr.bf16.gmra.mrb[0].mxu0 %v107
  %v143 = vpop.f32.mrb[0].mxu0
  %v144 = vadd.f32 0.0, %v143
  %v145 = vpop.f32.mrb[0].mxu0
  %v146 = vpop.f32.mrb[0].mxu0
  %v147 = vpop.f32.mrb[0].mxu0
  %148 = vdwg.mxu0
  %v149 = vadd.f32 %v91, %v144
  %s150 = scalar_lea.vmem %s52, 60
  %v151 = vld [vmem:[%s150] sm:$0xf]
  %v152 = vunpack.c.l.bf16 %v151
  %v153 = vpack.c.bf16 %v88, %v88
  %v158 = vunpack.c.l.b16 %v78
  %v159 = vunpack.c.l.b16 %v79
  %v160 = vunpack.c.l.b16 %v80
  %v161 = vunpack.c.l.b16 %v81
  %v162 = vpack.c.b16 %v159, %v158
  %v163 = vpack.c.b16 %v161, %v160
  %v167 = vsel %vm105, %v153, 0
  %169 = vmatprep.subr.bf16.mxu0 0
  %170 = vmatpush1.bf16.msra.mxu0 %v162
  %171 = vmatprep.subr.bf16.mxu0 0
  %172 = vmatpush1.bf16.msra.mxu0 %v163
  %173 = vmatprep.subr.bf16.mxu0 0
  %174 = vmatpush1.bf16.msra.mxu0 0
  %175 = vmatprep.subr.bf16.mxu0 0
  %176 = vmatpush1.bf16.msra.mxu0 0
  %177 = vmatprep.subr.bf16.mxu0 0
  %178 = vmatpush1.bf16.msra.mxu0 0
  %179 = vmatprep.subr.bf16.mxu0 0
  %180 = vmatpush1.bf16.msra.mxu0 0
  %181 = vmatprep.subr.bf16.mxu0 0
  %182 = vmatpush1.bf16.msra.mxu0 0
  %183 = vmatprep.subr.bf16.mxu0 0
  %184 = vmatpush1.bf16.msra.mxu0 0
  %185 = vmatprep.subr.bf16.mxu0 0
  %186 = vmatpush1.bf16.msra.mxu0 0
  %187 = vmatprep.subr.bf16.mxu0 0
  %188 = vmatpush1.bf16.msra.mxu0 0
  %189 = vmatprep.subr.bf16.mxu0 0
  %190 = vmatpush1.bf16.msra.mxu0 0
  %191 = vmatprep.subr.bf16.mxu0 0
  %192 = vmatpush1.bf16.msra.mxu0 0
  %193 = vmatprep.subr.bf16.mxu0 0
  %194 = vmatpush1.bf16.msra.mxu0 0
  %195 = vmatprep.subr.bf16.mxu0 0
  %196 = vmatpush1.bf16.msra.mxu0 0
  %197 = vmatprep.subr.bf16.mxu0 0
  %198 = vmatpush1.bf16.msra.mxu0 0
  %199 = vmatprep.subr.bf16.mxu0 0
  %200 = vmatpush1.bf16.msra.mxu0 0
  %201 = vmatprep.mubr.bf16.mxu0 0
  %202 = vmatmul.mubr.bf16.gmra.mrb[0].mxu0 %v167
  %v203 = vpop.f32.mrb[0].mxu0
  %v204 = vadd.f32 0.0, %v203
  %v205 = vpop.f32.mrb[0].mxu0
  %v206 = vpop.f32.mrb[0].mxu0
  %v207 = vpop.f32.mrb[0].mxu0
  %208 = vdwg.mxu0
  %v209 = vadd.f32 %v152, %v204
  %v210 = vxor.u32 %v149, 2147483648
  %v211 = vmul.f32 %v210, 1.442695
  %v212 = vpow.pop %v211
  %v213 = vadd.f32 %v212, 1.0
  %v214 = vrcp.pop %v213
  %v215 = vmul.f32 1.0, %v214
  %v216 = vtanh.pop %v149
  %218 = vrot.lane.b32.xlu0 %v87, 32
  %v219 = vpop.permute.xlu0 %218
  %v221 = vmul.f32 %v215, %v219
  %223 = vrot.lane.b32.xlu0 %v216, 32
  %v224 = vpop.permute.xlu0 %223
  %v226 = vmul.f32 %v215, %v224
  %228 = vrot.lane.b32.xlu0 %v226, 32
  %v229 = vpop.permute.xlu0 %228
  %v231 = vadd.f32 %v221, %v229
  %v232 = vtanh.pop %v231
  %234 = vrot.lane.b32.xlu0 %v232, 32
  %v235 = vpop.permute.xlu0 %234
  %v237 = vmul.f32 %v215, %v235
  %v238 = vstv %s83
  %vm239 = vcmp.gt.s32.totalorder %v82, %v238
  %v240 = vsel %vm239, 1, 0
  %241 = vset.pattern.permute.xlu0 0
  %242 = vperm.xlu0 %241, %v240
  %v243 = vpop.permute.xlu0 %242
  %vm244 = vcmp.eq.s32.totalorder %v243, 1
  %246 = vrot.lane.b32.xlu0 %v86, 64
  %v247 = vpop.permute.xlu0 %246
  %v249 = vsel %vm244, %v237, %v247
  %v250 = vsel %vm244, %v231, %v219
  %v251 = vsel %vm244, %v237, 0.0
  %s252 = sadd.s32 %s85, 15
  %v253 = vxor.u32 %v209, 2147483648
  %v254 = vmul.f32 %v253, 1.442695
  %v255 = vpow.pop %v254
  %v256 = vadd.f32 %v255, 1.0
  %v257 = vrcp.pop %v256
  %v258 = vmul.f32 1.0, %v257
  %v259 = vtanh.pop %v209
  %261 = vrot.lane.b32.xlu0 %v89, 32
  %v262 = vpop.permute.xlu0 %261
  %v264 = vmul.f32 %v258, %v262
  %266 = vrot.lane.b32.xlu0 %v259, 32
  %v267 = vpop.permute.xlu0 %266
  %v269 = vmul.f32 %v258, %v267
  %271 = vrot.lane.b32.xlu0 %v269, 32
  %v272 = vpop.permute.xlu0 %271
  %v274 = vadd.f32 %v264, %v272
  %v275 = vtanh.pop %v274
  %277 = vrot.lane.b32.xlu0 %v275, 32
  %v278 = vpop.permute.xlu0 %277
  %v280 = vmul.f32 %v258, %v278
  %v281 = vstv %s252
  %vm282 = vcmp.gt.s32.totalorder %v82, %v281
  %v283 = vsel %vm282, 1, 0
  %284 = vset.pattern.permute.xlu0 0
  %285 = vperm.xlu0 %284, %v283
  %v286 = vpop.permute.xlu0 %285
  %vm287 = vcmp.eq.s32.totalorder %v286, 1
  %289 = vrot.lane.b32.xlu0 %v88, 64
  %v290 = vpop.permute.xlu0 %289
  %v292 = vsel %vm287, %v280, %v290
  %v293 = vsel %vm287, %v274, %v262
  %v294 = vsel %vm287, %v280, 0.0
  %296 = vrot.lane.b32.xlu0 %v251, 64
  %v297 = vpop.permute.xlu0 %296
  %299 = vst.msk [vmem:[%s5] sm:$0xff] %vm105, %v297
  %301 = vrot.lane.b32.xlu0 %v294, 64
  %v302 = vpop.permute.xlu0 %301
  %s304 = scalar_lea.vmem %s61, 120
  %305 = vst.msk [vmem:[%s304] sm:$0xff] %vm105, %v302
  %s306 = scalar_lea.vmem %s0, 4
  %v307 = vld [vmem:[%s306] sm:$0xf]
  %v308 = vunpack.c.l.bf16 %v307
  %v309 = vpack.c.bf16 %v249, %v249
  %311 = vrot.lane.b32.xlu0 %v309, 64
  %v312 = vpop.permute.xlu0 %311
  %v314 = vsel %vm105, %v312, 0
  %316 = vmatprep.subr.bf16.mxu0 0
  %317 = vmatpush1.bf16.msra.mxu0 %v101
  %318 = vmatprep.subr.bf16.mxu0 0
  %319 = vmatpush1.bf16.msra.mxu0 %v102
  %320 = vmatprep.subr.bf16.mxu0 0
  %321 = vmatpush1.bf16.msra.mxu0 0
  %322 = vmatprep.subr.bf16.mxu0 0
  %323 = vmatpush1.bf16.msra.mxu0 0
  %324 = vmatprep.subr.bf16.mxu0 0
  %325 = vmatpush1.bf16.msra.mxu0 0
  %326 = vmatprep.subr.bf16.mxu0 0
  %327 = vmatpush1.bf16.msra.mxu0 0
  %328 = vmatprep.subr.bf16.mxu0 0
  %329 = vmatpush1.bf16.msra.mxu0 0
  %330 = vmatprep.subr.bf16.mxu0 0
  %331 = vmatpush1.bf16.msra.mxu0 0
  %332 = vmatprep.subr.bf16.mxu0 0
  %333 = vmatpush1.bf16.msra.mxu0 0
  %334 = vmatprep.subr.bf16.mxu0 0
  %335 = vmatpush1.bf16.msra.mxu0 0
  %336 = vmatprep.subr.bf16.mxu0 0
  %337 = vmatpush1.bf16.msra.mxu0 0
  %338 = vmatprep.subr.bf16.mxu0 0
  %339 = vmatpush1.bf16.msra.mxu0 0
  %340 = vmatprep.subr.bf16.mxu0 0
  %341 = vmatpush1.bf16.msra.mxu0 0
  %342 = vmatprep.subr.bf16.mxu0 0
  %343 = vmatpush1.bf16.msra.mxu0 0
  %344 = vmatprep.subr.bf16.mxu0 0
  %345 = vmatpush1.bf16.msra.mxu0 0
  %346 = vmatprep.subr.bf16.mxu0 0
  %347 = vmatpush1.bf16.msra.mxu0 0
  %348 = vmatprep.mubr.bf16.mxu0 0
  %349 = vmatmul.mubr.bf16.gmra.mrb[0].mxu0 %v314
  %v350 = vpop.f32.mrb[0].mxu0
  %v351 = vadd.f32 0.0, %v350
  %v352 = vpop.f32.mrb[0].mxu0
  %v353 = vpop.f32.mrb[0].mxu0
  %v354 = vpop.f32.mrb[0].mxu0
  %355 = vdwg.mxu0
  %v356 = vadd.f32 %v308, %v351
  %s357 = scalar_lea.vmem %s52, 56
  %v358 = vld [vmem:[%s357] sm:$0xf]
  %v359 = vunpack.c.l.bf16 %v358
  %v360 = vpack.c.bf16 %v292, %v292
  %362 = vrot.lane.b32.xlu0 %v360, 64
  %v363 = vpop.permute.xlu0 %362
  %v365 = vsel %vm105, %v363, 0
  %367 = vmatprep.subr.bf16.mxu0 0
  %368 = vmatpush1.bf16.msra.mxu0 %v162
  %369 = vmatprep.subr.bf16.mxu0 0
  %370 = vmatpush1.bf16.msra.mxu0 %v163
  %371 = vmatprep.subr.bf16.mxu0 0
  %372 = vmatpush1.bf16.msra.mxu0 0
  %373 = vmatprep.subr.bf16.mxu0 0
  %374 = vmatpush1.bf16.msra.mxu0 0
  %375 = vmatprep.subr.bf16.mxu0 0
  %376 = vmatpush1.bf16.msra.mxu0 0
  %377 = vmatprep.subr.bf16.mxu0 0
  %378 = vmatpush1.bf16.msra.mxu0 0
  %379 = vmatprep.subr.bf16.mxu0 0
  %380 = vmatpush1.bf16.msra.mxu0 0
  %381 = vmatprep.subr.bf16.mxu0 0
  %382 = vmatpush1.bf16.msra.mxu0 0
  %383 = vmatprep.subr.bf16.mxu0 0
  %384 = vmatpush1.bf16.msra.mxu0 0
  %385 = vmatprep.subr.bf16.mxu0 0
  %386 = vmatpush1.bf16.msra.mxu0 0
  %387 = vmatprep.subr.bf16.mxu0 0
  %388 = vmatpush1.bf16.msra.mxu0 0
  %389 = vmatprep.subr.bf16.mxu0 0
  %390 = vmatpush1.bf16.msra.mxu0 0
  %391 = vmatprep.subr.bf16.mxu0 0
  %392 = vmatpush1.bf16.msra.mxu0 0
  %393 = vmatprep.subr.bf16.mxu0 0
  %394 = vmatpush1.bf16.msra.mxu0 0
  %395 = vmatprep.subr.bf16.mxu0 0
  %396 = vmatpush1.bf16.msra.mxu0 0
  %397 = vmatprep.subr.bf16.mxu0 0
  %398 = vmatpush1.bf16.msra.mxu0 0
  %399 = vmatprep.mubr.bf16.mxu0 0
  %400 = vmatmul.mubr.bf16.gmra.mrb[0].mxu0 %v365
  %v401 = vpop.f32.mrb[0].mxu0
  %v402 = vadd.f32 0.0, %v401
  %v403 = vpop.f32.mrb[0].mxu0
  %v404 = vpop.f32.mrb[0].mxu0
  %v405 = vpop.f32.mrb[0].mxu0
  %406 = vdwg.mxu0
  %v407 = vadd.f32 %v359, %v402
  %s408 = sadd.s32 %s83, 1
  %v409 = vxor.u32 %v356, 2147483648
  %v410 = vmul.f32 %v409, 1.442695
  %v411 = vpow.pop %v410
  %v412 = vadd.f32 %v411, 1.0
  %v413 = vrcp.pop %v412
  %v414 = vmul.f32 1.0, %v413
  %v415 = vtanh.pop %v356
  %v416 = vmul.f32 %v414, %v250
  %418 = vrot.lane.b32.xlu0 %v415, 32
  %v419 = vpop.permute.xlu0 %418
  %v421 = vmul.f32 %v414, %v419
  %423 = vrot.lane.b32.xlu0 %v421, 32
  %v424 = vpop.permute.xlu0 %423
  %v426 = vadd.f32 %v416, %v424
  %v427 = vtanh.pop %v426
  %429 = vrot.lane.b32.xlu0 %v427, 32
  %v430 = vpop.permute.xlu0 %429
  %v432 = vmul.f32 %v414, %v430
  %v433 = vstv %s408
  %vm434 = vcmp.gt.s32.totalorder %v82, %v433
  %v435 = vsel %vm434, 1, 0
  %436 = vset.pattern.permute.xlu0 0
  %437 = vperm.xlu0 %436, %v435
  %v438 = vpop.permute.xlu0 %437
  %vm439 = vcmp.eq.s32.totalorder %v438, 1
  %v440 = vsel %vm439, %v432, %v249
  %v441 = vsel %vm439, %v426, %v250
  %v442 = vsel %vm439, %v432, 0.0
  %s443 = sadd.s32 %s85, 14
  %v444 = vxor.u32 %v407, 2147483648
  %v445 = vmul.f32 %v444, 1.442695
  %v446 = vpow.pop %v445
  %v447 = vadd.f32 %v446, 1.0
  %v448 = vrcp.pop %v447
  %v449 = vmul.f32 1.0, %v448
  %v450 = vtanh.pop %v407
  %v451 = vmul.f32 %v449, %v293
  %453 = vrot.lane.b32.xlu0 %v450, 32
  %v454 = vpop.permute.xlu0 %453
  %v456 = vmul.f32 %v449, %v454
  %458 = vrot.lane.b32.xlu0 %v456, 32
  %v459 = vpop.permute.xlu0 %458
  %v461 = vadd.f32 %v451, %v459
  %v462 = vtanh.pop %v461
  %464 = vrot.lane.b32.xlu0 %v462, 32
  %v465 = vpop.permute.xlu0 %464
  %v467 = vmul.f32 %v449, %v465
  %v468 = vstv %s443
  %vm469 = vcmp.gt.s32.totalorder %v82, %v468
  %v470 = vsel %vm469, 1, 0
  %471 = vset.pattern.permute.xlu0 0
  %472 = vperm.xlu0 %471, %v470
  %v473 = vpop.permute.xlu0 %472
  %vm474 = vcmp.eq.s32.totalorder %v473, 1
  %v475 = vsel %vm474, %v467, %v292
  %v476 = vsel %vm474, %v461, %v293
  %v477 = vsel %vm474, %v467, 0.0
  %479 = vrot.lane.b32.xlu0 %v442, 64
  %v480 = vpop.permute.xlu0 %479
  %s482 = scalar_lea.vmem %s5, 8
  %483 = vst.msk [vmem:[%s482] sm:$0xff] %vm105, %v480
  %485 = vrot.lane.b32.xlu0 %v477, 64
  %v486 = vpop.permute.xlu0 %485
  %s488 = scalar_lea.vmem %s61, 112
  %489 = vst.msk [vmem:[%s488] sm:$0xff] %vm105, %v486
  %s490 = scalar_lea.vmem %s0, 8
  %v491 = vld [vmem:[%s490] sm:$0xf]
  %v492 = vunpack.c.l.bf16 %v491
  %v493 = vpack.c.bf16 %v440, %v440
  %495 = vrot.lane.b32.xlu0 %v493, 64
  %v496 = vpop.permute.xlu0 %495
  %v498 = vsel %vm105, %v496, 0
  %500 = vmatprep.subr.bf16.mxu0 0
  %501 = vmatpush1.bf16.msra.mxu0 %v101
  %502 = vmatprep.subr.bf16.mxu0 0
  %503 = vmatpush1.bf16.msra.mxu0 %v102
  %504 = vmatprep.subr.bf16.mxu0 0
  %505 = vmatpush1.bf16.msra.mxu0 0
  %506 = vmatprep.subr.bf16.mxu0 0
  %507 = vmatpush1.bf16.msra.mxu0 0
  %508 = vmatprep.subr.bf16.mxu0 0
  %509 = vmatpush1.bf16.msra.mxu0 0
  %510 = vmatprep.subr.bf16.mxu0 0
  %511 = vmatpush1.bf16.msra.mxu0 0
  %512 = vmatprep.subr.bf16.mxu0 0
  %513 = vmatpush1.bf16.msra.mxu0 0
  %514 = vmatprep.subr.bf16.mxu0 0
  %515 = vmatpush1.bf16.msra.mxu0 0
  %516 = vmatprep.subr.bf16.mxu0 0
  %517 = vmatpush1.bf16.msra.mxu0 0
  %518 = vmatprep.subr.bf16.mxu0 0
  %519 = vmatpush1.bf16.msra.mxu0 0
  %520 = vmatprep.subr.bf16.mxu0 0
  %521 = vmatpush1.bf16.msra.mxu0 0
  %522 = vmatprep.subr.bf16.mxu0 0
  %523 = vmatpush1.bf16.msra.mxu0 0
  %524 = vmatprep.subr.bf16.mxu0 0
  %525 = vmatpush1.bf16.msra.mxu0 0
  %526 = vmatprep.subr.bf16.mxu0 0
  %527 = vmatpush1.bf16.msra.mxu0 0
  %528 = vmatprep.subr.bf16.mxu0 0
  %529 = vmatpush1.bf16.msra.mxu0 0
  %530 = vmatprep.subr.bf16.mxu0 0
  %531 = vmatpush1.bf16.msra.mxu0 0
  %532 = vmatprep.mubr.bf16.mxu0 0
  %533 = vmatmul.mubr.bf16.gmra.mrb[0].mxu0 %v498
  %v534 = vpop.f32.mrb[0].mxu0
  %v535 = vadd.f32 0.0, %v534
  %v536 = vpop.f32.mrb[0].mxu0
  %v537 = vpop.f32.mrb[0].mxu0
  %v538 = vpop.f32.mrb[0].mxu0
  %539 = vdwg.mxu0
  %v540 = vadd.f32 %v492, %v535
  %s541 = scalar_lea.vmem %s52, 52
  %v542 = vld [vmem:[%s541] sm:$0xf]
  %v543 = vunpack.c.l.bf16 %v542
  %v544 = vpack.c.bf16 %v475, %v475
  %546 = vrot.lane.b32.xlu0 %v544, 64
  %v547 = vpop.permute.xlu0 %546
  %v549 = vsel %vm105, %v547, 0
  %551 = vmatprep.subr.bf16.mxu0 0
  %552 = vmatpush1.bf16.msra.mxu0 %v162
  %553 = vmatprep.subr.bf16.mxu0 0
  %554 = vmatpush1.bf16.msra.mxu0 %v163
  %555 = vmatprep.subr.bf16.mxu0 0
  %556 = vmatpush1.bf16.msra.mxu0 0
  %557 = vmatprep.subr.bf16.mxu0 0
  %558 = vmatpush1.bf16.msra.mxu0 0
  %559 = vmatprep.subr.bf16.mxu0 0
  %560 = vmatpush1.bf16.msra.mxu0 0
  %561 = vmatprep.subr.bf16.mxu0 0
  %562 = vmatpush1.bf16.msra.mxu0 0
  %563 = vmatprep.subr.bf16.mxu0 0
  %564 = vmatpush1.bf16.msra.mxu0 0
  %565 = vmatprep.subr.bf16.mxu0 0
  %566 = vmatpush1.bf16.msra.mxu0 0
  %567 = vmatprep.subr.bf16.mxu0 0
  %568 = vmatpush1.bf16.msra.mxu0 0
  %569 = vmatprep.subr.bf16.mxu0 0
  %570 = vmatpush1.bf16.msra.mxu0 0
  %571 = vmatprep.subr.bf16.mxu0 0
  %572 = vmatpush1.bf16.msra.mxu0 0
  %573 = vmatprep.subr.bf16.mxu0 0
  %574 = vmatpush1.bf16.msra.mxu0 0
  %575 = vmatprep.subr.bf16.mxu0 0
  %576 = vmatpush1.bf16.msra.mxu0 0
  %577 = vmatprep.subr.bf16.mxu0 0
  %578 = vmatpush1.bf16.msra.mxu0 0
  %579 = vmatprep.subr.bf16.mxu0 0
  %580 = vmatpush1.bf16.msra.mxu0 0
  %581 = vmatprep.subr.bf16.mxu0 0
  %582 = vmatpush1.bf16.msra.mxu0 0
  %583 = vmatprep.mubr.bf16.mxu0 0
  %584 = vmatmul.mubr.bf16.gmra.mrb[0].mxu0 %v549
  %v585 = vpop.f32.mrb[0].mxu0
  %v586 = vadd.f32 0.0, %v585
  %v587 = vpop.f32.mrb[0].mxu0
  %v588 = vpop.f32.mrb[0].mxu0
  %v589 = vpop.f32.mrb[0].mxu0
  %590 = vdwg.mxu0
  %v591 = vadd.f32 %v543, %v586
  %s592 = sadd.s32 %s83, 2
  %v593 = vxor.u32 %v540, 2147483648
  %v594 = vmul.f32 %v593, 1.442695
  %v595 = vpow.pop %v594
  %v596 = vadd.f32 %v595, 1.0
  %v597 = vrcp.pop %v596
  %v598 = vmul.f32 1.0, %v597
  %v599 = vtanh.pop %v540
  %v600 = vmul.f32 %v598, %v441
  %602 = vrot.lane.b32.xlu0 %v599, 32
  %v603 = vpop.permute.xlu0 %602
  %v605 = vmul.f32 %v598, %v603
  %607 = vrot.lane.b32.xlu0 %v605, 32
  %v608 = vpop.permute.xlu0 %607
  %v610 = vadd.f32 %v600, %v608
  %v611 = vtanh.pop %v610
  %613 = vrot.lane.b32.xlu0 %v611, 32
  %v614 = vpop.permute.xlu0 %613
  %v616 = vmul.f32 %v598, %v614
  %v617 = vstv %s592
  %vm618 = vcmp.gt.s32.totalorder %v82, %v617
  %v619 = vsel %vm618, 1, 0
  %620 = vset.pattern.permute.xlu0 0
  %621 = vperm.xlu0 %620, %v619
  %v622 = vpop.permute.xlu0 %621
  %vm623 = vcmp.eq.s32.totalorder %v622, 1
  %v624 = vsel %vm623, %v616, %v440
  %v625 = vsel %vm623, %v610, %v441
  %v626 = vsel %vm623, %v616, 0.0
  %s627 = sadd.s32 %s85, 13
  %v628 = vxor.u32 %v591, 2147483648
  %v629 = vmul.f32 %v628, 1.442695
  %v630 = vpow.pop %v629
  %v631 = vadd.f32 %v630, 1.0
  %v632 = vrcp.pop %v631
  %v633 = vmul.f32 1.0, %v632
  %v634 = vtanh.pop %v591
  %v635 = vmul.f32 %v633, %v476
  %637 = vrot.lane.b32.xlu0 %v634, 32
  %v638 = vpop.permute.xlu0 %637
  %v640 = vmul.f32 %v633, %v638
  %642 = vrot.lane.b32.xlu0 %v640, 32
  %v643 = vpop.permute.xlu0 %642
  %v645 = vadd.f32 %v635, %v643
  %v646 = vtanh.pop %v645
  %648 = vrot.lane.b32.xlu0 %v646, 32
  %v649 = vpop.permute.xlu0 %648
  %v651 = vmul.f32 %v633, %v649
  %v652 = vstv %s627
  %vm653 = vcmp.gt.s32.totalorder %v82, %v652
  %v654 = vsel %vm653, 1, 0
  %655 = vset.pattern.permute.xlu0 0
  %656 = vperm.xlu0 %655, %v654
  %v657 = vpop.permute.xlu0 %656
  %vm658 = vcmp.eq.s32.totalorder %v657, 1
  %v659 = vsel %vm658, %v651, %v475
  %v660 = vsel %vm658, %v645, %v476
  %v661 = vsel %vm658, %v651, 0.0
  %663 = vrot.lane.b32.xlu0 %v626, 64
  %v664 = vpop.permute.xlu0 %663
  %s666 = scalar_lea.vmem %s5, 16
  %667 = vst.msk [vmem:[%s666] sm:$0xff] %vm105, %v664
  %669 = vrot.lane.b32.xlu0 %v661, 64
  %v670 = vpop.permute.xlu0 %669
  %s672 = scalar_lea.vmem %s61, 104
  %673 = vst.msk [vmem:[%s672] sm:$0xff] %vm105, %v670
  %s674 = scalar_lea.vmem %s0, 12
  %v675 = vld [vmem:[%s674] sm:$0xf]
  %v676 = vunpack.c.l.bf16 %v675
  %v677 = vpack.c.bf16 %v624, %v624
  %679 = vrot.lane.b32.xlu0 %v677, 64
  %v680 = vpop.permute.xlu0 %679
  %v682 = vsel %vm105, %v680, 0
  %684 = vmatprep.subr.bf16.mxu0 0
  %685 = vmatpush1.bf16.msra.mxu0 %v101
  %686 = vmatprep.subr.bf16.mxu0 0
  %687 = vmatpush1.bf16.msra.mxu0 %v102
  %688 = vmatprep.subr.bf16.mxu0 0
  %689 = vmatpush1.bf16.msra.mxu0 0
  %690 = vmatprep.subr.bf16.mxu0 0
  %691 = vmatpush1.bf16.msra.mxu0 0
  %692 = vmatprep.subr.bf16.mxu0 0
  %693 = vmatpush1.bf16.msra.mxu0 0
  %694 = vmatprep.subr.bf16.mxu0 0
  %695 = vmatpush1.bf16.msra.mxu0 0
  %696 = vmatprep.subr.bf16.mxu0 0
  %697 = vmatpush1.bf16.msra.mxu0 0
  %698 = vmatprep.subr.bf16.mxu0 0
  %699 = vmatpush1.bf16.msra.mxu0 0
  %700 = vmatprep.subr.bf16.mxu0 0
  %701 = vmatpush1.bf16.msra.mxu0 0
  %702 = vmatprep.subr.bf16.mxu0 0
  %703 = vmatpush1.bf16.msra.mxu0 0
  %704 = vmatprep.subr.bf16.mxu0 0
  %705 = vmatpush1.bf16.msra.mxu0 0
  %706 = vmatprep.subr.bf16.mxu0 0
  %707 = vmatpush1.bf16.msra.mxu0 0
  %708 = vmatprep.subr.bf16.mxu0 0
  %709 = vmatpush1.bf16.msra.mxu0 0
  %710 = vmatprep.subr.bf16.mxu0 0
  %711 = vmatpush1.bf16.msra.mxu0 0
  %712 = vmatprep.subr.bf16.mxu0 0
  %713 = vmatpush1.bf16.msra.mxu0 0
  %714 = vmatprep.subr.bf16.mxu0 0
  %715 = vmatpush1.bf16.msra.mxu0 0
  %716 = vmatprep.mubr.bf16.mxu0 0
  %717 = vmatmul.mubr.bf16.gmra.mrb[0].mxu0 %v682
  %v718 = vpop.f32.mrb[0].mxu0
  %v719 = vadd.f32 0.0, %v718
  %v720 = vpop.f32.mrb[0].mxu0
  %v721 = vpop.f32.mrb[0].mxu0
  %v722 = vpop.f32.mrb[0].mxu0
  %723 = vdwg.mxu0
  %v724 = vadd.f32 %v676, %v719
  %s725 = scalar_lea.vmem %s52, 48
  %v726 = vld [vmem:[%s725] sm:$0xf]
  %v727 = vunpack.c.l.bf16 %v726
  %v728 = vpack.c.bf16 %v659, %v659
  %730 = vrot.lane.b32.xlu0 %v728, 64
  %v731 = vpop.permute.xlu0 %730
  %v733 = vsel %vm105, %v731, 0
  %735 = vmatprep.subr.bf16.mxu0 0
  %736 = vmatpush1.bf16.msra.mxu0 %v162
  %737 = vmatprep.subr.bf16.mxu0 0
  %738 = vmatpush1.bf16.msra.mxu0 %v163
  %739 = vmatprep.subr.bf16.mxu0 0
  %740 = vmatpush1.bf16.msra.mxu0 0
  %741 = vmatprep.subr.bf16.mxu0 0
  %742 = vmatpush1.bf16.msra.mxu0 0
  %743 = vmatprep.subr.bf16.mxu0 0
  %744 = vmatpush1.bf16.msra.mxu0 0
  %745 = vmatprep.subr.bf16.mxu0 0
  %746 = vmatpush1.bf16.msra.mxu0 0
  %747 = vmatprep.subr.bf16.mxu0 0
  %748 = vmatpush1.bf16.msra.mxu0 0
  %749 = vmatprep.subr.bf16.mxu0 0
  %750 = vmatpush1.bf16.msra.mxu0 0
  %751 = vmatprep.subr.bf16.mxu0 0
  %752 = vmatpush1.bf16.msra.mxu0 0
  %753 = vmatprep.subr.bf16.mxu0 0
  %754 = vmatpush1.bf16.msra.mxu0 0
  %755 = vmatprep.subr.bf16.mxu0 0
  %756 = vmatpush1.bf16.msra.mxu0 0
  %757 = vmatprep.subr.bf16.mxu0 0
  %758 = vmatpush1.bf16.msra.mxu0 0
  %759 = vmatprep.subr.bf16.mxu0 0
  %760 = vmatpush1.bf16.msra.mxu0 0
  %761 = vmatprep.subr.bf16.mxu0 0
  %762 = vmatpush1.bf16.msra.mxu0 0
  %763 = vmatprep.subr.bf16.mxu0 0
  %764 = vmatpush1.bf16.msra.mxu0 0
  %765 = vmatprep.subr.bf16.mxu0 0
  %766 = vmatpush1.bf16.msra.mxu0 0
  %767 = vmatprep.mubr.bf16.mxu0 0
  %768 = vmatmul.mubr.bf16.gmra.mrb[0].mxu0 %v733
  %v769 = vpop.f32.mrb[0].mxu0
  %v770 = vadd.f32 0.0, %v769
  %v771 = vpop.f32.mrb[0].mxu0
  %v772 = vpop.f32.mrb[0].mxu0
  %v773 = vpop.f32.mrb[0].mxu0
  %774 = vdwg.mxu0
  %v775 = vadd.f32 %v727, %v770
  %s776 = sadd.s32 %s83, 3
  %v777 = vxor.u32 %v724, 2147483648
  %v778 = vmul.f32 %v777, 1.442695
  %v779 = vpow.pop %v778
  %v780 = vadd.f32 %v779, 1.0
  %v781 = vrcp.pop %v780
  %v782 = vmul.f32 1.0, %v781
  %v783 = vtanh.pop %v724
  %v784 = vmul.f32 %v782, %v625
  %786 = vrot.lane.b32.xlu0 %v783, 32
  %v787 = vpop.permute.xlu0 %786
  %v789 = vmul.f32 %v782, %v787
  %791 = vrot.lane.b32.xlu0 %v789, 32
  %v792 = vpop.permute.xlu0 %791
  %v794 = vadd.f32 %v784, %v792
  %v795 = vtanh.pop %v794
  %797 = vrot.lane.b32.xlu0 %v795, 32
  %v798 = vpop.permute.xlu0 %797
  %v800 = vmul.f32 %v782, %v798
  %v801 = vstv %s776
  %vm802 = vcmp.gt.s32.totalorder %v82, %v801
  %v803 = vsel %vm802, 1, 0
  %804 = vset.pattern.permute.xlu0 0
  %805 = vperm.xlu0 %804, %v803
  %v806 = vpop.permute.xlu0 %805
  %vm807 = vcmp.eq.s32.totalorder %v806, 1
  %v808 = vsel %vm807, %v800, %v624
  %v809 = vsel %vm807, %v794, %v625
  %v810 = vsel %vm807, %v800, 0.0
  %s811 = sadd.s32 %s85, 12
  %v812 = vxor.u32 %v775, 2147483648
  %v813 = vmul.f32 %v812, 1.442695
  %v814 = vpow.pop %v813
  %v815 = vadd.f32 %v814, 1.0
  %v816 = vrcp.pop %v815
  %v817 = vmul.f32 1.0, %v816
  %v818 = vtanh.pop %v775
  %v819 = vmul.f32 %v817, %v660
  %821 = vrot.lane.b32.xlu0 %v818, 32
  %v822 = vpop.permute.xlu0 %821
  %v824 = vmul.f32 %v817, %v822
  %826 = vrot.lane.b32.xlu0 %v824, 32
  %v827 = vpop.permute.xlu0 %826
  %v829 = vadd.f32 %v819, %v827
  %v830 = vtanh.pop %v829
  %832 = vrot.lane.b32.xlu0 %v830, 32
  %v833 = vpop.permute.xlu0 %832
  %v835 = vmul.f32 %v817, %v833
  %v836 = vstv %s811
  %vm837 = vcmp.gt.s32.totalorder %v82, %v836
  %v838 = vsel %vm837, 1, 0
  %839 = vset.pattern.permute.xlu0 0
  %840 = vperm.xlu0 %839, %v838
  %v841 = vpop.permute.xlu0 %840
  %vm842 = vcmp.eq.s32.totalorder %v841, 1
  %v843 = vsel %vm842, %v835, %v659
  %v844 = vsel %vm842, %v829, %v660
  %v845 = vsel %vm842, %v835, 0.0
  %847 = vrot.lane.b32.xlu0 %v810, 64
  %v848 = vpop.permute.xlu0 %847
  %s850 = scalar_lea.vmem %s5, 24
  %851 = vst.msk [vmem:[%s850] sm:$0xff] %vm105, %v848
  %853 = vrot.lane.b32.xlu0 %v845, 64
  %v854 = vpop.permute.xlu0 %853
  %s856 = scalar_lea.vmem %s61, 96
  %857 = vst.msk [vmem:[%s856] sm:$0xff] %vm105, %v854
  %s858 = scalar_lea.vmem %s0, 16
  %v859 = vld [vmem:[%s858] sm:$0xf]
  %v860 = vunpack.c.l.bf16 %v859
  %v861 = vpack.c.bf16 %v808, %v808
  %863 = vrot.lane.b32.xlu0 %v861, 64
  %v864 = vpop.permute.xlu0 %863
  %v866 = vsel %vm105, %v864, 0
  %868 = vmatprep.subr.bf16.mxu0 0
  %869 = vmatpush1.bf16.msra.mxu0 %v101
  %870 = vmatprep.subr.bf16.mxu0 0
  %871 = vmatpush1.bf16.msra.mxu0 %v102
  %872 = vmatprep.subr.bf16.mxu0 0
  %873 = vmatpush1.bf16.msra.mxu0 0
  %874 = vmatprep.subr.bf16.mxu0 0
  %875 = vmatpush1.bf16.msra.mxu0 0
  %876 = vmatprep.subr.bf16.mxu0 0
  %877 = vmatpush1.bf16.msra.mxu0 0
  %878 = vmatprep.subr.bf16.mxu0 0
  %879 = vmatpush1.bf16.msra.mxu0 0
  %880 = vmatprep.subr.bf16.mxu0 0
  %881 = vmatpush1.bf16.msra.mxu0 0
  %882 = vmatprep.subr.bf16.mxu0 0
  %883 = vmatpush1.bf16.msra.mxu0 0
  %884 = vmatprep.subr.bf16.mxu0 0
  %885 = vmatpush1.bf16.msra.mxu0 0
  %886 = vmatprep.subr.bf16.mxu0 0
  %887 = vmatpush1.bf16.msra.mxu0 0
  %888 = vmatprep.subr.bf16.mxu0 0
  %889 = vmatpush1.bf16.msra.mxu0 0
  %890 = vmatprep.subr.bf16.mxu0 0
  %891 = vmatpush1.bf16.msra.mxu0 0
  %892 = vmatprep.subr.bf16.mxu0 0
  %893 = vmatpush1.bf16.msra.mxu0 0
  %894 = vmatprep.subr.bf16.mxu0 0
  %895 = vmatpush1.bf16.msra.mxu0 0
  %896 = vmatprep.subr.bf16.mxu0 0
  %897 = vmatpush1.bf16.msra.mxu0 0
  %898 = vmatprep.subr.bf16.mxu0 0
  %899 = vmatpush1.bf16.msra.mxu0 0
  %900 = vmatprep.mubr.bf16.mxu0 0
  %901 = vmatmul.mubr.bf16.gmra.mrb[0].mxu0 %v866
  %v902 = vpop.f32.mrb[0].mxu0
  %v903 = vadd.f32 0.0, %v902
  %v904 = vpop.f32.mrb[0].mxu0
  %v905 = vpop.f32.mrb[0].mxu0
  %v906 = vpop.f32.mrb[0].mxu0
  %907 = vdwg.mxu0
  %v908 = vadd.f32 %v860, %v903
  %s909 = scalar_lea.vmem %s52, 44
  %v910 = vld [vmem:[%s909] sm:$0xf]
  %v911 = vunpack.c.l.bf16 %v910
  %v912 = vpack.c.bf16 %v843, %v843
  %914 = vrot.lane.b32.xlu0 %v912, 64
  %v915 = vpop.permute.xlu0 %914
  %v917 = vsel %vm105, %v915, 0
  %919 = vmatprep.subr.bf16.mxu0 0
  %920 = vmatpush1.bf16.msra.mxu0 %v162
  %921 = vmatprep.subr.bf16.mxu0 0
  %922 = vmatpush1.bf16.msra.mxu0 %v163
  %923 = vmatprep.subr.bf16.mxu0 0
  %924 = vmatpush1.bf16.msra.mxu0 0
  %925 = vmatprep.subr.bf16.mxu0 0
  %926 = vmatpush1.bf16.msra.mxu0 0
  %927 = vmatprep.subr.bf16.mxu0 0
  %928 = vmatpush1.bf16.msra.mxu0 0
  %929 = vmatprep.subr.bf16.mxu0 0
  %930 = vmatpush1.bf16.msra.mxu0 0
  %931 = vmatprep.subr.bf16.mxu0 0
  %932 = vmatpush1.bf16.msra.mxu0 0
  %933 = vmatprep.subr.bf16.mxu0 0
  %934 = vmatpush1.bf16.msra.mxu0 0
  %935 = vmatprep.subr.bf16.mxu0 0
  %936 = vmatpush1.bf16.msra.mxu0 0
  %937 = vmatprep.subr.bf16.mxu0 0
  %938 = vmatpush1.bf16.msra.mxu0 0
  %939 = vmatprep.subr.bf16.mxu0 0
  %940 = vmatpush1.bf16.msra.mxu0 0
  %941 = vmatprep.subr.bf16.mxu0 0
  %942 = vmatpush1.bf16.msra.mxu0 0
  %943 = vmatprep.subr.bf16.mxu0 0
  %944 = vmatpush1.bf16.msra.mxu0 0
  %945 = vmatprep.subr.bf16.mxu0 0
  %946 = vmatpush1.bf16.msra.mxu0 0
  %947 = vmatprep.subr.bf16.mxu0 0
  %948 = vmatpush1.bf16.msra.mxu0 0
  %949 = vmatprep.subr.bf16.mxu0 0
  %950 = vmatpush1.bf16.msra.mxu0 0
  %951 = vmatprep.mubr.bf16.mxu0 0
  %952 = vmatmul.mubr.bf16.gmra.mrb[0].mxu0 %v917
  %v953 = vpop.f32.mrb[0].mxu0
  %v954 = vadd.f32 0.0, %v953
  %v955 = vpop.f32.mrb[0].mxu0
  %v956 = vpop.f32.mrb[0].mxu0
  %v957 = vpop.f32.mrb[0].mxu0
  %958 = vdwg.mxu0
  %v959 = vadd.f32 %v911, %v954
  %s960 = sadd.s32 %s83, 4
  %v961 = vxor.u32 %v908, 2147483648
  %v962 = vmul.f32 %v961, 1.442695
  %v963 = vpow.pop %v962
  %v964 = vadd.f32 %v963, 1.0
  %v965 = vrcp.pop %v964
  %v966 = vmul.f32 1.0, %v965
  %v967 = vtanh.pop %v908
  %v968 = vmul.f32 %v966, %v809
  %970 = vrot.lane.b32.xlu0 %v967, 32
  %v971 = vpop.permute.xlu0 %970
  %v973 = vmul.f32 %v966, %v971
  %975 = vrot.lane.b32.xlu0 %v973, 32
  %v976 = vpop.permute.xlu0 %975
  %v978 = vadd.f32 %v968, %v976
  %v979 = vtanh.pop %v978
  %981 = vrot.lane.b32.xlu0 %v979, 32
  %v982 = vpop.permute.xlu0 %981
  %v984 = vmul.f32 %v966, %v982
  %v985 = vstv %s960
  %vm986 = vcmp.gt.s32.totalorder %v82, %v985
  %v987 = vsel %vm986, 1, 0
  %988 = vset.pattern.permute.xlu0 0
  %989 = vperm.xlu0 %988, %v987
  %v990 = vpop.permute.xlu0 %989
  %vm991 = vcmp.eq.s32.totalorder %v990, 1
  %v992 = vsel %vm991, %v984, %v808
  %v993 = vsel %vm991, %v978, %v809
  %v994 = vsel %vm991, %v984, 0.0
  %s995 = sadd.s32 %s85, 11
  %v996 = vxor.u32 %v959, 2147483648
  %v997 = vmul.f32 %v996, 1.442695
  %v998 = vpow.pop %v997
  %v999 = vadd.f32 %v998, 1.0
  %v1000 = vrcp.pop %v999
  %v1001 = vmul.f32 1.0, %v1000
  %v1002 = vtanh.pop %v959
  %v1003 = vmul.f32 %v1001, %v844
  %1005 = vrot.lane.b32.xlu0 %v1002, 32
  %v1006 = vpop.permute.xlu0 %1005
  %v1008 = vmul.f32 %v1001, %v1006
  %1010 = vrot.lane.b32.xlu0 %v1008, 32
  %v1011 = vpop.permute.xlu0 %1010
  %v1013 = vadd.f32 %v1003, %v1011
  %v1014 = vtanh.pop %v1013
  %1016 = vrot.lane.b32.xlu0 %v1014, 32
  %v1017 = vpop.permute.xlu0 %1016
  %v1019 = vmul.f32 %v1001, %v1017
  %v1020 = vstv %s995
  %vm1021 = vcmp.gt.s32.totalorder %v82, %v1020
  %v1022 = vsel %vm1021, 1, 0
  %1023 = vset.pattern.permute.xlu0 0
  %1024 = vperm.xlu0 %1023, %v1022
  %v1025 = vpop.permute.xlu0 %1024
  %vm1026 = vcmp.eq.s32.totalorder %v1025, 1
  %v1027 = vsel %vm1026, %v1019, %v843
  %v1028 = vsel %vm1026, %v1013, %v844
  %v1029 = vsel %vm1026, %v1019, 0.0
  %1031 = vrot.lane.b32.xlu0 %v994, 64
  %v1032 = vpop.permute.xlu0 %1031
  %s1034 = scalar_lea.vmem %s5, 32
  %1035 = vst.msk [vmem:[%s1034] sm:$0xff] %vm105, %v1032
  %1037 = vrot.lane.b32.xlu0 %v1029, 64
  %v1038 = vpop.permute.xlu0 %1037
  %s1040 = scalar_lea.vmem %s61, 88
  %1041 = vst.msk [vmem:[%s1040] sm:$0xff] %vm105, %v1038
  %s1042 = scalar_lea.vmem %s0, 20
  %v1043 = vld [vmem:[%s1042] sm:$0xf]
  %v1044 = vunpack.c.l.bf16 %v1043
  %v1045 = vpack.c.bf16 %v992, %v992
  %1047 = vrot.lane.b32.xlu0 %v1045, 64
  %v1048 = vpop.permute.xlu0 %1047
  %v1050 = vsel %vm105, %v1048, 0
  %1052 = vmatprep.subr.bf16.mxu0 0
  %1053 = vmatpush1.bf16.msra.mxu0 %v101
  %1054 = vmatprep.subr.bf16.mxu0 0
  %1055 = vmatpush1.bf16.msra.mxu0 %v102
  %1056 = vmatprep.subr.bf16.mxu0 0
  %1057 = vmatpush1.bf16.msra.mxu0 0
  %1058 = vmatprep.subr.bf16.mxu0 0
  %1059 = vmatpush1.bf16.msra.mxu0 0
  %1060 = vmatprep.subr.bf16.mxu0 0
  %1061 = vmatpush1.bf16.msra.mxu0 0
  %1062 = vmatprep.subr.bf16.mxu0 0
  %1063 = vmatpush1.bf16.msra.mxu0 0
  %1064 = vmatprep.subr.bf16.mxu0 0
  %1065 = vmatpush1.bf16.msra.mxu0 0
  %1066 = vmatprep.subr.bf16.mxu0 0
  %1067 = vmatpush1.bf16.msra.mxu0 0
  %1068 = vmatprep.subr.bf16.mxu0 0
  %1069 = vmatpush1.bf16.msra.mxu0 0
  %1070 = vmatprep.subr.bf16.mxu0 0
  %1071 = vmatpush1.bf16.msra.mxu0 0
  %1072 = vmatprep.subr.bf16.mxu0 0
  %1073 = vmatpush1.bf16.msra.mxu0 0
  %1074 = vmatprep.subr.bf16.mxu0 0
  %1075 = vmatpush1.bf16.msra.mxu0 0
  %1076 = vmatprep.subr.bf16.mxu0 0
  %1077 = vmatpush1.bf16.msra.mxu0 0
  %1078 = vmatprep.subr.bf16.mxu0 0
  %1079 = vmatpush1.bf16.msra.mxu0 0
  %1080 = vmatprep.subr.bf16.mxu0 0
  %1081 = vmatpush1.bf16.msra.mxu0 0
  %1082 = vmatprep.subr.bf16.mxu0 0
  %1083 = vmatpush1.bf16.msra.mxu0 0
  %1084 = vmatprep.mubr.bf16.mxu0 0
  %1085 = vmatmul.mubr.bf16.gmra.mrb[0].mxu0 %v1050
  %v1086 = vpop.f32.mrb[0].mxu0
  %v1087 = vadd.f32 0.0, %v1086
  %v1088 = vpop.f32.mrb[0].mxu0
  %v1089 = vpop.f32.mrb[0].mxu0
  %v1090 = vpop.f32.mrb[0].mxu0
  %1091 = vdwg.mxu0
  %v1092 = vadd.f32 %v1044, %v1087
  %s1093 = scalar_lea.vmem %s52, 40
  %v1094 = vld [vmem:[%s1093] sm:$0xf]
  %v1095 = vunpack.c.l.bf16 %v1094
  %v1096 = vpack.c.bf16 %v1027, %v1027
  %1098 = vrot.lane.b32.xlu0 %v1096, 64
  %v1099 = vpop.permute.xlu0 %1098
  %v1101 = vsel %vm105, %v1099, 0
  %1103 = vmatprep.subr.bf16.mxu0 0
  %1104 = vmatpush1.bf16.msra.mxu0 %v162
  %1105 = vmatprep.subr.bf16.mxu0 0
  %1106 = vmatpush1.bf16.msra.mxu0 %v163
  %1107 = vmatprep.subr.bf16.mxu0 0
  %1108 = vmatpush1.bf16.msra.mxu0 0
  %1109 = vmatprep.subr.bf16.mxu0 0
  %1110 = vmatpush1.bf16.msra.mxu0 0
  %1111 = vmatprep.subr.bf16.mxu0 0
  %1112 = vmatpush1.bf16.msra.mxu0 0
  %1113 = vmatprep.subr.bf16.mxu0 0
  %1114 = vmatpush1.bf16.msra.mxu0 0
  %1115 = vmatprep.subr.bf16.mxu0 0
  %1116 = vmatpush1.bf16.msra.mxu0 0
  %1117 = vmatprep.subr.bf16.mxu0 0
  %1118 = vmatpush1.bf16.msra.mxu0 0
  %1119 = vmatprep.subr.bf16.mxu0 0
  %1120 = vmatpush1.bf16.msra.mxu0 0
  %1121 = vmatprep.subr.bf16.mxu0 0
  %1122 = vmatpush1.bf16.msra.mxu0 0
  %1123 = vmatprep.subr.bf16.mxu0 0
  %1124 = vmatpush1.bf16.msra.mxu0 0
  %1125 = vmatprep.subr.bf16.mxu0 0
  %1126 = vmatpush1.bf16.msra.mxu0 0
  %1127 = vmatprep.subr.bf16.mxu0 0
  %1128 = vmatpush1.bf16.msra.mxu0 0
  %1129 = vmatprep.subr.bf16.mxu0 0
  %1130 = vmatpush1.bf16.msra.mxu0 0
  %1131 = vmatprep.subr.bf16.mxu0 0
  %1132 = vmatpush1.bf16.msra.mxu0 0
  %1133 = vmatprep.subr.bf16.mxu0 0
  %1134 = vmatpush1.bf16.msra.mxu0 0
  %1135 = vmatprep.mubr.bf16.mxu0 0
  %1136 = vmatmul.mubr.bf16.gmra.mrb[0].mxu0 %v1101
  %v1137 = vpop.f32.mrb[0].mxu0
  %v1138 = vadd.f32 0.0, %v1137
  %v1139 = vpop.f32.mrb[0].mxu0
  %v1140 = vpop.f32.mrb[0].mxu0
  %v1141 = vpop.f32.mrb[0].mxu0
  %1142 = vdwg.mxu0
  %v1143 = vadd.f32 %v1095, %v1138
  %s1144 = sadd.s32 %s83, 5
  %v1145 = vxor.u32 %v1092, 2147483648
  %v1146 = vmul.f32 %v1145, 1.442695
  %v1147 = vpow.pop %v1146
  %v1148 = vadd.f32 %v1147, 1.0
  %v1149 = vrcp.pop %v1148
  %v1150 = vmul.f32 1.0, %v1149
  %v1151 = vtanh.pop %v1092
  %v1152 = vmul.f32 %v1150, %v993
  %1154 = vrot.lane.b32.xlu0 %v1151, 32
  %v1155 = vpop.permute.xlu0 %1154
  %v1157 = vmul.f32 %v1150, %v1155
  %1159 = vrot.lane.b32.xlu0 %v1157, 32
  %v1160 = vpop.permute.xlu0 %1159
  %v1162 = vadd.f32 %v1152, %v1160
  %v1163 = vtanh.pop %v1162
  %1165 = vrot.lane.b32.xlu0 %v1163, 32
  %v1166 = vpop.permute.xlu0 %1165
  %v1168 = vmul.f32 %v1150, %v1166
  %v1169 = vstv %s1144
  %vm1170 = vcmp.gt.s32.totalorder %v82, %v1169
  %v1171 = vsel %vm1170, 1, 0
  %1172 = vset.pattern.permute.xlu0 0
  %1173 = vperm.xlu0 %1172, %v1171
  %v1174 = vpop.permute.xlu0 %1173
  %vm1175 = vcmp.eq.s32.totalorder %v1174, 1
  %v1176 = vsel %vm1175, %v1168, %v992
  %v1177 = vsel %vm1175, %v1162, %v993
  %v1178 = vsel %vm1175, %v1168, 0.0
  %s1179 = sadd.s32 %s85, 10
  %v1180 = vxor.u32 %v1143, 2147483648
  %v1181 = vmul.f32 %v1180, 1.442695
  %v1182 = vpow.pop %v1181
  %v1183 = vadd.f32 %v1182, 1.0
  %v1184 = vrcp.pop %v1183
  %v1185 = vmul.f32 1.0, %v1184
  %v1186 = vtanh.pop %v1143
  %v1187 = vmul.f32 %v1185, %v1028
  %1189 = vrot.lane.b32.xlu0 %v1186, 32
  %v1190 = vpop.permute.xlu0 %1189
  %v1192 = vmul.f32 %v1185, %v1190
  %1194 = vrot.lane.b32.xlu0 %v1192, 32
  %v1195 = vpop.permute.xlu0 %1194
  %v1197 = vadd.f32 %v1187, %v1195
  %v1198 = vtanh.pop %v1197
  %1200 = vrot.lane.b32.xlu0 %v1198, 32
  %v1201 = vpop.permute.xlu0 %1200
  %v1203 = vmul.f32 %v1185, %v1201
  %v1204 = vstv %s1179
  %vm1205 = vcmp.gt.s32.totalorder %v82, %v1204
  %v1206 = vsel %vm1205, 1, 0
  %1207 = vset.pattern.permute.xlu0 0
  %1208 = vperm.xlu0 %1207, %v1206
  %v1209 = vpop.permute.xlu0 %1208
  %vm1210 = vcmp.eq.s32.totalorder %v1209, 1
  %v1211 = vsel %vm1210, %v1203, %v1027
  %v1212 = vsel %vm1210, %v1197, %v1028
  %v1213 = vsel %vm1210, %v1203, 0.0
  %1215 = vrot.lane.b32.xlu0 %v1178, 64
  %v1216 = vpop.permute.xlu0 %1215
  %s1218 = scalar_lea.vmem %s5, 40
  %1219 = vst.msk [vmem:[%s1218] sm:$0xff] %vm105, %v1216
  %1221 = vrot.lane.b32.xlu0 %v1213, 64
  %v1222 = vpop.permute.xlu0 %1221
  %s1224 = scalar_lea.vmem %s61, 80
  %1225 = vst.msk [vmem:[%s1224] sm:$0xff] %vm105, %v1222
  %s1226 = scalar_lea.vmem %s0, 24
  %v1227 = vld [vmem:[%s1226] sm:$0xf]
  %v1228 = vunpack.c.l.bf16 %v1227
  %v1229 = vpack.c.bf16 %v1176, %v1176
  %1231 = vrot.lane.b32.xlu0 %v1229, 64
  %v1232 = vpop.permute.xlu0 %1231
  %v1234 = vsel %vm105, %v1232, 0
  %1236 = vmatprep.subr.bf16.mxu0 0
  %1237 = vmatpush1.bf16.msra.mxu0 %v101
  %1238 = vmatprep.subr.bf16.mxu0 0
  %1239 = vmatpush1.bf16.msra.mxu0 %v102
  %1240 = vmatprep.subr.bf16.mxu0 0
  %1241 = vmatpush1.bf16.msra.mxu0 0
  %1242 = vmatprep.subr.bf16.mxu0 0
  %1243 = vmatpush1.bf16.msra.mxu0 0
  %1244 = vmatprep.subr.bf16.mxu0 0
  %1245 = vmatpush1.bf16.msra.mxu0 0
  %1246 = vmatprep.subr.bf16.mxu0 0
  %1247 = vmatpush1.bf16.msra.mxu0 0
  %1248 = vmatprep.subr.bf16.mxu0 0
  %1249 = vmatpush1.bf16.msra.mxu0 0
  %1250 = vmatprep.subr.bf16.mxu0 0
  %1251 = vmatpush1.bf16.msra.mxu0 0
  %1252 = vmatprep.subr.bf16.mxu0 0
  %1253 = vmatpush1.bf16.msra.mxu0 0
  %1254 = vmatprep.subr.bf16.mxu0 0
  %1255 = vmatpush1.bf16.msra.mxu0 0
  %1256 = vmatprep.subr.bf16.mxu0 0
  %1257 = vmatpush1.bf16.msra.mxu0 0
  %1258 = vmatprep.subr.bf16.mxu0 0
  %1259 = vmatpush1.bf16.msra.mxu0 0
  %1260 = vmatprep.subr.bf16.mxu0 0
  %1261 = vmatpush1.bf16.msra.mxu0 0
  %1262 = vmatprep.subr.bf16.mxu0 0
  %1263 = vmatpush1.bf16.msra.mxu0 0
  %1264 = vmatprep.subr.bf16.mxu0 0
  %1265 = vmatpush1.bf16.msra.mxu0 0
  %1266 = vmatprep.subr.bf16.mxu0 0
  %1267 = vmatpush1.bf16.msra.mxu0 0
  %1268 = vmatprep.mubr.bf16.mxu0 0
  %1269 = vmatmul.mubr.bf16.gmra.mrb[0].mxu0 %v1234
  %v1270 = vpop.f32.mrb[0].mxu0
  %v1271 = vadd.f32 0.0, %v1270
  %v1272 = vpop.f32.mrb[0].mxu0
  %v1273 = vpop.f32.mrb[0].mxu0
  %v1274 = vpop.f32.mrb[0].mxu0
  %1275 = vdwg.mxu0
  %v1276 = vadd.f32 %v1228, %v1271
  %s1277 = scalar_lea.vmem %s52, 36
  %v1278 = vld [vmem:[%s1277] sm:$0xf]
  %v1279 = vunpack.c.l.bf16 %v1278
  %v1280 = vpack.c.bf16 %v1211, %v1211
  %1282 = vrot.lane.b32.xlu0 %v1280, 64
  %v1283 = vpop.permute.xlu0 %1282
  %v1285 = vsel %vm105, %v1283, 0
  %1287 = vmatprep.subr.bf16.mxu0 0
  %1288 = vmatpush1.bf16.msra.mxu0 %v162
  %1289 = vmatprep.subr.bf16.mxu0 0
  %1290 = vmatpush1.bf16.msra.mxu0 %v163
  %1291 = vmatprep.subr.bf16.mxu0 0
  %1292 = vmatpush1.bf16.msra.mxu0 0
  %1293 = vmatprep.subr.bf16.mxu0 0
  %1294 = vmatpush1.bf16.msra.mxu0 0
  %1295 = vmatprep.subr.bf16.mxu0 0
  %1296 = vmatpush1.bf16.msra.mxu0 0
  %1297 = vmatprep.subr.bf16.mxu0 0
  %1298 = vmatpush1.bf16.msra.mxu0 0
  %1299 = vmatprep.subr.bf16.mxu0 0
  %1300 = vmatpush1.bf16.msra.mxu0 0
  %1301 = vmatprep.subr.bf16.mxu0 0
  %1302 = vmatpush1.bf16.msra.mxu0 0
  %1303 = vmatprep.subr.bf16.mxu0 0
  %1304 = vmatpush1.bf16.msra.mxu0 0
  %1305 = vmatprep.subr.bf16.mxu0 0
  %1306 = vmatpush1.bf16.msra.mxu0 0
  %1307 = vmatprep.subr.bf16.mxu0 0
  %1308 = vmatpush1.bf16.msra.mxu0 0
  %1309 = vmatprep.subr.bf16.mxu0 0
  %1310 = vmatpush1.bf16.msra.mxu0 0
  %1311 = vmatprep.subr.bf16.mxu0 0
  %1312 = vmatpush1.bf16.msra.mxu0 0
  %1313 = vmatprep.subr.bf16.mxu0 0
  %1314 = vmatpush1.bf16.msra.mxu0 0
  %1315 = vmatprep.subr.bf16.mxu0 0
  %1316 = vmatpush1.bf16.msra.mxu0 0
  %1317 = vmatprep.subr.bf16.mxu0 0
  %1318 = vmatpush1.bf16.msra.mxu0 0
  %1319 = vmatprep.mubr.bf16.mxu0 0
  %1320 = vmatmul.mubr.bf16.gmra.mrb[0].mxu0 %v1285
  %v1321 = vpop.f32.mrb[0].mxu0
  %v1322 = vadd.f32 0.0, %v1321
  %v1323 = vpop.f32.mrb[0].mxu0
  %v1324 = vpop.f32.mrb[0].mxu0
  %v1325 = vpop.f32.mrb[0].mxu0
  %1326 = vdwg.mxu0
  %v1327 = vadd.f32 %v1279, %v1322
  %s1328 = sadd.s32 %s83, 6
  %v1329 = vxor.u32 %v1276, 2147483648
  %v1330 = vmul.f32 %v1329, 1.442695
  %v1331 = vpow.pop %v1330
  %v1332 = vadd.f32 %v1331, 1.0
  %v1333 = vrcp.pop %v1332
  %v1334 = vmul.f32 1.0, %v1333
  %v1335 = vtanh.pop %v1276
  %v1336 = vmul.f32 %v1334, %v1177
  %1338 = vrot.lane.b32.xlu0 %v1335, 32
  %v1339 = vpop.permute.xlu0 %1338
  %v1341 = vmul.f32 %v1334, %v1339
  %1343 = vrot.lane.b32.xlu0 %v1341, 32
  %v1344 = vpop.permute.xlu0 %1343
  %v1346 = vadd.f32 %v1336, %v1344
  %v1347 = vtanh.pop %v1346
  %1349 = vrot.lane.b32.xlu0 %v1347, 32
  %v1350 = vpop.permute.xlu0 %1349
  %v1352 = vmul.f32 %v1334, %v1350
  %v1353 = vstv %s1328
  %vm1354 = vcmp.gt.s32.totalorder %v82, %v1353
  %v1355 = vsel %vm1354, 1, 0
  %1356 = vset.pattern.permute.xlu0 0
  %1357 = vperm.xlu0 %1356, %v1355
  %v1358 = vpop.permute.xlu0 %1357
  %vm1359 = vcmp.eq.s32.totalorder %v1358, 1
  %v1360 = vsel %vm1359, %v1352, %v1176
  %v1361 = vsel %vm1359, %v1346, %v1177
  %v1362 = vsel %vm1359, %v1352, 0.0
  %s1363 = sadd.s32 %s85, 9
  %v1364 = vxor.u32 %v1327, 2147483648
  %v1365 = vmul.f32 %v1364, 1.442695
  %v1366 = vpow.pop %v1365
  %v1367 = vadd.f32 %v1366, 1.0
  %v1368 = vrcp.pop %v1367
  %v1369 = vmul.f32 1.0, %v1368
  %v1370 = vtanh.pop %v1327
  %v1371 = vmul.f32 %v1369, %v1212
  %1373 = vrot.lane.b32.xlu0 %v1370, 32
  %v1374 = vpop.permute.xlu0 %1373
  %v1376 = vmul.f32 %v1369, %v1374
  %1378 = vrot.lane.b32.xlu0 %v1376, 32
  %v1379 = vpop.permute.xlu0 %1378
  %v1381 = vadd.f32 %v1371, %v1379
  %v1382 = vtanh.pop %v1381
  %1384 = vrot.lane.b32.xlu0 %v1382, 32
  %v1385 = vpop.permute.xlu0 %1384
  %v1387 = vmul.f32 %v1369, %v1385
  %v1388 = vstv %s1363
  %vm1389 = vcmp.gt.s32.totalorder %v82, %v1388
  %v1390 = vsel %vm1389, 1, 0
  %1391 = vset.pattern.permute.xlu0 0
  %1392 = vperm.xlu0 %1391, %v1390
  %v1393 = vpop.permute.xlu0 %1392
  %vm1394 = vcmp.eq.s32.totalorder %v1393, 1
  %v1395 = vsel %vm1394, %v1387, %v1211
  %v1396 = vsel %vm1394, %v1381, %v1212
  %v1397 = vsel %vm1394, %v1387, 0.0
  %1399 = vrot.lane.b32.xlu0 %v1362, 64
  %v1400 = vpop.permute.xlu0 %1399
  %s1402 = scalar_lea.vmem %s5, 48
  %1403 = vst.msk [vmem:[%s1402] sm:$0xff] %vm105, %v1400
  %1405 = vrot.lane.b32.xlu0 %v1397, 64
  %v1406 = vpop.permute.xlu0 %1405
  %s1408 = scalar_lea.vmem %s61, 72
  %1409 = vst.msk [vmem:[%s1408] sm:$0xff] %vm105, %v1406
  %s1410 = scalar_lea.vmem %s0, 28
  %v1411 = vld [vmem:[%s1410] sm:$0xf]
  %v1412 = vunpack.c.l.bf16 %v1411
  %v1413 = vpack.c.bf16 %v1360, %v1360
  %1415 = vrot.lane.b32.xlu0 %v1413, 64
  %v1416 = vpop.permute.xlu0 %1415
  %v1418 = vsel %vm105, %v1416, 0
  %1420 = vmatprep.subr.bf16.mxu0 0
  %1421 = vmatpush1.bf16.msra.mxu0 %v101
  %1422 = vmatprep.subr.bf16.mxu0 0
  %1423 = vmatpush1.bf16.msra.mxu0 %v102
  %1424 = vmatprep.subr.bf16.mxu0 0
  %1425 = vmatpush1.bf16.msra.mxu0 0
  %1426 = vmatprep.subr.bf16.mxu0 0
  %1427 = vmatpush1.bf16.msra.mxu0 0
  %1428 = vmatprep.subr.bf16.mxu0 0
  %1429 = vmatpush1.bf16.msra.mxu0 0
  %1430 = vmatprep.subr.bf16.mxu0 0
  %1431 = vmatpush1.bf16.msra.mxu0 0
  %1432 = vmatprep.subr.bf16.mxu0 0
  %1433 = vmatpush1.bf16.msra.mxu0 0
  %1434 = vmatprep.subr.bf16.mxu0 0
  %1435 = vmatpush1.bf16.msra.mxu0 0
  %1436 = vmatprep.subr.bf16.mxu0 0
  %1437 = vmatpush1.bf16.msra.mxu0 0
  %1438 = vmatprep.subr.bf16.mxu0 0
  %1439 = vmatpush1.bf16.msra.mxu0 0
  %1440 = vmatprep.subr.bf16.mxu0 0
  %1441 = vmatpush1.bf16.msra.mxu0 0
  %1442 = vmatprep.subr.bf16.mxu0 0
  %1443 = vmatpush1.bf16.msra.mxu0 0
  %1444 = vmatprep.subr.bf16.mxu0 0
  %1445 = vmatpush1.bf16.msra.mxu0 0
  %1446 = vmatprep.subr.bf16.mxu0 0
  %1447 = vmatpush1.bf16.msra.mxu0 0
  %1448 = vmatprep.subr.bf16.mxu0 0
  %1449 = vmatpush1.bf16.msra.mxu0 0
  %1450 = vmatprep.subr.bf16.mxu0 0
  %1451 = vmatpush1.bf16.msra.mxu0 0
  %1452 = vmatprep.mubr.bf16.mxu0 0
  %1453 = vmatmul.mubr.bf16.gmra.mrb[0].mxu0 %v1418
  %v1454 = vpop.f32.mrb[0].mxu0
  %v1455 = vadd.f32 0.0, %v1454
  %v1456 = vpop.f32.mrb[0].mxu0
  %v1457 = vpop.f32.mrb[0].mxu0
  %v1458 = vpop.f32.mrb[0].mxu0
  %1459 = vdwg.mxu0
  %v1460 = vadd.f32 %v1412, %v1455
  %s1461 = scalar_lea.vmem %s52, 32
  %v1462 = vld [vmem:[%s1461] sm:$0xf]
  %v1463 = vunpack.c.l.bf16 %v1462
  %v1464 = vpack.c.bf16 %v1395, %v1395
  %1466 = vrot.lane.b32.xlu0 %v1464, 64
  %v1467 = vpop.permute.xlu0 %1466
  %v1469 = vsel %vm105, %v1467, 0
  %1471 = vmatprep.subr.bf16.mxu0 0
  %1472 = vmatpush1.bf16.msra.mxu0 %v162
  %1473 = vmatprep.subr.bf16.mxu0 0
  %1474 = vmatpush1.bf16.msra.mxu0 %v163
  %1475 = vmatprep.subr.bf16.mxu0 0
  %1476 = vmatpush1.bf16.msra.mxu0 0
  %1477 = vmatprep.subr.bf16.mxu0 0
  %1478 = vmatpush1.bf16.msra.mxu0 0
  %1479 = vmatprep.subr.bf16.mxu0 0
  %1480 = vmatpush1.bf16.msra.mxu0 0
  %1481 = vmatprep.subr.bf16.mxu0 0
  %1482 = vmatpush1.bf16.msra.mxu0 0
  %1483 = vmatprep.subr.bf16.mxu0 0
  %1484 = vmatpush1.bf16.msra.mxu0 0
  %1485 = vmatprep.subr.bf16.mxu0 0
  %1486 = vmatpush1.bf16.msra.mxu0 0
  %1487 = vmatprep.subr.bf16.mxu0 0
  %1488 = vmatpush1.bf16.msra.mxu0 0
  %1489 = vmatprep.subr.bf16.mxu0 0
  %1490 = vmatpush1.bf16.msra.mxu0 0
  %1491 = vmatprep.subr.bf16.mxu0 0
  %1492 = vmatpush1.bf16.msra.mxu0 0
  %1493 = vmatprep.subr.bf16.mxu0 0
  %1494 = vmatpush1.bf16.msra.mxu0 0
  %1495 = vmatprep.subr.bf16.mxu0 0
  %1496 = vmatpush1.bf16.msra.mxu0 0
  %1497 = vmatprep.subr.bf16.mxu0 0
  %1498 = vmatpush1.bf16.msra.mxu0 0
  %1499 = vmatprep.subr.bf16.mxu0 0
  %1500 = vmatpush1.bf16.msra.mxu0 0
  %1501 = vmatprep.subr.bf16.mxu0 0
  %1502 = vmatpush1.bf16.msra.mxu0 0
  %1503 = vmatprep.mubr.bf16.mxu0 0
  %1504 = vmatmul.mubr.bf16.gmra.mrb[0].mxu0 %v1469
  %v1505 = vpop.f32.mrb[0].mxu0
  %v1506 = vadd.f32 0.0, %v1505
  %v1507 = vpop.f32.mrb[0].mxu0
  %v1508 = vpop.f32.mrb[0].mxu0
  %v1509 = vpop.f32.mrb[0].mxu0
  %1510 = vdwg.mxu0
  %v1511 = vadd.f32 %v1463, %v1506
  %s1512 = sadd.s32 %s83, 7
  %v1513 = vxor.u32 %v1460, 2147483648
  %v1514 = vmul.f32 %v1513, 1.442695
  %v1515 = vpow.pop %v1514
  %v1516 = vadd.f32 %v1515, 1.0
  %v1517 = vrcp.pop %v1516
  %v1518 = vmul.f32 1.0, %v1517
  %v1519 = vtanh.pop %v1460
  %v1520 = vmul.f32 %v1518, %v1361
  %1522 = vrot.lane.b32.xlu0 %v1519, 32
  %v1523 = vpop.permute.xlu0 %1522
  %v1525 = vmul.f32 %v1518, %v1523
  %1527 = vrot.lane.b32.xlu0 %v1525, 32
  %v1528 = vpop.permute.xlu0 %1527
  %v1530 = vadd.f32 %v1520, %v1528
  %v1531 = vtanh.pop %v1530
  %1533 = vrot.lane.b32.xlu0 %v1531, 32
  %v1534 = vpop.permute.xlu0 %1533
  %v1536 = vmul.f32 %v1518, %v1534
  %v1537 = vstv %s1512
  %vm1538 = vcmp.gt.s32.totalorder %v82, %v1537
  %v1539 = vsel %vm1538, 1, 0
  %1540 = vset.pattern.permute.xlu0 0
  %1541 = vperm.xlu0 %1540, %v1539
  %v1542 = vpop.permute.xlu0 %1541
  %vm1543 = vcmp.eq.s32.totalorder %v1542, 1
  %v1544 = vsel %vm1543, %v1536, %v1360
  %v1545 = vsel %vm1543, %v1530, %v1361
  %v1546 = vsel %vm1543, %v1536, 0.0
  %s1547 = sadd.s32 %s85, 8
  %v1548 = vxor.u32 %v1511, 2147483648
  %v1549 = vmul.f32 %v1548, 1.442695
  %v1550 = vpow.pop %v1549
  %v1551 = vadd.f32 %v1550, 1.0
  %v1552 = vrcp.pop %v1551
  %v1553 = vmul.f32 1.0, %v1552
  %v1554 = vtanh.pop %v1511
  %v1555 = vmul.f32 %v1553, %v1396
  %1557 = vrot.lane.b32.xlu0 %v1554, 32
  %v1558 = vpop.permute.xlu0 %1557
  %v1560 = vmul.f32 %v1553, %v1558
  %1562 = vrot.lane.b32.xlu0 %v1560, 32
  %v1563 = vpop.permute.xlu0 %1562
  %v1565 = vadd.f32 %v1555, %v1563
  %v1566 = vtanh.pop %v1565
  %1568 = vrot.lane.b32.xlu0 %v1566, 32
  %v1569 = vpop.permute.xlu0 %1568
  %v1571 = vmul.f32 %v1553, %v1569
  %v1572 = vstv %s1547
  %vm1573 = vcmp.gt.s32.totalorder %v82, %v1572
  %v1574 = vsel %vm1573, 1, 0
  %1575 = vset.pattern.permute.xlu0 0
  %1576 = vperm.xlu0 %1575, %v1574
  %v1577 = vpop.permute.xlu0 %1576
  %vm1578 = vcmp.eq.s32.totalorder %v1577, 1
  %v1579 = vsel %vm1578, %v1571, %v1395
  %v1580 = vsel %vm1578, %v1565, %v1396
  %v1581 = vsel %vm1578, %v1571, 0.0
  %1583 = vrot.lane.b32.xlu0 %v1546, 64
  %v1584 = vpop.permute.xlu0 %1583
  %s1586 = scalar_lea.vmem %s5, 56
  %1587 = vst.msk [vmem:[%s1586] sm:$0xff] %vm105, %v1584
  %1589 = vrot.lane.b32.xlu0 %v1581, 64
  %v1590 = vpop.permute.xlu0 %1589
  %s1592 = scalar_lea.vmem %s61, 64
  %1593 = vst.msk [vmem:[%s1592] sm:$0xff] %vm105, %v1590
  %s1594 = scalar_lea.vmem %s0, 32
  %v1595 = vld [vmem:[%s1594] sm:$0xf]
  %v1596 = vunpack.c.l.bf16 %v1595
  %v1597 = vpack.c.bf16 %v1544, %v1544
  %1599 = vrot.lane.b32.xlu0 %v1597, 64
  %v1600 = vpop.permute.xlu0 %1599
  %v1602 = vsel %vm105, %v1600, 0
  %1604 = vmatprep.subr.bf16.mxu0 0
  %1605 = vmatpush1.bf16.msra.mxu0 %v101
  %1606 = vmatprep.subr.bf16.mxu0 0
  %1607 = vmatpush1.bf16.msra.mxu0 %v102
  %1608 = vmatprep.subr.bf16.mxu0 0
  %1609 = vmatpush1.bf16.msra.mxu0 0
  %1610 = vmatprep.subr.bf16.mxu0 0
  %1611 = vmatpush1.bf16.msra.mxu0 0
  %1612 = vmatprep.subr.bf16.mxu0 0
  %1613 = vmatpush1.bf16.msra.mxu0 0
  %1614 = vmatprep.subr.bf16.mxu0 0
  %1615 = vmatpush1.bf16.msra.mxu0 0
  %1616 = vmatprep.subr.bf16.mxu0 0
  %1617 = vmatpush1.bf16.msra.mxu0 0
  %1618 = vmatprep.subr.bf16.mxu0 0
  %1619 = vmatpush1.bf16.msra.mxu0 0
  %1620 = vmatprep.subr.bf16.mxu0 0
  %1621 = vmatpush1.bf16.msra.mxu0 0
  %1622 = vmatprep.subr.bf16.mxu0 0
  %1623 = vmatpush1.bf16.msra.mxu0 0
  %1624 = vmatprep.subr.bf16.mxu0 0
  %1625 = vmatpush1.bf16.msra.mxu0 0
  %1626 = vmatprep.subr.bf16.mxu0 0
  %1627 = vmatpush1.bf16.msra.mxu0 0
  %1628 = vmatprep.subr.bf16.mxu0 0
  %1629 = vmatpush1.bf16.msra.mxu0 0
  %1630 = vmatprep.subr.bf16.mxu0 0
  %1631 = vmatpush1.bf16.msra.mxu0 0
  %1632 = vmatprep.subr.bf16.mxu0 0
  %1633 = vmatpush1.bf16.msra.mxu0 0
  %1634 = vmatprep.subr.bf16.mxu0 0
  %1635 = vmatpush1.bf16.msra.mxu0 0
  %1636 = vmatprep.mubr.bf16.mxu0 0
  %1637 = vmatmul.mubr.bf16.gmra.mrb[0].mxu0 %v1602
  %v1638 = vpop.f32.mrb[0].mxu0
  %v1639 = vadd.f32 0.0, %v1638
  %v1640 = vpop.f32.mrb[0].mxu0
  %v1641 = vpop.f32.mrb[0].mxu0
  %v1642 = vpop.f32.mrb[0].mxu0
  %1643 = vdwg.mxu0
  %v1644 = vadd.f32 %v1596, %v1639
  %s1645 = scalar_lea.vmem %s52, 28
  %v1646 = vld [vmem:[%s1645] sm:$0xf]
  %v1647 = vunpack.c.l.bf16 %v1646
  %v1648 = vpack.c.bf16 %v1579, %v1579
  %1650 = vrot.lane.b32.xlu0 %v1648, 64
  %v1651 = vpop.permute.xlu0 %1650
  %v1653 = vsel %vm105, %v1651, 0
  %1655 = vmatprep.subr.bf16.mxu0 0
  %1656 = vmatpush1.bf16.msra.mxu0 %v162
  %1657 = vmatprep.subr.bf16.mxu0 0
  %1658 = vmatpush1.bf16.msra.mxu0 %v163
  %1659 = vmatprep.subr.bf16.mxu0 0
  %1660 = vmatpush1.bf16.msra.mxu0 0
  %1661 = vmatprep.subr.bf16.mxu0 0
  %1662 = vmatpush1.bf16.msra.mxu0 0
  %1663 = vmatprep.subr.bf16.mxu0 0
  %1664 = vmatpush1.bf16.msra.mxu0 0
  %1665 = vmatprep.subr.bf16.mxu0 0
  %1666 = vmatpush1.bf16.msra.mxu0 0
  %1667 = vmatprep.subr.bf16.mxu0 0
  %1668 = vmatpush1.bf16.msra.mxu0 0
  %1669 = vmatprep.subr.bf16.mxu0 0
  %1670 = vmatpush1.bf16.msra.mxu0 0
  %1671 = vmatprep.subr.bf16.mxu0 0
  %1672 = vmatpush1.bf16.msra.mxu0 0
  %1673 = vmatprep.subr.bf16.mxu0 0
  %1674 = vmatpush1.bf16.msra.mxu0 0
  %1675 = vmatprep.subr.bf16.mxu0 0
  %1676 = vmatpush1.bf16.msra.mxu0 0
  %1677 = vmatprep.subr.bf16.mxu0 0
  %1678 = vmatpush1.bf16.msra.mxu0 0
  %1679 = vmatprep.subr.bf16.mxu0 0
  %1680 = vmatpush1.bf16.msra.mxu0 0
  %1681 = vmatprep.subr.bf16.mxu0 0
  %1682 = vmatpush1.bf16.msra.mxu0 0
  %1683 = vmatprep.subr.bf16.mxu0 0
  %1684 = vmatpush1.bf16.msra.mxu0 0
  %1685 = vmatprep.subr.bf16.mxu0 0
  %1686 = vmatpush1.bf16.msra.mxu0 0
  %1687 = vmatprep.mubr.bf16.mxu0 0
  %1688 = vmatmul.mubr.bf16.gmra.mrb[0].mxu0 %v1653
  %v1689 = vpop.f32.mrb[0].mxu0
  %v1690 = vadd.f32 0.0, %v1689
  %v1691 = vpop.f32.mrb[0].mxu0
  %v1692 = vpop.f32.mrb[0].mxu0
  %v1693 = vpop.f32.mrb[0].mxu0
  %1694 = vdwg.mxu0
  %v1695 = vadd.f32 %v1647, %v1690
  %s1696 = sadd.s32 %s83, 8
  %v1697 = vxor.u32 %v1644, 2147483648
  %v1698 = vmul.f32 %v1697, 1.442695
  %v1699 = vpow.pop %v1698
  %v1700 = vadd.f32 %v1699, 1.0
  %v1701 = vrcp.pop %v1700
  %v1702 = vmul.f32 1.0, %v1701
  %v1703 = vtanh.pop %v1644
  %v1704 = vmul.f32 %v1702, %v1545
  %1706 = vrot.lane.b32.xlu0 %v1703, 32
  %v1707 = vpop.permute.xlu0 %1706
  %v1709 = vmul.f32 %v1702, %v1707
  %1711 = vrot.lane.b32.xlu0 %v1709, 32
  %v1712 = vpop.permute.xlu0 %1711
  %v1714 = vadd.f32 %v1704, %v1712
  %v1715 = vtanh.pop %v1714
  %1717 = vrot.lane.b32.xlu0 %v1715, 32
  %v1718 = vpop.permute.xlu0 %1717
  %v1720 = vmul.f32 %v1702, %v1718
  %v1721 = vstv %s1696
  %vm1722 = vcmp.gt.s32.totalorder %v82, %v1721
  %v1723 = vsel %vm1722, 1, 0
  %1724 = vset.pattern.permute.xlu0 0
  %1725 = vperm.xlu0 %1724, %v1723
  %v1726 = vpop.permute.xlu0 %1725
  %vm1727 = vcmp.eq.s32.totalorder %v1726, 1
  %v1728 = vsel %vm1727, %v1720, %v1544
  %v1729 = vsel %vm1727, %v1714, %v1545
  %v1730 = vsel %vm1727, %v1720, 0.0
  %s1731 = sadd.s32 %s85, 7
  %v1732 = vxor.u32 %v1695, 2147483648
  %v1733 = vmul.f32 %v1732, 1.442695
  %v1734 = vpow.pop %v1733
  %v1735 = vadd.f32 %v1734, 1.0
  %v1736 = vrcp.pop %v1735
  %v1737 = vmul.f32 1.0, %v1736
  %v1738 = vtanh.pop %v1695
  %v1739 = vmul.f32 %v1737, %v1580
  %1741 = vrot.lane.b32.xlu0 %v1738, 32
  %v1742 = vpop.permute.xlu0 %1741
  %v1744 = vmul.f32 %v1737, %v1742
  %1746 = vrot.lane.b32.xlu0 %v1744, 32
  %v1747 = vpop.permute.xlu0 %1746
  %v1749 = vadd.f32 %v1739, %v1747
  %v1750 = vtanh.pop %v1749
  %1752 = vrot.lane.b32.xlu0 %v1750, 32
  %v1753 = vpop.permute.xlu0 %1752
  %v1755 = vmul.f32 %v1737, %v1753
  %v1756 = vstv %s1731
  %vm1757 = vcmp.gt.s32.totalorder %v82, %v1756
  %v1758 = vsel %vm1757, 1, 0
  %1759 = vset.pattern.permute.xlu0 0
  %1760 = vperm.xlu0 %1759, %v1758
  %v1761 = vpop.permute.xlu0 %1760
  %vm1762 = vcmp.eq.s32.totalorder %v1761, 1
  %v1763 = vsel %vm1762, %v1755, %v1579
  %v1764 = vsel %vm1762, %v1749, %v1580
  %v1765 = vsel %vm1762, %v1755, 0.0
  %1767 = vrot.lane.b32.xlu0 %v1730, 64
  %v1768 = vpop.permute.xlu0 %1767
  %s1770 = scalar_lea.vmem %s5, 64
  %1771 = vst.msk [vmem:[%s1770] sm:$0xff] %vm105, %v1768
  %1773 = vrot.lane.b32.xlu0 %v1765, 64
  %v1774 = vpop.permute.xlu0 %1773
  %s1776 = scalar_lea.vmem %s61, 56
  %1777 = vst.msk [vmem:[%s1776] sm:$0xff] %vm105, %v1774
  %s1778 = scalar_lea.vmem %s0, 36
  %v1779 = vld [vmem:[%s1778] sm:$0xf]
  %v1780 = vunpack.c.l.bf16 %v1779
  %v1781 = vpack.c.bf16 %v1728, %v1728
  %1783 = vrot.lane.b32.xlu0 %v1781, 64
  %v1784 = vpop.permute.xlu0 %1783
  %v1786 = vsel %vm105, %v1784, 0
  %1788 = vmatprep.subr.bf16.mxu0 0
  %1789 = vmatpush1.bf16.msra.mxu0 %v101
  %1790 = vmatprep.subr.bf16.mxu0 0
  %1791 = vmatpush1.bf16.msra.mxu0 %v102
  %1792 = vmatprep.subr.bf16.mxu0 0
  %1793 = vmatpush1.bf16.msra.mxu0 0
  %1794 = vmatprep.subr.bf16.mxu0 0
  %1795 = vmatpush1.bf16.msra.mxu0 0
  %1796 = vmatprep.subr.bf16.mxu0 0
  %1797 = vmatpush1.bf16.msra.mxu0 0
  %1798 = vmatprep.subr.bf16.mxu0 0
  %1799 = vmatpush1.bf16.msra.mxu0 0
  %1800 = vmatprep.subr.bf16.mxu0 0
  %1801 = vmatpush1.bf16.msra.mxu0 0
  %1802 = vmatprep.subr.bf16.mxu0 0
  %1803 = vmatpush1.bf16.msra.mxu0 0
  %1804 = vmatprep.subr.bf16.mxu0 0
  %1805 = vmatpush1.bf16.msra.mxu0 0
  %1806 = vmatprep.subr.bf16.mxu0 0
  %1807 = vmatpush1.bf16.msra.mxu0 0
  %1808 = vmatprep.subr.bf16.mxu0 0
  %1809 = vmatpush1.bf16.msra.mxu0 0
  %1810 = vmatprep.subr.bf16.mxu0 0
  %1811 = vmatpush1.bf16.msra.mxu0 0
  %1812 = vmatprep.subr.bf16.mxu0 0
  %1813 = vmatpush1.bf16.msra.mxu0 0
  %1814 = vmatprep.subr.bf16.mxu0 0
  %1815 = vmatpush1.bf16.msra.mxu0 0
  %1816 = vmatprep.subr.bf16.mxu0 0
  %1817 = vmatpush1.bf16.msra.mxu0 0
  %1818 = vmatprep.subr.bf16.mxu0 0
  %1819 = vmatpush1.bf16.msra.mxu0 0
  %1820 = vmatprep.mubr.bf16.mxu0 0
  %1821 = vmatmul.mubr.bf16.gmra.mrb[0].mxu0 %v1786
  %v1822 = vpop.f32.mrb[0].mxu0
  %v1823 = vadd.f32 0.0, %v1822
  %v1824 = vpop.f32.mrb[0].mxu0
  %v1825 = vpop.f32.mrb[0].mxu0
  %v1826 = vpop.f32.mrb[0].mxu0
  %1827 = vdwg.mxu0
  %v1828 = vadd.f32 %v1780, %v1823
  %s1829 = scalar_lea.vmem %s52, 24
  %v1830 = vld [vmem:[%s1829] sm:$0xf]
  %v1831 = vunpack.c.l.bf16 %v1830
  %v1832 = vpack.c.bf16 %v1763, %v1763
  %1834 = vrot.lane.b32.xlu0 %v1832, 64
  %v1835 = vpop.permute.xlu0 %1834
  %v1837 = vsel %vm105, %v1835, 0
  %1839 = vmatprep.subr.bf16.mxu0 0
  %1840 = vmatpush1.bf16.msra.mxu0 %v162
  %1841 = vmatprep.subr.bf16.mxu0 0
  %1842 = vmatpush1.bf16.msra.mxu0 %v163
  %1843 = vmatprep.subr.bf16.mxu0 0
  %1844 = vmatpush1.bf16.msra.mxu0 0
  %1845 = vmatprep.subr.bf16.mxu0 0
  %1846 = vmatpush1.bf16.msra.mxu0 0
  %1847 = vmatprep.subr.bf16.mxu0 0
  %1848 = vmatpush1.bf16.msra.mxu0 0
  %1849 = vmatprep.subr.bf16.mxu0 0
  %1850 = vmatpush1.bf16.msra.mxu0 0
  %1851 = vmatprep.subr.bf16.mxu0 0
  %1852 = vmatpush1.bf16.msra.mxu0 0
  %1853 = vmatprep.subr.bf16.mxu0 0
  %1854 = vmatpush1.bf16.msra.mxu0 0
  %1855 = vmatprep.subr.bf16.mxu0 0
  %1856 = vmatpush1.bf16.msra.mxu0 0
  %1857 = vmatprep.subr.bf16.mxu0 0
  %1858 = vmatpush1.bf16.msra.mxu0 0
  %1859 = vmatprep.subr.bf16.mxu0 0
  %1860 = vmatpush1.bf16.msra.mxu0 0
  %1861 = vmatprep.subr.bf16.mxu0 0
  %1862 = vmatpush1.bf16.msra.mxu0 0
  %1863 = vmatprep.subr.bf16.mxu0 0
  %1864 = vmatpush1.bf16.msra.mxu0 0
  %1865 = vmatprep.subr.bf16.mxu0 0
  %1866 = vmatpush1.bf16.msra.mxu0 0
  %1867 = vmatprep.subr.bf16.mxu0 0
  %1868 = vmatpush1.bf16.msra.mxu0 0
  %1869 = vmatprep.subr.bf16.mxu0 0
  %1870 = vmatpush1.bf16.msra.mxu0 0
  %1871 = vmatprep.mubr.bf16.mxu0 0
  %1872 = vmatmul.mubr.bf16.gmra.mrb[0].mxu0 %v1837
  %v1873 = vpop.f32.mrb[0].mxu0
  %v1874 = vadd.f32 0.0, %v1873
  %v1875 = vpop.f32.mrb[0].mxu0
  %v1876 = vpop.f32.mrb[0].mxu0
  %v1877 = vpop.f32.mrb[0].mxu0
  %1878 = vdwg.mxu0
  %v1879 = vadd.f32 %v1831, %v1874
  %s1880 = sadd.s32 %s83, 9
  %v1881 = vxor.u32 %v1828, 2147483648
  %v1882 = vmul.f32 %v1881, 1.442695
  %v1883 = vpow.pop %v1882
  %v1884 = vadd.f32 %v1883, 1.0
  %v1885 = vrcp.pop %v1884
  %v1886 = vmul.f32 1.0, %v1885
  %v1887 = vtanh.pop %v1828
  %v1888 = vmul.f32 %v1886, %v1729
  %1890 = vrot.lane.b32.xlu0 %v1887, 32
  %v1891 = vpop.permute.xlu0 %1890
  %v1893 = vmul.f32 %v1886, %v1891
  %1895 = vrot.lane.b32.xlu0 %v1893, 32
  %v1896 = vpop.permute.xlu0 %1895
  %v1898 = vadd.f32 %v1888, %v1896
  %v1899 = vtanh.pop %v1898
  %1901 = vrot.lane.b32.xlu0 %v1899, 32
  %v1902 = vpop.permute.xlu0 %1901
  %v1904 = vmul.f32 %v1886, %v1902
  %v1905 = vstv %s1880
  %vm1906 = vcmp.gt.s32.totalorder %v82, %v1905
  %v1907 = vsel %vm1906, 1, 0
  %1908 = vset.pattern.permute.xlu0 0
  %1909 = vperm.xlu0 %1908, %v1907
  %v1910 = vpop.permute.xlu0 %1909
  %vm1911 = vcmp.eq.s32.totalorder %v1910, 1
  %v1912 = vsel %vm1911, %v1904, %v1728
  %v1913 = vsel %vm1911, %v1898, %v1729
  %v1914 = vsel %vm1911, %v1904, 0.0
  %s1915 = sadd.s32 %s85, 6
  %v1916 = vxor.u32 %v1879, 2147483648
  %v1917 = vmul.f32 %v1916, 1.442695
  %v1918 = vpow.pop %v1917
  %v1919 = vadd.f32 %v1918, 1.0
  %v1920 = vrcp.pop %v1919
  %v1921 = vmul.f32 1.0, %v1920
  %v1922 = vtanh.pop %v1879
  %v1923 = vmul.f32 %v1921, %v1764
  %1925 = vrot.lane.b32.xlu0 %v1922, 32
  %v1926 = vpop.permute.xlu0 %1925
  %v1928 = vmul.f32 %v1921, %v1926
  %1930 = vrot.lane.b32.xlu0 %v1928, 32
  %v1931 = vpop.permute.xlu0 %1930
  %v1933 = vadd.f32 %v1923, %v1931
  %v1934 = vtanh.pop %v1933
  %1936 = vrot.lane.b32.xlu0 %v1934, 32
  %v1937 = vpop.permute.xlu0 %1936
  %v1939 = vmul.f32 %v1921, %v1937
  %v1940 = vstv %s1915
  %vm1941 = vcmp.gt.s32.totalorder %v82, %v1940
  %v1942 = vsel %vm1941, 1, 0
  %1943 = vset.pattern.permute.xlu0 0
  %1944 = vperm.xlu0 %1943, %v1942
  %v1945 = vpop.permute.xlu0 %1944
  %vm1946 = vcmp.eq.s32.totalorder %v1945, 1
  %v1947 = vsel %vm1946, %v1939, %v1763
  %v1948 = vsel %vm1946, %v1933, %v1764
  %v1949 = vsel %vm1946, %v1939, 0.0
  %1951 = vrot.lane.b32.xlu0 %v1914, 64
  %v1952 = vpop.permute.xlu0 %1951
  %s1954 = scalar_lea.vmem %s5, 72
  %1955 = vst.msk [vmem:[%s1954] sm:$0xff] %vm105, %v1952
  %1957 = vrot.lane.b32.xlu0 %v1949, 64
  %v1958 = vpop.permute.xlu0 %1957
  %s1960 = scalar_lea.vmem %s61, 48
  %1961 = vst.msk [vmem:[%s1960] sm:$0xff] %vm105, %v1958
  %s1962 = scalar_lea.vmem %s0, 40
  %v1963 = vld [vmem:[%s1962] sm:$0xf]
  %v1964 = vunpack.c.l.bf16 %v1963
  %v1965 = vpack.c.bf16 %v1912, %v1912
  %1967 = vrot.lane.b32.xlu0 %v1965, 64
  %v1968 = vpop.permute.xlu0 %1967
  %v1970 = vsel %vm105, %v1968, 0
  %1972 = vmatprep.subr.bf16.mxu0 0
  %1973 = vmatpush1.bf16.msra.mxu0 %v101
  %1974 = vmatprep.subr.bf16.mxu0 0
  %1975 = vmatpush1.bf16.msra.mxu0 %v102
  %1976 = vmatprep.subr.bf16.mxu0 0
  %1977 = vmatpush1.bf16.msra.mxu0 0
  %1978 = vmatprep.subr.bf16.mxu0 0
  %1979 = vmatpush1.bf16.msra.mxu0 0
  %1980 = vmatprep.subr.bf16.mxu0 0
  %1981 = vmatpush1.bf16.msra.mxu0 0
  %1982 = vmatprep.subr.bf16.mxu0 0
  %1983 = vmatpush1.bf16.msra.mxu0 0
  %1984 = vmatprep.subr.bf16.mxu0 0
  %1985 = vmatpush1.bf16.msra.mxu0 0
  %1986 = vmatprep.subr.bf16.mxu0 0
  %1987 = vmatpush1.bf16.msra.mxu0 0
  %1988 = vmatprep.subr.bf16.mxu0 0
  %1989 = vmatpush1.bf16.msra.mxu0 0
  %1990 = vmatprep.subr.bf16.mxu0 0
  %1991 = vmatpush1.bf16.msra.mxu0 0
  %1992 = vmatprep.subr.bf16.mxu0 0
  %1993 = vmatpush1.bf16.msra.mxu0 0
  %1994 = vmatprep.subr.bf16.mxu0 0
  %1995 = vmatpush1.bf16.msra.mxu0 0
  %1996 = vmatprep.subr.bf16.mxu0 0
  %1997 = vmatpush1.bf16.msra.mxu0 0
  %1998 = vmatprep.subr.bf16.mxu0 0
  %1999 = vmatpush1.bf16.msra.mxu0 0
  %2000 = vmatprep.subr.bf16.mxu0 0
  %2001 = vmatpush1.bf16.msra.mxu0 0
  %2002 = vmatprep.subr.bf16.mxu0 0
  %2003 = vmatpush1.bf16.msra.mxu0 0
  %2004 = vmatprep.mubr.bf16.mxu0 0
  %2005 = vmatmul.mubr.bf16.gmra.mrb[0].mxu0 %v1970
  %v2006 = vpop.f32.mrb[0].mxu0
  %v2007 = vadd.f32 0.0, %v2006
  %v2008 = vpop.f32.mrb[0].mxu0
  %v2009 = vpop.f32.mrb[0].mxu0
  %v2010 = vpop.f32.mrb[0].mxu0
  %2011 = vdwg.mxu0
  %v2012 = vadd.f32 %v1964, %v2007
  %s2013 = scalar_lea.vmem %s52, 20
  %v2014 = vld [vmem:[%s2013] sm:$0xf]
  %v2015 = vunpack.c.l.bf16 %v2014
  %v2016 = vpack.c.bf16 %v1947, %v1947
  %2018 = vrot.lane.b32.xlu0 %v2016, 64
  %v2019 = vpop.permute.xlu0 %2018
  %v2021 = vsel %vm105, %v2019, 0
  %2023 = vmatprep.subr.bf16.mxu0 0
  %2024 = vmatpush1.bf16.msra.mxu0 %v162
  %2025 = vmatprep.subr.bf16.mxu0 0
  %2026 = vmatpush1.bf16.msra.mxu0 %v163
  %2027 = vmatprep.subr.bf16.mxu0 0
  %2028 = vmatpush1.bf16.msra.mxu0 0
  %2029 = vmatprep.subr.bf16.mxu0 0
  %2030 = vmatpush1.bf16.msra.mxu0 0
  %2031 = vmatprep.subr.bf16.mxu0 0
  %2032 = vmatpush1.bf16.msra.mxu0 0
  %2033 = vmatprep.subr.bf16.mxu0 0
  %2034 = vmatpush1.bf16.msra.mxu0 0
  %2035 = vmatprep.subr.bf16.mxu0 0
  %2036 = vmatpush1.bf16.msra.mxu0 0
  %2037 = vmatprep.subr.bf16.mxu0 0
  %2038 = vmatpush1.bf16.msra.mxu0 0
  %2039 = vmatprep.subr.bf16.mxu0 0
  %2040 = vmatpush1.bf16.msra.mxu0 0
  %2041 = vmatprep.subr.bf16.mxu0 0
  %2042 = vmatpush1.bf16.msra.mxu0 0
  %2043 = vmatprep.subr.bf16.mxu0 0
  %2044 = vmatpush1.bf16.msra.mxu0 0
  %2045 = vmatprep.subr.bf16.mxu0 0
  %2046 = vmatpush1.bf16.msra.mxu0 0
  %2047 = vmatprep.subr.bf16.mxu0 0
  %2048 = vmatpush1.bf16.msra.mxu0 0
  %2049 = vmatprep.subr.bf16.mxu0 0
  %2050 = vmatpush1.bf16.msra.mxu0 0
  %2051 = vmatprep.subr.bf16.mxu0 0
  %2052 = vmatpush1.bf16.msra.mxu0 0
  %2053 = vmatprep.subr.bf16.mxu0 0
  %2054 = vmatpush1.bf16.msra.mxu0 0
  %2055 = vmatprep.mubr.bf16.mxu0 0
  %2056 = vmatmul.mubr.bf16.gmra.mrb[0].mxu0 %v2021
  %v2057 = vpop.f32.mrb[0].mxu0
  %v2058 = vadd.f32 0.0, %v2057
  %v2059 = vpop.f32.mrb[0].mxu0
  %v2060 = vpop.f32.mrb[0].mxu0
  %v2061 = vpop.f32.mrb[0].mxu0
  %2062 = vdwg.mxu0
  %v2063 = vadd.f32 %v2015, %v2058
  %s2064 = sadd.s32 %s83, 10
  %v2065 = vxor.u32 %v2012, 2147483648
  %v2066 = vmul.f32 %v2065, 1.442695
  %v2067 = vpow.pop %v2066
  %v2068 = vadd.f32 %v2067, 1.0
  %v2069 = vrcp.pop %v2068
  %v2070 = vmul.f32 1.0, %v2069
  %v2071 = vtanh.pop %v2012
  %v2072 = vmul.f32 %v2070, %v1913
  %2074 = vrot.lane.b32.xlu0 %v2071, 32
  %v2075 = vpop.permute.xlu0 %2074
  %v2077 = vmul.f32 %v2070, %v2075
  %2079 = vrot.lane.b32.xlu0 %v2077, 32
  %v2080 = vpop.permute.xlu0 %2079
  %v2082 = vadd.f32 %v2072, %v2080
  %v2083 = vtanh.pop %v2082
  %2085 = vrot.lane.b32.xlu0 %v2083, 32
  %v2086 = vpop.permute.xlu0 %2085
  %v2088 = vmul.f32 %v2070, %v2086
  %v2089 = vstv %s2064
  %vm2090 = vcmp.gt.s32.totalorder %v82, %v2089
  %v2091 = vsel %vm2090, 1, 0
  %2092 = vset.pattern.permute.xlu0 0
  %2093 = vperm.xlu0 %2092, %v2091
  %v2094 = vpop.permute.xlu0 %2093
  %vm2095 = vcmp.eq.s32.totalorder %v2094, 1
  %v2096 = vsel %vm2095, %v2088, %v1912
  %v2097 = vsel %vm2095, %v2082, %v1913
  %v2098 = vsel %vm2095, %v2088, 0.0
  %s2099 = sadd.s32 %s85, 5
  %v2100 = vxor.u32 %v2063, 2147483648
  %v2101 = vmul.f32 %v2100, 1.442695
  %v2102 = vpow.pop %v2101
  %v2103 = vadd.f32 %v2102, 1.0
  %v2104 = vrcp.pop %v2103
  %v2105 = vmul.f32 1.0, %v2104
  %v2106 = vtanh.pop %v2063
  %v2107 = vmul.f32 %v2105, %v1948
  %2109 = vrot.lane.b32.xlu0 %v2106, 32
  %v2110 = vpop.permute.xlu0 %2109
  %v2112 = vmul.f32 %v2105, %v2110
  %2114 = vrot.lane.b32.xlu0 %v2112, 32
  %v2115 = vpop.permute.xlu0 %2114
  %v2117 = vadd.f32 %v2107, %v2115
  %v2118 = vtanh.pop %v2117
  %2120 = vrot.lane.b32.xlu0 %v2118, 32
  %v2121 = vpop.permute.xlu0 %2120
  %v2123 = vmul.f32 %v2105, %v2121
  %v2124 = vstv %s2099
  %vm2125 = vcmp.gt.s32.totalorder %v82, %v2124
  %v2126 = vsel %vm2125, 1, 0
  %2127 = vset.pattern.permute.xlu0 0
  %2128 = vperm.xlu0 %2127, %v2126
  %v2129 = vpop.permute.xlu0 %2128
  %vm2130 = vcmp.eq.s32.totalorder %v2129, 1
  %v2131 = vsel %vm2130, %v2123, %v1947
  %v2132 = vsel %vm2130, %v2117, %v1948
  %v2133 = vsel %vm2130, %v2123, 0.0
  %2135 = vrot.lane.b32.xlu0 %v2098, 64
  %v2136 = vpop.permute.xlu0 %2135
  %s2138 = scalar_lea.vmem %s5, 80
  %2139 = vst.msk [vmem:[%s2138] sm:$0xff] %vm105, %v2136
  %2141 = vrot.lane.b32.xlu0 %v2133, 64
  %v2142 = vpop.permute.xlu0 %2141
  %s2144 = scalar_lea.vmem %s61, 40
  %2145 = vst.msk [vmem:[%s2144] sm:$0xff] %vm105, %v2142
  %s2146 = scalar_lea.vmem %s0, 44
  %v2147 = vld [vmem:[%s2146] sm:$0xf]
  %v2148 = vunpack.c.l.bf16 %v2147
  %v2149 = vpack.c.bf16 %v2096, %v2096
  %2151 = vrot.lane.b32.xlu0 %v2149, 64
  %v2152 = vpop.permute.xlu0 %2151
  %v2154 = vsel %vm105, %v2152, 0
  %2156 = vmatprep.subr.bf16.mxu0 0
  %2157 = vmatpush1.bf16.msra.mxu0 %v101
  %2158 = vmatprep.subr.bf16.mxu0 0
  %2159 = vmatpush1.bf16.msra.mxu0 %v102
  %2160 = vmatprep.subr.bf16.mxu0 0
  %2161 = vmatpush1.bf16.msra.mxu0 0
  %2162 = vmatprep.subr.bf16.mxu0 0
  %2163 = vmatpush1.bf16.msra.mxu0 0
  %2164 = vmatprep.subr.bf16.mxu0 0
  %2165 = vmatpush1.bf16.msra.mxu0 0
  %2166 = vmatprep.subr.bf16.mxu0 0
  %2167 = vmatpush1.bf16.msra.mxu0 0
  %2168 = vmatprep.subr.bf16.mxu0 0
  %2169 = vmatpush1.bf16.msra.mxu0 0
  %2170 = vmatprep.subr.bf16.mxu0 0
  %2171 = vmatpush1.bf16.msra.mxu0 0
  %2172 = vmatprep.subr.bf16.mxu0 0
  %2173 = vmatpush1.bf16.msra.mxu0 0
  %2174 = vmatprep.subr.bf16.mxu0 0
  %2175 = vmatpush1.bf16.msra.mxu0 0
  %2176 = vmatprep.subr.bf16.mxu0 0
  %2177 = vmatpush1.bf16.msra.mxu0 0
  %2178 = vmatprep.subr.bf16.mxu0 0
  %2179 = vmatpush1.bf16.msra.mxu0 0
  %2180 = vmatprep.subr.bf16.mxu0 0
  %2181 = vmatpush1.bf16.msra.mxu0 0
  %2182 = vmatprep.subr.bf16.mxu0 0
  %2183 = vmatpush1.bf16.msra.mxu0 0
  %2184 = vmatprep.subr.bf16.mxu0 0
  %2185 = vmatpush1.bf16.msra.mxu0 0
  %2186 = vmatprep.subr.bf16.mxu0 0
  %2187 = vmatpush1.bf16.msra.mxu0 0
  %2188 = vmatprep.mubr.bf16.mxu0 0
  %2189 = vmatmul.mubr.bf16.gmra.mrb[0].mxu0 %v2154
  %v2190 = vpop.f32.mrb[0].mxu0
  %v2191 = vadd.f32 0.0, %v2190
  %v2192 = vpop.f32.mrb[0].mxu0
  %v2193 = vpop.f32.mrb[0].mxu0
  %v2194 = vpop.f32.mrb[0].mxu0
  %2195 = vdwg.mxu0
  %v2196 = vadd.f32 %v2148, %v2191
  %s2197 = scalar_lea.vmem %s52, 16
  %v2198 = vld [vmem:[%s2197] sm:$0xf]
  %v2199 = vunpack.c.l.bf16 %v2198
  %v2200 = vpack.c.bf16 %v2131, %v2131
  %2202 = vrot.lane.b32.xlu0 %v2200, 64
  %v2203 = vpop.permute.xlu0 %2202
  %v2205 = vsel %vm105, %v2203, 0
  %2207 = vmatprep.subr.bf16.mxu0 0
  %2208 = vmatpush1.bf16.msra.mxu0 %v162
  %2209 = vmatprep.subr.bf16.mxu0 0
  %2210 = vmatpush1.bf16.msra.mxu0 %v163
  %2211 = vmatprep.subr.bf16.mxu0 0
  %2212 = vmatpush1.bf16.msra.mxu0 0
  %2213 = vmatprep.subr.bf16.mxu0 0
  %2214 = vmatpush1.bf16.msra.mxu0 0
  %2215 = vmatprep.subr.bf16.mxu0 0
  %2216 = vmatpush1.bf16.msra.mxu0 0
  %2217 = vmatprep.subr.bf16.mxu0 0
  %2218 = vmatpush1.bf16.msra.mxu0 0
  %2219 = vmatprep.subr.bf16.mxu0 0
  %2220 = vmatpush1.bf16.msra.mxu0 0
  %2221 = vmatprep.subr.bf16.mxu0 0
  %2222 = vmatpush1.bf16.msra.mxu0 0
  %2223 = vmatprep.subr.bf16.mxu0 0
  %2224 = vmatpush1.bf16.msra.mxu0 0
  %2225 = vmatprep.subr.bf16.mxu0 0
  %2226 = vmatpush1.bf16.msra.mxu0 0
  %2227 = vmatprep.subr.bf16.mxu0 0
  %2228 = vmatpush1.bf16.msra.mxu0 0
  %2229 = vmatprep.subr.bf16.mxu0 0
  %2230 = vmatpush1.bf16.msra.mxu0 0
  %2231 = vmatprep.subr.bf16.mxu0 0
  %2232 = vmatpush1.bf16.msra.mxu0 0
  %2233 = vmatprep.subr.bf16.mxu0 0
  %2234 = vmatpush1.bf16.msra.mxu0 0
  %2235 = vmatprep.subr.bf16.mxu0 0
  %2236 = vmatpush1.bf16.msra.mxu0 0
  %2237 = vmatprep.subr.bf16.mxu0 0
  %2238 = vmatpush1.bf16.msra.mxu0 0
  %2239 = vmatprep.mubr.bf16.mxu0 0
  %2240 = vmatmul.mubr.bf16.gmra.mrb[0].mxu0 %v2205
  %v2241 = vpop.f32.mrb[0].mxu0
  %v2242 = vadd.f32 0.0, %v2241
  %v2243 = vpop.f32.mrb[0].mxu0
  %v2244 = vpop.f32.mrb[0].mxu0
  %v2245 = vpop.f32.mrb[0].mxu0
  %2246 = vdwg.mxu0
  %v2247 = vadd.f32 %v2199, %v2242
  %s2248 = sadd.s32 %s83, 11
  %v2249 = vxor.u32 %v2196, 2147483648
  %v2250 = vmul.f32 %v2249, 1.442695
  %v2251 = vpow.pop %v2250
  %v2252 = vadd.f32 %v2251, 1.0
  %v2253 = vrcp.pop %v2252
  %v2254 = vmul.f32 1.0, %v2253
  %v2255 = vtanh.pop %v2196
  %v2256 = vmul.f32 %v2254, %v2097
  %2258 = vrot.lane.b32.xlu0 %v2255, 32
  %v2259 = vpop.permute.xlu0 %2258
  %v2261 = vmul.f32 %v2254, %v2259
  %2263 = vrot.lane.b32.xlu0 %v2261, 32
  %v2264 = vpop.permute.xlu0 %2263
  %v2266 = vadd.f32 %v2256, %v2264
  %v2267 = vtanh.pop %v2266
  %2269 = vrot.lane.b32.xlu0 %v2267, 32
  %v2270 = vpop.permute.xlu0 %2269
  %v2272 = vmul.f32 %v2254, %v2270
  %v2273 = vstv %s2248
  %vm2274 = vcmp.gt.s32.totalorder %v82, %v2273
  %v2275 = vsel %vm2274, 1, 0
  %2276 = vset.pattern.permute.xlu0 0
  %2277 = vperm.xlu0 %2276, %v2275
  %v2278 = vpop.permute.xlu0 %2277
  %vm2279 = vcmp.eq.s32.totalorder %v2278, 1
  %v2280 = vsel %vm2279, %v2272, %v2096
  %v2281 = vsel %vm2279, %v2266, %v2097
  %v2282 = vsel %vm2279, %v2272, 0.0
  %s2283 = sadd.s32 %s85, 4
  %v2284 = vxor.u32 %v2247, 2147483648
  %v2285 = vmul.f32 %v2284, 1.442695
  %v2286 = vpow.pop %v2285
  %v2287 = vadd.f32 %v2286, 1.0
  %v2288 = vrcp.pop %v2287
  %v2289 = vmul.f32 1.0, %v2288
  %v2290 = vtanh.pop %v2247
  %v2291 = vmul.f32 %v2289, %v2132
  %2293 = vrot.lane.b32.xlu0 %v2290, 32
  %v2294 = vpop.permute.xlu0 %2293
  %v2296 = vmul.f32 %v2289, %v2294
  %2298 = vrot.lane.b32.xlu0 %v2296, 32
  %v2299 = vpop.permute.xlu0 %2298
  %v2301 = vadd.f32 %v2291, %v2299
  %v2302 = vtanh.pop %v2301
  %2304 = vrot.lane.b32.xlu0 %v2302, 32
  %v2305 = vpop.permute.xlu0 %2304
  %v2307 = vmul.f32 %v2289, %v2305
  %v2308 = vstv %s2283
  %vm2309 = vcmp.gt.s32.totalorder %v82, %v2308
  %v2310 = vsel %vm2309, 1, 0
  %2311 = vset.pattern.permute.xlu0 0
  %2312 = vperm.xlu0 %2311, %v2310
  %v2313 = vpop.permute.xlu0 %2312
  %vm2314 = vcmp.eq.s32.totalorder %v2313, 1
  %v2315 = vsel %vm2314, %v2307, %v2131
  %v2316 = vsel %vm2314, %v2301, %v2132
  %v2317 = vsel %vm2314, %v2307, 0.0
  %2319 = vrot.lane.b32.xlu0 %v2282, 64
  %v2320 = vpop.permute.xlu0 %2319
  %s2322 = scalar_lea.vmem %s5, 88
  %2323 = vst.msk [vmem:[%s2322] sm:$0xff] %vm105, %v2320
  %2325 = vrot.lane.b32.xlu0 %v2317, 64
  %v2326 = vpop.permute.xlu0 %2325
  %s2328 = scalar_lea.vmem %s61, 32
  %2329 = vst.msk [vmem:[%s2328] sm:$0xff] %vm105, %v2326
  %s2330 = scalar_lea.vmem %s0, 48
  %v2331 = vld [vmem:[%s2330] sm:$0xf]
  %v2332 = vunpack.c.l.bf16 %v2331
  %v2333 = vpack.c.bf16 %v2280, %v2280
  %2335 = vrot.lane.b32.xlu0 %v2333, 64
  %v2336 = vpop.permute.xlu0 %2335
  %v2338 = vsel %vm105, %v2336, 0
  %2340 = vmatprep.subr.bf16.mxu0 0
  %2341 = vmatpush1.bf16.msra.mxu0 %v101
  %2342 = vmatprep.subr.bf16.mxu0 0
  %2343 = vmatpush1.bf16.msra.mxu0 %v102
  %2344 = vmatprep.subr.bf16.mxu0 0
  %2345 = vmatpush1.bf16.msra.mxu0 0
  %2346 = vmatprep.subr.bf16.mxu0 0
  %2347 = vmatpush1.bf16.msra.mxu0 0
  %2348 = vmatprep.subr.bf16.mxu0 0
  %2349 = vmatpush1.bf16.msra.mxu0 0
  %2350 = vmatprep.subr.bf16.mxu0 0
  %2351 = vmatpush1.bf16.msra.mxu0 0
  %2352 = vmatprep.subr.bf16.mxu0 0
  %2353 = vmatpush1.bf16.msra.mxu0 0
  %2354 = vmatprep.subr.bf16.mxu0 0
  %2355 = vmatpush1.bf16.msra.mxu0 0
  %2356 = vmatprep.subr.bf16.mxu0 0
  %2357 = vmatpush1.bf16.msra.mxu0 0
  %2358 = vmatprep.subr.bf16.mxu0 0
  %2359 = vmatpush1.bf16.msra.mxu0 0
  %2360 = vmatprep.subr.bf16.mxu0 0
  %2361 = vmatpush1.bf16.msra.mxu0 0
  %2362 = vmatprep.subr.bf16.mxu0 0
  %2363 = vmatpush1.bf16.msra.mxu0 0
  %2364 = vmatprep.subr.bf16.mxu0 0
  %2365 = vmatpush1.bf16.msra.mxu0 0
  %2366 = vmatprep.subr.bf16.mxu0 0
  %2367 = vmatpush1.bf16.msra.mxu0 0
  %2368 = vmatprep.subr.bf16.mxu0 0
  %2369 = vmatpush1.bf16.msra.mxu0 0
  %2370 = vmatprep.subr.bf16.mxu0 0
  %2371 = vmatpush1.bf16.msra.mxu0 0
  %2372 = vmatprep.mubr.bf16.mxu0 0
  %2373 = vmatmul.mubr.bf16.gmra.mrb[0].mxu0 %v2338
  %v2374 = vpop.f32.mrb[0].mxu0
  %v2375 = vadd.f32 0.0, %v2374
  %v2376 = vpop.f32.mrb[0].mxu0
  %v2377 = vpop.f32.mrb[0].mxu0
  %v2378 = vpop.f32.mrb[0].mxu0
  %2379 = vdwg.mxu0
  %v2380 = vadd.f32 %v2332, %v2375
  %s2381 = scalar_lea.vmem %s52, 12
  %v2382 = vld [vmem:[%s2381] sm:$0xf]
  %v2383 = vunpack.c.l.bf16 %v2382
  %v2384 = vpack.c.bf16 %v2315, %v2315
  %2386 = vrot.lane.b32.xlu0 %v2384, 64
  %v2387 = vpop.permute.xlu0 %2386
  %v2389 = vsel %vm105, %v2387, 0
  %2391 = vmatprep.subr.bf16.mxu0 0
  %2392 = vmatpush1.bf16.msra.mxu0 %v162
  %2393 = vmatprep.subr.bf16.mxu0 0
  %2394 = vmatpush1.bf16.msra.mxu0 %v163
  %2395 = vmatprep.subr.bf16.mxu0 0
  %2396 = vmatpush1.bf16.msra.mxu0 0
  %2397 = vmatprep.subr.bf16.mxu0 0
  %2398 = vmatpush1.bf16.msra.mxu0 0
  %2399 = vmatprep.subr.bf16.mxu0 0
  %2400 = vmatpush1.bf16.msra.mxu0 0
  %2401 = vmatprep.subr.bf16.mxu0 0
  %2402 = vmatpush1.bf16.msra.mxu0 0
  %2403 = vmatprep.subr.bf16.mxu0 0
  %2404 = vmatpush1.bf16.msra.mxu0 0
  %2405 = vmatprep.subr.bf16.mxu0 0
  %2406 = vmatpush1.bf16.msra.mxu0 0
  %2407 = vmatprep.subr.bf16.mxu0 0
  %2408 = vmatpush1.bf16.msra.mxu0 0
  %2409 = vmatprep.subr.bf16.mxu0 0
  %2410 = vmatpush1.bf16.msra.mxu0 0
  %2411 = vmatprep.subr.bf16.mxu0 0
  %2412 = vmatpush1.bf16.msra.mxu0 0
  %2413 = vmatprep.subr.bf16.mxu0 0
  %2414 = vmatpush1.bf16.msra.mxu0 0
  %2415 = vmatprep.subr.bf16.mxu0 0
  %2416 = vmatpush1.bf16.msra.mxu0 0
  %2417 = vmatprep.subr.bf16.mxu0 0
  %2418 = vmatpush1.bf16.msra.mxu0 0
  %2419 = vmatprep.subr.bf16.mxu0 0
  %2420 = vmatpush1.bf16.msra.mxu0 0
  %2421 = vmatprep.subr.bf16.mxu0 0
  %2422 = vmatpush1.bf16.msra.mxu0 0
  %2423 = vmatprep.mubr.bf16.mxu0 0
  %2424 = vmatmul.mubr.bf16.gmra.mrb[0].mxu0 %v2389
  %v2425 = vpop.f32.mrb[0].mxu0
  %v2426 = vadd.f32 0.0, %v2425
  %v2427 = vpop.f32.mrb[0].mxu0
  %v2428 = vpop.f32.mrb[0].mxu0
  %v2429 = vpop.f32.mrb[0].mxu0
  %2430 = vdwg.mxu0
  %v2431 = vadd.f32 %v2383, %v2426
  %s2432 = sadd.s32 %s83, 12
  %v2433 = vxor.u32 %v2380, 2147483648
  %v2434 = vmul.f32 %v2433, 1.442695
  %v2435 = vpow.pop %v2434
  %v2436 = vadd.f32 %v2435, 1.0
  %v2437 = vrcp.pop %v2436
  %v2438 = vmul.f32 1.0, %v2437
  %v2439 = vtanh.pop %v2380
  %v2440 = vmul.f32 %v2438, %v2281
  %2442 = vrot.lane.b32.xlu0 %v2439, 32
  %v2443 = vpop.permute.xlu0 %2442
  %v2445 = vmul.f32 %v2438, %v2443
  %2447 = vrot.lane.b32.xlu0 %v2445, 32
  %v2448 = vpop.permute.xlu0 %2447
  %v2450 = vadd.f32 %v2440, %v2448
  %v2451 = vtanh.pop %v2450
  %2453 = vrot.lane.b32.xlu0 %v2451, 32
  %v2454 = vpop.permute.xlu0 %2453
  %v2456 = vmul.f32 %v2438, %v2454
  %v2457 = vstv %s2432
  %vm2458 = vcmp.gt.s32.totalorder %v82, %v2457
  %v2459 = vsel %vm2458, 1, 0
  %2460 = vset.pattern.permute.xlu0 0
  %2461 = vperm.xlu0 %2460, %v2459
  %v2462 = vpop.permute.xlu0 %2461
  %vm2463 = vcmp.eq.s32.totalorder %v2462, 1
  %v2464 = vsel %vm2463, %v2456, %v2280
  %v2465 = vsel %vm2463, %v2450, %v2281
  %v2466 = vsel %vm2463, %v2456, 0.0
  %s2467 = sadd.s32 %s85, 3
  %v2468 = vxor.u32 %v2431, 2147483648
  %v2469 = vmul.f32 %v2468, 1.442695
  %v2470 = vpow.pop %v2469
  %v2471 = vadd.f32 %v2470, 1.0
  %v2472 = vrcp.pop %v2471
  %v2473 = vmul.f32 1.0, %v2472
  %v2474 = vtanh.pop %v2431
  %v2475 = vmul.f32 %v2473, %v2316
  %2477 = vrot.lane.b32.xlu0 %v2474, 32
  %v2478 = vpop.permute.xlu0 %2477
  %v2480 = vmul.f32 %v2473, %v2478
  %2482 = vrot.lane.b32.xlu0 %v2480, 32
  %v2483 = vpop.permute.xlu0 %2482
  %v2485 = vadd.f32 %v2475, %v2483
  %v2486 = vtanh.pop %v2485
  %2488 = vrot.lane.b32.xlu0 %v2486, 32
  %v2489 = vpop.permute.xlu0 %2488
  %v2491 = vmul.f32 %v2473, %v2489
  %v2492 = vstv %s2467
  %vm2493 = vcmp.gt.s32.totalorder %v82, %v2492
  %v2494 = vsel %vm2493, 1, 0
  %2495 = vset.pattern.permute.xlu0 0
  %2496 = vperm.xlu0 %2495, %v2494
  %v2497 = vpop.permute.xlu0 %2496
  %vm2498 = vcmp.eq.s32.totalorder %v2497, 1
  %v2499 = vsel %vm2498, %v2491, %v2315
  %v2500 = vsel %vm2498, %v2485, %v2316
  %v2501 = vsel %vm2498, %v2491, 0.0
  %2503 = vrot.lane.b32.xlu0 %v2466, 64
  %v2504 = vpop.permute.xlu0 %2503
  %s2506 = scalar_lea.vmem %s5, 96
  %2507 = vst.msk [vmem:[%s2506] sm:$0xff] %vm105, %v2504
  %2509 = vrot.lane.b32.xlu0 %v2501, 64
  %v2510 = vpop.permute.xlu0 %2509
  %s2512 = scalar_lea.vmem %s61, 24
  %2513 = vst.msk [vmem:[%s2512] sm:$0xff] %vm105, %v2510
  %s2514 = scalar_lea.vmem %s0, 52
  %v2515 = vld [vmem:[%s2514] sm:$0xf]
  %v2516 = vunpack.c.l.bf16 %v2515
  %v2517 = vpack.c.bf16 %v2464, %v2464
  %2519 = vrot.lane.b32.xlu0 %v2517, 64
  %v2520 = vpop.permute.xlu0 %2519
  %v2522 = vsel %vm105, %v2520, 0
  %2524 = vmatprep.subr.bf16.mxu0 0
  %2525 = vmatpush1.bf16.msra.mxu0 %v101
  %2526 = vmatprep.subr.bf16.mxu0 0
  %2527 = vmatpush1.bf16.msra.mxu0 %v102
  %2528 = vmatprep.subr.bf16.mxu0 0
  %2529 = vmatpush1.bf16.msra.mxu0 0
  %2530 = vmatprep.subr.bf16.mxu0 0
  %2531 = vmatpush1.bf16.msra.mxu0 0
  %2532 = vmatprep.subr.bf16.mxu0 0
  %2533 = vmatpush1.bf16.msra.mxu0 0
  %2534 = vmatprep.subr.bf16.mxu0 0
  %2535 = vmatpush1.bf16.msra.mxu0 0
  %2536 = vmatprep.subr.bf16.mxu0 0
  %2537 = vmatpush1.bf16.msra.mxu0 0
  %2538 = vmatprep.subr.bf16.mxu0 0
  %2539 = vmatpush1.bf16.msra.mxu0 0
  %2540 = vmatprep.subr.bf16.mxu0 0
  %2541 = vmatpush1.bf16.msra.mxu0 0
  %2542 = vmatprep.subr.bf16.mxu0 0
  %2543 = vmatpush1.bf16.msra.mxu0 0
  %2544 = vmatprep.subr.bf16.mxu0 0
  %2545 = vmatpush1.bf16.msra.mxu0 0
  %2546 = vmatprep.subr.bf16.mxu0 0
  %2547 = vmatpush1.bf16.msra.mxu0 0
  %2548 = vmatprep.subr.bf16.mxu0 0
  %2549 = vmatpush1.bf16.msra.mxu0 0
  %2550 = vmatprep.subr.bf16.mxu0 0
  %2551 = vmatpush1.bf16.msra.mxu0 0
  %2552 = vmatprep.subr.bf16.mxu0 0
  %2553 = vmatpush1.bf16.msra.mxu0 0
  %2554 = vmatprep.subr.bf16.mxu0 0
  %2555 = vmatpush1.bf16.msra.mxu0 0
  %2556 = vmatprep.mubr.bf16.mxu0 0
  %2557 = vmatmul.mubr.bf16.gmra.mrb[0].mxu0 %v2522
  %v2558 = vpop.f32.mrb[0].mxu0
  %v2559 = vadd.f32 0.0, %v2558
  %v2560 = vpop.f32.mrb[0].mxu0
  %v2561 = vpop.f32.mrb[0].mxu0
  %v2562 = vpop.f32.mrb[0].mxu0
  %2563 = vdwg.mxu0
  %v2564 = vadd.f32 %v2516, %v2559
  %s2565 = scalar_lea.vmem %s52, 8
  %v2566 = vld [vmem:[%s2565] sm:$0xf]
  %v2567 = vunpack.c.l.bf16 %v2566
  %v2568 = vpack.c.bf16 %v2499, %v2499
  %2570 = vrot.lane.b32.xlu0 %v2568, 64
  %v2571 = vpop.permute.xlu0 %2570
  %v2573 = vsel %vm105, %v2571, 0
  %2575 = vmatprep.subr.bf16.mxu0 0
  %2576 = vmatpush1.bf16.msra.mxu0 %v162
  %2577 = vmatprep.subr.bf16.mxu0 0
  %2578 = vmatpush1.bf16.msra.mxu0 %v163
  %2579 = vmatprep.subr.bf16.mxu0 0
  %2580 = vmatpush1.bf16.msra.mxu0 0
  %2581 = vmatprep.subr.bf16.mxu0 0
  %2582 = vmatpush1.bf16.msra.mxu0 0
  %2583 = vmatprep.subr.bf16.mxu0 0
  %2584 = vmatpush1.bf16.msra.mxu0 0
  %2585 = vmatprep.subr.bf16.mxu0 0
  %2586 = vmatpush1.bf16.msra.mxu0 0
  %2587 = vmatprep.subr.bf16.mxu0 0
  %2588 = vmatpush1.bf16.msra.mxu0 0
  %2589 = vmatprep.subr.bf16.mxu0 0
  %2590 = vmatpush1.bf16.msra.mxu0 0
  %2591 = vmatprep.subr.bf16.mxu0 0
  %2592 = vmatpush1.bf16.msra.mxu0 0
  %2593 = vmatprep.subr.bf16.mxu0 0
  %2594 = vmatpush1.bf16.msra.mxu0 0
  %2595 = vmatprep.subr.bf16.mxu0 0
  %2596 = vmatpush1.bf16.msra.mxu0 0
  %2597 = vmatprep.subr.bf16.mxu0 0
  %2598 = vmatpush1.bf16.msra.mxu0 0
  %2599 = vmatprep.subr.bf16.mxu0 0
  %2600 = vmatpush1.bf16.msra.mxu0 0
  %2601 = vmatprep.subr.bf16.mxu0 0
  %2602 = vmatpush1.bf16.msra.mxu0 0
  %2603 = vmatprep.subr.bf16.mxu0 0
  %2604 = vmatpush1.bf16.msra.mxu0 0
  %2605 = vmatprep.subr.bf16.mxu0 0
  %2606 = vmatpush1.bf16.msra.mxu0 0
  %2607 = vmatprep.mubr.bf16.mxu0 0
  %2608 = vmatmul.mubr.bf16.gmra.mrb[0].mxu0 %v2573
  %v2609 = vpop.f32.mrb[0].mxu0
  %v2610 = vadd.f32 0.0, %v2609
  %v2611 = vpop.f32.mrb[0].mxu0
  %v2612 = vpop.f32.mrb[0].mxu0
  %v2613 = vpop.f32.mrb[0].mxu0
  %2614 = vdwg.mxu0
  %v2615 = vadd.f32 %v2567, %v2610
  %s2616 = sadd.s32 %s83, 13
  %v2617 = vxor.u32 %v2564, 2147483648
  %v2618 = vmul.f32 %v2617, 1.442695
  %v2619 = vpow.pop %v2618
  %v2620 = vadd.f32 %v2619, 1.0
  %v2621 = vrcp.pop %v2620
  %v2622 = vmul.f32 1.0, %v2621
  %v2623 = vtanh.pop %v2564
  %v2624 = vmul.f32 %v2622, %v2465
  %2626 = vrot.lane.b32.xlu0 %v2623, 32
  %v2627 = vpop.permute.xlu0 %2626
  %v2629 = vmul.f32 %v2622, %v2627
  %2631 = vrot.lane.b32.xlu0 %v2629, 32
  %v2632 = vpop.permute.xlu0 %2631
  %v2634 = vadd.f32 %v2624, %v2632
  %v2635 = vtanh.pop %v2634
  %2637 = vrot.lane.b32.xlu0 %v2635, 32
  %v2638 = vpop.permute.xlu0 %2637
  %v2640 = vmul.f32 %v2622, %v2638
  %v2641 = vstv %s2616
  %vm2642 = vcmp.gt.s32.totalorder %v82, %v2641
  %v2643 = vsel %vm2642, 1, 0
  %2644 = vset.pattern.permute.xlu0 0
  %2645 = vperm.xlu0 %2644, %v2643
  %v2646 = vpop.permute.xlu0 %2645
  %vm2647 = vcmp.eq.s32.totalorder %v2646, 1
  %v2648 = vsel %vm2647, %v2640, %v2464
  %v2649 = vsel %vm2647, %v2634, %v2465
  %v2650 = vsel %vm2647, %v2640, 0.0
  %s2651 = sadd.s32 %s85, 2
  %v2652 = vxor.u32 %v2615, 2147483648
  %v2653 = vmul.f32 %v2652, 1.442695
  %v2654 = vpow.pop %v2653
  %v2655 = vadd.f32 %v2654, 1.0
  %v2656 = vrcp.pop %v2655
  %v2657 = vmul.f32 1.0, %v2656
  %v2658 = vtanh.pop %v2615
  %v2659 = vmul.f32 %v2657, %v2500
  %2661 = vrot.lane.b32.xlu0 %v2658, 32
  %v2662 = vpop.permute.xlu0 %2661
  %v2664 = vmul.f32 %v2657, %v2662
  %2666 = vrot.lane.b32.xlu0 %v2664, 32
  %v2667 = vpop.permute.xlu0 %2666
  %v2669 = vadd.f32 %v2659, %v2667
  %v2670 = vtanh.pop %v2669
  %2672 = vrot.lane.b32.xlu0 %v2670, 32
  %v2673 = vpop.permute.xlu0 %2672
  %v2675 = vmul.f32 %v2657, %v2673
  %v2676 = vstv %s2651
  %vm2677 = vcmp.gt.s32.totalorder %v82, %v2676
  %v2678 = vsel %vm2677, 1, 0
  %2679 = vset.pattern.permute.xlu0 0
  %2680 = vperm.xlu0 %2679, %v2678
  %v2681 = vpop.permute.xlu0 %2680
  %vm2682 = vcmp.eq.s32.totalorder %v2681, 1
  %v2683 = vsel %vm2682, %v2675, %v2499
  %v2684 = vsel %vm2682, %v2669, %v2500
  %v2685 = vsel %vm2682, %v2675, 0.0
  %2687 = vrot.lane.b32.xlu0 %v2650, 64
  %v2688 = vpop.permute.xlu0 %2687
  %s2690 = scalar_lea.vmem %s5, 104
  %2691 = vst.msk [vmem:[%s2690] sm:$0xff] %vm105, %v2688
  %2693 = vrot.lane.b32.xlu0 %v2685, 64
  %v2694 = vpop.permute.xlu0 %2693
  %s2696 = scalar_lea.vmem %s61, 16
  %2697 = vst.msk [vmem:[%s2696] sm:$0xff] %vm105, %v2694
  %s2698 = scalar_lea.vmem %s0, 56
  %v2699 = vld [vmem:[%s2698] sm:$0xf]
  %v2700 = vunpack.c.l.bf16 %v2699
  %v2701 = vpack.c.bf16 %v2648, %v2648
  %2703 = vrot.lane.b32.xlu0 %v2701, 64
  %v2704 = vpop.permute.xlu0 %2703
  %v2706 = vsel %vm105, %v2704, 0
  %2708 = vmatprep.subr.bf16.mxu0 0
  %2709 = vmatpush1.bf16.msra.mxu0 %v101
  %2710 = vmatprep.subr.bf16.mxu0 0
  %2711 = vmatpush1.bf16.msra.mxu0 %v102
  %2712 = vmatprep.subr.bf16.mxu0 0
  %2713 = vmatpush1.bf16.msra.mxu0 0
  %2714 = vmatprep.subr.bf16.mxu0 0
  %2715 = vmatpush1.bf16.msra.mxu0 0
  %2716 = vmatprep.subr.bf16.mxu0 0
  %2717 = vmatpush1.bf16.msra.mxu0 0
  %2718 = vmatprep.subr.bf16.mxu0 0
  %2719 = vmatpush1.bf16.msra.mxu0 0
  %2720 = vmatprep.subr.bf16.mxu0 0
  %2721 = vmatpush1.bf16.msra.mxu0 0
  %2722 = vmatprep.subr.bf16.mxu0 0
  %2723 = vmatpush1.bf16.msra.mxu0 0
  %2724 = vmatprep.subr.bf16.mxu0 0
  %2725 = vmatpush1.bf16.msra.mxu0 0
  %2726 = vmatprep.subr.bf16.mxu0 0
  %2727 = vmatpush1.bf16.msra.mxu0 0
  %2728 = vmatprep.subr.bf16.mxu0 0
  %2729 = vmatpush1.bf16.msra.mxu0 0
  %2730 = vmatprep.subr.bf16.mxu0 0
  %2731 = vmatpush1.bf16.msra.mxu0 0
  %2732 = vmatprep.subr.bf16.mxu0 0
  %2733 = vmatpush1.bf16.msra.mxu0 0
  %2734 = vmatprep.subr.bf16.mxu0 0
  %2735 = vmatpush1.bf16.msra.mxu0 0
  %2736 = vmatprep.subr.bf16.mxu0 0
  %2737 = vmatpush1.bf16.msra.mxu0 0
  %2738 = vmatprep.subr.bf16.mxu0 0
  %2739 = vmatpush1.bf16.msra.mxu0 0
  %2740 = vmatprep.mubr.bf16.mxu0 0
  %2741 = vmatmul.mubr.bf16.gmra.mrb[0].mxu0 %v2706
  %v2742 = vpop.f32.mrb[0].mxu0
  %v2743 = vadd.f32 0.0, %v2742
  %v2744 = vpop.f32.mrb[0].mxu0
  %v2745 = vpop.f32.mrb[0].mxu0
  %v2746 = vpop.f32.mrb[0].mxu0
  %2747 = vdwg.mxu0
  %v2748 = vadd.f32 %v2700, %v2743
  %s2749 = scalar_lea.vmem %s52, 4
  %v2750 = vld [vmem:[%s2749] sm:$0xf]
  %v2751 = vunpack.c.l.bf16 %v2750
  %v2752 = vpack.c.bf16 %v2683, %v2683
  %2754 = vrot.lane.b32.xlu0 %v2752, 64
  %v2755 = vpop.permute.xlu0 %2754
  %v2757 = vsel %vm105, %v2755, 0
  %2759 = vmatprep.subr.bf16.mxu0 0
  %2760 = vmatpush1.bf16.msra.mxu0 %v162
  %2761 = vmatprep.subr.bf16.mxu0 0
  %2762 = vmatpush1.bf16.msra.mxu0 %v163
  %2763 = vmatprep.subr.bf16.mxu0 0
  %2764 = vmatpush1.bf16.msra.mxu0 0
  %2765 = vmatprep.subr.bf16.mxu0 0
  %2766 = vmatpush1.bf16.msra.mxu0 0
  %2767 = vmatprep.subr.bf16.mxu0 0
  %2768 = vmatpush1.bf16.msra.mxu0 0
  %2769 = vmatprep.subr.bf16.mxu0 0
  %2770 = vmatpush1.bf16.msra.mxu0 0
  %2771 = vmatprep.subr.bf16.mxu0 0
  %2772 = vmatpush1.bf16.msra.mxu0 0
  %2773 = vmatprep.subr.bf16.mxu0 0
  %2774 = vmatpush1.bf16.msra.mxu0 0
  %2775 = vmatprep.subr.bf16.mxu0 0
  %2776 = vmatpush1.bf16.msra.mxu0 0
  %2777 = vmatprep.subr.bf16.mxu0 0
  %2778 = vmatpush1.bf16.msra.mxu0 0
  %2779 = vmatprep.subr.bf16.mxu0 0
  %2780 = vmatpush1.bf16.msra.mxu0 0
  %2781 = vmatprep.subr.bf16.mxu0 0
  %2782 = vmatpush1.bf16.msra.mxu0 0
  %2783 = vmatprep.subr.bf16.mxu0 0
  %2784 = vmatpush1.bf16.msra.mxu0 0
  %2785 = vmatprep.subr.bf16.mxu0 0
  %2786 = vmatpush1.bf16.msra.mxu0 0
  %2787 = vmatprep.subr.bf16.mxu0 0
  %2788 = vmatpush1.bf16.msra.mxu0 0
  %2789 = vmatprep.subr.bf16.mxu0 0
  %2790 = vmatpush1.bf16.msra.mxu0 0
  %2791 = vmatprep.mubr.bf16.mxu0 0
  %2792 = vmatmul.mubr.bf16.gmra.mrb[0].mxu0 %v2757
  %v2793 = vpop.f32.mrb[0].mxu0
  %v2794 = vadd.f32 0.0, %v2793
  %v2795 = vpop.f32.mrb[0].mxu0
  %v2796 = vpop.f32.mrb[0].mxu0
  %v2797 = vpop.f32.mrb[0].mxu0
  %2798 = vdwg.mxu0
  %v2799 = vadd.f32 %v2751, %v2794
  %s2800 = sadd.s32 %s83, 14
  %v2801 = vxor.u32 %v2748, 2147483648
  %v2802 = vmul.f32 %v2801, 1.442695
  %v2803 = vpow.pop %v2802
  %v2804 = vadd.f32 %v2803, 1.0
  %v2805 = vrcp.pop %v2804
  %v2806 = vmul.f32 1.0, %v2805
  %v2807 = vtanh.pop %v2748
  %v2808 = vmul.f32 %v2806, %v2649
  %2810 = vrot.lane.b32.xlu0 %v2807, 32
  %v2811 = vpop.permute.xlu0 %2810
  %v2813 = vmul.f32 %v2806, %v2811
  %2815 = vrot.lane.b32.xlu0 %v2813, 32
  %v2816 = vpop.permute.xlu0 %2815
  %v2818 = vadd.f32 %v2808, %v2816
  %v2819 = vtanh.pop %v2818
  %2821 = vrot.lane.b32.xlu0 %v2819, 32
  %v2822 = vpop.permute.xlu0 %2821
  %v2824 = vmul.f32 %v2806, %v2822
  %v2825 = vstv %s2800
  %vm2826 = vcmp.gt.s32.totalorder %v82, %v2825
  %v2827 = vsel %vm2826, 1, 0
  %2828 = vset.pattern.permute.xlu0 0
  %2829 = vperm.xlu0 %2828, %v2827
  %v2830 = vpop.permute.xlu0 %2829
  %vm2831 = vcmp.eq.s32.totalorder %v2830, 1
  %v2832 = vsel %vm2831, %v2824, %v2648
  %v2833 = vsel %vm2831, %v2818, %v2649
  %v2834 = vsel %vm2831, %v2824, 0.0
  %s2835 = sadd.s32 %s85, 1
  %v2836 = vxor.u32 %v2799, 2147483648
  %v2837 = vmul.f32 %v2836, 1.442695
  %v2838 = vpow.pop %v2837
  %v2839 = vadd.f32 %v2838, 1.0
  %v2840 = vrcp.pop %v2839
  %v2841 = vmul.f32 1.0, %v2840
  %v2842 = vtanh.pop %v2799
  %v2843 = vmul.f32 %v2841, %v2684
  %2845 = vrot.lane.b32.xlu0 %v2842, 32
  %v2846 = vpop.permute.xlu0 %2845
  %v2848 = vmul.f32 %v2841, %v2846
  %2850 = vrot.lane.b32.xlu0 %v2848, 32
  %v2851 = vpop.permute.xlu0 %2850
  %v2853 = vadd.f32 %v2843, %v2851
  %v2854 = vtanh.pop %v2853
  %2856 = vrot.lane.b32.xlu0 %v2854, 32
  %v2857 = vpop.permute.xlu0 %2856
  %v2859 = vmul.f32 %v2841, %v2857
  %v2860 = vstv %s2835
  %vm2861 = vcmp.gt.s32.totalorder %v82, %v2860
  %v2862 = vsel %vm2861, 1, 0
  %2863 = vset.pattern.permute.xlu0 0
  %2864 = vperm.xlu0 %2863, %v2862
  %v2865 = vpop.permute.xlu0 %2864
  %vm2866 = vcmp.eq.s32.totalorder %v2865, 1
  %v2867 = vsel %vm2866, %v2859, %v2683
  %v2868 = vsel %vm2866, %v2853, %v2684
  %v2869 = vsel %vm2866, %v2859, 0.0
  %2871 = vrot.lane.b32.xlu0 %v2834, 64
  %v2872 = vpop.permute.xlu0 %2871
  %s2874 = scalar_lea.vmem %s5, 112
  %2875 = vst.msk [vmem:[%s2874] sm:$0xff] %vm105, %v2872
  %2877 = vrot.lane.b32.xlu0 %v2869, 64
  %v2878 = vpop.permute.xlu0 %2877
  %s2880 = scalar_lea.vmem %s61, 8
  %2881 = vst.msk [vmem:[%s2880] sm:$0xff] %vm105, %v2878
  %s2882 = scalar_lea.vmem %s0, 60
  %v2883 = vld [vmem:[%s2882] sm:$0xf]
  %v2884 = vunpack.c.l.bf16 %v2883
  %v2885 = vpack.c.bf16 %v2832, %v2832
  %2887 = vrot.lane.b32.xlu0 %v2885, 64
  %v2888 = vpop.permute.xlu0 %2887
  %v2890 = vsel %vm105, %v2888, 0
  %2892 = vmatprep.subr.bf16.mxu0 0
  %2893 = vmatpush1.bf16.msra.mxu0 %v101
  %2894 = vmatprep.subr.bf16.mxu0 0
  %2895 = vmatpush1.bf16.msra.mxu0 %v102
  %2896 = vmatprep.subr.bf16.mxu0 0
  %2897 = vmatpush1.bf16.msra.mxu0 0
  %2898 = vmatprep.subr.bf16.mxu0 0
  %2899 = vmatpush1.bf16.msra.mxu0 0
  %2900 = vmatprep.subr.bf16.mxu0 0
  %2901 = vmatpush1.bf16.msra.mxu0 0
  %2902 = vmatprep.subr.bf16.mxu0 0
  %2903 = vmatpush1.bf16.msra.mxu0 0
  %2904 = vmatprep.subr.bf16.mxu0 0
  %2905 = vmatpush1.bf16.msra.mxu0 0
  %2906 = vmatprep.subr.bf16.mxu0 0
  %2907 = vmatpush1.bf16.msra.mxu0 0
  %2908 = vmatprep.subr.bf16.mxu0 0
  %2909 = vmatpush1.bf16.msra.mxu0 0
  %2910 = vmatprep.subr.bf16.mxu0 0
  %2911 = vmatpush1.bf16.msra.mxu0 0
  %2912 = vmatprep.subr.bf16.mxu0 0
  %2913 = vmatpush1.bf16.msra.mxu0 0
  %2914 = vmatprep.subr.bf16.mxu0 0
  %2915 = vmatpush1.bf16.msra.mxu0 0
  %2916 = vmatprep.subr.bf16.mxu0 0
  %2917 = vmatpush1.bf16.msra.mxu0 0
  %2918 = vmatprep.subr.bf16.mxu0 0
  %2919 = vmatpush1.bf16.msra.mxu0 0
  %2920 = vmatprep.subr.bf16.mxu0 0
  %2921 = vmatpush1.bf16.msra.mxu0 0
  %2922 = vmatprep.subr.bf16.mxu0 0
  %2923 = vmatpush1.bf16.msra.mxu0 0
  %2924 = vmatprep.mubr.bf16.mxu0 0
  %2925 = vmatmul.mubr.bf16.gmra.mrb[0].mxu0 %v2890
  %v2926 = vpop.f32.mrb[0].mxu0
  %v2927 = vadd.f32 0.0, %v2926
  %v2928 = vpop.f32.mrb[0].mxu0
  %v2929 = vpop.f32.mrb[0].mxu0
  %v2930 = vpop.f32.mrb[0].mxu0
  %2931 = vdwg.mxu0
  %v2932 = vadd.f32 %v2884, %v2927
  %v2933 = vld [vmem:[%s52] sm:$0xf]
  %v2934 = vunpack.c.l.bf16 %v2933
  %v2935 = vpack.c.bf16 %v2867, %v2867
  %2937 = vrot.lane.b32.xlu0 %v2935, 64
  %v2938 = vpop.permute.xlu0 %2937
  %v2940 = vsel %vm105, %v2938, 0
  %2942 = vmatprep.subr.bf16.mxu0 0
  %2943 = vmatpush1.bf16.msra.mxu0 %v162
  %2944 = vmatprep.subr.bf16.mxu0 0
  %2945 = vmatpush1.bf16.msra.mxu0 %v163
  %2946 = vmatprep.subr.bf16.mxu0 0
  %2947 = vmatpush1.bf16.msra.mxu0 0
  %2948 = vmatprep.subr.bf16.mxu0 0
  %2949 = vmatpush1.bf16.msra.mxu0 0
  %2950 = vmatprep.subr.bf16.mxu0 0
  %2951 = vmatpush1.bf16.msra.mxu0 0
  %2952 = vmatprep.subr.bf16.mxu0 0
  %2953 = vmatpush1.bf16.msra.mxu0 0
  %2954 = vmatprep.subr.bf16.mxu0 0
  %2955 = vmatpush1.bf16.msra.mxu0 0
  %2956 = vmatprep.subr.bf16.mxu0 0
  %2957 = vmatpush1.bf16.msra.mxu0 0
  %2958 = vmatprep.subr.bf16.mxu0 0
  %2959 = vmatpush1.bf16.msra.mxu0 0
  %2960 = vmatprep.subr.bf16.mxu0 0
  %2961 = vmatpush1.bf16.msra.mxu0 0
  %2962 = vmatprep.subr.bf16.mxu0 0
  %2963 = vmatpush1.bf16.msra.mxu0 0
  %2964 = vmatprep.subr.bf16.mxu0 0
  %2965 = vmatpush1.bf16.msra.mxu0 0
  %2966 = vmatprep.subr.bf16.mxu0 0
  %2967 = vmatpush1.bf16.msra.mxu0 0
  %2968 = vmatprep.subr.bf16.mxu0 0
  %2969 = vmatpush1.bf16.msra.mxu0 0
  %2970 = vmatprep.subr.bf16.mxu0 0
  %2971 = vmatpush1.bf16.msra.mxu0 0
  %2972 = vmatprep.subr.bf16.mxu0 0
  %2973 = vmatpush1.bf16.msra.mxu0 0
  %2974 = vmatprep.mubr.bf16.mxu0 0
  %2975 = vmatmul.mubr.bf16.gmra.mrb[0].mxu0 %v2940
  %v2976 = vpop.f32.mrb[0].mxu0
  %v2977 = vadd.f32 0.0, %v2976
  %v2978 = vpop.f32.mrb[0].mxu0
  %v2979 = vpop.f32.mrb[0].mxu0
  %v2980 = vpop.f32.mrb[0].mxu0
  %2981 = vdwg.mxu0
  %v2982 = vadd.f32 %v2934, %v2977
  %s2983 = sadd.s32 %s83, 15
  %v2984 = vxor.u32 %v2932, 2147483648
  %v2985 = vmul.f32 %v2984, 1.442695
  %v2986 = vpow.pop %v2985
  %v2987 = vadd.f32 %v2986, 1.0
  %v2988 = vrcp.pop %v2987
  %v2989 = vmul.f32 1.0, %v2988
  %v2990 = vtanh.pop %v2932
  %v2991 = vmul.f32 %v2989, %v2833
  %2993 = vrot.lane.b32.xlu0 %v2990, 32
  %v2994 = vpop.permute.xlu0 %2993
  %v2996 = vmul.f32 %v2989, %v2994
  %2998 = vrot.lane.b32.xlu0 %v2996, 32
  %v2999 = vpop.permute.xlu0 %2998
  %v3001 = vadd.f32 %v2991, %v2999
  %v3002 = vtanh.pop %v3001
  %3004 = vrot.lane.b32.xlu0 %v3002, 32
  %v3005 = vpop.permute.xlu0 %3004
  %v3007 = vmul.f32 %v2989, %v3005
  %v3008 = vstv %s2983
  %vm3009 = vcmp.gt.s32.totalorder %v82, %v3008
  %v3010 = vsel %vm3009, 1, 0
  %3011 = vset.pattern.permute.xlu0 0
  %3012 = vperm.xlu0 %3011, %v3010
  %v3013 = vpop.permute.xlu0 %3012
  %vm3014 = vcmp.eq.s32.totalorder %v3013, 1
  %v3015 = vsel %vm3014, %v3007, %v2832
  %v3016 = vsel %vm3014, %v3001, %v2833
  %v3017 = vsel %vm3014, %v3007, 0.0
  %v3018 = vxor.u32 %v2982, 2147483648
  %v3019 = vmul.f32 %v3018, 1.442695
  %v3020 = vpow.pop %v3019
  %v3021 = vadd.f32 %v3020, 1.0
  %v3022 = vrcp.pop %v3021
  %v3023 = vmul.f32 1.0, %v3022
  %v3024 = vtanh.pop %v2982
  %v3025 = vmul.f32 %v3023, %v2868
  %3027 = vrot.lane.b32.xlu0 %v3024, 32
  %v3028 = vpop.permute.xlu0 %3027
  %v3030 = vmul.f32 %v3023, %v3028
  %3032 = vrot.lane.b32.xlu0 %v3030, 32
  %v3033 = vpop.permute.xlu0 %3032
  %v3035 = vadd.f32 %v3025, %v3033
  %v3036 = vtanh.pop %v3035
  %3038 = vrot.lane.b32.xlu0 %v3036, 32
  %v3039 = vpop.permute.xlu0 %3038
  %v3041 = vmul.f32 %v3023, %v3039
  %v3042 = vstv %s85
  %vm3043 = vcmp.gt.s32.totalorder %v82, %v3042
  %v3044 = vsel %vm3043, 1, 0
  %3045 = vset.pattern.permute.xlu0 0
  %3046 = vperm.xlu0 %3045, %v3044
  %v3047 = vpop.permute.xlu0 %3046
  %vm3048 = vcmp.eq.s32.totalorder %v3047, 1
  %v3049 = vsel %vm3048, %v3041, %v2867
  %v3050 = vsel %vm3048, %v3035, %v2868
  %v3051 = vsel %vm3048, %v3041, 0.0
  %3053 = vrot.lane.b32.xlu0 %v3017, 64
  %v3054 = vpop.permute.xlu0 %3053
  %s3056 = scalar_lea.vmem %s5, 120
  %3057 = vst.msk [vmem:[%s3056] sm:$0xff] %vm105, %v3054
  %3059 = vrot.lane.b32.xlu0 %v3051, 64
  %v3060 = vpop.permute.xlu0 %3059
  %3062 = vst.msk [vmem:[%s61] sm:$0xff] %vm105, %v3060
  %3064 = vrot.lane.b32.xlu0 %v3015, 64
  %v3065 = vpop.permute.xlu0 %3064
  %3067 = vst.msk [vmem:[#allocation2] sm:$0xff] %vm105, %v3065
  %3069 = vrot.lane.b32.xlu0 %v3016, 96
  %v3070 = vpop.permute.xlu0 %3069
  %3072 = vst.msk [vmem:[#allocation3] sm:$0xff] %vm105, %v3070
  %3074 = vrot.lane.b32.xlu0 %v3049, 64
  %v3075 = vpop.permute.xlu0 %3074
  %3077 = vst.msk [vmem:[#allocation4] sm:$0xff] %vm105, %v3075
  %3079 = vrot.lane.b32.xlu0 %v3050, 96
  %v3080 = vpop.permute.xlu0 %3079
  %3082 = vst.msk [vmem:[#allocation5] sm:$0xff] %vm105, %v3080
  %s3083 = ssub.s32 0, 0
  %s3084 = smul.u32 16, %s3083
  %p3085 = scmp.lt.s32.totalorder %s3084, 15
  %s3086 = scalar_select %p3085, %s3084, 15
  %s3087 = smul.addr %s3086, 8
  %s3088 = scalar_lea.vmem %s6, %s3087
  // Predicated region
  $region26: #{_lambda_.9} parent=0 // pred_check
    _
  $region27: #{_lambda_.9} parent=0 // pred_check_branch
    %3090 = sbr.rel (0) target = $region29
  $region28: #{_lambda_.9} parent=0 // pred_region
    _
  $region29: #{_lambda_.9} parent=0 // pred_fallthru
    _
  // Predicated region
  $region30: #{_lambda_.9} parent=0 // pred_check
    _
  $region31: #{_lambda_.9} parent=0 // pred_check_branch
    %3092 = sbr.rel (0) target = $region33
  $region32: #{_lambda_.9} parent=0 // pred_region
    %s3093 = ssub.s32 0, 0
    %s3094 = smul.u32 16, %s3093
  $region33: #{_lambda_.9} parent=0 // pred_fallthru
    _
  // Predicated region
  $region34: #{_lambda_.9} parent=0 // pred_check
    _
  $region35: #{_lambda_.9} parent=0 // pred_check_branch
    %3096 = sbr.rel (0) target = $region37
  $region36: #{_lambda_.9} parent=0 // pred_region
    _
  $region37: #{_lambda_.9} parent=0 // pred_fallthru
    _
  // Predicated region
  $region38: #{_lambda_.9} parent=0 // pred_check
    _
  $region39: #{_lambda_.9} parent=0 // pred_check_branch
    %3098 = sbr.rel (0) target = $region41
  $region40: #{_lambda_.9} parent=0 // pred_region
    %s3099 = ssub.s32 0, 0
    %s3100 = smul.u32 16, %s3099
    %p3101 = scmp.lt.s32.totalorder %s3100, 15
    %s3102 = scalar_select %p3101, %s3100, 15
    %s3103 = smul.addr %s3102, 8
    %s3104 = scalar_lea.vmem %s6, %s3103
  $region41: #{_lambda_.9} parent=0 // pred_fallthru
    _

// kernel: _lambda_.14
$region0: #{_lambda_.14}
  #allocation0 [shape = 'u32[]', space=smem, size = 0x4, offset = 0x4, fixed_abs, tag = 'smem constant byte address 0x4 - core index']
  #allocation1 [shape = 'u32[144,128]{1,0:T(1,128)}', space=vmem, size = 0x12000, scoped, tag = 'internal scratch']
  #allocation2 [shape = 'f32[8,32]{1,0:T(8,128)}', space=vmem, size = 0x1000, scoped, tag = 'scratch operand']
  #allocation3 [shape = 'f32[8,32]{1,0:T(8,128)}', space=vmem, size = 0x1000, scoped, tag = 'scratch operand']
  #allocation4 [shape = 'f32[8,32]{1,0:T(8,128)}', space=vmem, size = 0x1000, scoped, tag = 'scratch operand']
  #allocation5 [shape = 'f32[8,32]{1,0:T(8,128)}', space=vmem, size = 0x1000, scoped, tag = 'scratch operand']
  %s0 = inlined_call_operand.vmem [shape: bf16[2,4,8,128], index: 0, kind: input, shape index: {}, may-alias: {0,1}]
  %s1 = inlined_call_operand.vmem [shape: bf16[2,4,8,128], index: 1, kind: input, shape index: {}, may-alias: {0,1}]
  %s2 = inlined_call_operand.vmem [shape: bf16[2,32,128], index: 2, kind: input, shape index: {}, may-alias: {2,3}]
  %s3 = inlined_call_operand.vmem [shape: bf16[2,32,128], index: 3, kind: input, shape index: {}, may-alias: {2,3}]
  %s4 = inlined_call_operand.vmem [shape: s32[8,1], index: 4, kind: input, shape index: {}]
  %s5 = inlined_call_operand.vmem [shape: f32[4,8,32], index: 5, kind: output, shape index: {0}]
  %s6 = inlined_call_operand.vmem [shape: f32[4,8,32], index: 6, kind: output, shape index: {1}]
  %7 = xla_tuple %s5, %s6
  %s8 = sld [smem:[#allocation0]]
  $region42: #{_lambda_.14} parent=0
    _
  %s10 = ssub.s32 1, %s8
  %s11 = scalar_select 0, %s10, %s8
  // Predicated region
  $region2: #{_lambda_.14} parent=0 // pred_check
    _
  $region3: #{_lambda_.14} parent=0 // pred_check_branch
    %13 = sbr.rel (0) target = $region5
  $region4: #{_lambda_.14} parent=0 // pred_region
    _
  $region5: #{_lambda_.14} parent=0 // pred_fallthru
    _
  // Predicated region
  $region6: #{_lambda_.14} parent=0 // pred_check
    _
  $region7: #{_lambda_.14} parent=0 // pred_check_branch
    %15 = sbr.rel (0) target = $region9
  $region8: #{_lambda_.14} parent=0 // pred_region
    %s16 = ssub.s32 0, 0
    %s17 = smul.u32 4, %s16
    %p18 = scmp.lt.s32.totalorder %s17, 3
    %s19 = scalar_select %p18, %s17, 3
    %s20 = sadd.s32 %s19, 4
    %s21 = smul.addr %s20, 4
    %s22 = scalar_lea.vmem %s1, %s21
    %s23 = ssub.s32 0, 0
    %s24 = smul.u32 4, %s23
  $region9: #{_lambda_.14} parent=0 // pred_fallthru
    _
  // Predicated region
  $region10: #{_lambda_.14} parent=0 // pred_check
    _
  $region11: #{_lambda_.14} parent=0 // pred_check_branch
    %26 = sbr.rel (0) target = $region13
  $region12: #{_lambda_.14} parent=0 // pred_region
    _
  $region13: #{_lambda_.14} parent=0 // pred_fallthru
    _
  // Predicated region
  $region14: #{_lambda_.14} parent=0 // pred_check
    _
  $region15: #{_lambda_.14} parent=0 // pred_check_branch
    %28 = sbr.rel (0) target = $region17
  $region16: #{_lambda_.14} parent=0 // pred_region
    %s29 = scalar_lea.vmem %s3, 16
  $region17: #{_lambda_.14} parent=0 // pred_fallthru
    _
  // Predicated region
  $region18: #{_lambda_.14} parent=0 // pred_check
    _
  $region19: #{_lambda_.14} parent=0 // pred_check_branch
    %31 = sbr.rel (0) target = $region21
  $region20: #{_lambda_.14} parent=0 // pred_region
    _
  $region21: #{_lambda_.14} parent=0 // pred_fallthru
    _
  %s32 = ssub.s32 0, 0
  %s33 = smul.u32 4, %s32
  %p34 = scmp.lt.s32.totalorder %s33, 3
  %s35 = scalar_select %p34, %s33, 3
  %s36 = sadd.s32 %s35, 4
  %s37 = smul.addr %s36, 4
  %s38 = scalar_lea.vmem %s1, %s37
  %s39 = scalar_lea.vmem %s3, 16
  %s40 = ssub.s32 0, 0
  %s41 = smul.u32 4, %s40
  %p42 = scmp.lt.s32.totalorder %s41, 3
  %s43 = scalar_select %p42, %s41, 3
  %s44 = smul.addr %s43, 8
  %s45 = scalar_lea.vmem %s6, %s44
  %s46 = ssub.s32 0, 0
  %s47 = smul.u32 4, %s46
  %p48 = scmp.lt.s32.totalorder %s47, 3
  %s49 = scalar_select %p48, %s47, 3
  %s50 = sadd.s32 %s49, 4
  %s51 = smul.addr %s50, 4
  %s52 = scalar_lea.vmem %s1, %s51
  %s53 = ssub.s32 0, 0
  %s54 = smul.u32 4, %s53
  %s55 = scalar_lea.vmem %s3, 16
  %s56 = ssub.s32 0, 0
  %s57 = smul.u32 4, %s56
  %p58 = scmp.lt.s32.totalorder %s57, 3
  %s59 = scalar_select %p58, %s57, 3
  %s60 = smul.addr %s59, 8
  %s61 = scalar_lea.vmem %s6, %s60
  %s62 = ssub.s32 0, 0
  %s63 = smul.u32 4, %s62
  %p65 = scmp.eq.s32.totalorder 0, 0
  // Predicated region
  $region22: #{_lambda_.14} parent=0 // pred_check
    %p66 = pneg %p65
  $region23: #{_lambda_.14} parent=0 // pred_check_branch
    %68 = sbr.rel (%p66) target = $region25
  $region24: #{_lambda_.14} parent=0 // pred_region
    %vm69 = vcmask 261120
    %70 = vst.msk [vmem:[#allocation2] sm:$0xff] %vm69, 0.0
    %71 = vst.msk [vmem:[#allocation3] sm:$0xff] %vm69, 0.0
    %72 = vst.msk [vmem:[#allocation4] sm:$0xff] %vm69, 0.0
    %73 = vst.msk [vmem:[#allocation5] sm:$0xff] %vm69, 0.0
  $region25: #{_lambda_.14} parent=0 // pred_fallthru
    _
  %v74 = vld [vmem:[%s2] sm:$0xf]
  %v75 = vld [vmem:[%s2 + $0x4] sm:$0xf]
  %v76 = vld [vmem:[%s2 + $0x8] sm:$0xf]
  %v77 = vld [vmem:[%s2 + $0xc] sm:$0xf]
  %v78 = vld [vmem:[%s55] sm:$0xf]
  %v79 = vld [vmem:[%s55 + $0x4] sm:$0xf]
  %v80 = vld [vmem:[%s55 + $0x8] sm:$0xf]
  %v81 = vld [vmem:[%s55 + $0xc] sm:$0xf]
  %v82 = vld [vmem:[%s4] sm:$0xff]
  %s83 = smul.u32 0, 4
  %s84 = ssub.s32 0, 0
  %s85 = smul.u32 %s84, 4
  %v86 = vld [vmem:[#allocation2] sm:$0xff]
  %v87 = vld [vmem:[#allocation3] sm:$0xff]
  %v88 = vld [vmem:[#allocation4] sm:$0xff]
  %v89 = vld [vmem:[#allocation5] sm:$0xff]
  %v90 = vld [vmem:[%s0] sm:$0xf]
  %v91 = vunpack.c.l.bf16 %v90
  %v92 = vpack.c.bf16 %v86, %v86
  %v97 = vunpack.c.l.b16 %v74
  %v98 = vunpack.c.l.b16 %v75
  %v99 = vunpack.c.l.b16 %v76
  %v100 = vunpack.c.l.b16 %v77
  %v101 = vpack.c.b16 %v98, %v97
  %v102 = vpack.c.b16 %v100, %v99
  %vm105 = vcmask 261120
  %v107 = vsel %vm105, %v92, 0
  %109 = vmatprep.subr.bf16.mxu0 0
  %110 = vmatpush1.bf16.msra.mxu0 %v101
  %111 = vmatprep.subr.bf16.mxu0 0
  %112 = vmatpush1.bf16.msra.mxu0 %v102
  %113 = vmatprep.subr.bf16.mxu0 0
  %114 = vmatpush1.bf16.msra.mxu0 0
  %115 = vmatprep.subr.bf16.mxu0 0
  %116 = vmatpush1.bf16.msra.mxu0 0
  %117 = vmatprep.subr.bf16.mxu0 0
  %118 = vmatpush1.bf16.msra.mxu0 0
  %119 = vmatprep.subr.bf16.mxu0 0
  %120 = vmatpush1.bf16.msra.mxu0 0
  %121 = vmatprep.subr.bf16.mxu0 0
  %122 = vmatpush1.bf16.msra.mxu0 0
  %123 = vmatprep.subr.bf16.mxu0 0
  %124 = vmatpush1.bf16.msra.mxu0 0
  %125 = vmatprep.subr.bf16.mxu0 0
  %126 = vmatpush1.bf16.msra.mxu0 0
  %127 = vmatprep.subr.bf16.mxu0 0
  %128 = vmatpush1.bf16.msra.mxu0 0
  %129 = vmatprep.subr.bf16.mxu0 0
  %130 = vmatpush1.bf16.msra.mxu0 0
  %131 = vmatprep.subr.bf16.mxu0 0
  %132 = vmatpush1.bf16.msra.mxu0 0
  %133 = vmatprep.subr.bf16.mxu0 0
  %134 = vmatpush1.bf16.msra.mxu0 0
  %135 = vmatprep.subr.bf16.mxu0 0
  %136 = vmatpush1.bf16.msra.mxu0 0
  %137 = vmatprep.subr.bf16.mxu0 0
  %138 = vmatpush1.bf16.msra.mxu0 0
  %139 = vmatprep.subr.bf16.mxu0 0
  %140 = vmatpush1.bf16.msra.mxu0 0
  %141 = vmatprep.mubr.bf16.mxu0 0
  %142 = vmatmul.mubr.bf16.gmra.mrb[0].mxu0 %v107
  %v143 = vpop.f32.mrb[0].mxu0
  %v144 = vadd.f32 0.0, %v143
  %v145 = vpop.f32.mrb[0].mxu0
  %v146 = vpop.f32.mrb[0].mxu0
  %v147 = vpop.f32.mrb[0].mxu0
  %148 = vdwg.mxu0
  %v149 = vadd.f32 %v91, %v144
  %s150 = scalar_lea.vmem %s52, 12
  %v151 = vld [vmem:[%s150] sm:$0xf]
  %v152 = vunpack.c.l.bf16 %v151
  %v153 = vpack.c.bf16 %v88, %v88
  %v158 = vunpack.c.l.b16 %v78
  %v159 = vunpack.c.l.b16 %v79
  %v160 = vunpack.c.l.b16 %v80
  %v161 = vunpack.c.l.b16 %v81
  %v162 = vpack.c.b16 %v159, %v158
  %v163 = vpack.c.b16 %v161, %v160
  %v167 = vsel %vm105, %v153, 0
  %169 = vmatprep.subr.bf16.mxu0 0
  %170 = vmatpush1.bf16.msra.mxu0 %v162
  %171 = vmatprep.subr.bf16.mxu0 0
  %172 = vmatpush1.bf16.msra.mxu0 %v163
  %173 = vmatprep.subr.bf16.mxu0 0
  %174 = vmatpush1.bf16.msra.mxu0 0
  %175 = vmatprep.subr.bf16.mxu0 0
  %176 = vmatpush1.bf16.msra.mxu0 0
  %177 = vmatprep.subr.bf16.mxu0 0
  %178 = vmatpush1.bf16.msra.mxu0 0
  %179 = vmatprep.subr.bf16.mxu0 0
  %180 = vmatpush1.bf16.msra.mxu0 0
  %181 = vmatprep.subr.bf16.mxu0 0
  %182 = vmatpush1.bf16.msra.mxu0 0
  %183 = vmatprep.subr.bf16.mxu0 0
  %184 = vmatpush1.bf16.msra.mxu0 0
  %185 = vmatprep.subr.bf16.mxu0 0
  %186 = vmatpush1.bf16.msra.mxu0 0
  %187 = vmatprep.subr.bf16.mxu0 0
  %188 = vmatpush1.bf16.msra.mxu0 0
  %189 = vmatprep.subr.bf16.mxu0 0
  %190 = vmatpush1.bf16.msra.mxu0 0
  %191 = vmatprep.subr.bf16.mxu0 0
  %192 = vmatpush1.bf16.msra.mxu0 0
  %193 = vmatprep.subr.bf16.mxu0 0
  %194 = vmatpush1.bf16.msra.mxu0 0
  %195 = vmatprep.subr.bf16.mxu0 0
  %196 = vmatpush1.bf16.msra.mxu0 0
  %197 = vmatprep.subr.bf16.mxu0 0
  %198 = vmatpush1.bf16.msra.mxu0 0
  %199 = vmatprep.subr.bf16.mxu0 0
  %200 = vmatpush1.bf16.msra.mxu0 0
  %201 = vmatprep.mubr.bf16.mxu0 0
  %202 = vmatmul.mubr.bf16.gmra.mrb[0].mxu0 %v167
  %v203 = vpop.f32.mrb[0].mxu0
  %v204 = vadd.f32 0.0, %v203
  %v205 = vpop.f32.mrb[0].mxu0
  %v206 = vpop.f32.mrb[0].mxu0
  %v207 = vpop.f32.mrb[0].mxu0
  %208 = vdwg.mxu0
  %v209 = vadd.f32 %v152, %v204
  %v210 = vxor.u32 %v149, 2147483648
  %v211 = vmul.f32 %v210, 1.442695
  %v212 = vpow.pop %v211
  %v213 = vadd.f32 %v212, 1.0
  %v214 = vrcp.pop %v213
  %v215 = vmul.f32 1.0, %v214
  %v216 = vtanh.pop %v149
  %218 = vrot.lane.b32.xlu0 %v87, 32
  %v219 = vpop.permute.xlu0 %218
  %v221 = vmul.f32 %v215, %v219
  %223 = vrot.lane.b32.xlu0 %v216, 32
  %v224 = vpop.permute.xlu0 %223
  %v226 = vmul.f32 %v215, %v224
  %228 = vrot.lane.b32.xlu0 %v226, 32
  %v229 = vpop.permute.xlu0 %228
  %v231 = vadd.f32 %v221, %v229
  %v232 = vtanh.pop %v231
  %234 = vrot.lane.b32.xlu0 %v232, 32
  %v235 = vpop.permute.xlu0 %234
  %v237 = vmul.f32 %v215, %v235
  %v238 = vstv %s83
  %vm239 = vcmp.gt.s32.totalorder %v82, %v238
  %v240 = vsel %vm239, 1, 0
  %241 = vset.pattern.permute.xlu0 0
  %242 = vperm.xlu0 %241, %v240
  %v243 = vpop.permute.xlu0 %242
  %vm244 = vcmp.eq.s32.totalorder %v243, 1
  %246 = vrot.lane.b32.xlu0 %v86, 64
  %v247 = vpop.permute.xlu0 %246
  %v249 = vsel %vm244, %v237, %v247
  %v250 = vsel %vm244, %v231, %v219
  %v251 = vsel %vm244, %v237, 0.0
  %s252 = sadd.s32 %s85, 3
  %v253 = vxor.u32 %v209, 2147483648
  %v254 = vmul.f32 %v253, 1.442695
  %v255 = vpow.pop %v254
  %v256 = vadd.f32 %v255, 1.0
  %v257 = vrcp.pop %v256
  %v258 = vmul.f32 1.0, %v257
  %v259 = vtanh.pop %v209
  %261 = vrot.lane.b32.xlu0 %v89, 32
  %v262 = vpop.permute.xlu0 %261
  %v264 = vmul.f32 %v258, %v262
  %266 = vrot.lane.b32.xlu0 %v259, 32
  %v267 = vpop.permute.xlu0 %266
  %v269 = vmul.f32 %v258, %v267
  %271 = vrot.lane.b32.xlu0 %v269, 32
  %v272 = vpop.permute.xlu0 %271
  %v274 = vadd.f32 %v264, %v272
  %v275 = vtanh.pop %v274
  %277 = vrot.lane.b32.xlu0 %v275, 32
  %v278 = vpop.permute.xlu0 %277
  %v280 = vmul.f32 %v258, %v278
  %v281 = vstv %s252
  %vm282 = vcmp.gt.s32.totalorder %v82, %v281
  %v283 = vsel %vm282, 1, 0
  %284 = vset.pattern.permute.xlu0 0
  %285 = vperm.xlu0 %284, %v283
  %v286 = vpop.permute.xlu0 %285
  %vm287 = vcmp.eq.s32.totalorder %v286, 1
  %289 = vrot.lane.b32.xlu0 %v88, 64
  %v290 = vpop.permute.xlu0 %289
  %v292 = vsel %vm287, %v280, %v290
  %v293 = vsel %vm287, %v274, %v262
  %v294 = vsel %vm287, %v280, 0.0
  %296 = vrot.lane.b32.xlu0 %v251, 64
  %v297 = vpop.permute.xlu0 %296
  %299 = vst.msk [vmem:[%s5] sm:$0xff] %vm105, %v297
  %301 = vrot.lane.b32.xlu0 %v294, 64
  %v302 = vpop.permute.xlu0 %301
  %s304 = scalar_lea.vmem %s61, 24
  %305 = vst.msk [vmem:[%s304] sm:$0xff] %vm105, %v302
  %s306 = scalar_lea.vmem %s0, 4
  %v307 = vld [vmem:[%s306] sm:$0xf]
  %v308 = vunpack.c.l.bf16 %v307
  %v309 = vpack.c.bf16 %v249, %v249
  %311 = vrot.lane.b32.xlu0 %v309, 64
  %v312 = vpop.permute.xlu0 %311
  %v314 = vsel %vm105, %v312, 0
  %316 = vmatprep.subr.bf16.mxu0 0
  %317 = vmatpush1.bf16.msra.mxu0 %v101
  %318 = vmatprep.subr.bf16.mxu0 0
  %319 = vmatpush1.bf16.msra.mxu0 %v102
  %320 = vmatprep.subr.bf16.mxu0 0
  %321 = vmatpush1.bf16.msra.mxu0 0
  %322 = vmatprep.subr.bf16.mxu0 0
  %323 = vmatpush1.bf16.msra.mxu0 0
  %324 = vmatprep.subr.bf16.mxu0 0
  %325 = vmatpush1.bf16.msra.mxu0 0
  %326 = vmatprep.subr.bf16.mxu0 0
  %327 = vmatpush1.bf16.msra.mxu0 0
  %328 = vmatprep.subr.bf16.mxu0 0
  %329 = vmatpush1.bf16.msra.mxu0 0
  %330 = vmatprep.subr.bf16.mxu0 0
  %331 = vmatpush1.bf16.msra.mxu0 0
  %332 = vmatprep.subr.bf16.mxu0 0
  %333 = vmatpush1.bf16.msra.mxu0 0
  %334 = vmatprep.subr.bf16.mxu0 0
  %335 = vmatpush1.bf16.msra.mxu0 0
  %336 = vmatprep.subr.bf16.mxu0 0
  %337 = vmatpush1.bf16.msra.mxu0 0
  %338 = vmatprep.subr.bf16.mxu0 0
  %339 = vmatpush1.bf16.msra.mxu0 0
  %340 = vmatprep.subr.bf16.mxu0 0
  %341 = vmatpush1.bf16.msra.mxu0 0
  %342 = vmatprep.subr.bf16.mxu0 0
  %343 = vmatpush1.bf16.msra.mxu0 0
  %344 = vmatprep.subr.bf16.mxu0 0
  %345 = vmatpush1.bf16.msra.mxu0 0
  %346 = vmatprep.subr.bf16.mxu0 0
  %347 = vmatpush1.bf16.msra.mxu0 0
  %348 = vmatprep.mubr.bf16.mxu0 0
  %349 = vmatmul.mubr.bf16.gmra.mrb[0].mxu0 %v314
  %v350 = vpop.f32.mrb[0].mxu0
  %v351 = vadd.f32 0.0, %v350
  %v352 = vpop.f32.mrb[0].mxu0
  %v353 = vpop.f32.mrb[0].mxu0
  %v354 = vpop.f32.mrb[0].mxu0
  %355 = vdwg.mxu0
  %v356 = vadd.f32 %v308, %v351
  %s357 = scalar_lea.vmem %s52, 8
  %v358 = vld [vmem:[%s357] sm:$0xf]
  %v359 = vunpack.c.l.bf16 %v358
  %v360 = vpack.c.bf16 %v292, %v292
  %362 = vrot.lane.b32.xlu0 %v360, 64
  %v363 = vpop.permute.xlu0 %362
  %v365 = vsel %vm105, %v363, 0
  %367 = vmatprep.subr.bf16.mxu0 0
  %368 = vmatpush1.bf16.msra.mxu0 %v162
  %369 = vmatprep.subr.bf16.mxu0 0
  %370 = vmatpush1.bf16.msra.mxu0 %v163
  %371 = vmatprep.subr.bf16.mxu0 0
  %372 = vmatpush1.bf16.msra.mxu0 0
  %373 = vmatprep.subr.bf16.mxu0 0
  %374 = vmatpush1.bf16.msra.mxu0 0
  %375 = vmatprep.subr.bf16.mxu0 0
  %376 = vmatpush1.bf16.msra.mxu0 0
  %377 = vmatprep.subr.bf16.mxu0 0
  %378 = vmatpush1.bf16.msra.mxu0 0
  %379 = vmatprep.subr.bf16.mxu0 0
  %380 = vmatpush1.bf16.msra.mxu0 0
  %381 = vmatprep.subr.bf16.mxu0 0
  %382 = vmatpush1.bf16.msra.mxu0 0
  %383 = vmatprep.subr.bf16.mxu0 0
  %384 = vmatpush1.bf16.msra.mxu0 0
  %385 = vmatprep.subr.bf16.mxu0 0
  %386 = vmatpush1.bf16.msra.mxu0 0
  %387 = vmatprep.subr.bf16.mxu0 0
  %388 = vmatpush1.bf16.msra.mxu0 0
  %389 = vmatprep.subr.bf16.mxu0 0
  %390 = vmatpush1.bf16.msra.mxu0 0
  %391 = vmatprep.subr.bf16.mxu0 0
  %392 = vmatpush1.bf16.msra.mxu0 0
  %393 = vmatprep.subr.bf16.mxu0 0
  %394 = vmatpush1.bf16.msra.mxu0 0
  %395 = vmatprep.subr.bf16.mxu0 0
  %396 = vmatpush1.bf16.msra.mxu0 0
  %397 = vmatprep.subr.bf16.mxu0 0
  %398 = vmatpush1.bf16.msra.mxu0 0
  %399 = vmatprep.mubr.bf16.mxu0 0
  %400 = vmatmul.mubr.bf16.gmra.mrb[0].mxu0 %v365
  %v401 = vpop.f32.mrb[0].mxu0
  %v402 = vadd.f32 0.0, %v401
  %v403 = vpop.f32.mrb[0].mxu0
  %v404 = vpop.f32.mrb[0].mxu0
  %v405 = vpop.f32.mrb[0].mxu0
  %406 = vdwg.mxu0
  %v407 = vadd.f32 %v359, %v402
  %s408 = sadd.s32 %s83, 1
  %v409 = vxor.u32 %v356, 2147483648
  %v410 = vmul.f32 %v409, 1.442695
  %v411 = vpow.pop %v410
  %v412 = vadd.f32 %v411, 1.0
  %v413 = vrcp.pop %v412
  %v414 = vmul.f32 1.0, %v413
  %v415 = vtanh.pop %v356
  %v416 = vmul.f32 %v414, %v250
  %418 = vrot.lane.b32.xlu0 %v415, 32
  %v419 = vpop.permute.xlu0 %418
  %v421 = vmul.f32 %v414, %v419
  %423 = vrot.lane.b32.xlu0 %v421, 32
  %v424 = vpop.permute.xlu0 %423
  %v426 = vadd.f32 %v416, %v424
  %v427 = vtanh.pop %v426
  %429 = vrot.lane.b32.xlu0 %v427, 32
  %v430 = vpop.permute.xlu0 %429
  %v432 = vmul.f32 %v414, %v430
  %v433 = vstv %s408
  %vm434 = vcmp.gt.s32.totalorder %v82, %v433
  %v435 = vsel %vm434, 1, 0
  %436 = vset.pattern.permute.xlu0 0
  %437 = vperm.xlu0 %436, %v435
  %v438 = vpop.permute.xlu0 %437
  %vm439 = vcmp.eq.s32.totalorder %v438, 1
  %v440 = vsel %vm439, %v432, %v249
  %v441 = vsel %vm439, %v426, %v250
  %v442 = vsel %vm439, %v432, 0.0
  %s443 = sadd.s32 %s85, 2
  %v444 = vxor.u32 %v407, 2147483648
  %v445 = vmul.f32 %v444, 1.442695
  %v446 = vpow.pop %v445
  %v447 = vadd.f32 %v446, 1.0
  %v448 = vrcp.pop %v447
  %v449 = vmul.f32 1.0, %v448
  %v450 = vtanh.pop %v407
  %v451 = vmul.f32 %v449, %v293
  %453 = vrot.lane.b32.xlu0 %v450, 32
  %v454 = vpop.permute.xlu0 %453
  %v456 = vmul.f32 %v449, %v454
  %458 = vrot.lane.b32.xlu0 %v456, 32
  %v459 = vpop.permute.xlu0 %458
  %v461 = vadd.f32 %v451, %v459
  %v462 = vtanh.pop %v461
  %464 = vrot.lane.b32.xlu0 %v462, 32
  %v465 = vpop.permute.xlu0 %464
  %v467 = vmul.f32 %v449, %v465
  %v468 = vstv %s443
  %vm469 = vcmp.gt.s32.totalorder %v82, %v468
  %v470 = vsel %vm469, 1, 0
  %471 = vset.pattern.permute.xlu0 0
  %472 = vperm.xlu0 %471, %v470
  %v473 = vpop.permute.xlu0 %472
  %vm474 = vcmp.eq.s32.totalorder %v473, 1
  %v475 = vsel %vm474, %v467, %v292
  %v476 = vsel %vm474, %v461, %v293
  %v477 = vsel %vm474, %v467, 0.0
  %479 = vrot.lane.b32.xlu0 %v442, 64
  %v480 = vpop.permute.xlu0 %479
  %s482 = scalar_lea.vmem %s5, 8
  %483 = vst.msk [vmem:[%s482] sm:$0xff] %vm105, %v480
  %485 = vrot.lane.b32.xlu0 %v477, 64
  %v486 = vpop.permute.xlu0 %485
  %s488 = scalar_lea.vmem %s61, 16
  %489 = vst.msk [vmem:[%s488] sm:$0xff] %vm105, %v486
  %s490 = scalar_lea.vmem %s0, 8
  %v491 = vld [vmem:[%s490] sm:$0xf]
  %v492 = vunpack.c.l.bf16 %v491
  %v493 = vpack.c.bf16 %v440, %v440
  %495 = vrot.lane.b32.xlu0 %v493, 64
  %v496 = vpop.permute.xlu0 %495
  %v498 = vsel %vm105, %v496, 0
  %500 = vmatprep.subr.bf16.mxu0 0
  %501 = vmatpush1.bf16.msra.mxu0 %v101
  %502 = vmatprep.subr.bf16.mxu0 0
  %503 = vmatpush1.bf16.msra.mxu0 %v102
  %504 = vmatprep.subr.bf16.mxu0 0
  %505 = vmatpush1.bf16.msra.mxu0 0
  %506 = vmatprep.subr.bf16.mxu0 0
  %507 = vmatpush1.bf16.msra.mxu0 0
  %508 = vmatprep.subr.bf16.mxu0 0
  %509 = vmatpush1.bf16.msra.mxu0 0
  %510 = vmatprep.subr.bf16.mxu0 0
  %511 = vmatpush1.bf16.msra.mxu0 0
  %512 = vmatprep.subr.bf16.mxu0 0
  %513 = vmatpush1.bf16.msra.mxu0 0
  %514 = vmatprep.subr.bf16.mxu0 0
  %515 = vmatpush1.bf16.msra.mxu0 0
  %516 = vmatprep.subr.bf16.mxu0 0
  %517 = vmatpush1.bf16.msra.mxu0 0
  %518 = vmatprep.subr.bf16.mxu0 0
  %519 = vmatpush1.bf16.msra.mxu0 0
  %520 = vmatprep.subr.bf16.mxu0 0
  %521 = vmatpush1.bf16.msra.mxu0 0
  %522 = vmatprep.subr.bf16.mxu0 0
  %523 = vmatpush1.bf16.msra.mxu0 0
  %524 = vmatprep.subr.bf16.mxu0 0
  %525 = vmatpush1.bf16.msra.mxu0 0
  %526 = vmatprep.subr.bf16.mxu0 0
  %527 = vmatpush1.bf16.msra.mxu0 0
  %528 = vmatprep.subr.bf16.mxu0 0
  %529 = vmatpush1.bf16.msra.mxu0 0
  %530 = vmatprep.subr.bf16.mxu0 0
  %531 = vmatpush1.bf16.msra.mxu0 0
  %532 = vmatprep.mubr.bf16.mxu0 0
  %533 = vmatmul.mubr.bf16.gmra.mrb[0].mxu0 %v498
  %v534 = vpop.f32.mrb[0].mxu0
  %v535 = vadd.f32 0.0, %v534
  %v536 = vpop.f32.mrb[0].mxu0
  %v537 = vpop.f32.mrb[0].mxu0
  %v538 = vpop.f32.mrb[0].mxu0
  %539 = vdwg.mxu0
  %v540 = vadd.f32 %v492, %v535
  %s541 = scalar_lea.vmem %s52, 4
  %v542 = vld [vmem:[%s541] sm:$0xf]
  %v543 = vunpack.c.l.bf16 %v542
  %v544 = vpack.c.bf16 %v475, %v475
  %546 = vrot.lane.b32.xlu0 %v544, 64
  %v547 = vpop.permute.xlu0 %546
  %v549 = vsel %vm105, %v547, 0
  %551 = vmatprep.subr.bf16.mxu0 0
  %552 = vmatpush1.bf16.msra.mxu0 %v162
  %553 = vmatprep.subr.bf16.mxu0 0
  %554 = vmatpush1.bf16.msra.mxu0 %v163
  %555 = vmatprep.subr.bf16.mxu0 0
  %556 = vmatpush1.bf16.msra.mxu0 0
  %557 = vmatprep.subr.bf16.mxu0 0
  %558 = vmatpush1.bf16.msra.mxu0 0
  %559 = vmatprep.subr.bf16.mxu0 0
  %560 = vmatpush1.bf16.msra.mxu0 0
  %561 = vmatprep.subr.bf16.mxu0 0
  %562 = vmatpush1.bf16.msra.mxu0 0
  %563 = vmatprep.subr.bf16.mxu0 0
  %564 = vmatpush1.bf16.msra.mxu0 0
  %565 = vmatprep.subr.bf16.mxu0 0
  %566 = vmatpush1.bf16.msra.mxu0 0
  %567 = vmatprep.subr.bf16.mxu0 0
  %568 = vmatpush1.bf16.msra.mxu0 0
  %569 = vmatprep.subr.bf16.mxu0 0
  %570 = vmatpush1.bf16.msra.mxu0 0
  %571 = vmatprep.subr.bf16.mxu0 0
  %572 = vmatpush1.bf16.msra.mxu0 0
  %573 = vmatprep.subr.bf16.mxu0 0
  %574 = vmatpush1.bf16.msra.mxu0 0
  %575 = vmatprep.subr.bf16.mxu0 0
  %576 = vmatpush1.bf16.msra.mxu0 0
  %577 = vmatprep.subr.bf16.mxu0 0
  %578 = vmatpush1.bf16.msra.mxu0 0
  %579 = vmatprep.subr.bf16.mxu0 0
  %580 = vmatpush1.bf16.msra.mxu0 0
  %581 = vmatprep.subr.bf16.mxu0 0
  %582 = vmatpush1.bf16.msra.mxu0 0
  %583 = vmatprep.mubr.bf16.mxu0 0
  %584 = vmatmul.mubr.bf16.gmra.mrb[0].mxu0 %v549
  %v585 = vpop.f32.mrb[0].mxu0
  %v586 = vadd.f32 0.0, %v585
  %v587 = vpop.f32.mrb[0].mxu0
  %v588 = vpop.f32.mrb[0].mxu0
  %v589 = vpop.f32.mrb[0].mxu0
  %590 = vdwg.mxu0
  %v591 = vadd.f32 %v543, %v586
  %s592 = sadd.s32 %s83, 2
  %v593 = vxor.u32 %v540, 2147483648
  %v594 = vmul.f32 %v593, 1.442695
  %v595 = vpow.pop %v594
  %v596 = vadd.f32 %v595, 1.0
  %v597 = vrcp.pop %v596
  %v598 = vmul.f32 1.0, %v597
  %v599 = vtanh.pop %v540
  %v600 = vmul.f32 %v598, %v441
  %602 = vrot.lane.b32.xlu0 %v599, 32
  %v603 = vpop.permute.xlu0 %602
  %v605 = vmul.f32 %v598, %v603
  %607 = vrot.lane.b32.xlu0 %v605, 32
  %v608 = vpop.permute.xlu0 %607
  %v610 = vadd.f32 %v600, %v608
  %v611 = vtanh.pop %v610
  %613 = vrot.lane.b32.xlu0 %v611, 32
  %v614 = vpop.permute.xlu0 %613
  %v616 = vmul.f32 %v598, %v614
  %v617 = vstv %s592
  %vm618 = vcmp.gt.s32.totalorder %v82, %v617
  %v619 = vsel %vm618, 1, 0
  %620 = vset.pattern.permute.xlu0 0
  %621 = vperm.xlu0 %620, %v619
  %v622 = vpop.permute.xlu0 %621
  %vm623 = vcmp.eq.s32.totalorder %v622, 1
  %v624 = vsel %vm623, %v616, %v440
  %v625 = vsel %vm623, %v610, %v441
  %v626 = vsel %vm623, %v616, 0.0
  %s627 = sadd.s32 %s85, 1
  %v628 = vxor.u32 %v591, 2147483648
  %v629 = vmul.f32 %v628, 1.442695
  %v630 = vpow.pop %v629
  %v631 = vadd.f32 %v630, 1.0
  %v632 = vrcp.pop %v631
  %v633 = vmul.f32 1.0, %v632
  %v634 = vtanh.pop %v591
  %v635 = vmul.f32 %v633, %v476
  %637 = vrot.lane.b32.xlu0 %v634, 32
  %v638 = vpop.permute.xlu0 %637
  %v640 = vmul.f32 %v633, %v638
  %642 = vrot.lane.b32.xlu0 %v640, 32
  %v643 = vpop.permute.xlu0 %642
  %v645 = vadd.f32 %v635, %v643
  %v646 = vtanh.pop %v645
  %648 = vrot.lane.b32.xlu0 %v646, 32
  %v649 = vpop.permute.xlu0 %648
  %v651 = vmul.f32 %v633, %v649
  %v652 = vstv %s627
  %vm653 = vcmp.gt.s32.totalorder %v82, %v652
  %v654 = vsel %vm653, 1, 0
  %655 = vset.pattern.permute.xlu0 0
  %656 = vperm.xlu0 %655, %v654
  %v657 = vpop.permute.xlu0 %656
  %vm658 = vcmp.eq.s32.totalorder %v657, 1
  %v659 = vsel %vm658, %v651, %v475
  %v660 = vsel %vm658, %v645, %v476
  %v661 = vsel %vm658, %v651, 0.0
  %663 = vrot.lane.b32.xlu0 %v626, 64
  %v664 = vpop.permute.xlu0 %663
  %s666 = scalar_lea.vmem %s5, 16
  %667 = vst.msk [vmem:[%s666] sm:$0xff] %vm105, %v664
  %669 = vrot.lane.b32.xlu0 %v661, 64
  %v670 = vpop.permute.xlu0 %669
  %s672 = scalar_lea.vmem %s61, 8
  %673 = vst.msk [vmem:[%s672] sm:$0xff] %vm105, %v670
  %s674 = scalar_lea.vmem %s0, 12
  %v675 = vld [vmem:[%s674] sm:$0xf]
  %v676 = vunpack.c.l.bf16 %v675
  %v677 = vpack.c.bf16 %v624, %v624
  %679 = vrot.lane.b32.xlu0 %v677, 64
  %v680 = vpop.permute.xlu0 %679
  %v682 = vsel %vm105, %v680, 0
  %684 = vmatprep.subr.bf16.mxu0 0
  %685 = vmatpush1.bf16.msra.mxu0 %v101
  %686 = vmatprep.subr.bf16.mxu0 0
  %687 = vmatpush1.bf16.msra.mxu0 %v102
  %688 = vmatprep.subr.bf16.mxu0 0
  %689 = vmatpush1.bf16.msra.mxu0 0
  %690 = vmatprep.subr.bf16.mxu0 0
  %691 = vmatpush1.bf16.msra.mxu0 0
  %692 = vmatprep.subr.bf16.mxu0 0
  %693 = vmatpush1.bf16.msra.mxu0 0
  %694 = vmatprep.subr.bf16.mxu0 0
  %695 = vmatpush1.bf16.msra.mxu0 0
  %696 = vmatprep.subr.bf16.mxu0 0
  %697 = vmatpush1.bf16.msra.mxu0 0
  %698 = vmatprep.subr.bf16.mxu0 0
  %699 = vmatpush1.bf16.msra.mxu0 0
  %700 = vmatprep.subr.bf16.mxu0 0
  %701 = vmatpush1.bf16.msra.mxu0 0
  %702 = vmatprep.subr.bf16.mxu0 0
  %703 = vmatpush1.bf16.msra.mxu0 0
  %704 = vmatprep.subr.bf16.mxu0 0
  %705 = vmatpush1.bf16.msra.mxu0 0
  %706 = vmatprep.subr.bf16.mxu0 0
  %707 = vmatpush1.bf16.msra.mxu0 0
  %708 = vmatprep.subr.bf16.mxu0 0
  %709 = vmatpush1.bf16.msra.mxu0 0
  %710 = vmatprep.subr.bf16.mxu0 0
  %711 = vmatpush1.bf16.msra.mxu0 0
  %712 = vmatprep.subr.bf16.mxu0 0
  %713 = vmatpush1.bf16.msra.mxu0 0
  %714 = vmatprep.subr.bf16.mxu0 0
  %715 = vmatpush1.bf16.msra.mxu0 0
  %716 = vmatprep.mubr.bf16.mxu0 0
  %717 = vmatmul.mubr.bf16.gmra.mrb[0].mxu0 %v682
  %v718 = vpop.f32.mrb[0].mxu0
  %v719 = vadd.f32 0.0, %v718
  %v720 = vpop.f32.mrb[0].mxu0
  %v721 = vpop.f32.mrb[0].mxu0
  %v722 = vpop.f32.mrb[0].mxu0
  %723 = vdwg.mxu0
  %v724 = vadd.f32 %v676, %v719
  %v725 = vld [vmem:[%s52] sm:$0xf]
  %v726 = vunpack.c.l.bf16 %v725
  %v727 = vpack.c.bf16 %v659, %v659
  %729 = vrot.lane.b32.xlu0 %v727, 64
  %v730 = vpop.permute.xlu0 %729
  %v732 = vsel %vm105, %v730, 0
  %734 = vmatprep.subr.bf16.mxu0 0
  %735 = vmatpush1.bf16.msra.mxu0 %v162
  %736 = vmatprep.subr.bf16.mxu0 0
  %737 = vmatpush1.bf16.msra.mxu0 %v163
  %738 = vmatprep.subr.bf16.mxu0 0
  %739 = vmatpush1.bf16.msra.mxu0 0
  %740 = vmatprep.subr.bf16.mxu0 0
  %741 = vmatpush1.bf16.msra.mxu0 0
  %742 = vmatprep.subr.bf16.mxu0 0
  %743 = vmatpush1.bf16.msra.mxu0 0
  %744 = vmatprep.subr.bf16.mxu0 0
  %745 = vmatpush1.bf16.msra.mxu0 0
  %746 = vmatprep.subr.bf16.mxu0 0
  %747 = vmatpush1.bf16.msra.mxu0 0
  %748 = vmatprep.subr.bf16.mxu0 0
  %749 = vmatpush1.bf16.msra.mxu0 0
  %750 = vmatprep.subr.bf16.mxu0 0
  %751 = vmatpush1.bf16.msra.mxu0 0
  %752 = vmatprep.subr.bf16.mxu0 0
  %753 = vmatpush1.bf16.msra.mxu0 0
  %754 = vmatprep.subr.bf16.mxu0 0
  %755 = vmatpush1.bf16.msra.mxu0 0
  %756 = vmatprep.subr.bf16.mxu0 0
  %757 = vmatpush1.bf16.msra.mxu0 0
  %758 = vmatprep.subr.bf16.mxu0 0
  %759 = vmatpush1.bf16.msra.mxu0 0
  %760 = vmatprep.subr.bf16.mxu0 0
  %761 = vmatpush1.bf16.msra.mxu0 0
  %762 = vmatprep.subr.bf16.mxu0 0
  %763 = vmatpush1.bf16.msra.mxu0 0
  %764 = vmatprep.subr.bf16.mxu0 0
  %765 = vmatpush1.bf16.msra.mxu0 0
  %766 = vmatprep.mubr.bf16.mxu0 0
  %767 = vmatmul.mubr.bf16.gmra.mrb[0].mxu0 %v732
  %v768 = vpop.f32.mrb[0].mxu0
  %v769 = vadd.f32 0.0, %v768
  %v770 = vpop.f32.mrb[0].mxu0
  %v771 = vpop.f32.mrb[0].mxu0
  %v772 = vpop.f32.mrb[0].mxu0
  %773 = vdwg.mxu0
  %v774 = vadd.f32 %v726, %v769
  %s775 = sadd.s32 %s83, 3
  %v776 = vxor.u32 %v724, 2147483648
  %v777 = vmul.f32 %v776, 1.442695
  %v778 = vpow.pop %v777
  %v779 = vadd.f32 %v778, 1.0
  %v780 = vrcp.pop %v779
  %v781 = vmul.f32 1.0, %v780
  %v782 = vtanh.pop %v724
  %v783 = vmul.f32 %v781, %v625
  %785 = vrot.lane.b32.xlu0 %v782, 32
  %v786 = vpop.permute.xlu0 %785
  %v788 = vmul.f32 %v781, %v786
  %790 = vrot.lane.b32.xlu0 %v788, 32
  %v791 = vpop.permute.xlu0 %790
  %v793 = vadd.f32 %v783, %v791
  %v794 = vtanh.pop %v793
  %796 = vrot.lane.b32.xlu0 %v794, 32
  %v797 = vpop.permute.xlu0 %796
  %v799 = vmul.f32 %v781, %v797
  %v800 = vstv %s775
  %vm801 = vcmp.gt.s32.totalorder %v82, %v800
  %v802 = vsel %vm801, 1, 0
  %803 = vset.pattern.permute.xlu0 0
  %804 = vperm.xlu0 %803, %v802
  %v805 = vpop.permute.xlu0 %804
  %vm806 = vcmp.eq.s32.totalorder %v805, 1
  %v807 = vsel %vm806, %v799, %v624
  %v808 = vsel %vm806, %v793, %v625
  %v809 = vsel %vm806, %v799, 0.0
  %v810 = vxor.u32 %v774, 2147483648
  %v811 = vmul.f32 %v810, 1.442695
  %v812 = vpow.pop %v811
  %v813 = vadd.f32 %v812, 1.0
  %v814 = vrcp.pop %v813
  %v815 = vmul.f32 1.0, %v814
  %v816 = vtanh.pop %v774
  %v817 = vmul.f32 %v815, %v660
  %819 = vrot.lane.b32.xlu0 %v816, 32
  %v820 = vpop.permute.xlu0 %819
  %v822 = vmul.f32 %v815, %v820
  %824 = vrot.lane.b32.xlu0 %v822, 32
  %v825 = vpop.permute.xlu0 %824
  %v827 = vadd.f32 %v817, %v825
  %v828 = vtanh.pop %v827
  %830 = vrot.lane.b32.xlu0 %v828, 32
  %v831 = vpop.permute.xlu0 %830
  %v833 = vmul.f32 %v815, %v831
  %v834 = vstv %s85
  %vm835 = vcmp.gt.s32.totalorder %v82, %v834
  %v836 = vsel %vm835, 1, 0
  %837 = vset.pattern.permute.xlu0 0
  %838 = vperm.xlu0 %837, %v836
  %v839 = vpop.permute.xlu0 %838
  %vm840 = vcmp.eq.s32.totalorder %v839, 1
  %v841 = vsel %vm840, %v833, %v659
  %v842 = vsel %vm840, %v827, %v660
  %v843 = vsel %vm840, %v833, 0.0
  %845 = vrot.lane.b32.xlu0 %v809, 64
  %v846 = vpop.permute.xlu0 %845
  %s848 = scalar_lea.vmem %s5, 24
  %849 = vst.msk [vmem:[%s848] sm:$0xff] %vm105, %v846
  %851 = vrot.lane.b32.xlu0 %v843, 64
  %v852 = vpop.permute.xlu0 %851
  %854 = vst.msk [vmem:[%s61] sm:$0xff] %vm105, %v852
  %856 = vrot.lane.b32.xlu0 %v807, 64
  %v857 = vpop.permute.xlu0 %856
  %859 = vst.msk [vmem:[#allocation2] sm:$0xff] %vm105, %v857
  %861 = vrot.lane.b32.xlu0 %v808, 96
  %v862 = vpop.permute.xlu0 %861
  %864 = vst.msk [vmem:[#allocation3] sm:$0xff] %vm105, %v862
  %866 = vrot.lane.b32.xlu0 %v841, 64
  %v867 = vpop.permute.xlu0 %866
  %869 = vst.msk [vmem:[#allocation4] sm:$0xff] %vm105, %v867
  %871 = vrot.lane.b32.xlu0 %v842, 96
  %v872 = vpop.permute.xlu0 %871
  %874 = vst.msk [vmem:[#allocation5] sm:$0xff] %vm105, %v872
  %s875 = ssub.s32 0, 0
  %s876 = smul.u32 4, %s875
  %p877 = scmp.lt.s32.totalorder %s876, 3
  %s878 = scalar_select %p877, %s876, 3
  %s879 = smul.addr %s878, 8
  %s880 = scalar_lea.vmem %s6, %s879
  // Predicated region
  $region26: #{_lambda_.14} parent=0 // pred_check
    _
  $region27: #{_lambda_.14} parent=0 // pred_check_branch
    %882 = sbr.rel (0) target = $region29
  $region28: #{_lambda_.14} parent=0 // pred_region
    _
  $region29: #{_lambda_.14} parent=0 // pred_fallthru
    _
  // Predicated region
  $region30: #{_lambda_.14} parent=0 // pred_check
    _
  $region31: #{_lambda_.14} parent=0 // pred_check_branch
    %884 = sbr.rel (0) target = $region33
  $region32: #{_lambda_.14} parent=0 // pred_region
    %s885 = ssub.s32 0, 0
    %s886 = smul.u32 4, %s885
  $region33: #{_lambda_.14} parent=0 // pred_fallthru
    _
  // Predicated region
  $region34: #{_lambda_.14} parent=0 // pred_check
    _
  $region35: #{_lambda_.14} parent=0 // pred_check_branch
    %888 = sbr.rel (0) target = $region37
  $region36: #{_lambda_.14} parent=0 // pred_region
    _
  $region37: #{_lambda_.14} parent=0 // pred_fallthru
    _
  // Predicated region
  $region38: #{_lambda_.14} parent=0 // pred_check
    _
  $region39: #{_lambda_.14} parent=0 // pred_check_branch
    %890 = sbr.rel (0) target = $region41
  $region40: #{_lambda_.14} parent=0 // pred_region
    %s891 = ssub.s32 0, 0
    %s892 = smul.u32 4, %s891
    %p893 = scmp.lt.s32.totalorder %s892, 3
    %s894 = scalar_select %p893, %s892, 3
    %s895 = smul.addr %s894, 8
    %s896 = scalar_lea.vmem %s6, %s895
  $region41: #{_lambda_.14} parent=0 // pred_fallthru
    _

// kernel: _lambda_.16
$region0: #{_lambda_.16}
  #allocation0 [shape = 'u32[]', space=smem, size = 0x4, offset = 0x4, fixed_abs, tag = 'smem constant byte address 0x4 - core index']
  #allocation1 [shape = 'u32[144,128]{1,0:T(1,128)}', space=vmem, size = 0x12000, scoped, tag = 'internal scratch']
  #allocation2 [shape = 'f32[8,32]{1,0:T(8,128)}', space=vmem, size = 0x1000, scoped, tag = 'scratch operand']
  #allocation3 [shape = 'f32[8,32]{1,0:T(8,128)}', space=vmem, size = 0x1000, scoped, tag = 'scratch operand']
  #allocation4 [shape = 'f32[8,32]{1,0:T(8,128)}', space=vmem, size = 0x1000, scoped, tag = 'scratch operand']
  #allocation5 [shape = 'f32[8,32]{1,0:T(8,128)}', space=vmem, size = 0x1000, scoped, tag = 'scratch operand']
  %s0 = inlined_call_operand.vmem [shape: bf16[2,2,8,128], index: 0, kind: input, shape index: {}, may-alias: {0,1}]
  %s1 = inlined_call_operand.vmem [shape: bf16[2,2,8,128], index: 1, kind: input, shape index: {}, may-alias: {0,1}]
  %s2 = inlined_call_operand.vmem [shape: bf16[2,32,128], index: 2, kind: input, shape index: {}, may-alias: {2,3}]
  %s3 = inlined_call_operand.vmem [shape: bf16[2,32,128], index: 3, kind: input, shape index: {}, may-alias: {2,3}]
  %s4 = inlined_call_operand.vmem [shape: s32[8,1], index: 4, kind: input, shape index: {}]
  %s5 = inlined_call_operand.vmem [shape: f32[2,8,32], index: 5, kind: output, shape index: {0}]
  %s6 = inlined_call_operand.vmem [shape: f32[2,8,32], index: 6, kind: output, shape index: {1}]
  %7 = xla_tuple %s5, %s6
  %s8 = sld [smem:[#allocation0]]
  $region42: #{_lambda_.16} parent=0
    _
  %s10 = ssub.s32 1, %s8
  %s11 = scalar_select 0, %s10, %s8
  // Predicated region
  $region2: #{_lambda_.16} parent=0 // pred_check
    _
  $region3: #{_lambda_.16} parent=0 // pred_check_branch
    %13 = sbr.rel (0) target = $region5
  $region4: #{_lambda_.16} parent=0 // pred_region
    _
  $region5: #{_lambda_.16} parent=0 // pred_fallthru
    _
  // Predicated region
  $region6: #{_lambda_.16} parent=0 // pred_check
    _
  $region7: #{_lambda_.16} parent=0 // pred_check_branch
    %15 = sbr.rel (0) target = $region9
  $region8: #{_lambda_.16} parent=0 // pred_region
    %s16 = ssub.s32 0, 0
    %s17 = smul.u32 2, %s16
    %p18 = scmp.lt.s32.totalorder %s17, 1
    %s19 = scalar_select %p18, %s17, 1
    %s20 = sadd.s32 %s19, 2
    %s21 = smul.addr %s20, 4
    %s22 = scalar_lea.vmem %s1, %s21
    %s23 = ssub.s32 0, 0
    %s24 = smul.u32 2, %s23
  $region9: #{_lambda_.16} parent=0 // pred_fallthru
    _
  // Predicated region
  $region10: #{_lambda_.16} parent=0 // pred_check
    _
  $region11: #{_lambda_.16} parent=0 // pred_check_branch
    %26 = sbr.rel (0) target = $region13
  $region12: #{_lambda_.16} parent=0 // pred_region
    _
  $region13: #{_lambda_.16} parent=0 // pred_fallthru
    _
  // Predicated region
  $region14: #{_lambda_.16} parent=0 // pred_check
    _
  $region15: #{_lambda_.16} parent=0 // pred_check_branch
    %28 = sbr.rel (0) target = $region17
  $region16: #{_lambda_.16} parent=0 // pred_region
    %s29 = scalar_lea.vmem %s3, 16
  $region17: #{_lambda_.16} parent=0 // pred_fallthru
    _
  // Predicated region
  $region18: #{_lambda_.16} parent=0 // pred_check
    _
  $region19: #{_lambda_.16} parent=0 // pred_check_branch
    %31 = sbr.rel (0) target = $region21
  $region20: #{_lambda_.16} parent=0 // pred_region
    _
  $region21: #{_lambda_.16} parent=0 // pred_fallthru
    _
  %s32 = ssub.s32 0, 0
  %s33 = smul.u32 2, %s32
  %p34 = scmp.lt.s32.totalorder %s33, 1
  %s35 = scalar_select %p34, %s33, 1
  %s36 = sadd.s32 %s35, 2
  %s37 = smul.addr %s36, 4
  %s38 = scalar_lea.vmem %s1, %s37
  %s39 = scalar_lea.vmem %s3, 16
  %s40 = ssub.s32 0, 0
  %s41 = smul.u32 2, %s40
  %p42 = scmp.lt.s32.totalorder %s41, 1
  %s43 = scalar_select %p42, %s41, 1
  %s44 = smul.addr %s43, 8
  %s45 = scalar_lea.vmem %s6, %s44
  %s46 = ssub.s32 0, 0
  %s47 = smul.u32 2, %s46
  %p48 = scmp.lt.s32.totalorder %s47, 1
  %s49 = scalar_select %p48, %s47, 1
  %s50 = sadd.s32 %s49, 2
  %s51 = smul.addr %s50, 4
  %s52 = scalar_lea.vmem %s1, %s51
  %s53 = ssub.s32 0, 0
  %s54 = smul.u32 2, %s53
  %s55 = scalar_lea.vmem %s3, 16
  %s56 = ssub.s32 0, 0
  %s57 = smul.u32 2, %s56
  %p58 = scmp.lt.s32.totalorder %s57, 1
  %s59 = scalar_select %p58, %s57, 1
  %s60 = smul.addr %s59, 8
  %s61 = scalar_lea.vmem %s6, %s60
  %s62 = ssub.s32 0, 0
  %s63 = smul.u32 2, %s62
  %p65 = scmp.eq.s32.totalorder 0, 0
  // Predicated region
  $region22: #{_lambda_.16} parent=0 // pred_check
    %p66 = pneg %p65
  $region23: #{_lambda_.16} parent=0 // pred_check_branch
    %68 = sbr.rel (%p66) target = $region25
  $region24: #{_lambda_.16} parent=0 // pred_region
    %vm69 = vcmask 261120
    %70 = vst.msk [vmem:[#allocation2] sm:$0xff] %vm69, 0.0
    %71 = vst.msk [vmem:[#allocation3] sm:$0xff] %vm69, 0.0
    %72 = vst.msk [vmem:[#allocation4] sm:$0xff] %vm69, 0.0
    %73 = vst.msk [vmem:[#allocation5] sm:$0xff] %vm69, 0.0
  $region25: #{_lambda_.16} parent=0 // pred_fallthru
    _
  %v74 = vld [vmem:[%s2] sm:$0xf]
  %v75 = vld [vmem:[%s2 + $0x4] sm:$0xf]
  %v76 = vld [vmem:[%s2 + $0x8] sm:$0xf]
  %v77 = vld [vmem:[%s2 + $0xc] sm:$0xf]
  %v78 = vld [vmem:[%s55] sm:$0xf]
  %v79 = vld [vmem:[%s55 + $0x4] sm:$0xf]
  %v80 = vld [vmem:[%s55 + $0x8] sm:$0xf]
  %v81 = vld [vmem:[%s55 + $0xc] sm:$0xf]
  %v82 = vld [vmem:[%s4] sm:$0xff]
  %s83 = smul.u32 0, 2
  %s84 = ssub.s32 0, 0
  %s85 = smul.u32 %s84, 2
  %v86 = vld [vmem:[#allocation2] sm:$0xff]
  %v87 = vld [vmem:[#allocation3] sm:$0xff]
  %v88 = vld [vmem:[#allocation4] sm:$0xff]
  %v89 = vld [vmem:[#allocation5] sm:$0xff]
  %v90 = vld [vmem:[%s0] sm:$0xf]
  %v91 = vunpack.c.l.bf16 %v90
  %v92 = vpack.c.bf16 %v86, %v86
  %v97 = vunpack.c.l.b16 %v74
  %v98 = vunpack.c.l.b16 %v75
  %v99 = vunpack.c.l.b16 %v76
  %v100 = vunpack.c.l.b16 %v77
  %v101 = vpack.c.b16 %v98, %v97
  %v102 = vpack.c.b16 %v100, %v99
  %vm105 = vcmask 261120
  %v107 = vsel %vm105, %v92, 0
  %109 = vmatprep.subr.bf16.mxu0 0
  %110 = vmatpush1.bf16.msra.mxu0 %v101
  %111 = vmatprep.subr.bf16.mxu0 0
  %112 = vmatpush1.bf16.msra.mxu0 %v102
  %113 = vmatprep.subr.bf16.mxu0 0
  %114 = vmatpush1.bf16.msra.mxu0 0
  %115 = vmatprep.subr.bf16.mxu0 0
  %116 = vmatpush1.bf16.msra.mxu0 0
  %117 = vmatprep.subr.bf16.mxu0 0
  %118 = vmatpush1.bf16.msra.mxu0 0
  %119 = vmatprep.subr.bf16.mxu0 0
  %120 = vmatpush1.bf16.msra.mxu0 0
  %121 = vmatprep.subr.bf16.mxu0 0
  %122 = vmatpush1.bf16.msra.mxu0 0
  %123 = vmatprep.subr.bf16.mxu0 0
  %124 = vmatpush1.bf16.msra.mxu0 0
  %125 = vmatprep.subr.bf16.mxu0 0
  %126 = vmatpush1.bf16.msra.mxu0 0
  %127 = vmatprep.subr.bf16.mxu0 0
  %128 = vmatpush1.bf16.msra.mxu0 0
  %129 = vmatprep.subr.bf16.mxu0 0
  %130 = vmatpush1.bf16.msra.mxu0 0
  %131 = vmatprep.subr.bf16.mxu0 0
  %132 = vmatpush1.bf16.msra.mxu0 0
  %133 = vmatprep.subr.bf16.mxu0 0
  %134 = vmatpush1.bf16.msra.mxu0 0
  %135 = vmatprep.subr.bf16.mxu0 0
  %136 = vmatpush1.bf16.msra.mxu0 0
  %137 = vmatprep.subr.bf16.mxu0 0
  %138 = vmatpush1.bf16.msra.mxu0 0
  %139 = vmatprep.subr.bf16.mxu0 0
  %140 = vmatpush1.bf16.msra.mxu0 0
  %141 = vmatprep.mubr.bf16.mxu0 0
  %142 = vmatmul.mubr.bf16.gmra.mrb[0].mxu0 %v107
  %v143 = vpop.f32.mrb[0].mxu0
  %v144 = vadd.f32 0.0, %v143
  %v145 = vpop.f32.mrb[0].mxu0
  %v146 = vpop.f32.mrb[0].mxu0
  %v147 = vpop.f32.mrb[0].mxu0
  %148 = vdwg.mxu0
  %v149 = vadd.f32 %v91, %v144
  %s150 = scalar_lea.vmem %s52, 4
  %v151 = vld [vmem:[%s150] sm:$0xf]
  %v152 = vunpack.c.l.bf16 %v151
  %v153 = vpack.c.bf16 %v88, %v88
  %v158 = vunpack.c.l.b16 %v78
  %v159 = vunpack.c.l.b16 %v79
  %v160 = vunpack.c.l.b16 %v80
  %v161 = vunpack.c.l.b16 %v81
  %v162 = vpack.c.b16 %v159, %v158
  %v163 = vpack.c.b16 %v161, %v160
  %v167 = vsel %vm105, %v153, 0
  %169 = vmatprep.subr.bf16.mxu0 0
  %170 = vmatpush1.bf16.msra.mxu0 %v162
  %171 = vmatprep.subr.bf16.mxu0 0
  %172 = vmatpush1.bf16.msra.mxu0 %v163
  %173 = vmatprep.subr.bf16.mxu0 0
  %174 = vmatpush1.bf16.msra.mxu0 0
  %175 = vmatprep.subr.bf16.mxu0 0
  %176 = vmatpush1.bf16.msra.mxu0 0
  %177 = vmatprep.subr.bf16.mxu0 0
  %178 = vmatpush1.bf16.msra.mxu0 0
  %179 = vmatprep.subr.bf16.mxu0 0
  %180 = vmatpush1.bf16.msra.mxu0 0
  %181 = vmatprep.subr.bf16.mxu0 0
  %182 = vmatpush1.bf16.msra.mxu0 0
  %183 = vmatprep.subr.bf16.mxu0 0
  %184 = vmatpush1.bf16.msra.mxu0 0
  %185 = vmatprep.subr.bf16.mxu0 0
  %186 = vmatpush1.bf16.msra.mxu0 0
  %187 = vmatprep.subr.bf16.mxu0 0
  %188 = vmatpush1.bf16.msra.mxu0 0
  %189 = vmatprep.subr.bf16.mxu0 0
  %190 = vmatpush1.bf16.msra.mxu0 0
  %191 = vmatprep.subr.bf16.mxu0 0
  %192 = vmatpush1.bf16.msra.mxu0 0
  %193 = vmatprep.subr.bf16.mxu0 0
  %194 = vmatpush1.bf16.msra.mxu0 0
  %195 = vmatprep.subr.bf16.mxu0 0
  %196 = vmatpush1.bf16.msra.mxu0 0
  %197 = vmatprep.subr.bf16.mxu0 0
  %198 = vmatpush1.bf16.msra.mxu0 0
  %199 = vmatprep.subr.bf16.mxu0 0
  %200 = vmatpush1.bf16.msra.mxu0 0
  %201 = vmatprep.mubr.bf16.mxu0 0
  %202 = vmatmul.mubr.bf16.gmra.mrb[0].mxu0 %v167
  %v203 = vpop.f32.mrb[0].mxu0
  %v204 = vadd.f32 0.0, %v203
  %v205 = vpop.f32.mrb[0].mxu0
  %v206 = vpop.f32.mrb[0].mxu0
  %v207 = vpop.f32.mrb[0].mxu0
  %208 = vdwg.mxu0
  %v209 = vadd.f32 %v152, %v204
  %v210 = vxor.u32 %v149, 2147483648
  %v211 = vmul.f32 %v210, 1.442695
  %v212 = vpow.pop %v211
  %v213 = vadd.f32 %v212, 1.0
  %v214 = vrcp.pop %v213
  %v215 = vmul.f32 1.0, %v214
  %v216 = vtanh.pop %v149
  %218 = vrot.lane.b32.xlu0 %v87, 32
  %v219 = vpop.permute.xlu0 %218
  %v221 = vmul.f32 %v215, %v219
  %223 = vrot.lane.b32.xlu0 %v216, 32
  %v224 = vpop.permute.xlu0 %223
  %v226 = vmul.f32 %v215, %v224
  %228 = vrot.lane.b32.xlu0 %v226, 32
  %v229 = vpop.permute.xlu0 %228
  %v231 = vadd.f32 %v221, %v229
  %v232 = vtanh.pop %v231
  %234 = vrot.lane.b32.xlu0 %v232, 32
  %v235 = vpop.permute.xlu0 %234
  %v237 = vmul.f32 %v215, %v235
  %v238 = vstv %s83
  %vm239 = vcmp.gt.s32.totalorder %v82, %v238
  %v240 = vsel %vm239, 1, 0
  %241 = vset.pattern.permute.xlu0 0
  %242 = vperm.xlu0 %241, %v240
  %v243 = vpop.permute.xlu0 %242
  %vm244 = vcmp.eq.s32.totalorder %v243, 1
  %246 = vrot.lane.b32.xlu0 %v86, 64
  %v247 = vpop.permute.xlu0 %246
  %v249 = vsel %vm244, %v237, %v247
  %v250 = vsel %vm244, %v231, %v219
  %v251 = vsel %vm244, %v237, 0.0
  %s252 = sadd.s32 %s85, 1
  %v253 = vxor.u32 %v209, 2147483648
  %v254 = vmul.f32 %v253, 1.442695
  %v255 = vpow.pop %v254
  %v256 = vadd.f32 %v255, 1.0
  %v257 = vrcp.pop %v256
  %v258 = vmul.f32 1.0, %v257
  %v259 = vtanh.pop %v209
  %261 = vrot.lane.b32.xlu0 %v89, 32
  %v262 = vpop.permute.xlu0 %261
  %v264 = vmul.f32 %v258, %v262
  %266 = vrot.lane.b32.xlu0 %v259, 32
  %v267 = vpop.permute.xlu0 %266
  %v269 = vmul.f32 %v258, %v267
  %271 = vrot.lane.b32.xlu0 %v269, 32
  %v272 = vpop.permute.xlu0 %271
  %v274 = vadd.f32 %v264, %v272
  %v275 = vtanh.pop %v274
  %277 = vrot.lane.b32.xlu0 %v275, 32
  %v278 = vpop.permute.xlu0 %277
  %v280 = vmul.f32 %v258, %v278
  %v281 = vstv %s252
  %vm282 = vcmp.gt.s32.totalorder %v82, %v281
  %v283 = vsel %vm282, 1, 0
  %284 = vset.pattern.permute.xlu0 0
  %285 = vperm.xlu0 %284, %v283
  %v286 = vpop.permute.xlu0 %285
  %vm287 = vcmp.eq.s32.totalorder %v286, 1
  %289 = vrot.lane.b32.xlu0 %v88, 64
  %v290 = vpop.permute.xlu0 %289
  %v292 = vsel %vm287, %v280, %v290
  %v293 = vsel %vm287, %v274, %v262
  %v294 = vsel %vm287, %v280, 0.0
  %296 = vrot.lane.b32.xlu0 %v251, 64
  %v297 = vpop.permute.xlu0 %296
  %299 = vst.msk [vmem:[%s5] sm:$0xff] %vm105, %v297
  %301 = vrot.lane.b32.xlu0 %v294, 64
  %v302 = vpop.permute.xlu0 %301
  %s304 = scalar_lea.vmem %s61, 8
  %305 = vst.msk [vmem:[%s304] sm:$0xff] %vm105, %v302
  %s306 = scalar_lea.vmem %s0, 4
  %v307 = vld [vmem:[%s306] sm:$0xf]
  %v308 = vunpack.c.l.bf16 %v307
  %v309 = vpack.c.bf16 %v249, %v249
  %311 = vrot.lane.b32.xlu0 %v309, 64
  %v312 = vpop.permute.xlu0 %311
  %v314 = vsel %vm105, %v312, 0
  %316 = vmatprep.subr.bf16.mxu0 0
  %317 = vmatpush1.bf16.msra.mxu0 %v101
  %318 = vmatprep.subr.bf16.mxu0 0
  %319 = vmatpush1.bf16.msra.mxu0 %v102
  %320 = vmatprep.subr.bf16.mxu0 0
  %321 = vmatpush1.bf16.msra.mxu0 0
  %322 = vmatprep.subr.bf16.mxu0 0
  %323 = vmatpush1.bf16.msra.mxu0 0
  %324 = vmatprep.subr.bf16.mxu0 0
  %325 = vmatpush1.bf16.msra.mxu0 0
  %326 = vmatprep.subr.bf16.mxu0 0
  %327 = vmatpush1.bf16.msra.mxu0 0
  %328 = vmatprep.subr.bf16.mxu0 0
  %329 = vmatpush1.bf16.msra.mxu0 0
  %330 = vmatprep.subr.bf16.mxu0 0
  %331 = vmatpush1.bf16.msra.mxu0 0
  %332 = vmatprep.subr.bf16.mxu0 0
  %333 = vmatpush1.bf16.msra.mxu0 0
  %334 = vmatprep.subr.bf16.mxu0 0
  %335 = vmatpush1.bf16.msra.mxu0 0
  %336 = vmatprep.subr.bf16.mxu0 0
  %337 = vmatpush1.bf16.msra.mxu0 0
  %338 = vmatprep.subr.bf16.mxu0 0
  %339 = vmatpush1.bf16.msra.mxu0 0
  %340 = vmatprep.subr.bf16.mxu0 0
  %341 = vmatpush1.bf16.msra.mxu0 0
  %342 = vmatprep.subr.bf16.mxu0 0
  %343 = vmatpush1.bf16.msra.mxu0 0
  %344 = vmatprep.subr.bf16.mxu0 0
  %345 = vmatpush1.bf16.msra.mxu0 0
  %346 = vmatprep.subr.bf16.mxu0 0
  %347 = vmatpush1.bf16.msra.mxu0 0
  %348 = vmatprep.mubr.bf16.mxu0 0
  %349 = vmatmul.mubr.bf16.gmra.mrb[0].mxu0 %v314
  %v350 = vpop.f32.mrb[0].mxu0
  %v351 = vadd.f32 0.0, %v350
  %v352 = vpop.f32.mrb[0].mxu0
  %v353 = vpop.f32.mrb[0].mxu0
  %v354 = vpop.f32.mrb[0].mxu0
  %355 = vdwg.mxu0
  %v356 = vadd.f32 %v308, %v351
  %v357 = vld [vmem:[%s52] sm:$0xf]
  %v358 = vunpack.c.l.bf16 %v357
  %v359 = vpack.c.bf16 %v292, %v292
  %361 = vrot.lane.b32.xlu0 %v359, 64
  %v362 = vpop.permute.xlu0 %361
  %v364 = vsel %vm105, %v362, 0
  %366 = vmatprep.subr.bf16.mxu0 0
  %367 = vmatpush1.bf16.msra.mxu0 %v162
  %368 = vmatprep.subr.bf16.mxu0 0
  %369 = vmatpush1.bf16.msra.mxu0 %v163
  %370 = vmatprep.subr.bf16.mxu0 0
  %371 = vmatpush1.bf16.msra.mxu0 0
  %372 = vmatprep.subr.bf16.mxu0 0
  %373 = vmatpush1.bf16.msra.mxu0 0
  %374 = vmatprep.subr.bf16.mxu0 0
  %375 = vmatpush1.bf16.msra.mxu0 0
  %376 = vmatprep.subr.bf16.mxu0 0
  %377 = vmatpush1.bf16.msra.mxu0 0
  %378 = vmatprep.subr.bf16.mxu0 0
  %379 = vmatpush1.bf16.msra.mxu0 0
  %380 = vmatprep.subr.bf16.mxu0 0
  %381 = vmatpush1.bf16.msra.mxu0 0
  %382 = vmatprep.subr.bf16.mxu0 0
  %383 = vmatpush1.bf16.msra.mxu0 0
  %384 = vmatprep.subr.bf16.mxu0 0
  %385 = vmatpush1.bf16.msra.mxu0 0
  %386 = vmatprep.subr.bf16.mxu0 0
  %387 = vmatpush1.bf16.msra.mxu0 0
  %388 = vmatprep.subr.bf16.mxu0 0
  %389 = vmatpush1.bf16.msra.mxu0 0
  %390 = vmatprep.subr.bf16.mxu0 0
  %391 = vmatpush1.bf16.msra.mxu0 0
  %392 = vmatprep.subr.bf16.mxu0 0
  %393 = vmatpush1.bf16.msra.mxu0 0
  %394 = vmatprep.subr.bf16.mxu0 0
  %395 = vmatpush1.bf16.msra.mxu0 0
  %396 = vmatprep.subr.bf16.mxu0 0
  %397 = vmatpush1.bf16.msra.mxu0 0
  %398 = vmatprep.mubr.bf16.mxu0 0
  %399 = vmatmul.mubr.bf16.gmra.mrb[0].mxu0 %v364
  %v400 = vpop.f32.mrb[0].mxu0
  %v401 = vadd.f32 0.0, %v400
  %v402 = vpop.f32.mrb[0].mxu0
  %v403 = vpop.f32.mrb[0].mxu0
  %v404 = vpop.f32.mrb[0].mxu0
  %405 = vdwg.mxu0
  %v406 = vadd.f32 %v358, %v401
  %s407 = sadd.s32 %s83, 1
  %v408 = vxor.u32 %v356, 2147483648
  %v409 = vmul.f32 %v408, 1.442695
  %v410 = vpow.pop %v409
  %v411 = vadd.f32 %v410, 1.0
  %v412 = vrcp.pop %v411
  %v413 = vmul.f32 1.0, %v412
  %v414 = vtanh.pop %v356
  %v415 = vmul.f32 %v413, %v250
  %417 = vrot.lane.b32.xlu0 %v414, 32
  %v418 = vpop.permute.xlu0 %417
  %v420 = vmul.f32 %v413, %v418
  %422 = vrot.lane.b32.xlu0 %v420, 32
  %v423 = vpop.permute.xlu0 %422
  %v425 = vadd.f32 %v415, %v423
  %v426 = vtanh.pop %v425
  %428 = vrot.lane.b32.xlu0 %v426, 32
  %v429 = vpop.permute.xlu0 %428
  %v431 = vmul.f32 %v413, %v429
  %v432 = vstv %s407
  %vm433 = vcmp.gt.s32.totalorder %v82, %v432
  %v434 = vsel %vm433, 1, 0
  %435 = vset.pattern.permute.xlu0 0
  %436 = vperm.xlu0 %435, %v434
  %v437 = vpop.permute.xlu0 %436
  %vm438 = vcmp.eq.s32.totalorder %v437, 1
  %v439 = vsel %vm438, %v431, %v249
  %v440 = vsel %vm438, %v425, %v250
  %v441 = vsel %vm438, %v431, 0.0
  %v442 = vxor.u32 %v406, 2147483648
  %v443 = vmul.f32 %v442, 1.442695
  %v444 = vpow.pop %v443
  %v445 = vadd.f32 %v444, 1.0
  %v446 = vrcp.pop %v445
  %v447 = vmul.f32 1.0, %v446
  %v448 = vtanh.pop %v406
  %v449 = vmul.f32 %v447, %v293
  %451 = vrot.lane.b32.xlu0 %v448, 32
  %v452 = vpop.permute.xlu0 %451
  %v454 = vmul.f32 %v447, %v452
  %456 = vrot.lane.b32.xlu0 %v454, 32
  %v457 = vpop.permute.xlu0 %456
  %v459 = vadd.f32 %v449, %v457
  %v460 = vtanh.pop %v459
  %462 = vrot.lane.b32.xlu0 %v460, 32
  %v463 = vpop.permute.xlu0 %462
  %v465 = vmul.f32 %v447, %v463
  %v466 = vstv %s85
  %vm467 = vcmp.gt.s32.totalorder %v82, %v466
  %v468 = vsel %vm467, 1, 0
  %469 = vset.pattern.permute.xlu0 0
  %470 = vperm.xlu0 %469, %v468
  %v471 = vpop.permute.xlu0 %470
  %vm472 = vcmp.eq.s32.totalorder %v471, 1
  %v473 = vsel %vm472, %v465, %v292
  %v474 = vsel %vm472, %v459, %v293
  %v475 = vsel %vm472, %v465, 0.0
  %477 = vrot.lane.b32.xlu0 %v441, 64
  %v478 = vpop.permute.xlu0 %477
  %s480 = scalar_lea.vmem %s5, 8
  %481 = vst.msk [vmem:[%s480] sm:$0xff] %vm105, %v478
  %483 = vrot.lane.b32.xlu0 %v475, 64
  %v484 = vpop.permute.xlu0 %483
  %486 = vst.msk [vmem:[%s61] sm:$0xff] %vm105, %v484
  %488 = vrot.lane.b32.xlu0 %v439, 64
  %v489 = vpop.permute.xlu0 %488
  %491 = vst.msk [vmem:[#allocation2] sm:$0xff] %vm105, %v489
  %493 = vrot.lane.b32.xlu0 %v440, 96
  %v494 = vpop.permute.xlu0 %493
  %496 = vst.msk [vmem:[#allocation3] sm:$0xff] %vm105, %v494
  %498 = vrot.lane.b32.xlu0 %v473, 64
  %v499 = vpop.permute.xlu0 %498
  %501 = vst.msk [vmem:[#allocation4] sm:$0xff] %vm105, %v499
  %503 = vrot.lane.b32.xlu0 %v474, 96
  %v504 = vpop.permute.xlu0 %503
  %506 = vst.msk [vmem:[#allocation5] sm:$0xff] %vm105, %v504
  %s507 = ssub.s32 0, 0
  %s508 = smul.u32 2, %s507
  %p509 = scmp.lt.s32.totalorder %s508, 1
  %s510 = scalar_select %p509, %s508, 1
  %s511 = smul.addr %s510, 8
  %s512 = scalar_lea.vmem %s6, %s511
  // Predicated region
  $region26: #{_lambda_.16} parent=0 // pred_check
    _
  $region27: #{_lambda_.16} parent=0 // pred_check_branch
    %514 = sbr.rel (0) target = $region29
  $region28: #{_lambda_.16} parent=0 // pred_region
    _
  $region29: #{_lambda_.16} parent=0 // pred_fallthru
    _
  // Predicated region
  $region30: #{_lambda_.16} parent=0 // pred_check
    _
  $region31: #{_lambda_.16} parent=0 // pred_check_branch
    %516 = sbr.rel (0) target = $region33
  $region32: #{_lambda_.16} parent=0 // pred_region
    %s517 = ssub.s32 0, 0
    %s518 = smul.u32 2, %s517
  $region33: #{_lambda_.16} parent=0 // pred_fallthru
    _
  // Predicated region
  $region34: #{_lambda_.16} parent=0 // pred_check
    _
  $region35: #{_lambda_.16} parent=0 // pred_check_branch
    %520 = sbr.rel (0) target = $region37
  $region36: #{_lambda_.16} parent=0 // pred_region
    _
  $region37: #{_lambda_.16} parent=0 // pred_fallthru
    _
  // Predicated region
  $region38: #{_lambda_.16} parent=0 // pred_check
    _
  $region39: #{_lambda_.16} parent=0 // pred_check_branch
    %522 = sbr.rel (0) target = $region41
  $region40: #{_lambda_.16} parent=0 // pred_region
    %s523 = ssub.s32 0, 0
    %s524 = smul.u32 2, %s523
    %p525 = scmp.lt.s32.totalorder %s524, 1
    %s526 = scalar_select %p525, %s524, 1
    %s527 = smul.addr %s526, 8
    %s528 = scalar_lea.vmem %s6, %s527
  $region41: #{_lambda_.16} parent=0 // pred_fallthru
    _

</llo_original>
